<compile_context>
chip_gen: v6e
topology: v6e:2x2x1
jax: 0.10.0
libtpu: 0.0.40
codegen_flags: <defaults>
</compile_context>

<pallas_src>
import jax
import jax.numpy as jnp
from jax.experimental import pallas as pl
from jax.experimental.pallas import tpu as pltpu

D_MODEL = 1024
OUTPUT_DIM = 3
N_LAYERS = 3
IN_DIM = 10 * 10          # 100
IN_PAD = 128              # lane-clean K for the first matmul (zero-padded)
OUT_PAD = 128             # lane-dense output tile (sliced to 3 in the wrapper)
MAX_TILE_B = 512          # max batch tile (amortizes per-step overhead, fills MXU)


def _single_buffered():
    # Constant-index blocks are DMA'd once and stay resident; no double buffer.
    return pl.Buffered(buffer_count=1)


def _round_up(n, m):
    return ((n + m - 1) // m) * m


# ----------------------------------------------------------------------------
# Kernel 1: resident weights (large-batch regime). Grid = (batch tiles,).
# ----------------------------------------------------------------------------
def _mlp_resident_kernel(x_ref, wp_ref, bp_ref, wl_ref, bl_ref, wo_ref, bo_ref,
                         out_ref):
    # x:(TB,128) bf16  wp:(128,1024) bf16  bp:(1,1024) f32
    # wl:(3,1024,1024) bf16  bl:(3,1,1024) f32  wo:(1024,128) bf16  bo:(1,128) f32
    h = jnp.dot(x_ref[...], wp_ref[...],
                preferred_element_type=jnp.float32) + bp_ref[...]
    h = jnp.maximum(h, 0.0).astype(jnp.bfloat16)          # ReLU fused with bf16 cast
    for i in range(N_LAYERS):
        h = jnp.dot(h, wl_ref[i],
                    preferred_element_type=jnp.float32) + bl_ref[i]
        h = jnp.maximum(h, 0.0).astype(jnp.bfloat16)
        # dropout(0.15): identity at inference
    o = jnp.dot(h, wo_ref[...],
                preferred_element_type=jnp.float32) + bo_ref[...]
    out_ref[...] = jnp.maximum(o, 0.0).astype(out_ref.dtype)   # final ReLU (per spec)


# ----------------------------------------------------------------------------
# Kernel 2: streamed per-layer weights (small-batch regime).
# Grid = (batch tiles, N_LAYERS); hidden activations kept in bf16 VMEM scratch.
# ----------------------------------------------------------------------------
def _mlp_stream_kernel(x_ref, wp_ref, bp_ref, wl_ref, bl_ref, wo_ref, bo_ref,
                       out_ref, h_ref):
    l = pl.program_id(1)

    @pl.when(l == 0)
    def _():
        h0 = jnp.dot(x_ref[...], wp_ref[...],
                     preferred_element_type=jnp.float32) + bp_ref[...]
        h_ref[...] = jnp.maximum(h0, 0.0).astype(h_ref.dtype)

    # One streamed hidden layer per grid step; its 2 MiB weight DMA overlaps
    # the previous step's matmul via the default double-buffered pipeline.
    h = jnp.dot(h_ref[...], wl_ref[0],
                preferred_element_type=jnp.float32) + bl_ref[0]
    h_ref[...] = jnp.maximum(h, 0.0).astype(h_ref.dtype)
    # dropout(0.15): identity at inference

    @pl.when(l == pl.num_programs(1) - 1)
    def _():
        o = jnp.dot(h_ref[...], wo_ref[...],
                    preferred_element_type=jnp.float32) + bo_ref[...]
        out_ref[...] = jnp.maximum(o, 0.0).astype(out_ref.dtype)


# ----------------------------------------------------------------------------
# Wrapper
# ----------------------------------------------------------------------------
def mlp_forward(x, params, mode="auto"):
    """x: (B, 10, 10) -> (weight, offset_1, offset_2), each (B,) float32."""
    B = x.shape[0]
    x_flat = x.reshape(B, -1).astype(jnp.bfloat16)                # (B, 100) bf16
    x_flat = jnp.pad(x_flat, ((0, 0), (0, IN_PAD - IN_DIM)))      # (B, 128)
    b128 = _round_up(B, 128)

    if mode == "auto":
        # <= one 512-row tile of work -> weight-DMA-bound -> stream layer weights.
        mode = "stream" if b128 <= MAX_TILE_B else "resident"

    if mode == "stream":
        tile_b = min(b128, MAX_TILE_B)
    else:
        # Up to 512 rows/tile, but keep >= 2 tiles so both v7x TCs get work.
        n128 = b128 // 128
        tile_b = 128 * min(MAX_TILE_B // 128, max(1, (n128 + 1) // 2))

    n_tiles = pl.cdiv(B, tile_b)
    b_pad = n_tiles * tile_b
    if b_pad != B:
        x_flat = jnp.pad(x_flat, ((0, b_pad - B), (0, 0)))

    # bf16 weights (f32 masters stay in params), f32 biases.
    wp = params["w_proj"].astype(jnp.bfloat16)
    wl = params["w_layers"].astype(jnp.bfloat16)
    wo = params["w_out"].astype(jnp.bfloat16)
    bp, bl, bo = params["b_proj"], params["b_layers"], params["b_out"]

    cparams = pltpu.CompilerParams(
        dimension_semantics=(("parallel",) if mode == "resident"
                             else ("parallel", "arbitrary")),
        vmem_limit_bytes=48 * 1024 * 1024,   # safe on v5e/v6e (128 MiB) and v7x (64 MiB)
    )

    if mode == "resident":
        out = pl.pallas_call(
            _mlp_resident_kernel,
            out_shape=jax.ShapeDtypeStruct((b_pad, OUT_PAD), jnp.bfloat16),
            grid=(n_tiles,),
            in_specs=[
                pl.BlockSpec((tile_b, IN_PAD), lambda i: (i, 0)),
                pl.BlockSpec((IN_PAD, D_MODEL), lambda i: (0, 0),
                             pipeline_mode=_single_buffered()),
                pl.BlockSpec((1, D_MODEL), lambda i: (0, 0),
                             pipeline_mode=_single_buffered()),
                pl.BlockSpec((N_LAYERS, D_MODEL, D_MODEL), lambda i: (0, 0, 0),
                             pipeline_mode=_single_buffered()),
                pl.BlockSpec((N_LAYERS, 1, D_MODEL), lambda i: (0, 0, 0),
                             pipeline_mode=_single_buffered()),
                pl.BlockSpec((D_MODEL, OUT_PAD), lambda i: (0, 0),
                             pipeline_mode=_single_buffered()),
                pl.BlockSpec((1, OUT_PAD), lambda i: (0, 0),
                             pipeline_mode=_single_buffered()),
            ],
            out_specs=pl.BlockSpec((tile_b, OUT_PAD), lambda i: (i, 0)),
            compiler_params=cparams,
        )(x_flat, wp, bp, wl, bl, wo, bo)
    else:
        out = pl.pallas_call(
            _mlp_stream_kernel,
            out_shape=jax.ShapeDtypeStruct((b_pad, OUT_PAD), jnp.bfloat16),
            grid=(n_tiles, N_LAYERS),
            in_specs=[
                pl.BlockSpec((tile_b, IN_PAD), lambda i, l: (i, 0)),
                pl.BlockSpec((IN_PAD, D_MODEL), lambda i, l: (0, 0),
                             pipeline_mode=_single_buffered()),
                pl.BlockSpec((1, D_MODEL), lambda i, l: (0, 0),
                             pipeline_mode=_single_buffered()),
                pl.BlockSpec((1, D_MODEL, D_MODEL), lambda i, l: (l, 0, 0)),  # streamed
                pl.BlockSpec((1, 1, D_MODEL), lambda i, l: (l, 0, 0)),        # streamed
                pl.BlockSpec((D_MODEL, OUT_PAD), lambda i, l: (0, 0),
                             pipeline_mode=_single_buffered()),
                pl.BlockSpec((1, OUT_PAD), lambda i, l: (0, 0),
                             pipeline_mode=_single_buffered()),
            ],
            out_specs=pl.BlockSpec((tile_b, OUT_PAD), lambda i, l: (i, 0)),
            scratch_shapes=[pltpu.VMEM((tile_b, D_MODEL), jnp.bfloat16)],
            compiler_params=cparams,
        )(x_flat, wp, bp, wl, bl, wo, bo)

    o = out[:B, :OUTPUT_DIM].astype(jnp.float32)
    return o[:, 0], o[:, 1], o[:, 2]


# ----------------------------------------------------------------------------
# References
# ----------------------------------------------------------------------------
def _reference_bf16(x, params):
    """Pure-JAX reference using the kernel's bf16-weight / f32-accum math."""
    B = x.shape[0]
    h = x.reshape(B, -1).astype(jnp.bfloat16)
    h = jnp.pad(h, ((0, 0), (0, IN_PAD - IN_DIM)))
    h = jnp.dot(h, params["w_proj"].astype(jnp.bfloat16),
                preferred_element_type=jnp.float32) + params["b_proj"]
    h = jnp.maximum(h, 0.0).astype(jnp.bfloat16)
    for i in range(N_LAYERS):
        h = jnp.dot(h, params["w_layers"][i].astype(jnp.bfloat16),
                    preferred_element_type=jnp.float32) + params["b_layers"][i]
        h = jnp.maximum(h, 0.0).astype(jnp.bfloat16)
    o = jnp.dot(h, params["w_out"].astype(jnp.bfloat16),
                preferred_element_type=jnp.float32) + params["b_out"]
    o = jnp.maximum(o, 0.0).astype(jnp.bfloat16).astype(jnp.float32)
    return o[:, 0], o[:, 1], o[:, 2]


def _reference_f32(x, params):
    """Full-f32 reference of the original module (drift check vs bf16 kernel)."""
    B = x.shape[0]
    h = x.reshape(B, -1).astype(jnp.float32)
    h = jnp.pad(h, ((0, 0), (0, IN_PAD - IN_DIM)))
    h = jnp.maximum(h @ params["w_proj"] + params["b_proj"], 0.0)
    for i in range(N_LAYERS):
        h = jnp.maximum(h @ params["w_layers"][i] + params["b_layers"][i], 0.0)
    o = jnp.maximum(h @ params["w_out"] + params["b_out"], 0.0)
    return o[:, 0], o[:, 1], o[:, 2]


def init_params(key):
    """Mimic the PyTorch module's init; weights stored (in, out) so y = x @ W + b."""
    k_pw, k_pb, k_lin, k_ow, k_ob = jax.random.split(key, 5)

    # projection: nn.Linear default init U(-1/sqrt(fan_in), 1/sqrt(fan_in)).
    bound = 1.0 / (IN_DIM ** 0.5)
    w_proj = jax.random.uniform(k_pw, (IN_DIM, D_MODEL), jnp.float32, -bound, bound)
    w_proj = jnp.pad(w_proj, ((0, IN_PAD - IN_DIM), (0, 0)))   # zero rows for padded K
    b_proj = jax.random.uniform(k_pb, (1, D_MODEL), jnp.float32, -bound, bound)

    # 3 hidden linears: kaiming_normal_ weights (std = sqrt(2/fan_in)), zero bias.
    std = (2.0 / D_MODEL) ** 0.5
    w_layers = std * jax.random.normal(k_lin, (N_LAYERS, D_MODEL, D_MODEL), jnp.float32)
    b_layers = jnp.zeros((N_LAYERS, 1, D_MODEL), jnp.float32)

    # out: xavier_uniform_ weight, default Linear bias init; pad head to 128 cols.
    xav = (6.0 / (D_MODEL + OUTPUT_DIM)) ** 0.5
    w_out = jax.random.uniform(k_ow, (D_MODEL, OUTPUT_DIM), jnp.float32, -xav, xav)
    w_out = jnp.pad(w_out, ((0, 0), (0, OUT_PAD - OUTPUT_DIM)))
    ob = 1.0 / (D_MODEL ** 0.5)
    b_out = jax.random.uniform(k_ob, (1, OUTPUT_DIM), jnp.float32, -ob, ob)
    b_out = jnp.pad(b_out, ((0, 0), (0, OUT_PAD - OUTPUT_DIM)))

    return {
        "w_proj": w_proj, "b_proj": b_proj,
        "w_layers": w_layers, "b_layers": b_layers,
        "w_out": w_out, "b_out": b_out,
    }


def _check(outs, x, params):
    w, o1, o2 = outs
    B = x.shape[0]
    assert w.shape == (B,) and o1.shape == (B,) and o2.shape == (B,)
    for v in (w, o1, o2):
        assert bool(jnp.all(jnp.isfinite(v)))
        assert bool(jnp.all(v >= 0.0))          # final ReLU (present in the spec)
    rw, r1, r2 = _reference_bf16(x, params)     # same-math reference (tight)
    assert bool(jnp.allclose(w, rw, rtol=2e-2, atol=2e-2))
    assert bool(jnp.allclose(o1, r1, rtol=2e-2, atol=2e-2))
    assert bool(jnp.allclose(o2, r2, rtol=2e-2, atol=2e-2))
    fw, f1, f2 = _reference_f32(x, params)      # f32-model drift bound (loose)
    assert bool(jnp.allclose(w, fw, rtol=1e-1, atol=1e-1))
    assert bool(jnp.allclose(o1, f1, rtol=1e-1, atol=1e-1))
    assert bool(jnp.allclose(o2, f2, rtol=1e-1, atol=1e-1))


if __name__ == "__main__":
    key = jax.random.PRNGKey(0)
    pkey, xkey = jax.random.split(key)
    params = init_params(pkey)

    fwd = jax.jit(mlp_forward, static_argnames=("mode",))

    # 1) Small batch -> auto picks the streamed-weights path (grid (1, 3)).
    B1 = 4
    x1 = jax.random.normal(xkey, (B1, 10, 10), jnp.float32)
    outs1 = jax.block_until_ready(fwd(x1, params))
    _check(outs1, x1, params)

    # 2) Force the resident-weights path with >1 batch tile and batch padding
    #    (validates multi-tile pipeline + padding path).
    B2 = 200
    x2 = jax.random.normal(jax.random.fold_in(xkey, 1), (B2, 10, 10), jnp.float32)
    outs2 = jax.block_until_ready(fwd(x2, params, mode="resident"))
    _check(outs2, x2, params)

    print("KERNEL_OK")
</pallas_src>

<mosaic_0001>
module attributes {stable_mosaic.version = 11 : i64} {
  func.func @_mlp_stream_kernel(%arg0: i32, %arg1: i32, %arg2: memref<128x128xbf16, #tpu.memory_space<vmem>>, %arg3: memref<128x1024xbf16, #tpu.memory_space<vmem>>, %arg4: memref<1x1024xf32, #tpu.memory_space<vmem>>, %arg5: memref<1x1024x1024xbf16, #tpu.memory_space<vmem>>, %arg6: memref<1x1x1024xf32, #tpu.memory_space<vmem>>, %arg7: memref<1024x128xbf16, #tpu.memory_space<vmem>>, %arg8: memref<1x128xf32, #tpu.memory_space<vmem>>, %arg9: memref<128x128xbf16, #tpu.memory_space<vmem>>, %arg10: memref<128x1024xbf16, #tpu.memory_space<vmem>>) attributes {dimension_semantics = [#tpu.dimension_semantics<parallel>, #tpu.dimension_semantics<arbitrary>], iteration_bounds = array<i64: 1, 3>, scalar_prefetch = 0 : i64, scratch_operands = 1 : i64, tpu.core_type = #tpu.core_type<tc>, window_params = [{transform_indices = @transform_0, window_bounds = array<i64: 128, 128>}, {pipeline_mode = #tpu.pipeline_mode<synchronous>, transform_indices = @transform_1, window_bounds = array<i64: 128, 1024>}, {pipeline_mode = #tpu.pipeline_mode<synchronous>, transform_indices = @transform_2, window_bounds = array<i64: 1, 1024>}, {transform_indices = @transform_3, window_bounds = array<i64: 1, 1024, 1024>}, {transform_indices = @transform_4, window_bounds = array<i64: 1, 1, 1024>}, {pipeline_mode = #tpu.pipeline_mode<synchronous>, transform_indices = @transform_5, window_bounds = array<i64: 1024, 128>}, {pipeline_mode = #tpu.pipeline_mode<synchronous>, transform_indices = @transform_6, window_bounds = array<i64: 1, 128>}, {transform_indices = @transform_7, window_bounds = array<i64: 128, 128>}]} {
    %c0_i32 = arith.constant 0 : i32
    %0 = arith.cmpi eq, %arg1, %c0_i32 : i32
    %1 = arith.extui %0 : i1 to i32
    %c0_i32_0 = arith.constant 0 : i32
    %2 = arith.cmpi ne, %1, %c0_i32_0 : i32
    scf.if %2 {
      %c0_12 = arith.constant 0 : index
      %c0_13 = arith.constant 0 : index
      %18 = vector.load %arg2[%c0_12, %c0_13] : memref<128x128xbf16, #tpu.memory_space<vmem>>, vector<128x128xbf16>
      %c0_14 = arith.constant 0 : index
      %c0_15 = arith.constant 0 : index
      %19 = vector.load %arg3[%c0_14, %c0_15] : memref<128x1024xbf16, #tpu.memory_space<vmem>>, vector<128x1024xbf16>
      %cst_16 = arith.constant dense<0.000000e+00> : vector<128x1024xf32>
      %20 = tpu.matmul %18, %19, %cst_16 {dimension_numbers = #tpu.dot_dimension_numbers<[1], [0], [0], [1], [0, 0, 1, 1], [], []>} : vector<128x128xbf16>, vector<128x1024xbf16>, vector<128x1024xf32> -> vector<128x1024xf32>
      %c0_17 = arith.constant 0 : index
      %c0_18 = arith.constant 0 : index
      %21 = vector.load %arg4[%c0_17, %c0_18] : memref<1x1024xf32, #tpu.memory_space<vmem>>, vector<1x1024xf32>
      %22 = vector.broadcast %21 : vector<1x1024xf32> to vector<128x1024xf32>
      %23 = arith.addf %20, %22 : vector<128x1024xf32>
      %cst_19 = arith.constant 0.000000e+00 : f32
      %24 = vector.broadcast %cst_19 : f32 to vector<128x1024xf32>
      %25 = arith.maximumf %23, %24 : vector<128x1024xf32>
      %26 = arith.truncf %25 : vector<128x1024xf32> to vector<128x1024xbf16>
      %c0_20 = arith.constant 0 : index
      %c0_21 = arith.constant 0 : index
      %27 = vector.load %arg10[%c0_20, %c0_21] : memref<128x1024xbf16, #tpu.memory_space<vmem>>, vector<128x1024xbf16>
      tpu.vector_store %arg10[%c0_20, %c0_21], %26 {strides = array<i32>} : memref<128x1024xbf16, #tpu.memory_space<vmem>>, vector<128x1024xbf16>,
    } else {
    }
    %c0 = arith.constant 0 : index
    %c0_1 = arith.constant 0 : index
    %3 = vector.load %arg10[%c0, %c0_1] : memref<128x1024xbf16, #tpu.memory_space<vmem>>, vector<128x1024xbf16>
    %c0_2 = arith.constant 0 : index
    %c0_3 = arith.constant 0 : index
    %c0_4 = arith.constant 0 : index
    %4 = vector.load %arg5[%c0_2, %c0_3, %c0_4] : memref<1x1024x1024xbf16, #tpu.memory_space<vmem>>, vector<1x1024x1024xbf16>
    %5 = vector.shape_cast %4 : vector<1x1024x1024xbf16> to vector<1024x1024xbf16>
    %cst = arith.constant dense<0.000000e+00> : vector<128x1024xf32>
    %6 = tpu.matmul %3, %5, %cst {dimension_numbers = #tpu.dot_dimension_numbers<[1], [0], [0], [1], [0, 0, 1, 1], [], []>} : vector<128x1024xbf16>, vector<1024x1024xbf16>, vector<128x1024xf32> -> vector<128x1024xf32>
    %c0_5 = arith.constant 0 : index
    %c0_6 = arith.constant 0 : index
    %c0_7 = arith.constant 0 : index
    %7 = vector.load %arg6[%c0_5, %c0_6, %c0_7] : memref<1x1x1024xf32, #tpu.memory_space<vmem>>, vector<1x1x1024xf32>
    %8 = vector.shape_cast %7 : vector<1x1x1024xf32> to vector<1x1024xf32>
    %9 = vector.broadcast %8 : vector<1x1024xf32> to vector<128x1024xf32>
    %10 = arith.addf %6, %9 : vector<128x1024xf32>
    %cst_8 = arith.constant 0.000000e+00 : f32
    %11 = vector.broadcast %cst_8 : f32 to vector<128x1024xf32>
    %12 = arith.maximumf %10, %11 : vector<128x1024xf32>
    %13 = arith.truncf %12 : vector<128x1024xf32> to vector<128x1024xbf16>
    %c0_9 = arith.constant 0 : index
    %c0_10 = arith.constant 0 : index
    %14 = vector.load %arg10[%c0_9, %c0_10] : memref<128x1024xbf16, #tpu.memory_space<vmem>>, vector<128x1024xbf16>
    tpu.vector_store %arg10[%c0_9, %c0_10], %13 {strides = array<i32>} : memref<128x1024xbf16, #tpu.memory_space<vmem>>, vector<128x1024xbf16>,
    %c2_i32 = arith.constant 2 : i32
    %15 = arith.cmpi eq, %arg1, %c2_i32 : i32
    %16 = arith.extui %15 : i1 to i32
    %c0_i32_11 = arith.constant 0 : i32
    %17 = arith.cmpi ne, %16, %c0_i32_11 : i32
    scf.if %17 {
      %c0_12 = arith.constant 0 : index
      %c0_13 = arith.constant 0 : index
      %18 = vector.load %arg10[%c0_12, %c0_13] : memref<128x1024xbf16, #tpu.memory_space<vmem>>, vector<128x1024xbf16>
      %c0_14 = arith.constant 0 : index
      %c0_15 = arith.constant 0 : index
      %19 = vector.load %arg7[%c0_14, %c0_15] : memref<1024x128xbf16, #tpu.memory_space<vmem>>, vector<1024x128xbf16>
      %cst_16 = arith.constant dense<0.000000e+00> : vector<128x128xf32>
      %20 = tpu.matmul %18, %19, %cst_16 {dimension_numbers = #tpu.dot_dimension_numbers<[1], [0], [0], [1], [0, 0, 1, 1], [], []>} : vector<128x1024xbf16>, vector<1024x128xbf16>, vector<128x128xf32> -> vector<128x128xf32>
      %c0_17 = arith.constant 0 : index
      %c0_18 = arith.constant 0 : index
      %21 = vector.load %arg8[%c0_17, %c0_18] : memref<1x128xf32, #tpu.memory_space<vmem>>, vector<1x128xf32>
      %22 = vector.broadcast %21 : vector<1x128xf32> to vector<128x128xf32>
      %23 = arith.addf %20, %22 : vector<128x128xf32>
      %cst_19 = arith.constant 0.000000e+00 : f32
      %24 = vector.broadcast %cst_19 : f32 to vector<128x128xf32>
      %25 = arith.maximumf %23, %24 : vector<128x128xf32>
      %26 = arith.truncf %25 : vector<128x128xf32> to vector<128x128xbf16>
      %c0_20 = arith.constant 0 : index
      %c0_21 = arith.constant 0 : index
      %27 = vector.load %arg9[%c0_20, %c0_21] : memref<128x128xbf16, #tpu.memory_space<vmem>>, vector<128x128xbf16>
      tpu.vector_store %arg9[%c0_20, %c0_21], %26 {strides = array<i32>} : memref<128x128xbf16, #tpu.memory_space<vmem>>, vector<128x128xbf16>,
    } else {
    }
    return
  }
  func.func @transform_0(%arg0: i32, %arg1: i32) -> (i32, i32) {
    %c0_i32 = arith.constant 0 : i32
    %c0_i32_0 = arith.constant 0 : i32
    return %arg0, %c0_i32 : i32, i32
  }
  func.func @transform_1(%arg0: i32, %arg1: i32) -> (i32, i32) {
    %c0_i32 = arith.constant 0 : i32
    %c0_i32_0 = arith.constant 0 : i32
    %c0_i32_1 = arith.constant 0 : i32
    return %c0_i32, %c0_i32_0 : i32, i32
  }
  func.func @transform_2(%arg0: i32, %arg1: i32) -> (i32, i32) {
    %c0_i32 = arith.constant 0 : i32
    %c0_i32_0 = arith.constant 0 : i32
    %c0_i32_1 = arith.constant 0 : i32
    return %c0_i32, %c0_i32_0 : i32, i32
  }
  func.func @transform_3(%arg0: i32, %arg1: i32) -> (i32, i32, i32) {
    %c0_i32 = arith.constant 0 : i32
    %c0_i32_0 = arith.constant 0 : i32
    %c0_i32_1 = arith.constant 0 : i32
    return %arg1, %c0_i32, %c0_i32_0 : i32, i32, i32
  }
  func.func @transform_4(%arg0: i32, %arg1: i32) -> (i32, i32, i32) {
    %c0_i32 = arith.constant 0 : i32
    %c0_i32_0 = arith.constant 0 : i32
    %c0_i32_1 = arith.constant 0 : i32
    return %arg1, %c0_i32, %c0_i32_0 : i32, i32, i32
  }
  func.func @transform_5(%arg0: i32, %arg1: i32) -> (i32, i32) {
    %c0_i32 = arith.constant 0 : i32
    %c0_i32_0 = arith.constant 0 : i32
    %c0_i32_1 = arith.constant 0 : i32
    return %c0_i32, %c0_i32_0 : i32, i32
  }
  func.func @transform_6(%arg0: i32, %arg1: i32) -> (i32, i32) {
    %c0_i32 = arith.constant 0 : i32
    %c0_i32_0 = arith.constant 0 : i32
    %c0_i32_1 = arith.constant 0 : i32
    return %c0_i32, %c0_i32_0 : i32, i32
  }
  func.func @transform_7(%arg0: i32, %arg1: i32) -> (i32, i32) {
    %c0_i32 = arith.constant 0 : i32
    %c0_i32_0 = arith.constant 0 : i32
    return %arg0, %c0_i32 : i32, i32
  }
}

</mosaic_0001>

<llo_original>
// kernel: mlp_forward.1
$region0: #{mlp_forward.1}
  #allocation0 [shape = 'u32[]', space=smem, size = 0x4, offset = 0x4, fixed_abs, tag = 'smem constant byte address 0x4 - core index']
  #allocation1 [shape = 'u32[144,128]{1,0:T(1,128)}', space=vmem, size = 0x12000, scoped, tag = 'internal scratch']
  #allocation2 [shape = 'bf16[128,1024]{1,0:T(8,128)(2,1)}', space=vmem, size = 0x40000, scoped, tag = 'scratch operand']
  %s0 = inlined_call_operand.vmem [shape: bf16[128,128], index: 0, kind: input, shape index: {}]
  %s1 = inlined_call_operand.vmem [shape: bf16[128,1024], index: 1, kind: input, shape index: {}]
  %s2 = inlined_call_operand.vmem [shape: f32[1,1024], index: 2, kind: input, shape index: {}]
  %s3 = inlined_call_operand.vmem [shape: bf16[3,1024,1024], index: 3, kind: input, shape index: {}]
  %s4 = inlined_call_operand.vmem [shape: f32[3,1,1024], index: 4, kind: input, shape index: {}]
  %s5 = inlined_call_operand.vmem [shape: bf16[1024,128], index: 5, kind: input, shape index: {}]
  %s6 = inlined_call_operand.vmem [shape: f32[1,128], index: 6, kind: input, shape index: {}]
  %s7 = inlined_call_operand.vmem [shape: bf16[128,128], index: 7, kind: output, shape index: {}]
  %s8 = sld [smem:[#allocation0]]
  $region69: #{mlp_forward.1} parent=0
    _
  %s10 = ssub.s32 1, %s8
  %s11 = scalar_select 0, %s10, %s8
  loop: start=0, step=1, limit=5
  $region2: #{mlp_forward.1} parent=0 // loop_pre_header
    _
  $region3: #{mlp_forward.1} parent=0 // loop_header
    %s13 = sphi 0, %s17
    %p14 = scmp.ge.s32.totalorder %s13, 5
    %s20 = sphi 0, %s32
    %s21 = sphi 0, %s28
    %s22 = sphi 0, %s20
    %s23 = sphi 0, %s21
    %s24 = sphi 0, %s22
    %s25 = sphi 0, %s23
    %s35 = sphi 0, %s37
    %s38 = sphi 0, %s35
    %s39 = sphi 0, %s38
    %s55 = sphi 0, %s39
    %s59 = sphi 0, %s59
    %s61 = sphi 0, %s59
    %s62 = sphi 0, %s61
    %s76 = sphi 0, %s62
    %s80 = sphi 0, %s80
    %s82 = sphi 0, %s80
    %s83 = sphi 0, %s82
    %s97 = sphi 0, %s83
    %s103 = sphi 0, %s105
    %s106 = sphi 0, %s103
    %s107 = sphi 0, %s106
    %s123 = sphi 0, %s107
    %s129 = sphi 0, %s131
    %s132 = sphi 0, %s129
    %s133 = sphi 0, %s132
    %s149 = sphi 0, %s133
    %s153 = sphi 0, %s153
    %s155 = sphi 0, %s153
    %s156 = sphi 0, %s155
    %s170 = sphi 0, %s156
    %s174 = sphi 0, %s174
    %s176 = sphi 0, %s174
    %s177 = sphi 0, %s176
    %s191 = sphi 0, %s177
    %s197 = sphi 0, %s199
    %s200 = sphi 0, %s197
    %s201 = sphi 0, %s200
    %s217 = sphi 0, %s201
  $region4: #{mlp_forward.1} parent=0 // loop_header_branch
    %16 = sbr.rel (%p14) target = $region8
  $region5: #{mlp_forward.1} parent=0 // loop_body
    %s18 = ssub.s32 %s13, 1
    %s19 = ssub.s32 %s13, 2
    %s26 = sadd.s32 1, %s21
    %p27 = scmp.ge.s32.totalorder %s26, 3
    %s28 = scalar_select %p27, 0, %s26
    %s29 = sadd.s32 1, %s20
    %s30 = scalar_select %p27, %s29, %s20
    %p31 = scmp.ge.s32.totalorder %s30, 1
    %s32 = scalar_select %p31, 0, %s30
    %s33 = ssub.s32 %s20, %s32
    %p34 = scmp.eq.s32.totalorder %s33, 0
    %s36 = sadd.s32 %s35, 1
    %s37 = scalar_select %p34, %s35, %s36
    %p40 = pneg %p34
    %p41 = scmp.eq.s32.totalorder %s13, 2
    %p42 = por %p40, %p41
    %p43 = scmp.ne.s32.totalorder %s35, %s38
    %p44 = scmp.eq.s32.totalorder %s13, 0
    %p45 = por %p43, %p44
    %p46 = scmp.ne.s32.totalorder %s35, %s38
    %p47 = scmp.eq.s32.totalorder %s18, 2
    %p48 = por %p46, %p47
    %p49 = scmp.ne.s32.totalorder %s38, %s39
    %p50 = scmp.eq.s32.totalorder %s18, 0
    %p51 = por %p49, %p50
    %p52 = scmp.ne.s32.totalorder %s38, %s39
    %p53 = scmp.eq.s32.totalorder %s19, 2
    %p54 = por %p52, %p53
    %p56 = scmp.ne.s32.totalorder %s39, %s55
    %p57 = scmp.eq.s32.totalorder %s19, 0
    %p58 = por %p56, %p57
    %s60 = sadd.s32 %s59, 1
    %p63 = scmp.eq.s32.totalorder %s13, 2
    %p64 = scmp.ne.s32.totalorder %s59, %s61
    %p65 = scmp.eq.s32.totalorder %s13, 0
    %p66 = por %p64, %p65
    %p67 = scmp.ne.s32.totalorder %s59, %s61
    %p68 = scmp.eq.s32.totalorder %s18, 2
    %p69 = por %p67, %p68
    %p70 = scmp.ne.s32.totalorder %s61, %s62
    %p71 = scmp.eq.s32.totalorder %s18, 0
    %p72 = por %p70, %p71
    %p73 = scmp.ne.s32.totalorder %s61, %s62
    %p74 = scmp.eq.s32.totalorder %s19, 2
    %p75 = por %p73, %p74
    %p77 = scmp.ne.s32.totalorder %s62, %s76
    %p78 = scmp.eq.s32.totalorder %s19, 0
    %p79 = por %p77, %p78
    %s81 = sadd.s32 %s80, 1
    %p84 = scmp.eq.s32.totalorder %s13, 2
    %p85 = scmp.ne.s32.totalorder %s80, %s82
    %p86 = scmp.eq.s32.totalorder %s13, 0
    %p87 = por %p85, %p86
    %p88 = scmp.ne.s32.totalorder %s80, %s82
    %p89 = scmp.eq.s32.totalorder %s18, 2
    %p90 = por %p88, %p89
    %p91 = scmp.ne.s32.totalorder %s82, %s83
    %p92 = scmp.eq.s32.totalorder %s18, 0
    %p93 = por %p91, %p92
    %p94 = scmp.ne.s32.totalorder %s82, %s83
    %p95 = scmp.eq.s32.totalorder %s19, 2
    %p96 = por %p94, %p95
    %p98 = scmp.ne.s32.totalorder %s83, %s97
    %p99 = scmp.eq.s32.totalorder %s19, 0
    %p100 = por %p98, %p99
    %s101 = ssub.s32 %s21, %s28
    %p102 = scmp.eq.s32.totalorder %s101, 0
    %s104 = sadd.s32 %s103, 1
    %s105 = scalar_select %p102, %s103, %s104
    %p108 = pneg %p102
    %p109 = scmp.eq.s32.totalorder %s13, 2
    %p110 = por %p108, %p109
    %p111 = scmp.ne.s32.totalorder %s103, %s106
    %p112 = scmp.eq.s32.totalorder %s13, 0
    %p113 = por %p111, %p112
    %p114 = scmp.ne.s32.totalorder %s103, %s106
    %p115 = scmp.eq.s32.totalorder %s18, 2
    %p116 = por %p114, %p115
    %p117 = scmp.ne.s32.totalorder %s106, %s107
    %p118 = scmp.eq.s32.totalorder %s18, 0
    %p119 = por %p117, %p118
    %p120 = scmp.ne.s32.totalorder %s106, %s107
    %p121 = scmp.eq.s32.totalorder %s19, 2
    %p122 = por %p120, %p121
    %p124 = scmp.ne.s32.totalorder %s107, %s123
    %p125 = scmp.eq.s32.totalorder %s19, 0
    %p126 = por %p124, %p125
    %s127 = ssub.s32 %s21, %s28
    %p128 = scmp.eq.s32.totalorder %s127, 0
    %s130 = sadd.s32 %s129, 1
    %s131 = scalar_select %p128, %s129, %s130
    %p134 = pneg %p128
    %p135 = scmp.eq.s32.totalorder %s13, 2
    %p136 = por %p134, %p135
    %p137 = scmp.ne.s32.totalorder %s129, %s132
    %p138 = scmp.eq.s32.totalorder %s13, 0
    %p139 = por %p137, %p138
    %p140 = scmp.ne.s32.totalorder %s129, %s132
    %p141 = scmp.eq.s32.totalorder %s18, 2
    %p142 = por %p140, %p141
    %p143 = scmp.ne.s32.totalorder %s132, %s133
    %p144 = scmp.eq.s32.totalorder %s18, 0
    %p145 = por %p143, %p144
    %p146 = scmp.ne.s32.totalorder %s132, %s133
    %p147 = scmp.eq.s32.totalorder %s19, 2
    %p148 = por %p146, %p147
    %p150 = scmp.ne.s32.totalorder %s133, %s149
    %p151 = scmp.eq.s32.totalorder %s19, 0
    %p152 = por %p150, %p151
    %s154 = sadd.s32 %s153, 1
    %p157 = scmp.eq.s32.totalorder %s13, 2
    %p158 = scmp.ne.s32.totalorder %s153, %s155
    %p159 = scmp.eq.s32.totalorder %s13, 0
    %p160 = por %p158, %p159
    %p161 = scmp.ne.s32.totalorder %s153, %s155
    %p162 = scmp.eq.s32.totalorder %s18, 2
    %p163 = por %p161, %p162
    %p164 = scmp.ne.s32.totalorder %s155, %s156
    %p165 = scmp.eq.s32.totalorder %s18, 0
    %p166 = por %p164, %p165
    %p167 = scmp.ne.s32.totalorder %s155, %s156
    %p168 = scmp.eq.s32.totalorder %s19, 2
    %p169 = por %p167, %p168
    %p171 = scmp.ne.s32.totalorder %s156, %s170
    %p172 = scmp.eq.s32.totalorder %s19, 0
    %p173 = por %p171, %p172
    %s175 = sadd.s32 %s174, 1
    %p178 = scmp.eq.s32.totalorder %s13, 2
    %p179 = scmp.ne.s32.totalorder %s174, %s176
    %p180 = scmp.eq.s32.totalorder %s13, 0
    %p181 = por %p179, %p180
    %p182 = scmp.ne.s32.totalorder %s174, %s176
    %p183 = scmp.eq.s32.totalorder %s18, 2
    %p184 = por %p182, %p183
    %p185 = scmp.ne.s32.totalorder %s176, %s177
    %p186 = scmp.eq.s32.totalorder %s18, 0
    %p187 = por %p185, %p186
    %p188 = scmp.ne.s32.totalorder %s176, %s177
    %p189 = scmp.eq.s32.totalorder %s19, 2
    %p190 = por %p188, %p189
    %p192 = scmp.ne.s32.totalorder %s177, %s191
    %p193 = scmp.eq.s32.totalorder %s19, 0
    %p194 = por %p192, %p193
    %s195 = ssub.s32 %s20, %s32
    %p196 = scmp.eq.s32.totalorder %s195, 0
    %s198 = sadd.s32 %s197, 1
    %s199 = scalar_select %p196, %s197, %s198
    %p202 = pneg %p196
    %p203 = scmp.eq.s32.totalorder %s13, 2
    %p204 = por %p202, %p203
    %p205 = scmp.ne.s32.totalorder %s197, %s200
    %p206 = scmp.eq.s32.totalorder %s13, 0
    %p207 = por %p205, %p206
    %p208 = scmp.ne.s32.totalorder %s197, %s200
    %p209 = scmp.eq.s32.totalorder %s18, 2
    %p210 = por %p208, %p209
    %p211 = scmp.ne.s32.totalorder %s200, %s201
    %p212 = scmp.eq.s32.totalorder %s18, 0
    %p213 = por %p211, %p212
    %p214 = scmp.ne.s32.totalorder %s200, %s201
    %p215 = scmp.eq.s32.totalorder %s19, 2
    %p216 = por %p214, %p215
    %p218 = scmp.ne.s32.totalorder %s201, %s217
    %p219 = scmp.eq.s32.totalorder %s19, 0
    %p220 = por %p218, %p219
    %p221 = scmp.le.s32.totalorder 1, %s13
    %p222 = scmp.lt.s32.totalorder %s13, 4
    %p223 = pnand %p221, %p222
    %p224 = pneg %p223
    // Predicated region
    $region9: #{mlp_forward.1} parent=5 // pred_check
      _
    $region10: #{mlp_forward.1} parent=5 // pred_check_branch
      %226 = sbr.rel (%p223) target = $region12
    $region11: #{mlp_forward.1} parent=5 // pred_region
      %s227 = ssub.s32 %s13, 1
      // Predicated region
      $region13: #{mlp_forward.1} parent=11 // pred_check
        %p228 = pneg %p51
      $region14: #{mlp_forward.1} parent=11 // pred_check_branch
        %230 = sbr.rel (%p228) target = $region16
      $region15: #{mlp_forward.1} parent=11 // pred_region
        %s231 = smul.u32 16, %s22
        %p232 = scmp.lt.s32.totalorder %s231, 15
        %s233 = scalar_select %p232, %s231, 15
        %s234 = smul.addr %s233, 4
        %s235 = scalar_lea.vmem %s0, %s234
        %s236 = smul.u32 16, %s22
      $region16: #{mlp_forward.1} parent=11 // pred_fallthru
        _
      // Predicated region
      $region17: #{mlp_forward.1} parent=11 // pred_check
        %p237 = pneg %p72
      $region18: #{mlp_forward.1} parent=11 // pred_check_branch
        %239 = sbr.rel (%p237) target = $region20
      $region19: #{mlp_forward.1} parent=11 // pred_region
        _
      $region20: #{mlp_forward.1} parent=11 // pred_fallthru
        _
      // Predicated region
      $region21: #{mlp_forward.1} parent=11 // pred_check
        %p240 = pneg %p93
      $region22: #{mlp_forward.1} parent=11 // pred_check_branch
        %242 = sbr.rel (%p240) target = $region24
      $region23: #{mlp_forward.1} parent=11 // pred_region
        _
      $region24: #{mlp_forward.1} parent=11 // pred_fallthru
        _
      // Predicated region
      $region25: #{mlp_forward.1} parent=11 // pred_check
        %p243 = pneg %p166
      $region26: #{mlp_forward.1} parent=11 // pred_check_branch
        %245 = sbr.rel (%p243) target = $region28
      $region27: #{mlp_forward.1} parent=11 // pred_region
        _
      $region28: #{mlp_forward.1} parent=11 // pred_fallthru
        _
      // Predicated region
      $region29: #{mlp_forward.1} parent=11 // pred_check
        %p246 = pneg %p187
      $region30: #{mlp_forward.1} parent=11 // pred_check_branch
        %248 = sbr.rel (%p246) target = $region32
      $region31: #{mlp_forward.1} parent=11 // pred_region
        _
      $region32: #{mlp_forward.1} parent=11 // pred_fallthru
        _
    $region12: #{mlp_forward.1} parent=5 // pred_fallthru
      _
    %p249 = scmp.lt.s32.totalorder %s13, 3
    // Predicated region
    $region33: #{mlp_forward.1} parent=5 // pred_check
      %p250 = pneg %p249
    $region34: #{mlp_forward.1} parent=5 // pred_check_branch
      %252 = sbr.rel (%p250) target = $region36
    $region35: #{mlp_forward.1} parent=5 // pred_region
      // Predicated region
      $region37: #{mlp_forward.1} parent=35 // pred_check
        %p253 = pneg %p113
      $region38: #{mlp_forward.1} parent=35 // pred_check_branch
        %255 = sbr.rel (%p253) target = $region40
      $region39: #{mlp_forward.1} parent=35 // pred_region
        %p256 = scmp.lt.s32.totalorder %s21, 2
        %s257 = scalar_select %p256, %s21, 2
        %s258 = smul.addr %s257, 1024
        %s259 = smul.addr %s258, 4
        %s260 = scalar_lea.vmem %s3, %s259
      $region40: #{mlp_forward.1} parent=35 // pred_fallthru
        _
      // Predicated region
      $region41: #{mlp_forward.1} parent=35 // pred_check
        %p261 = pneg %p139
      $region42: #{mlp_forward.1} parent=35 // pred_check_branch
        %263 = sbr.rel (%p261) target = $region44
      $region43: #{mlp_forward.1} parent=35 // pred_region
        %p264 = scmp.lt.s32.totalorder %s21, 2
        %s265 = scalar_select %p264, %s21, 2
        %s266 = smul.addr %s265, 8
        %s267 = scalar_lea.vmem %s4, %s266
      $region44: #{mlp_forward.1} parent=35 // pred_fallthru
        _
    $region36: #{mlp_forward.1} parent=5 // pred_fallthru
      _
    %p268 = scmp.le.s32.totalorder 1, %s13
    %p269 = scmp.lt.s32.totalorder %s13, 4
    %p270 = pnand %p268, %p269
    %p271 = pneg %p270
    // Predicated region
    $region45: #{mlp_forward.1} parent=5 // pred_check
      _
    $region46: #{mlp_forward.1} parent=5 // pred_check_branch
      %273 = sbr.rel (%p270) target = $region48
    $region47: #{mlp_forward.1} parent=5 // pred_region
      %s274 = ssub.s32 %s13, 1
      %s275 = smul.u32 16, %s22
      %p276 = scmp.lt.s32.totalorder %s275, 15
      %s277 = scalar_select %p276, %s275, 15
      %s278 = smul.addr %s277, 4
      %s279 = scalar_lea.vmem %s0, %s278
      %p280 = pneg %p51
      %p281 = pneg %p48
      %p282 = pneg %p72
      %p283 = pneg %p69
      %p284 = pneg %p93
      %p285 = pneg %p90
      %p286 = scmp.lt.s32.totalorder %s23, 2
      %s287 = scalar_select %p286, %s23, 2
      %s288 = smul.addr %s287, 1024
      %s289 = smul.addr %s288, 4
      %s290 = scalar_lea.vmem %s3, %s289
      %p291 = pneg %p119
      %p292 = pneg %p116
      %p293 = scmp.lt.s32.totalorder %s23, 2
      %s294 = scalar_select %p293, %s23, 2
      %s295 = smul.addr %s294, 8
      %s296 = scalar_lea.vmem %s4, %s295
      %p297 = pneg %p145
      %p298 = pneg %p142
      %p299 = pneg %p166
      %p300 = pneg %p163
      %p301 = pneg %p187
      %p302 = pneg %p184
      %p303 = pneg %p213
      %p304 = pneg %p210
      %s305 = smul.u32 16, %s22
      %p306 = scmp.lt.s32.totalorder %s305, 15
      %s307 = scalar_select %p306, %s305, 15
      %s308 = smul.addr %s307, 4
      %s309 = scalar_lea.vmem %s7, %s308
      %s310 = smul.u32 16, %s22
      %p311 = scmp.lt.s32.totalorder %s310, 15
      %s312 = scalar_select %p311, %s310, 15
      %s313 = smul.addr %s312, 4
      %s314 = scalar_lea.vmem %s0, %s313
      %s315 = smul.u32 16, %s22
      %p316 = scmp.lt.s32.totalorder %s23, 2
      %s317 = scalar_select %p316, %s23, 2
      %s318 = smul.addr %s317, 1024
      %s319 = smul.addr %s318, 4
      %s320 = scalar_lea.vmem %s3, %s319
      %p321 = scmp.lt.s32.totalorder %s23, 2
      %s322 = scalar_select %p321, %s23, 2
      %s323 = smul.addr %s322, 8
      %s324 = scalar_lea.vmem %s4, %s323
      %s325 = smul.u32 16, %s22
      %p326 = scmp.lt.s32.totalorder %s325, 15
      %s327 = scalar_select %p326, %s325, 15
      %s328 = smul.addr %s327, 4
      %s329 = scalar_lea.vmem %s7, %s328
      %s330 = smul.u32 16, %s22
      %p332 = scmp.eq.s32.totalorder %s23, 0
      // Predicated region
      $region49: #{mlp_forward.1} parent=47 // pred_check
        %p333 = pneg %p332
      $region50: #{mlp_forward.1} parent=47 // pred_check_branch
        %335 = sbr.rel (%p333) target = $region52
      $region51: #{mlp_forward.1} parent=47 // pred_region
        %v336 = vld [vmem:[%s314] sm:$0xf]
        %v337 = vld [vmem:[%s314 + $0x4] sm:$0xf]
        %v338 = vld [vmem:[%s314 + $0x8] sm:$0xf]
        %v339 = vld [vmem:[%s314 + $0xc] sm:$0xf]
        %v340 = vld [vmem:[%s314 + $0x10] sm:$0xf]
        %v341 = vld [vmem:[%s314 + $0x14] sm:$0xf]
        %v342 = vld [vmem:[%s314 + $0x18] sm:$0xf]
        %v343 = vld [vmem:[%s314 + $0x1c] sm:$0xf]
        %v344 = vld [vmem:[%s314 + $0x20] sm:$0xf]
        %v345 = vld [vmem:[%s314 + $0x24] sm:$0xf]
        %v346 = vld [vmem:[%s314 + $0x28] sm:$0xf]
        %v347 = vld [vmem:[%s314 + $0x2c] sm:$0xf]
        %v348 = vld [vmem:[%s314 + $0x30] sm:$0xf]
        %v349 = vld [vmem:[%s314 + $0x34] sm:$0xf]
        %v350 = vld [vmem:[%s314 + $0x38] sm:$0xf]
        %v351 = vld [vmem:[%s314 + $0x3c] sm:$0xf]
        %v352 = vld [vmem:[%s1] sm:$0xff]
        %v353 = vld [vmem:[%s1 + $0x8] sm:$0xff]
        %v354 = vld [vmem:[%s1 + $0x10] sm:$0xff]
        %v355 = vld [vmem:[%s1 + $0x18] sm:$0xff]
        %v356 = vld [vmem:[%s1 + $0x20] sm:$0xff]
        %v357 = vld [vmem:[%s1 + $0x28] sm:$0xff]
        %v358 = vld [vmem:[%s1 + $0x30] sm:$0xff]
        %v359 = vld [vmem:[%s1 + $0x38] sm:$0xff]
        %v360 = vld [vmem:[%s1 + $0x40] sm:$0xff]
        %v361 = vld [vmem:[%s1 + $0x48] sm:$0xff]
        %v362 = vld [vmem:[%s1 + $0x50] sm:$0xff]
        %v363 = vld [vmem:[%s1 + $0x58] sm:$0xff]
        %v364 = vld [vmem:[%s1 + $0x60] sm:$0xff]
        %v365 = vld [vmem:[%s1 + $0x68] sm:$0xff]
        %v366 = vld [vmem:[%s1 + $0x70] sm:$0xff]
        %v367 = vld [vmem:[%s1 + $0x78] sm:$0xff]
        %v368 = vld [vmem:[%s1 + $0x80] sm:$0xff]
        %v369 = vld [vmem:[%s1 + $0x88] sm:$0xff]
        %v370 = vld [vmem:[%s1 + $0x90] sm:$0xff]
        %v371 = vld [vmem:[%s1 + $0x98] sm:$0xff]
        %v372 = vld [vmem:[%s1 + $0xa0] sm:$0xff]
        %v373 = vld [vmem:[%s1 + $0xa8] sm:$0xff]
        %v374 = vld [vmem:[%s1 + $0xb0] sm:$0xff]
        %v375 = vld [vmem:[%s1 + $0xb8] sm:$0xff]
        %v376 = vld [vmem:[%s1 + $0xc0] sm:$0xff]
        %v377 = vld [vmem:[%s1 + $0xc8] sm:$0xff]
        %v378 = vld [vmem:[%s1 + $0xd0] sm:$0xff]
        %v379 = vld [vmem:[%s1 + $0xd8] sm:$0xff]
        %v380 = vld [vmem:[%s1 + $0xe0] sm:$0xff]
        %v381 = vld [vmem:[%s1 + $0xe8] sm:$0xff]
        %v382 = vld [vmem:[%s1 + $0xf0] sm:$0xff]
        %v383 = vld [vmem:[%s1 + $0xf8] sm:$0xff]
        %v384 = vld [vmem:[%s1 + $0x100] sm:$0xff]
        %v385 = vld [vmem:[%s1 + $0x108] sm:$0xff]
        %v386 = vld [vmem:[%s1 + $0x110] sm:$0xff]
        %v387 = vld [vmem:[%s1 + $0x118] sm:$0xff]
        %v388 = vld [vmem:[%s1 + $0x120] sm:$0xff]
        %v389 = vld [vmem:[%s1 + $0x128] sm:$0xff]
        %v390 = vld [vmem:[%s1 + $0x130] sm:$0xff]
        %v391 = vld [vmem:[%s1 + $0x138] sm:$0xff]
        %v392 = vld [vmem:[%s1 + $0x140] sm:$0xff]
        %v393 = vld [vmem:[%s1 + $0x148] sm:$0xff]
        %v394 = vld [vmem:[%s1 + $0x150] sm:$0xff]
        %v395 = vld [vmem:[%s1 + $0x158] sm:$0xff]
        %v396 = vld [vmem:[%s1 + $0x160] sm:$0xff]
        %v397 = vld [vmem:[%s1 + $0x168] sm:$0xff]
        %v398 = vld [vmem:[%s1 + $0x170] sm:$0xff]
        %v399 = vld [vmem:[%s1 + $0x178] sm:$0xff]
        %v400 = vld [vmem:[%s1 + $0x180] sm:$0xff]
        %v401 = vld [vmem:[%s1 + $0x188] sm:$0xff]
        %v402 = vld [vmem:[%s1 + $0x190] sm:$0xff]
        %v403 = vld [vmem:[%s1 + $0x198] sm:$0xff]
        %v404 = vld [vmem:[%s1 + $0x1a0] sm:$0xff]
        %v405 = vld [vmem:[%s1 + $0x1a8] sm:$0xff]
        %v406 = vld [vmem:[%s1 + $0x1b0] sm:$0xff]
        %v407 = vld [vmem:[%s1 + $0x1b8] sm:$0xff]
        %v408 = vld [vmem:[%s1 + $0x1c0] sm:$0xff]
        %v409 = vld [vmem:[%s1 + $0x1c8] sm:$0xff]
        %v410 = vld [vmem:[%s1 + $0x1d0] sm:$0xff]
        %v411 = vld [vmem:[%s1 + $0x1d8] sm:$0xff]
        %v412 = vld [vmem:[%s1 + $0x1e0] sm:$0xff]
        %v413 = vld [vmem:[%s1 + $0x1e8] sm:$0xff]
        %v414 = vld [vmem:[%s1 + $0x1f0] sm:$0xff]
        %v415 = vld [vmem:[%s1 + $0x1f8] sm:$0xff]
        %v416 = vld [vmem:[%s2] sm:$0xff]
        %v418 = vlaneseq
        %v419 = vshrl.u32 %v418, 7
        %v420 = vsub.s32 0, %v419
        %v421 = vrot.slane %v416, %v420
        %v422 = vlaneseq
        %v423 = vshrl.u32 %v422, 7
        %v424 = vsub.s32 1, %v423
        %v425 = vrot.slane %v416, %v424
        %v426 = vlaneseq
        %v427 = vshrl.u32 %v426, 7
        %v428 = vsub.s32 2, %v427
        %v429 = vrot.slane %v416, %v428
        %v430 = vlaneseq
        %v431 = vshrl.u32 %v430, 7
        %v432 = vsub.s32 3, %v431
        %v433 = vrot.slane %v416, %v432
        %v434 = vlaneseq
        %v435 = vshrl.u32 %v434, 7
        %v436 = vsub.s32 4, %v435
        %v437 = vrot.slane %v416, %v436
        %v438 = vlaneseq
        %v439 = vshrl.u32 %v438, 7
        %v440 = vsub.s32 5, %v439
        %v441 = vrot.slane %v416, %v440
        %v442 = vlaneseq
        %v443 = vshrl.u32 %v442, 7
        %v444 = vsub.s32 6, %v443
        %v445 = vrot.slane %v416, %v444
        %v446 = vlaneseq
        %v447 = vshrl.u32 %v446, 7
        %v448 = vsub.s32 7, %v447
        %v449 = vrot.slane %v416, %v448
        %v474 = vunpack.c.l.b16 %v336
        %v475 = vunpack.c.l.b16 %v337
        %v476 = vunpack.c.l.b16 %v338
        %v477 = vunpack.c.l.b16 %v339
        %v478 = vunpack.c.l.b16 %v340
        %v479 = vunpack.c.l.b16 %v341
        %v480 = vunpack.c.l.b16 %v342
        %v481 = vunpack.c.l.b16 %v343
        %v482 = vunpack.c.l.b16 %v344
        %v483 = vunpack.c.l.b16 %v345
        %v484 = vunpack.c.l.b16 %v346
        %v485 = vunpack.c.l.b16 %v347
        %v486 = vunpack.c.l.b16 %v348
        %v487 = vunpack.c.l.b16 %v349
        %v488 = vunpack.c.l.b16 %v350
        %v489 = vunpack.c.l.b16 %v351
        %v490 = vpack.c.b16 %v475, %v474
        %v491 = vpack.c.b16 %v477, %v476
        %v492 = vpack.c.b16 %v479, %v478
        %v493 = vpack.c.b16 %v481, %v480
        %v494 = vpack.c.b16 %v483, %v482
        %v495 = vpack.c.b16 %v485, %v484
        %v496 = vpack.c.b16 %v487, %v486
        %v497 = vpack.c.b16 %v489, %v488
        %v570 = vunpack.c.l.b16 %v352
        %v571 = vunpack.c.h.b16 %v352
        %v572 = vunpack.c.l.b16 %v353
        %v573 = vunpack.c.h.b16 %v353
        %v574 = vunpack.c.l.b16 %v354
        %v575 = vunpack.c.h.b16 %v354
        %v576 = vunpack.c.l.b16 %v355
        %v577 = vunpack.c.h.b16 %v355
        %v578 = vunpack.c.l.b16 %v356
        %v579 = vunpack.c.h.b16 %v356
        %v580 = vunpack.c.l.b16 %v357
        %v581 = vunpack.c.h.b16 %v357
        %v582 = vunpack.c.l.b16 %v358
        %v583 = vunpack.c.h.b16 %v358
        %v584 = vunpack.c.l.b16 %v359
        %v585 = vunpack.c.h.b16 %v359
        %v586 = vunpack.c.l.b16 %v360
        %v587 = vunpack.c.h.b16 %v360
        %v588 = vunpack.c.l.b16 %v361
        %v589 = vunpack.c.h.b16 %v361
        %v590 = vunpack.c.l.b16 %v362
        %v591 = vunpack.c.h.b16 %v362
        %v592 = vunpack.c.l.b16 %v363
        %v593 = vunpack.c.h.b16 %v363
        %v594 = vunpack.c.l.b16 %v364
        %v595 = vunpack.c.h.b16 %v364
        %v596 = vunpack.c.l.b16 %v365
        %v597 = vunpack.c.h.b16 %v365
        %v598 = vunpack.c.l.b16 %v366
        %v599 = vunpack.c.h.b16 %v366
        %v600 = vunpack.c.l.b16 %v367
        %v601 = vunpack.c.h.b16 %v367
        %v602 = vunpack.c.l.b16 %v368
        %v603 = vunpack.c.h.b16 %v368
        %v604 = vunpack.c.l.b16 %v369
        %v605 = vunpack.c.h.b16 %v369
        %v606 = vunpack.c.l.b16 %v370
        %v607 = vunpack.c.h.b16 %v370
        %v608 = vunpack.c.l.b16 %v371
        %v609 = vunpack.c.h.b16 %v371
        %v610 = vunpack.c.l.b16 %v372
        %v611 = vunpack.c.h.b16 %v372
        %v612 = vunpack.c.l.b16 %v373
        %v613 = vunpack.c.h.b16 %v373
        %v614 = vunpack.c.l.b16 %v374
        %v615 = vunpack.c.h.b16 %v374
        %v616 = vunpack.c.l.b16 %v375
        %v617 = vunpack.c.h.b16 %v375
        %v618 = vunpack.c.l.b16 %v376
        %v619 = vunpack.c.h.b16 %v376
        %v620 = vunpack.c.l.b16 %v377
        %v621 = vunpack.c.h.b16 %v377
        %v622 = vunpack.c.l.b16 %v378
        %v623 = vunpack.c.h.b16 %v378
        %v624 = vunpack.c.l.b16 %v379
        %v625 = vunpack.c.h.b16 %v379
        %v626 = vunpack.c.l.b16 %v380
        %v627 = vunpack.c.h.b16 %v380
        %v628 = vunpack.c.l.b16 %v381
        %v629 = vunpack.c.h.b16 %v381
        %v630 = vunpack.c.l.b16 %v382
        %v631 = vunpack.c.h.b16 %v382
        %v632 = vunpack.c.l.b16 %v383
        %v633 = vunpack.c.h.b16 %v383
        %v634 = vunpack.c.l.b16 %v384
        %v635 = vunpack.c.h.b16 %v384
        %v636 = vunpack.c.l.b16 %v385
        %v637 = vunpack.c.h.b16 %v385
        %v638 = vunpack.c.l.b16 %v386
        %v639 = vunpack.c.h.b16 %v386
        %v640 = vunpack.c.l.b16 %v387
        %v641 = vunpack.c.h.b16 %v387
        %v642 = vunpack.c.l.b16 %v388
        %v643 = vunpack.c.h.b16 %v388
        %v644 = vunpack.c.l.b16 %v389
        %v645 = vunpack.c.h.b16 %v389
        %v646 = vunpack.c.l.b16 %v390
        %v647 = vunpack.c.h.b16 %v390
        %v648 = vunpack.c.l.b16 %v391
        %v649 = vunpack.c.h.b16 %v391
        %v650 = vunpack.c.l.b16 %v392
        %v651 = vunpack.c.h.b16 %v392
        %v652 = vunpack.c.l.b16 %v393
        %v653 = vunpack.c.h.b16 %v393
        %v654 = vunpack.c.l.b16 %v394
        %v655 = vunpack.c.h.b16 %v394
        %v656 = vunpack.c.l.b16 %v395
        %v657 = vunpack.c.h.b16 %v395
        %v658 = vunpack.c.l.b16 %v396
        %v659 = vunpack.c.h.b16 %v396
        %v660 = vunpack.c.l.b16 %v397
        %v661 = vunpack.c.h.b16 %v397
        %v662 = vunpack.c.l.b16 %v398
        %v663 = vunpack.c.h.b16 %v398
        %v664 = vunpack.c.l.b16 %v399
        %v665 = vunpack.c.h.b16 %v399
        %v666 = vunpack.c.l.b16 %v400
        %v667 = vunpack.c.h.b16 %v400
        %v668 = vunpack.c.l.b16 %v401
        %v669 = vunpack.c.h.b16 %v401
        %v670 = vunpack.c.l.b16 %v402
        %v671 = vunpack.c.h.b16 %v402
        %v672 = vunpack.c.l.b16 %v403
        %v673 = vunpack.c.h.b16 %v403
        %v674 = vunpack.c.l.b16 %v404
        %v675 = vunpack.c.h.b16 %v404
        %v676 = vunpack.c.l.b16 %v405
        %v677 = vunpack.c.h.b16 %v405
        %v678 = vunpack.c.l.b16 %v406
        %v679 = vunpack.c.h.b16 %v406
        %v680 = vunpack.c.l.b16 %v407
        %v681 = vunpack.c.h.b16 %v407
        %v682 = vunpack.c.l.b16 %v408
        %v683 = vunpack.c.h.b16 %v408
        %v684 = vunpack.c.l.b16 %v409
        %v685 = vunpack.c.h.b16 %v409
        %v686 = vunpack.c.l.b16 %v410
        %v687 = vunpack.c.h.b16 %v410
        %v688 = vunpack.c.l.b16 %v411
        %v689 = vunpack.c.h.b16 %v411
        %v690 = vunpack.c.l.b16 %v412
        %v691 = vunpack.c.h.b16 %v412
        %v692 = vunpack.c.l.b16 %v413
        %v693 = vunpack.c.h.b16 %v413
        %v694 = vunpack.c.l.b16 %v414
        %v695 = vunpack.c.h.b16 %v414
        %v696 = vunpack.c.l.b16 %v415
        %v697 = vunpack.c.h.b16 %v415
        %v698 = vpack.c.b16 %v578, %v570
        %v699 = vpack.c.b16 %v579, %v571
        %v700 = vpack.c.b16 %v580, %v572
        %v701 = vpack.c.b16 %v581, %v573
        %v702 = vpack.c.b16 %v582, %v574
        %v703 = vpack.c.b16 %v583, %v575
        %v704 = vpack.c.b16 %v584, %v576
        %v705 = vpack.c.b16 %v585, %v577
        %v706 = vpack.c.b16 %v594, %v586
        %v707 = vpack.c.b16 %v595, %v587
        %v708 = vpack.c.b16 %v596, %v588
        %v709 = vpack.c.b16 %v597, %v589
        %v710 = vpack.c.b16 %v598, %v590
        %v711 = vpack.c.b16 %v599, %v591
        %v712 = vpack.c.b16 %v600, %v592
        %v713 = vpack.c.b16 %v601, %v593
        %v714 = vpack.c.b16 %v610, %v602
        %v715 = vpack.c.b16 %v611, %v603
        %v716 = vpack.c.b16 %v612, %v604
        %v717 = vpack.c.b16 %v613, %v605
        %v718 = vpack.c.b16 %v614, %v606
        %v719 = vpack.c.b16 %v615, %v607
        %v720 = vpack.c.b16 %v616, %v608
        %v721 = vpack.c.b16 %v617, %v609
        %v722 = vpack.c.b16 %v626, %v618
        %v723 = vpack.c.b16 %v627, %v619
        %v724 = vpack.c.b16 %v628, %v620
        %v725 = vpack.c.b16 %v629, %v621
        %v726 = vpack.c.b16 %v630, %v622
        %v727 = vpack.c.b16 %v631, %v623
        %v728 = vpack.c.b16 %v632, %v624
        %v729 = vpack.c.b16 %v633, %v625
        %v730 = vpack.c.b16 %v642, %v634
        %v731 = vpack.c.b16 %v643, %v635
        %v732 = vpack.c.b16 %v644, %v636
        %v733 = vpack.c.b16 %v645, %v637
        %v734 = vpack.c.b16 %v646, %v638
        %v735 = vpack.c.b16 %v647, %v639
        %v736 = vpack.c.b16 %v648, %v640
        %v737 = vpack.c.b16 %v649, %v641
        %v738 = vpack.c.b16 %v658, %v650
        %v739 = vpack.c.b16 %v659, %v651
        %v740 = vpack.c.b16 %v660, %v652
        %v741 = vpack.c.b16 %v661, %v653
        %v742 = vpack.c.b16 %v662, %v654
        %v743 = vpack.c.b16 %v663, %v655
        %v744 = vpack.c.b16 %v664, %v656
        %v745 = vpack.c.b16 %v665, %v657
        %v746 = vpack.c.b16 %v674, %v666
        %v747 = vpack.c.b16 %v675, %v667
        %v748 = vpack.c.b16 %v676, %v668
        %v749 = vpack.c.b16 %v677, %v669
        %v750 = vpack.c.b16 %v678, %v670
        %v751 = vpack.c.b16 %v679, %v671
        %v752 = vpack.c.b16 %v680, %v672
        %v753 = vpack.c.b16 %v681, %v673
        %v754 = vpack.c.b16 %v690, %v682
        %v755 = vpack.c.b16 %v691, %v683
        %v756 = vpack.c.b16 %v692, %v684
        %v757 = vpack.c.b16 %v693, %v685
        %v758 = vpack.c.b16 %v694, %v686
        %v759 = vpack.c.b16 %v695, %v687
        %v760 = vpack.c.b16 %v696, %v688
        %v761 = vpack.c.b16 %v697, %v689
        %826 = vmatprep.subr.bf16.mxu0 %v755
        %827 = vmatpush1.bf16.msra.mxu0 %v754
        %828 = vmatprep.subr.bf16.mxu0 %v747
        %829 = vmatpush1.bf16.msra.mxu0 %v746
        %830 = vmatprep.subr.bf16.mxu0 %v739
        %831 = vmatpush1.bf16.msra.mxu0 %v738
        %832 = vmatprep.subr.bf16.mxu0 %v731
        %833 = vmatpush1.bf16.msra.mxu0 %v730
        %834 = vmatprep.subr.bf16.mxu0 %v723
        %835 = vmatpush1.bf16.msra.mxu0 %v722
        %836 = vmatprep.subr.bf16.mxu0 %v715
        %837 = vmatpush1.bf16.msra.mxu0 %v714
        %838 = vmatprep.subr.bf16.mxu0 %v707
        %839 = vmatpush1.bf16.msra.mxu0 %v706
        %840 = vmatprep.subr.bf16.mxu0 %v699
        %841 = vmatpush1.bf16.msra.mxu0 %v698
        %842 = vmatprep.subr.bf16.mxu0 0
        %843 = vmatpush2.bf16.msra.mxu0 0
        %844 = vmatprep.subr.bf16.mxu0 0
        %845 = vmatpush2.bf16.msra.mxu0 0
        %846 = vmatprep.subr.bf16.mxu0 0
        %847 = vmatpush2.bf16.msra.mxu0 0
        %848 = vmatprep.subr.bf16.mxu0 0
        %849 = vmatpush2.bf16.msra.mxu0 0
        %850 = vmatprep.subr.bf16.mxu0 0
        %851 = vmatpush2.bf16.msra.mxu0 0
        %852 = vmatprep.subr.bf16.mxu0 0
        %853 = vmatpush2.bf16.msra.mxu0 0
        %854 = vmatprep.subr.bf16.mxu0 0
        %855 = vmatpush2.bf16.msra.mxu0 0
        %856 = vmatprep.subr.bf16.mxu0 0
        %857 = vmatpush2.bf16.msra.mxu0 0
        %858 = vmatprep.mubr.bf16.mxu0 0
        %859 = vmatmul.mubr.bf16.gmra.mxu0 %v490
        %v860 = vpop.f32.mrf.mxu0
        %v861 = vadd.f32 %v421, %v860
        %v862 = vpop.f32.mrf.mxu0
        %v863 = vadd.f32 %v425, %v862
        %v864 = vpop.f32.mrf.mxu0
        %v865 = vadd.f32 %v421, %v864
        %v866 = vpop.f32.mrf.mxu0
        %v867 = vadd.f32 %v425, %v866
        %868 = vmatprep.mubr.bf16.mxu0 0
        %869 = vmatmul.mubr.bf16.gmra.mxu0 %v491
        %v870 = vpop.f32.mrf.mxu0
        %v871 = vadd.f32 %v421, %v870
        %v872 = vpop.f32.mrf.mxu0
        %v873 = vadd.f32 %v425, %v872
        %v874 = vpop.f32.mrf.mxu0
        %v875 = vadd.f32 %v421, %v874
        %v876 = vpop.f32.mrf.mxu0
        %v877 = vadd.f32 %v425, %v876
        %878 = vmatprep.mubr.bf16.mxu0 0
        %879 = vmatmul.mubr.bf16.gmra.mxu0 %v492
        %v880 = vpop.f32.mrf.mxu0
        %v881 = vadd.f32 %v421, %v880
        %v882 = vpop.f32.mrf.mxu0
        %v883 = vadd.f32 %v425, %v882
        %v884 = vpop.f32.mrf.mxu0
        %v885 = vadd.f32 %v421, %v884
        %v886 = vpop.f32.mrf.mxu0
        %v887 = vadd.f32 %v425, %v886
        %888 = vmatprep.mubr.bf16.mxu0 0
        %889 = vmatmul.mubr.bf16.gmra.mxu0 %v493
        %v890 = vpop.f32.mrf.mxu0
        %v891 = vadd.f32 %v421, %v890
        %v892 = vpop.f32.mrf.mxu0
        %v893 = vadd.f32 %v425, %v892
        %v894 = vpop.f32.mrf.mxu0
        %v895 = vadd.f32 %v421, %v894
        %v896 = vpop.f32.mrf.mxu0
        %v897 = vadd.f32 %v425, %v896
        %898 = vmatprep.mubr.bf16.mxu0 0
        %899 = vmatmul.mubr.bf16.gmra.mxu0 %v494
        %v900 = vpop.f32.mrf.mxu0
        %v901 = vadd.f32 %v421, %v900
        %v902 = vpop.f32.mrf.mxu0
        %v903 = vadd.f32 %v425, %v902
        %v904 = vpop.f32.mrf.mxu0
        %v905 = vadd.f32 %v421, %v904
        %v906 = vpop.f32.mrf.mxu0
        %v907 = vadd.f32 %v425, %v906
        %908 = vmatprep.mubr.bf16.mxu0 0
        %909 = vmatmul.mubr.bf16.gmra.mxu0 %v495
        %v910 = vpop.f32.mrf.mxu0
        %v911 = vadd.f32 %v421, %v910
        %v912 = vpop.f32.mrf.mxu0
        %v913 = vadd.f32 %v425, %v912
        %v914 = vpop.f32.mrf.mxu0
        %v915 = vadd.f32 %v421, %v914
        %v916 = vpop.f32.mrf.mxu0
        %v917 = vadd.f32 %v425, %v916
        %918 = vmatprep.mubr.bf16.mxu0 0
        %919 = vmatmul.mubr.bf16.gmra.mxu0 %v496
        %v920 = vpop.f32.mrf.mxu0
        %v921 = vadd.f32 %v421, %v920
        %v922 = vpop.f32.mrf.mxu0
        %v923 = vadd.f32 %v425, %v922
        %v924 = vpop.f32.mrf.mxu0
        %v925 = vadd.f32 %v421, %v924
        %v926 = vpop.f32.mrf.mxu0
        %v927 = vadd.f32 %v425, %v926
        %928 = vmatprep.mubr.bf16.mxu0 0
        %929 = vmatmul.mubr.bf16.gmra.mxu0 %v497
        %v930 = vpop.f32.mrf.mxu0
        %v931 = vadd.f32 %v421, %v930
        %v932 = vpop.f32.mrf.mxu0
        %v933 = vadd.f32 %v425, %v932
        %v934 = vpop.f32.mrf.mxu0
        %v935 = vadd.f32 %v421, %v934
        %v936 = vpop.f32.mrf.mxu0
        %v937 = vadd.f32 %v425, %v936
        %938 = vdwg.mxu0
        %939 = vmatprep.subr.bf16.mxu0 %v757
        %940 = vmatpush1.bf16.msra.mxu0 %v756
        %941 = vmatprep.subr.bf16.mxu0 %v749
        %942 = vmatpush1.bf16.msra.mxu0 %v748
        %943 = vmatprep.subr.bf16.mxu0 %v741
        %944 = vmatpush1.bf16.msra.mxu0 %v740
        %945 = vmatprep.subr.bf16.mxu0 %v733
        %946 = vmatpush1.bf16.msra.mxu0 %v732
        %947 = vmatprep.subr.bf16.mxu0 %v725
        %948 = vmatpush1.bf16.msra.mxu0 %v724
        %949 = vmatprep.subr.bf16.mxu0 %v717
        %950 = vmatpush1.bf16.msra.mxu0 %v716
        %951 = vmatprep.subr.bf16.mxu0 %v709
        %952 = vmatpush1.bf16.msra.mxu0 %v708
        %953 = vmatprep.subr.bf16.mxu0 %v701
        %954 = vmatpush1.bf16.msra.mxu0 %v700
        %955 = vmatprep.subr.bf16.mxu0 0
        %956 = vmatpush2.bf16.msra.mxu0 0
        %957 = vmatprep.subr.bf16.mxu0 0
        %958 = vmatpush2.bf16.msra.mxu0 0
        %959 = vmatprep.subr.bf16.mxu0 0
        %960 = vmatpush2.bf16.msra.mxu0 0
        %961 = vmatprep.subr.bf16.mxu0 0
        %962 = vmatpush2.bf16.msra.mxu0 0
        %963 = vmatprep.subr.bf16.mxu0 0
        %964 = vmatpush2.bf16.msra.mxu0 0
        %965 = vmatprep.subr.bf16.mxu0 0
        %966 = vmatpush2.bf16.msra.mxu0 0
        %967 = vmatprep.subr.bf16.mxu0 0
        %968 = vmatpush2.bf16.msra.mxu0 0
        %969 = vmatprep.subr.bf16.mxu0 0
        %970 = vmatpush2.bf16.msra.mxu0 0
        %971 = vmatprep.mubr.bf16.mxu0 0
        %972 = vmatmul.mubr.bf16.gmra.mxu0 %v490
        %v973 = vpop.f32.mrf.mxu0
        %v974 = vadd.f32 %v429, %v973
        %v975 = vpop.f32.mrf.mxu0
        %v976 = vadd.f32 %v433, %v975
        %v977 = vpop.f32.mrf.mxu0
        %v978 = vadd.f32 %v429, %v977
        %v979 = vpop.f32.mrf.mxu0
        %v980 = vadd.f32 %v433, %v979
        %981 = vmatprep.mubr.bf16.mxu0 0
        %982 = vmatmul.mubr.bf16.gmra.mxu0 %v491
        %v983 = vpop.f32.mrf.mxu0
        %v984 = vadd.f32 %v429, %v983
        %v985 = vpop.f32.mrf.mxu0
        %v986 = vadd.f32 %v433, %v985
        %v987 = vpop.f32.mrf.mxu0
        %v988 = vadd.f32 %v429, %v987
        %v989 = vpop.f32.mrf.mxu0
        %v990 = vadd.f32 %v433, %v989
        %991 = vmatprep.mubr.bf16.mxu0 0
        %992 = vmatmul.mubr.bf16.gmra.mxu0 %v492
        %v993 = vpop.f32.mrf.mxu0
        %v994 = vadd.f32 %v429, %v993
        %v995 = vpop.f32.mrf.mxu0
        %v996 = vadd.f32 %v433, %v995
        %v997 = vpop.f32.mrf.mxu0
        %v998 = vadd.f32 %v429, %v997
        %v999 = vpop.f32.mrf.mxu0
        %v1000 = vadd.f32 %v433, %v999
        %1001 = vmatprep.mubr.bf16.mxu0 0
        %1002 = vmatmul.mubr.bf16.gmra.mxu0 %v493
        %v1003 = vpop.f32.mrf.mxu0
        %v1004 = vadd.f32 %v429, %v1003
        %v1005 = vpop.f32.mrf.mxu0
        %v1006 = vadd.f32 %v433, %v1005
        %v1007 = vpop.f32.mrf.mxu0
        %v1008 = vadd.f32 %v429, %v1007
        %v1009 = vpop.f32.mrf.mxu0
        %v1010 = vadd.f32 %v433, %v1009
        %1011 = vmatprep.mubr.bf16.mxu0 0
        %1012 = vmatmul.mubr.bf16.gmra.mxu0 %v494
        %v1013 = vpop.f32.mrf.mxu0
        %v1014 = vadd.f32 %v429, %v1013
        %v1015 = vpop.f32.mrf.mxu0
        %v1016 = vadd.f32 %v433, %v1015
        %v1017 = vpop.f32.mrf.mxu0
        %v1018 = vadd.f32 %v429, %v1017
        %v1019 = vpop.f32.mrf.mxu0
        %v1020 = vadd.f32 %v433, %v1019
        %1021 = vmatprep.mubr.bf16.mxu0 0
        %1022 = vmatmul.mubr.bf16.gmra.mxu0 %v495
        %v1023 = vpop.f32.mrf.mxu0
        %v1024 = vadd.f32 %v429, %v1023
        %v1025 = vpop.f32.mrf.mxu0
        %v1026 = vadd.f32 %v433, %v1025
        %v1027 = vpop.f32.mrf.mxu0
        %v1028 = vadd.f32 %v429, %v1027
        %v1029 = vpop.f32.mrf.mxu0
        %v1030 = vadd.f32 %v433, %v1029
        %1031 = vmatprep.mubr.bf16.mxu0 0
        %1032 = vmatmul.mubr.bf16.gmra.mxu0 %v496
        %v1033 = vpop.f32.mrf.mxu0
        %v1034 = vadd.f32 %v429, %v1033
        %v1035 = vpop.f32.mrf.mxu0
        %v1036 = vadd.f32 %v433, %v1035
        %v1037 = vpop.f32.mrf.mxu0
        %v1038 = vadd.f32 %v429, %v1037
        %v1039 = vpop.f32.mrf.mxu0
        %v1040 = vadd.f32 %v433, %v1039
        %1041 = vmatprep.mubr.bf16.mxu0 0
        %1042 = vmatmul.mubr.bf16.gmra.mxu0 %v497
        %v1043 = vpop.f32.mrf.mxu0
        %v1044 = vadd.f32 %v429, %v1043
        %v1045 = vpop.f32.mrf.mxu0
        %v1046 = vadd.f32 %v433, %v1045
        %v1047 = vpop.f32.mrf.mxu0
        %v1048 = vadd.f32 %v429, %v1047
        %v1049 = vpop.f32.mrf.mxu0
        %v1050 = vadd.f32 %v433, %v1049
        %1051 = vdwg.mxu0
        %1052 = vmatprep.subr.bf16.mxu0 %v759
        %1053 = vmatpush1.bf16.msra.mxu0 %v758
        %1054 = vmatprep.subr.bf16.mxu0 %v751
        %1055 = vmatpush1.bf16.msra.mxu0 %v750
        %1056 = vmatprep.subr.bf16.mxu0 %v743
        %1057 = vmatpush1.bf16.msra.mxu0 %v742
        %1058 = vmatprep.subr.bf16.mxu0 %v735
        %1059 = vmatpush1.bf16.msra.mxu0 %v734
        %1060 = vmatprep.subr.bf16.mxu0 %v727
        %1061 = vmatpush1.bf16.msra.mxu0 %v726
        %1062 = vmatprep.subr.bf16.mxu0 %v719
        %1063 = vmatpush1.bf16.msra.mxu0 %v718
        %1064 = vmatprep.subr.bf16.mxu0 %v711
        %1065 = vmatpush1.bf16.msra.mxu0 %v710
        %1066 = vmatprep.subr.bf16.mxu0 %v703
        %1067 = vmatpush1.bf16.msra.mxu0 %v702
        %1068 = vmatprep.subr.bf16.mxu0 0
        %1069 = vmatpush2.bf16.msra.mxu0 0
        %1070 = vmatprep.subr.bf16.mxu0 0
        %1071 = vmatpush2.bf16.msra.mxu0 0
        %1072 = vmatprep.subr.bf16.mxu0 0
        %1073 = vmatpush2.bf16.msra.mxu0 0
        %1074 = vmatprep.subr.bf16.mxu0 0
        %1075 = vmatpush2.bf16.msra.mxu0 0
        %1076 = vmatprep.subr.bf16.mxu0 0
        %1077 = vmatpush2.bf16.msra.mxu0 0
        %1078 = vmatprep.subr.bf16.mxu0 0
        %1079 = vmatpush2.bf16.msra.mxu0 0
        %1080 = vmatprep.subr.bf16.mxu0 0
        %1081 = vmatpush2.bf16.msra.mxu0 0
        %1082 = vmatprep.subr.bf16.mxu0 0
        %1083 = vmatpush2.bf16.msra.mxu0 0
        %1084 = vmatprep.mubr.bf16.mxu0 0
        %1085 = vmatmul.mubr.bf16.gmra.mxu0 %v490
        %v1086 = vpop.f32.mrf.mxu0
        %v1087 = vadd.f32 %v437, %v1086
        %v1088 = vpop.f32.mrf.mxu0
        %v1089 = vadd.f32 %v441, %v1088
        %v1090 = vpop.f32.mrf.mxu0
        %v1091 = vadd.f32 %v437, %v1090
        %v1092 = vpop.f32.mrf.mxu0
        %v1093 = vadd.f32 %v441, %v1092
        %1094 = vmatprep.mubr.bf16.mxu0 0
        %1095 = vmatmul.mubr.bf16.gmra.mxu0 %v491
        %v1096 = vpop.f32.mrf.mxu0
        %v1097 = vadd.f32 %v437, %v1096
        %v1098 = vpop.f32.mrf.mxu0
        %v1099 = vadd.f32 %v441, %v1098
        %v1100 = vpop.f32.mrf.mxu0
        %v1101 = vadd.f32 %v437, %v1100
        %v1102 = vpop.f32.mrf.mxu0
        %v1103 = vadd.f32 %v441, %v1102
        %1104 = vmatprep.mubr.bf16.mxu0 0
        %1105 = vmatmul.mubr.bf16.gmra.mxu0 %v492
        %v1106 = vpop.f32.mrf.mxu0
        %v1107 = vadd.f32 %v437, %v1106
        %v1108 = vpop.f32.mrf.mxu0
        %v1109 = vadd.f32 %v441, %v1108
        %v1110 = vpop.f32.mrf.mxu0
        %v1111 = vadd.f32 %v437, %v1110
        %v1112 = vpop.f32.mrf.mxu0
        %v1113 = vadd.f32 %v441, %v1112
        %1114 = vmatprep.mubr.bf16.mxu0 0
        %1115 = vmatmul.mubr.bf16.gmra.mxu0 %v493
        %v1116 = vpop.f32.mrf.mxu0
        %v1117 = vadd.f32 %v437, %v1116
        %v1118 = vpop.f32.mrf.mxu0
        %v1119 = vadd.f32 %v441, %v1118
        %v1120 = vpop.f32.mrf.mxu0
        %v1121 = vadd.f32 %v437, %v1120
        %v1122 = vpop.f32.mrf.mxu0
        %v1123 = vadd.f32 %v441, %v1122
        %1124 = vmatprep.mubr.bf16.mxu0 0
        %1125 = vmatmul.mubr.bf16.gmra.mxu0 %v494
        %v1126 = vpop.f32.mrf.mxu0
        %v1127 = vadd.f32 %v437, %v1126
        %v1128 = vpop.f32.mrf.mxu0
        %v1129 = vadd.f32 %v441, %v1128
        %v1130 = vpop.f32.mrf.mxu0
        %v1131 = vadd.f32 %v437, %v1130
        %v1132 = vpop.f32.mrf.mxu0
        %v1133 = vadd.f32 %v441, %v1132
        %1134 = vmatprep.mubr.bf16.mxu0 0
        %1135 = vmatmul.mubr.bf16.gmra.mxu0 %v495
        %v1136 = vpop.f32.mrf.mxu0
        %v1137 = vadd.f32 %v437, %v1136
        %v1138 = vpop.f32.mrf.mxu0
        %v1139 = vadd.f32 %v441, %v1138
        %v1140 = vpop.f32.mrf.mxu0
        %v1141 = vadd.f32 %v437, %v1140
        %v1142 = vpop.f32.mrf.mxu0
        %v1143 = vadd.f32 %v441, %v1142
        %1144 = vmatprep.mubr.bf16.mxu0 0
        %1145 = vmatmul.mubr.bf16.gmra.mxu0 %v496
        %v1146 = vpop.f32.mrf.mxu0
        %v1147 = vadd.f32 %v437, %v1146
        %v1148 = vpop.f32.mrf.mxu0
        %v1149 = vadd.f32 %v441, %v1148
        %v1150 = vpop.f32.mrf.mxu0
        %v1151 = vadd.f32 %v437, %v1150
        %v1152 = vpop.f32.mrf.mxu0
        %v1153 = vadd.f32 %v441, %v1152
        %1154 = vmatprep.mubr.bf16.mxu0 0
        %1155 = vmatmul.mubr.bf16.gmra.mxu0 %v497
        %v1156 = vpop.f32.mrf.mxu0
        %v1157 = vadd.f32 %v437, %v1156
        %v1158 = vpop.f32.mrf.mxu0
        %v1159 = vadd.f32 %v441, %v1158
        %v1160 = vpop.f32.mrf.mxu0
        %v1161 = vadd.f32 %v437, %v1160
        %v1162 = vpop.f32.mrf.mxu0
        %v1163 = vadd.f32 %v441, %v1162
        %1164 = vdwg.mxu0
        %1165 = vmatprep.subr.bf16.mxu0 %v761
        %1166 = vmatpush1.bf16.msra.mxu0 %v760
        %1167 = vmatprep.subr.bf16.mxu0 %v753
        %1168 = vmatpush1.bf16.msra.mxu0 %v752
        %1169 = vmatprep.subr.bf16.mxu0 %v745
        %1170 = vmatpush1.bf16.msra.mxu0 %v744
        %1171 = vmatprep.subr.bf16.mxu0 %v737
        %1172 = vmatpush1.bf16.msra.mxu0 %v736
        %1173 = vmatprep.subr.bf16.mxu0 %v729
        %1174 = vmatpush1.bf16.msra.mxu0 %v728
        %1175 = vmatprep.subr.bf16.mxu0 %v721
        %1176 = vmatpush1.bf16.msra.mxu0 %v720
        %1177 = vmatprep.subr.bf16.mxu0 %v713
        %1178 = vmatpush1.bf16.msra.mxu0 %v712
        %1179 = vmatprep.subr.bf16.mxu0 %v705
        %1180 = vmatpush1.bf16.msra.mxu0 %v704
        %1181 = vmatprep.subr.bf16.mxu0 0
        %1182 = vmatpush2.bf16.msra.mxu0 0
        %1183 = vmatprep.subr.bf16.mxu0 0
        %1184 = vmatpush2.bf16.msra.mxu0 0
        %1185 = vmatprep.subr.bf16.mxu0 0
        %1186 = vmatpush2.bf16.msra.mxu0 0
        %1187 = vmatprep.subr.bf16.mxu0 0
        %1188 = vmatpush2.bf16.msra.mxu0 0
        %1189 = vmatprep.subr.bf16.mxu0 0
        %1190 = vmatpush2.bf16.msra.mxu0 0
        %1191 = vmatprep.subr.bf16.mxu0 0
        %1192 = vmatpush2.bf16.msra.mxu0 0
        %1193 = vmatprep.subr.bf16.mxu0 0
        %1194 = vmatpush2.bf16.msra.mxu0 0
        %1195 = vmatprep.subr.bf16.mxu0 0
        %1196 = vmatpush2.bf16.msra.mxu0 0
        %1197 = vmatprep.mubr.bf16.mxu0 0
        %1198 = vmatmul.mubr.bf16.gmra.mxu0 %v490
        %v1199 = vpop.f32.mrf.mxu0
        %v1200 = vadd.f32 %v445, %v1199
        %v1201 = vpop.f32.mrf.mxu0
        %v1202 = vadd.f32 %v449, %v1201
        %v1203 = vpop.f32.mrf.mxu0
        %v1204 = vadd.f32 %v445, %v1203
        %v1205 = vpop.f32.mrf.mxu0
        %v1206 = vadd.f32 %v449, %v1205
        %1207 = vmatprep.mubr.bf16.mxu0 0
        %1208 = vmatmul.mubr.bf16.gmra.mxu0 %v491
        %v1209 = vpop.f32.mrf.mxu0
        %v1210 = vadd.f32 %v445, %v1209
        %v1211 = vpop.f32.mrf.mxu0
        %v1212 = vadd.f32 %v449, %v1211
        %v1213 = vpop.f32.mrf.mxu0
        %v1214 = vadd.f32 %v445, %v1213
        %v1215 = vpop.f32.mrf.mxu0
        %v1216 = vadd.f32 %v449, %v1215
        %1217 = vmatprep.mubr.bf16.mxu0 0
        %1218 = vmatmul.mubr.bf16.gmra.mxu0 %v492
        %v1219 = vpop.f32.mrf.mxu0
        %v1220 = vadd.f32 %v445, %v1219
        %v1221 = vpop.f32.mrf.mxu0
        %v1222 = vadd.f32 %v449, %v1221
        %v1223 = vpop.f32.mrf.mxu0
        %v1224 = vadd.f32 %v445, %v1223
        %v1225 = vpop.f32.mrf.mxu0
        %v1226 = vadd.f32 %v449, %v1225
        %1227 = vmatprep.mubr.bf16.mxu0 0
        %1228 = vmatmul.mubr.bf16.gmra.mxu0 %v493
        %v1229 = vpop.f32.mrf.mxu0
        %v1230 = vadd.f32 %v445, %v1229
        %v1231 = vpop.f32.mrf.mxu0
        %v1232 = vadd.f32 %v449, %v1231
        %v1233 = vpop.f32.mrf.mxu0
        %v1234 = vadd.f32 %v445, %v1233
        %v1235 = vpop.f32.mrf.mxu0
        %v1236 = vadd.f32 %v449, %v1235
        %1237 = vmatprep.mubr.bf16.mxu0 0
        %1238 = vmatmul.mubr.bf16.gmra.mxu0 %v494
        %v1239 = vpop.f32.mrf.mxu0
        %v1240 = vadd.f32 %v445, %v1239
        %v1241 = vpop.f32.mrf.mxu0
        %v1242 = vadd.f32 %v449, %v1241
        %v1243 = vpop.f32.mrf.mxu0
        %v1244 = vadd.f32 %v445, %v1243
        %v1245 = vpop.f32.mrf.mxu0
        %v1246 = vadd.f32 %v449, %v1245
        %1247 = vmatprep.mubr.bf16.mxu0 0
        %1248 = vmatmul.mubr.bf16.gmra.mxu0 %v495
        %v1249 = vpop.f32.mrf.mxu0
        %v1250 = vadd.f32 %v445, %v1249
        %v1251 = vpop.f32.mrf.mxu0
        %v1252 = vadd.f32 %v449, %v1251
        %v1253 = vpop.f32.mrf.mxu0
        %v1254 = vadd.f32 %v445, %v1253
        %v1255 = vpop.f32.mrf.mxu0
        %v1256 = vadd.f32 %v449, %v1255
        %1257 = vmatprep.mubr.bf16.mxu0 0
        %1258 = vmatmul.mubr.bf16.gmra.mxu0 %v496
        %v1259 = vpop.f32.mrf.mxu0
        %v1260 = vadd.f32 %v445, %v1259
        %v1261 = vpop.f32.mrf.mxu0
        %v1262 = vadd.f32 %v449, %v1261
        %v1263 = vpop.f32.mrf.mxu0
        %v1264 = vadd.f32 %v445, %v1263
        %v1265 = vpop.f32.mrf.mxu0
        %v1266 = vadd.f32 %v449, %v1265
        %1267 = vmatprep.mubr.bf16.mxu0 0
        %1268 = vmatmul.mubr.bf16.gmra.mxu0 %v497
        %v1269 = vpop.f32.mrf.mxu0
        %v1270 = vadd.f32 %v445, %v1269
        %v1271 = vpop.f32.mrf.mxu0
        %v1272 = vadd.f32 %v449, %v1271
        %v1273 = vpop.f32.mrf.mxu0
        %v1274 = vadd.f32 %v445, %v1273
        %v1275 = vpop.f32.mrf.mxu0
        %v1276 = vadd.f32 %v449, %v1275
        %1277 = vdwg.mxu0
        %v1278 = vmax.f32 %v861, 0.0
        %v1279 = vmax.f32 %v863, 0.0
        %v1280 = vmax.f32 %v974, 0.0
        %v1281 = vmax.f32 %v976, 0.0
        %v1282 = vmax.f32 %v1087, 0.0
        %v1283 = vmax.f32 %v1089, 0.0
        %v1284 = vmax.f32 %v1200, 0.0
        %v1285 = vmax.f32 %v1202, 0.0
        %v1286 = vmax.f32 %v865, 0.0
        %v1287 = vmax.f32 %v867, 0.0
        %v1288 = vmax.f32 %v978, 0.0
        %v1289 = vmax.f32 %v980, 0.0
        %v1290 = vmax.f32 %v1091, 0.0
        %v1291 = vmax.f32 %v1093, 0.0
        %v1292 = vmax.f32 %v1204, 0.0
        %v1293 = vmax.f32 %v1206, 0.0
        %v1294 = vmax.f32 %v871, 0.0
        %v1295 = vmax.f32 %v873, 0.0
        %v1296 = vmax.f32 %v984, 0.0
        %v1297 = vmax.f32 %v986, 0.0
        %v1298 = vmax.f32 %v1097, 0.0
        %v1299 = vmax.f32 %v1099, 0.0
        %v1300 = vmax.f32 %v1210, 0.0
        %v1301 = vmax.f32 %v1212, 0.0
        %v1302 = vmax.f32 %v875, 0.0
        %v1303 = vmax.f32 %v877, 0.0
        %v1304 = vmax.f32 %v988, 0.0
        %v1305 = vmax.f32 %v990, 0.0
        %v1306 = vmax.f32 %v1101, 0.0
        %v1307 = vmax.f32 %v1103, 0.0
        %v1308 = vmax.f32 %v1214, 0.0
        %v1309 = vmax.f32 %v1216, 0.0
        %v1310 = vmax.f32 %v881, 0.0
        %v1311 = vmax.f32 %v883, 0.0
        %v1312 = vmax.f32 %v994, 0.0
        %v1313 = vmax.f32 %v996, 0.0
        %v1314 = vmax.f32 %v1107, 0.0
        %v1315 = vmax.f32 %v1109, 0.0
        %v1316 = vmax.f32 %v1220, 0.0
        %v1317 = vmax.f32 %v1222, 0.0
        %v1318 = vmax.f32 %v885, 0.0
        %v1319 = vmax.f32 %v887, 0.0
        %v1320 = vmax.f32 %v998, 0.0
        %v1321 = vmax.f32 %v1000, 0.0
        %v1322 = vmax.f32 %v1111, 0.0
        %v1323 = vmax.f32 %v1113, 0.0
        %v1324 = vmax.f32 %v1224, 0.0
        %v1325 = vmax.f32 %v1226, 0.0
        %v1326 = vmax.f32 %v891, 0.0
        %v1327 = vmax.f32 %v893, 0.0
        %v1328 = vmax.f32 %v1004, 0.0
        %v1329 = vmax.f32 %v1006, 0.0
        %v1330 = vmax.f32 %v1117, 0.0
        %v1331 = vmax.f32 %v1119, 0.0
        %v1332 = vmax.f32 %v1230, 0.0
        %v1333 = vmax.f32 %v1232, 0.0
        %v1334 = vmax.f32 %v895, 0.0
        %v1335 = vmax.f32 %v897, 0.0
        %v1336 = vmax.f32 %v1008, 0.0
        %v1337 = vmax.f32 %v1010, 0.0
        %v1338 = vmax.f32 %v1121, 0.0
        %v1339 = vmax.f32 %v1123, 0.0
        %v1340 = vmax.f32 %v1234, 0.0
        %v1341 = vmax.f32 %v1236, 0.0
        %v1342 = vmax.f32 %v901, 0.0
        %v1343 = vmax.f32 %v903, 0.0
        %v1344 = vmax.f32 %v1014, 0.0
        %v1345 = vmax.f32 %v1016, 0.0
        %v1346 = vmax.f32 %v1127, 0.0
        %v1347 = vmax.f32 %v1129, 0.0
        %v1348 = vmax.f32 %v1240, 0.0
        %v1349 = vmax.f32 %v1242, 0.0
        %v1350 = vmax.f32 %v905, 0.0
        %v1351 = vmax.f32 %v907, 0.0
        %v1352 = vmax.f32 %v1018, 0.0
        %v1353 = vmax.f32 %v1020, 0.0
        %v1354 = vmax.f32 %v1131, 0.0
        %v1355 = vmax.f32 %v1133, 0.0
        %v1356 = vmax.f32 %v1244, 0.0
        %v1357 = vmax.f32 %v1246, 0.0
        %v1358 = vmax.f32 %v911, 0.0
        %v1359 = vmax.f32 %v913, 0.0
        %v1360 = vmax.f32 %v1024, 0.0
        %v1361 = vmax.f32 %v1026, 0.0
        %v1362 = vmax.f32 %v1137, 0.0
        %v1363 = vmax.f32 %v1139, 0.0
        %v1364 = vmax.f32 %v1250, 0.0
        %v1365 = vmax.f32 %v1252, 0.0
        %v1366 = vmax.f32 %v915, 0.0
        %v1367 = vmax.f32 %v917, 0.0
        %v1368 = vmax.f32 %v1028, 0.0
        %v1369 = vmax.f32 %v1030, 0.0
        %v1370 = vmax.f32 %v1141, 0.0
        %v1371 = vmax.f32 %v1143, 0.0
        %v1372 = vmax.f32 %v1254, 0.0
        %v1373 = vmax.f32 %v1256, 0.0
        %v1374 = vmax.f32 %v921, 0.0
        %v1375 = vmax.f32 %v923, 0.0
        %v1376 = vmax.f32 %v1034, 0.0
        %v1377 = vmax.f32 %v1036, 0.0
        %v1378 = vmax.f32 %v1147, 0.0
        %v1379 = vmax.f32 %v1149, 0.0
        %v1380 = vmax.f32 %v1260, 0.0
        %v1381 = vmax.f32 %v1262, 0.0
        %v1382 = vmax.f32 %v925, 0.0
        %v1383 = vmax.f32 %v927, 0.0
        %v1384 = vmax.f32 %v1038, 0.0
        %v1385 = vmax.f32 %v1040, 0.0
        %v1386 = vmax.f32 %v1151, 0.0
        %v1387 = vmax.f32 %v1153, 0.0
        %v1388 = vmax.f32 %v1264, 0.0
        %v1389 = vmax.f32 %v1266, 0.0
        %v1390 = vmax.f32 %v931, 0.0
        %v1391 = vmax.f32 %v933, 0.0
        %v1392 = vmax.f32 %v1044, 0.0
        %v1393 = vmax.f32 %v1046, 0.0
        %v1394 = vmax.f32 %v1157, 0.0
        %v1395 = vmax.f32 %v1159, 0.0
        %v1396 = vmax.f32 %v1270, 0.0
        %v1397 = vmax.f32 %v1272, 0.0
        %v1398 = vmax.f32 %v935, 0.0
        %v1399 = vmax.f32 %v937, 0.0
        %v1400 = vmax.f32 %v1048, 0.0
        %v1401 = vmax.f32 %v1050, 0.0
        %v1402 = vmax.f32 %v1161, 0.0
        %v1403 = vmax.f32 %v1163, 0.0
        %v1404 = vmax.f32 %v1274, 0.0
        %v1405 = vmax.f32 %v1276, 0.0
        %v1406 = vpack.c.bf16 %v1286, %v1278
        %v1407 = vpack.c.bf16 %v1287, %v1279
        %v1408 = vpack.c.bf16 %v1288, %v1280
        %v1409 = vpack.c.bf16 %v1289, %v1281
        %v1410 = vpack.c.bf16 %v1290, %v1282
        %v1411 = vpack.c.bf16 %v1291, %v1283
        %v1412 = vpack.c.bf16 %v1292, %v1284
        %v1413 = vpack.c.bf16 %v1293, %v1285
        %v1414 = vpack.c.bf16 %v1302, %v1294
        %v1415 = vpack.c.bf16 %v1303, %v1295
        %v1416 = vpack.c.bf16 %v1304, %v1296
        %v1417 = vpack.c.bf16 %v1305, %v1297
        %v1418 = vpack.c.bf16 %v1306, %v1298
        %v1419 = vpack.c.bf16 %v1307, %v1299
        %v1420 = vpack.c.bf16 %v1308, %v1300
        %v1421 = vpack.c.bf16 %v1309, %v1301
        %v1422 = vpack.c.bf16 %v1318, %v1310
        %v1423 = vpack.c.bf16 %v1319, %v1311
        %v1424 = vpack.c.bf16 %v1320, %v1312
        %v1425 = vpack.c.bf16 %v1321, %v1313
        %v1426 = vpack.c.bf16 %v1322, %v1314
        %v1427 = vpack.c.bf16 %v1323, %v1315
        %v1428 = vpack.c.bf16 %v1324, %v1316
        %v1429 = vpack.c.bf16 %v1325, %v1317
        %v1430 = vpack.c.bf16 %v1334, %v1326
        %v1431 = vpack.c.bf16 %v1335, %v1327
        %v1432 = vpack.c.bf16 %v1336, %v1328
        %v1433 = vpack.c.bf16 %v1337, %v1329
        %v1434 = vpack.c.bf16 %v1338, %v1330
        %v1435 = vpack.c.bf16 %v1339, %v1331
        %v1436 = vpack.c.bf16 %v1340, %v1332
        %v1437 = vpack.c.bf16 %v1341, %v1333
        %v1438 = vpack.c.bf16 %v1350, %v1342
        %v1439 = vpack.c.bf16 %v1351, %v1343
        %v1440 = vpack.c.bf16 %v1352, %v1344
        %v1441 = vpack.c.bf16 %v1353, %v1345
        %v1442 = vpack.c.bf16 %v1354, %v1346
        %v1443 = vpack.c.bf16 %v1355, %v1347
        %v1444 = vpack.c.bf16 %v1356, %v1348
        %v1445 = vpack.c.bf16 %v1357, %v1349
        %v1446 = vpack.c.bf16 %v1366, %v1358
        %v1447 = vpack.c.bf16 %v1367, %v1359
        %v1448 = vpack.c.bf16 %v1368, %v1360
        %v1449 = vpack.c.bf16 %v1369, %v1361
        %v1450 = vpack.c.bf16 %v1370, %v1362
        %v1451 = vpack.c.bf16 %v1371, %v1363
        %v1452 = vpack.c.bf16 %v1372, %v1364
        %v1453 = vpack.c.bf16 %v1373, %v1365
        %v1454 = vpack.c.bf16 %v1382, %v1374
        %v1455 = vpack.c.bf16 %v1383, %v1375
        %v1456 = vpack.c.bf16 %v1384, %v1376
        %v1457 = vpack.c.bf16 %v1385, %v1377
        %v1458 = vpack.c.bf16 %v1386, %v1378
        %v1459 = vpack.c.bf16 %v1387, %v1379
        %v1460 = vpack.c.bf16 %v1388, %v1380
        %v1461 = vpack.c.bf16 %v1389, %v1381
        %v1462 = vpack.c.bf16 %v1398, %v1390
        %v1463 = vpack.c.bf16 %v1399, %v1391
        %v1464 = vpack.c.bf16 %v1400, %v1392
        %v1465 = vpack.c.bf16 %v1401, %v1393
        %v1466 = vpack.c.bf16 %v1402, %v1394
        %v1467 = vpack.c.bf16 %v1403, %v1395
        %v1468 = vpack.c.bf16 %v1404, %v1396
        %v1469 = vpack.c.bf16 %v1405, %v1397
        %v1534 = vunpack.c.l.b16 %v1406
        %v1535 = vunpack.c.l.b16 %v1407
        %v1536 = vunpack.c.l.b16 %v1408
        %v1537 = vunpack.c.l.b16 %v1409
        %v1538 = vunpack.c.l.b16 %v1410
        %v1539 = vunpack.c.l.b16 %v1411
        %v1540 = vunpack.c.l.b16 %v1412
        %v1541 = vunpack.c.l.b16 %v1413
        %v1542 = vunpack.c.h.b16 %v1406
        %v1543 = vunpack.c.h.b16 %v1407
        %v1544 = vunpack.c.h.b16 %v1408
        %v1545 = vunpack.c.h.b16 %v1409
        %v1546 = vunpack.c.h.b16 %v1410
        %v1547 = vunpack.c.h.b16 %v1411
        %v1548 = vunpack.c.h.b16 %v1412
        %v1549 = vunpack.c.h.b16 %v1413
        %v1550 = vunpack.c.l.b16 %v1414
        %v1551 = vunpack.c.l.b16 %v1415
        %v1552 = vunpack.c.l.b16 %v1416
        %v1553 = vunpack.c.l.b16 %v1417
        %v1554 = vunpack.c.l.b16 %v1418
        %v1555 = vunpack.c.l.b16 %v1419
        %v1556 = vunpack.c.l.b16 %v1420
        %v1557 = vunpack.c.l.b16 %v1421
        %v1558 = vunpack.c.h.b16 %v1414
        %v1559 = vunpack.c.h.b16 %v1415
        %v1560 = vunpack.c.h.b16 %v1416
        %v1561 = vunpack.c.h.b16 %v1417
        %v1562 = vunpack.c.h.b16 %v1418
        %v1563 = vunpack.c.h.b16 %v1419
        %v1564 = vunpack.c.h.b16 %v1420
        %v1565 = vunpack.c.h.b16 %v1421
        %v1566 = vunpack.c.l.b16 %v1422
        %v1567 = vunpack.c.l.b16 %v1423
        %v1568 = vunpack.c.l.b16 %v1424
        %v1569 = vunpack.c.l.b16 %v1425
        %v1570 = vunpack.c.l.b16 %v1426
        %v1571 = vunpack.c.l.b16 %v1427
        %v1572 = vunpack.c.l.b16 %v1428
        %v1573 = vunpack.c.l.b16 %v1429
        %v1574 = vunpack.c.h.b16 %v1422
        %v1575 = vunpack.c.h.b16 %v1423
        %v1576 = vunpack.c.h.b16 %v1424
        %v1577 = vunpack.c.h.b16 %v1425
        %v1578 = vunpack.c.h.b16 %v1426
        %v1579 = vunpack.c.h.b16 %v1427
        %v1580 = vunpack.c.h.b16 %v1428
        %v1581 = vunpack.c.h.b16 %v1429
        %v1582 = vunpack.c.l.b16 %v1430
        %v1583 = vunpack.c.l.b16 %v1431
        %v1584 = vunpack.c.l.b16 %v1432
        %v1585 = vunpack.c.l.b16 %v1433
        %v1586 = vunpack.c.l.b16 %v1434
        %v1587 = vunpack.c.l.b16 %v1435
        %v1588 = vunpack.c.l.b16 %v1436
        %v1589 = vunpack.c.l.b16 %v1437
        %v1590 = vunpack.c.h.b16 %v1430
        %v1591 = vunpack.c.h.b16 %v1431
        %v1592 = vunpack.c.h.b16 %v1432
        %v1593 = vunpack.c.h.b16 %v1433
        %v1594 = vunpack.c.h.b16 %v1434
        %v1595 = vunpack.c.h.b16 %v1435
        %v1596 = vunpack.c.h.b16 %v1436
        %v1597 = vunpack.c.h.b16 %v1437
        %v1598 = vunpack.c.l.b16 %v1438
        %v1599 = vunpack.c.l.b16 %v1439
        %v1600 = vunpack.c.l.b16 %v1440
        %v1601 = vunpack.c.l.b16 %v1441
        %v1602 = vunpack.c.l.b16 %v1442
        %v1603 = vunpack.c.l.b16 %v1443
        %v1604 = vunpack.c.l.b16 %v1444
        %v1605 = vunpack.c.l.b16 %v1445
        %v1606 = vunpack.c.h.b16 %v1438
        %v1607 = vunpack.c.h.b16 %v1439
        %v1608 = vunpack.c.h.b16 %v1440
        %v1609 = vunpack.c.h.b16 %v1441
        %v1610 = vunpack.c.h.b16 %v1442
        %v1611 = vunpack.c.h.b16 %v1443
        %v1612 = vunpack.c.h.b16 %v1444
        %v1613 = vunpack.c.h.b16 %v1445
        %v1614 = vunpack.c.l.b16 %v1446
        %v1615 = vunpack.c.l.b16 %v1447
        %v1616 = vunpack.c.l.b16 %v1448
        %v1617 = vunpack.c.l.b16 %v1449
        %v1618 = vunpack.c.l.b16 %v1450
        %v1619 = vunpack.c.l.b16 %v1451
        %v1620 = vunpack.c.l.b16 %v1452
        %v1621 = vunpack.c.l.b16 %v1453
        %v1622 = vunpack.c.h.b16 %v1446
        %v1623 = vunpack.c.h.b16 %v1447
        %v1624 = vunpack.c.h.b16 %v1448
        %v1625 = vunpack.c.h.b16 %v1449
        %v1626 = vunpack.c.h.b16 %v1450
        %v1627 = vunpack.c.h.b16 %v1451
        %v1628 = vunpack.c.h.b16 %v1452
        %v1629 = vunpack.c.h.b16 %v1453
        %v1630 = vunpack.c.l.b16 %v1454
        %v1631 = vunpack.c.l.b16 %v1455
        %v1632 = vunpack.c.l.b16 %v1456
        %v1633 = vunpack.c.l.b16 %v1457
        %v1634 = vunpack.c.l.b16 %v1458
        %v1635 = vunpack.c.l.b16 %v1459
        %v1636 = vunpack.c.l.b16 %v1460
        %v1637 = vunpack.c.l.b16 %v1461
        %v1638 = vunpack.c.h.b16 %v1454
        %v1639 = vunpack.c.h.b16 %v1455
        %v1640 = vunpack.c.h.b16 %v1456
        %v1641 = vunpack.c.h.b16 %v1457
        %v1642 = vunpack.c.h.b16 %v1458
        %v1643 = vunpack.c.h.b16 %v1459
        %v1644 = vunpack.c.h.b16 %v1460
        %v1645 = vunpack.c.h.b16 %v1461
        %v1646 = vunpack.c.l.b16 %v1462
        %v1647 = vunpack.c.l.b16 %v1463
        %v1648 = vunpack.c.l.b16 %v1464
        %v1649 = vunpack.c.l.b16 %v1465
        %v1650 = vunpack.c.l.b16 %v1466
        %v1651 = vunpack.c.l.b16 %v1467
        %v1652 = vunpack.c.l.b16 %v1468
        %v1653 = vunpack.c.l.b16 %v1469
        %v1654 = vunpack.c.h.b16 %v1462
        %v1655 = vunpack.c.h.b16 %v1463
        %v1656 = vunpack.c.h.b16 %v1464
        %v1657 = vunpack.c.h.b16 %v1465
        %v1658 = vunpack.c.h.b16 %v1466
        %v1659 = vunpack.c.h.b16 %v1467
        %v1660 = vunpack.c.h.b16 %v1468
        %v1661 = vunpack.c.h.b16 %v1469
        %v1662 = vpack.c.b16 %v1535, %v1534
        %v1663 = vpack.c.b16 %v1537, %v1536
        %v1664 = vpack.c.b16 %v1539, %v1538
        %v1665 = vpack.c.b16 %v1541, %v1540
        %v1666 = vpack.c.b16 %v1543, %v1542
        %v1667 = vpack.c.b16 %v1545, %v1544
        %v1668 = vpack.c.b16 %v1547, %v1546
        %v1669 = vpack.c.b16 %v1549, %v1548
        %v1670 = vpack.c.b16 %v1551, %v1550
        %v1671 = vpack.c.b16 %v1553, %v1552
        %v1672 = vpack.c.b16 %v1555, %v1554
        %v1673 = vpack.c.b16 %v1557, %v1556
        %v1674 = vpack.c.b16 %v1559, %v1558
        %v1675 = vpack.c.b16 %v1561, %v1560
        %v1676 = vpack.c.b16 %v1563, %v1562
        %v1677 = vpack.c.b16 %v1565, %v1564
        %v1678 = vpack.c.b16 %v1567, %v1566
        %v1679 = vpack.c.b16 %v1569, %v1568
        %v1680 = vpack.c.b16 %v1571, %v1570
        %v1681 = vpack.c.b16 %v1573, %v1572
        %v1682 = vpack.c.b16 %v1575, %v1574
        %v1683 = vpack.c.b16 %v1577, %v1576
        %v1684 = vpack.c.b16 %v1579, %v1578
        %v1685 = vpack.c.b16 %v1581, %v1580
        %v1686 = vpack.c.b16 %v1583, %v1582
        %v1687 = vpack.c.b16 %v1585, %v1584
        %v1688 = vpack.c.b16 %v1587, %v1586
        %v1689 = vpack.c.b16 %v1589, %v1588
        %v1690 = vpack.c.b16 %v1591, %v1590
        %v1691 = vpack.c.b16 %v1593, %v1592
        %v1692 = vpack.c.b16 %v1595, %v1594
        %v1693 = vpack.c.b16 %v1597, %v1596
        %v1694 = vpack.c.b16 %v1599, %v1598
        %v1695 = vpack.c.b16 %v1601, %v1600
        %v1696 = vpack.c.b16 %v1603, %v1602
        %v1697 = vpack.c.b16 %v1605, %v1604
        %v1698 = vpack.c.b16 %v1607, %v1606
        %v1699 = vpack.c.b16 %v1609, %v1608
        %v1700 = vpack.c.b16 %v1611, %v1610
        %v1701 = vpack.c.b16 %v1613, %v1612
        %v1702 = vpack.c.b16 %v1615, %v1614
        %v1703 = vpack.c.b16 %v1617, %v1616
        %v1704 = vpack.c.b16 %v1619, %v1618
        %v1705 = vpack.c.b16 %v1621, %v1620
        %v1706 = vpack.c.b16 %v1623, %v1622
        %v1707 = vpack.c.b16 %v1625, %v1624
        %v1708 = vpack.c.b16 %v1627, %v1626
        %v1709 = vpack.c.b16 %v1629, %v1628
        %v1710 = vpack.c.b16 %v1631, %v1630
        %v1711 = vpack.c.b16 %v1633, %v1632
        %v1712 = vpack.c.b16 %v1635, %v1634
        %v1713 = vpack.c.b16 %v1637, %v1636
        %v1714 = vpack.c.b16 %v1639, %v1638
        %v1715 = vpack.c.b16 %v1641, %v1640
        %v1716 = vpack.c.b16 %v1643, %v1642
        %v1717 = vpack.c.b16 %v1645, %v1644
        %v1718 = vpack.c.b16 %v1647, %v1646
        %v1719 = vpack.c.b16 %v1649, %v1648
        %v1720 = vpack.c.b16 %v1651, %v1650
        %v1721 = vpack.c.b16 %v1653, %v1652
        %v1722 = vpack.c.b16 %v1655, %v1654
        %v1723 = vpack.c.b16 %v1657, %v1656
        %v1724 = vpack.c.b16 %v1659, %v1658
        %v1725 = vpack.c.b16 %v1661, %v1660
        %1790 = vst [vmem:[#allocation2] sm:$0xff] %v1662
        %1791 = vst [vmem:[#allocation2 + $0x8] sm:$0xff] %v1663
        %1792 = vst [vmem:[#allocation2 + $0x10] sm:$0xff] %v1664
        %1793 = vst [vmem:[#allocation2 + $0x18] sm:$0xff] %v1665
        %1794 = vst [vmem:[#allocation2 + $0x20] sm:$0xff] %v1666
        %1795 = vst [vmem:[#allocation2 + $0x28] sm:$0xff] %v1667
        %1796 = vst [vmem:[#allocation2 + $0x30] sm:$0xff] %v1668
        %1797 = vst [vmem:[#allocation2 + $0x38] sm:$0xff] %v1669
        %1798 = vst [vmem:[#allocation2 + $0x40] sm:$0xff] %v1670
        %1799 = vst [vmem:[#allocation2 + $0x48] sm:$0xff] %v1671
        %1800 = vst [vmem:[#allocation2 + $0x50] sm:$0xff] %v1672
        %1801 = vst [vmem:[#allocation2 + $0x58] sm:$0xff] %v1673
        %1802 = vst [vmem:[#allocation2 + $0x60] sm:$0xff] %v1674
        %1803 = vst [vmem:[#allocation2 + $0x68] sm:$0xff] %v1675
        %1804 = vst [vmem:[#allocation2 + $0x70] sm:$0xff] %v1676
        %1805 = vst [vmem:[#allocation2 + $0x78] sm:$0xff] %v1677
        %1806 = vst [vmem:[#allocation2 + $0x80] sm:$0xff] %v1678
        %1807 = vst [vmem:[#allocation2 + $0x88] sm:$0xff] %v1679
        %1808 = vst [vmem:[#allocation2 + $0x90] sm:$0xff] %v1680
        %1809 = vst [vmem:[#allocation2 + $0x98] sm:$0xff] %v1681
        %1810 = vst [vmem:[#allocation2 + $0xa0] sm:$0xff] %v1682
        %1811 = vst [vmem:[#allocation2 + $0xa8] sm:$0xff] %v1683
        %1812 = vst [vmem:[#allocation2 + $0xb0] sm:$0xff] %v1684
        %1813 = vst [vmem:[#allocation2 + $0xb8] sm:$0xff] %v1685
        %1814 = vst [vmem:[#allocation2 + $0xc0] sm:$0xff] %v1686
        %1815 = vst [vmem:[#allocation2 + $0xc8] sm:$0xff] %v1687
        %1816 = vst [vmem:[#allocation2 + $0xd0] sm:$0xff] %v1688
        %1817 = vst [vmem:[#allocation2 + $0xd8] sm:$0xff] %v1689
        %1818 = vst [vmem:[#allocation2 + $0xe0] sm:$0xff] %v1690
        %1819 = vst [vmem:[#allocation2 + $0xe8] sm:$0xff] %v1691
        %1820 = vst [vmem:[#allocation2 + $0xf0] sm:$0xff] %v1692
        %1821 = vst [vmem:[#allocation2 + $0xf8] sm:$0xff] %v1693
        %1822 = vst [vmem:[#allocation2 + $0x100] sm:$0xff] %v1694
        %1823 = vst [vmem:[#allocation2 + $0x108] sm:$0xff] %v1695
        %1824 = vst [vmem:[#allocation2 + $0x110] sm:$0xff] %v1696
        %1825 = vst [vmem:[#allocation2 + $0x118] sm:$0xff] %v1697
        %1826 = vst [vmem:[#allocation2 + $0x120] sm:$0xff] %v1698
        %1827 = vst [vmem:[#allocation2 + $0x128] sm:$0xff] %v1699
        %1828 = vst [vmem:[#allocation2 + $0x130] sm:$0xff] %v1700
        %1829 = vst [vmem:[#allocation2 + $0x138] sm:$0xff] %v1701
        %1830 = vst [vmem:[#allocation2 + $0x140] sm:$0xff] %v1702
        %1831 = vst [vmem:[#allocation2 + $0x148] sm:$0xff] %v1703
        %1832 = vst [vmem:[#allocation2 + $0x150] sm:$0xff] %v1704
        %1833 = vst [vmem:[#allocation2 + $0x158] sm:$0xff] %v1705
        %1834 = vst [vmem:[#allocation2 + $0x160] sm:$0xff] %v1706
        %1835 = vst [vmem:[#allocation2 + $0x168] sm:$0xff] %v1707
        %1836 = vst [vmem:[#allocation2 + $0x170] sm:$0xff] %v1708
        %1837 = vst [vmem:[#allocation2 + $0x178] sm:$0xff] %v1709
        %1838 = vst [vmem:[#allocation2 + $0x180] sm:$0xff] %v1710
        %1839 = vst [vmem:[#allocation2 + $0x188] sm:$0xff] %v1711
        %1840 = vst [vmem:[#allocation2 + $0x190] sm:$0xff] %v1712
        %1841 = vst [vmem:[#allocation2 + $0x198] sm:$0xff] %v1713
        %1842 = vst [vmem:[#allocation2 + $0x1a0] sm:$0xff] %v1714
        %1843 = vst [vmem:[#allocation2 + $0x1a8] sm:$0xff] %v1715
        %1844 = vst [vmem:[#allocation2 + $0x1b0] sm:$0xff] %v1716
        %1845 = vst [vmem:[#allocation2 + $0x1b8] sm:$0xff] %v1717
        %1846 = vst [vmem:[#allocation2 + $0x1c0] sm:$0xff] %v1718
        %1847 = vst [vmem:[#allocation2 + $0x1c8] sm:$0xff] %v1719
        %1848 = vst [vmem:[#allocation2 + $0x1d0] sm:$0xff] %v1720
        %1849 = vst [vmem:[#allocation2 + $0x1d8] sm:$0xff] %v1721
        %1850 = vst [vmem:[#allocation2 + $0x1e0] sm:$0xff] %v1722
        %1851 = vst [vmem:[#allocation2 + $0x1e8] sm:$0xff] %v1723
        %1852 = vst [vmem:[#allocation2 + $0x1f0] sm:$0xff] %v1724
        %1853 = vst [vmem:[#allocation2 + $0x1f8] sm:$0xff] %v1725
      $region52: #{mlp_forward.1} parent=47 // pred_fallthru
        _
      %v1854 = vld [vmem:[#allocation2] sm:$0xff]
      %v1855 = vld [vmem:[#allocation2 + $0x8] sm:$0xff]
      %v1856 = vld [vmem:[#allocation2 + $0x10] sm:$0xff]
      %v1857 = vld [vmem:[#allocation2 + $0x18] sm:$0xff]
      %v1858 = vld [vmem:[#allocation2 + $0x20] sm:$0xff]
      %v1859 = vld [vmem:[#allocation2 + $0x28] sm:$0xff]
      %v1860 = vld [vmem:[#allocation2 + $0x30] sm:$0xff]
      %v1861 = vld [vmem:[#allocation2 + $0x38] sm:$0xff]
      %v1862 = vld [vmem:[#allocation2 + $0x40] sm:$0xff]
      %v1863 = vld [vmem:[#allocation2 + $0x48] sm:$0xff]
      %v1864 = vld [vmem:[#allocation2 + $0x50] sm:$0xff]
      %v1865 = vld [vmem:[#allocation2 + $0x58] sm:$0xff]
      %v1866 = vld [vmem:[#allocation2 + $0x60] sm:$0xff]
      %v1867 = vld [vmem:[#allocation2 + $0x68] sm:$0xff]
      %v1868 = vld [vmem:[#allocation2 + $0x70] sm:$0xff]
      %v1869 = vld [vmem:[#allocation2 + $0x78] sm:$0xff]
      %v1870 = vld [vmem:[#allocation2 + $0x80] sm:$0xff]
      %v1871 = vld [vmem:[#allocation2 + $0x88] sm:$0xff]
      %v1872 = vld [vmem:[#allocation2 + $0x90] sm:$0xff]
      %v1873 = vld [vmem:[#allocation2 + $0x98] sm:$0xff]
      %v1874 = vld [vmem:[#allocation2 + $0xa0] sm:$0xff]
      %v1875 = vld [vmem:[#allocation2 + $0xa8] sm:$0xff]
      %v1876 = vld [vmem:[#allocation2 + $0xb0] sm:$0xff]
      %v1877 = vld [vmem:[#allocation2 + $0xb8] sm:$0xff]
      %v1878 = vld [vmem:[#allocation2 + $0xc0] sm:$0xff]
      %v1879 = vld [vmem:[#allocation2 + $0xc8] sm:$0xff]
      %v1880 = vld [vmem:[#allocation2 + $0xd0] sm:$0xff]
      %v1881 = vld [vmem:[#allocation2 + $0xd8] sm:$0xff]
      %v1882 = vld [vmem:[#allocation2 + $0xe0] sm:$0xff]
      %v1883 = vld [vmem:[#allocation2 + $0xe8] sm:$0xff]
      %v1884 = vld [vmem:[#allocation2 + $0xf0] sm:$0xff]
      %v1885 = vld [vmem:[#allocation2 + $0xf8] sm:$0xff]
      %v1886 = vld [vmem:[#allocation2 + $0x100] sm:$0xff]
      %v1887 = vld [vmem:[#allocation2 + $0x108] sm:$0xff]
      %v1888 = vld [vmem:[#allocation2 + $0x110] sm:$0xff]
      %v1889 = vld [vmem:[#allocation2 + $0x118] sm:$0xff]
      %v1890 = vld [vmem:[#allocation2 + $0x120] sm:$0xff]
      %v1891 = vld [vmem:[#allocation2 + $0x128] sm:$0xff]
      %v1892 = vld [vmem:[#allocation2 + $0x130] sm:$0xff]
      %v1893 = vld [vmem:[#allocation2 + $0x138] sm:$0xff]
      %v1894 = vld [vmem:[#allocation2 + $0x140] sm:$0xff]
      %v1895 = vld [vmem:[#allocation2 + $0x148] sm:$0xff]
      %v1896 = vld [vmem:[#allocation2 + $0x150] sm:$0xff]
      %v1897 = vld [vmem:[#allocation2 + $0x158] sm:$0xff]
      %v1898 = vld [vmem:[#allocation2 + $0x160] sm:$0xff]
      %v1899 = vld [vmem:[#allocation2 + $0x168] sm:$0xff]
      %v1900 = vld [vmem:[#allocation2 + $0x170] sm:$0xff]
      %v1901 = vld [vmem:[#allocation2 + $0x178] sm:$0xff]
      %v1902 = vld [vmem:[#allocation2 + $0x180] sm:$0xff]
      %v1903 = vld [vmem:[#allocation2 + $0x188] sm:$0xff]
      %v1904 = vld [vmem:[#allocation2 + $0x190] sm:$0xff]
      %v1905 = vld [vmem:[#allocation2 + $0x198] sm:$0xff]
      %v1906 = vld [vmem:[#allocation2 + $0x1a0] sm:$0xff]
      %v1907 = vld [vmem:[#allocation2 + $0x1a8] sm:$0xff]
      %v1908 = vld [vmem:[#allocation2 + $0x1b0] sm:$0xff]
      %v1909 = vld [vmem:[#allocation2 + $0x1b8] sm:$0xff]
      %v1910 = vld [vmem:[#allocation2 + $0x1c0] sm:$0xff]
      %v1911 = vld [vmem:[#allocation2 + $0x1c8] sm:$0xff]
      %v1912 = vld [vmem:[#allocation2 + $0x1d0] sm:$0xff]
      %v1913 = vld [vmem:[#allocation2 + $0x1d8] sm:$0xff]
      %v1914 = vld [vmem:[#allocation2 + $0x1e0] sm:$0xff]
      %v1915 = vld [vmem:[#allocation2 + $0x1e8] sm:$0xff]
      %v1916 = vld [vmem:[#allocation2 + $0x1f0] sm:$0xff]
      %v1917 = vld [vmem:[#allocation2 + $0x1f8] sm:$0xff]
      %v1918 = vld [vmem:[%s320] sm:$0xff]
      %v1919 = vld [vmem:[%s320 + $0x8] sm:$0xff]
      %v1920 = vld [vmem:[%s320 + $0x10] sm:$0xff]
      %v1921 = vld [vmem:[%s320 + $0x18] sm:$0xff]
      %v1922 = vld [vmem:[%s320 + $0x20] sm:$0xff]
      %v1923 = vld [vmem:[%s320 + $0x28] sm:$0xff]
      %v1924 = vld [vmem:[%s320 + $0x30] sm:$0xff]
      %v1925 = vld [vmem:[%s320 + $0x38] sm:$0xff]
      %v1926 = vld [vmem:[%s320 + $0x40] sm:$0xff]
      %v1927 = vld [vmem:[%s320 + $0x48] sm:$0xff]
      %v1928 = vld [vmem:[%s320 + $0x50] sm:$0xff]
      %v1929 = vld [vmem:[%s320 + $0x58] sm:$0xff]
      %v1930 = vld [vmem:[%s320 + $0x60] sm:$0xff]
      %v1931 = vld [vmem:[%s320 + $0x68] sm:$0xff]
      %v1932 = vld [vmem:[%s320 + $0x70] sm:$0xff]
      %v1933 = vld [vmem:[%s320 + $0x78] sm:$0xff]
      %v1934 = vld [vmem:[%s320 + $0x80] sm:$0xff]
      %v1935 = vld [vmem:[%s320 + $0x88] sm:$0xff]
      %v1936 = vld [vmem:[%s320 + $0x90] sm:$0xff]
      %v1937 = vld [vmem:[%s320 + $0x98] sm:$0xff]
      %v1938 = vld [vmem:[%s320 + $0xa0] sm:$0xff]
      %v1939 = vld [vmem:[%s320 + $0xa8] sm:$0xff]
      %v1940 = vld [vmem:[%s320 + $0xb0] sm:$0xff]
      %v1941 = vld [vmem:[%s320 + $0xb8] sm:$0xff]
      %v1942 = vld [vmem:[%s320 + $0xc0] sm:$0xff]
      %v1943 = vld [vmem:[%s320 + $0xc8] sm:$0xff]
      %v1944 = vld [vmem:[%s320 + $0xd0] sm:$0xff]
      %v1945 = vld [vmem:[%s320 + $0xd8] sm:$0xff]
      %v1946 = vld [vmem:[%s320 + $0xe0] sm:$0xff]
      %v1947 = vld [vmem:[%s320 + $0xe8] sm:$0xff]
      %v1948 = vld [vmem:[%s320 + $0xf0] sm:$0xff]
      %v1949 = vld [vmem:[%s320 + $0xf8] sm:$0xff]
      %v1950 = vld [vmem:[%s320 + $0x100] sm:$0xff]
      %v1951 = vld [vmem:[%s320 + $0x108] sm:$0xff]
      %v1952 = vld [vmem:[%s320 + $0x110] sm:$0xff]
      %v1953 = vld [vmem:[%s320 + $0x118] sm:$0xff]
      %v1954 = vld [vmem:[%s320 + $0x120] sm:$0xff]
      %v1955 = vld [vmem:[%s320 + $0x128] sm:$0xff]
      %v1956 = vld [vmem:[%s320 + $0x130] sm:$0xff]
      %v1957 = vld [vmem:[%s320 + $0x138] sm:$0xff]
      %v1958 = vld [vmem:[%s320 + $0x140] sm:$0xff]
      %v1959 = vld [vmem:[%s320 + $0x148] sm:$0xff]
      %v1960 = vld [vmem:[%s320 + $0x150] sm:$0xff]
      %v1961 = vld [vmem:[%s320 + $0x158] sm:$0xff]
      %v1962 = vld [vmem:[%s320 + $0x160] sm:$0xff]
      %v1963 = vld [vmem:[%s320 + $0x168] sm:$0xff]
      %v1964 = vld [vmem:[%s320 + $0x170] sm:$0xff]
      %v1965 = vld [vmem:[%s320 + $0x178] sm:$0xff]
      %v1966 = vld [vmem:[%s320 + $0x180] sm:$0xff]
      %v1967 = vld [vmem:[%s320 + $0x188] sm:$0xff]
      %v1968 = vld [vmem:[%s320 + $0x190] sm:$0xff]
      %v1969 = vld [vmem:[%s320 + $0x198] sm:$0xff]
      %v1970 = vld [vmem:[%s320 + $0x1a0] sm:$0xff]
      %v1971 = vld [vmem:[%s320 + $0x1a8] sm:$0xff]
      %v1972 = vld [vmem:[%s320 + $0x1b0] sm:$0xff]
      %v1973 = vld [vmem:[%s320 + $0x1b8] sm:$0xff]
      %v1974 = vld [vmem:[%s320 + $0x1c0] sm:$0xff]
      %v1975 = vld [vmem:[%s320 + $0x1c8] sm:$0xff]
      %v1976 = vld [vmem:[%s320 + $0x1d0] sm:$0xff]
      %v1977 = vld [vmem:[%s320 + $0x1d8] sm:$0xff]
      %v1978 = vld [vmem:[%s320 + $0x1e0] sm:$0xff]
      %v1979 = vld [vmem:[%s320 + $0x1e8] sm:$0xff]
      %v1980 = vld [vmem:[%s320 + $0x1f0] sm:$0xff]
      %v1981 = vld [vmem:[%s320 + $0x1f8] sm:$0xff]
      %v1982 = vld [vmem:[%s320 + $0x200] sm:$0xff]
      %v1983 = vld [vmem:[%s320 + $0x208] sm:$0xff]
      %v1984 = vld [vmem:[%s320 + $0x210] sm:$0xff]
      %v1985 = vld [vmem:[%s320 + $0x218] sm:$0xff]
      %v1986 = vld [vmem:[%s320 + $0x220] sm:$0xff]
      %v1987 = vld [vmem:[%s320 + $0x228] sm:$0xff]
      %v1988 = vld [vmem:[%s320 + $0x230] sm:$0xff]
      %v1989 = vld [vmem:[%s320 + $0x238] sm:$0xff]
      %v1990 = vld [vmem:[%s320 + $0x240] sm:$0xff]
      %v1991 = vld [vmem:[%s320 + $0x248] sm:$0xff]
      %v1992 = vld [vmem:[%s320 + $0x250] sm:$0xff]
      %v1993 = vld [vmem:[%s320 + $0x258] sm:$0xff]
      %v1994 = vld [vmem:[%s320 + $0x260] sm:$0xff]
      %v1995 = vld [vmem:[%s320 + $0x268] sm:$0xff]
      %v1996 = vld [vmem:[%s320 + $0x270] sm:$0xff]
      %v1997 = vld [vmem:[%s320 + $0x278] sm:$0xff]
      %v1998 = vld [vmem:[%s320 + $0x280] sm:$0xff]
      %v1999 = vld [vmem:[%s320 + $0x288] sm:$0xff]
      %v2000 = vld [vmem:[%s320 + $0x290] sm:$0xff]
      %v2001 = vld [vmem:[%s320 + $0x298] sm:$0xff]
      %v2002 = vld [vmem:[%s320 + $0x2a0] sm:$0xff]
      %v2003 = vld [vmem:[%s320 + $0x2a8] sm:$0xff]
      %v2004 = vld [vmem:[%s320 + $0x2b0] sm:$0xff]
      %v2005 = vld [vmem:[%s320 + $0x2b8] sm:$0xff]
      %v2006 = vld [vmem:[%s320 + $0x2c0] sm:$0xff]
      %v2007 = vld [vmem:[%s320 + $0x2c8] sm:$0xff]
      %v2008 = vld [vmem:[%s320 + $0x2d0] sm:$0xff]
      %v2009 = vld [vmem:[%s320 + $0x2d8] sm:$0xff]
      %v2010 = vld [vmem:[%s320 + $0x2e0] sm:$0xff]
      %v2011 = vld [vmem:[%s320 + $0x2e8] sm:$0xff]
      %v2012 = vld [vmem:[%s320 + $0x2f0] sm:$0xff]
      %v2013 = vld [vmem:[%s320 + $0x2f8] sm:$0xff]
      %v2014 = vld [vmem:[%s320 + $0x300] sm:$0xff]
      %v2015 = vld [vmem:[%s320 + $0x308] sm:$0xff]
      %v2016 = vld [vmem:[%s320 + $0x310] sm:$0xff]
      %v2017 = vld [vmem:[%s320 + $0x318] sm:$0xff]
      %v2018 = vld [vmem:[%s320 + $0x320] sm:$0xff]
      %v2019 = vld [vmem:[%s320 + $0x328] sm:$0xff]
      %v2020 = vld [vmem:[%s320 + $0x330] sm:$0xff]
      %v2021 = vld [vmem:[%s320 + $0x338] sm:$0xff]
      %v2022 = vld [vmem:[%s320 + $0x340] sm:$0xff]
      %v2023 = vld [vmem:[%s320 + $0x348] sm:$0xff]
      %v2024 = vld [vmem:[%s320 + $0x350] sm:$0xff]
      %v2025 = vld [vmem:[%s320 + $0x358] sm:$0xff]
      %v2026 = vld [vmem:[%s320 + $0x360] sm:$0xff]
      %v2027 = vld [vmem:[%s320 + $0x368] sm:$0xff]
      %v2028 = vld [vmem:[%s320 + $0x370] sm:$0xff]
      %v2029 = vld [vmem:[%s320 + $0x378] sm:$0xff]
      %v2030 = vld [vmem:[%s320 + $0x380] sm:$0xff]
      %v2031 = vld [vmem:[%s320 + $0x388] sm:$0xff]
      %v2032 = vld [vmem:[%s320 + $0x390] sm:$0xff]
      %v2033 = vld [vmem:[%s320 + $0x398] sm:$0xff]
      %v2034 = vld [vmem:[%s320 + $0x3a0] sm:$0xff]
      %v2035 = vld [vmem:[%s320 + $0x3a8] sm:$0xff]
      %v2036 = vld [vmem:[%s320 + $0x3b0] sm:$0xff]
      %v2037 = vld [vmem:[%s320 + $0x3b8] sm:$0xff]
      %v2038 = vld [vmem:[%s320 + $0x3c0] sm:$0xff]
      %v2039 = vld [vmem:[%s320 + $0x3c8] sm:$0xff]
      %v2040 = vld [vmem:[%s320 + $0x3d0] sm:$0xff]
      %v2041 = vld [vmem:[%s320 + $0x3d8] sm:$0xff]
      %v2042 = vld [vmem:[%s320 + $0x3e0] sm:$0xff]
      %v2043 = vld [vmem:[%s320 + $0x3e8] sm:$0xff]
      %v2044 = vld [vmem:[%s320 + $0x3f0] sm:$0xff]
      %v2045 = vld [vmem:[%s320 + $0x3f8] sm:$0xff]
      %v2046 = vld [vmem:[%s320 + $0x400] sm:$0xff]
      %v2047 = vld [vmem:[%s320 + $0x408] sm:$0xff]
      %v2048 = vld [vmem:[%s320 + $0x410] sm:$0xff]
      %v2049 = vld [vmem:[%s320 + $0x418] sm:$0xff]
      %v2050 = vld [vmem:[%s320 + $0x420] sm:$0xff]
      %v2051 = vld [vmem:[%s320 + $0x428] sm:$0xff]
      %v2052 = vld [vmem:[%s320 + $0x430] sm:$0xff]
      %v2053 = vld [vmem:[%s320 + $0x438] sm:$0xff]
      %v2054 = vld [vmem:[%s320 + $0x440] sm:$0xff]
      %v2055 = vld [vmem:[%s320 + $0x448] sm:$0xff]
      %v2056 = vld [vmem:[%s320 + $0x450] sm:$0xff]
      %v2057 = vld [vmem:[%s320 + $0x458] sm:$0xff]
      %v2058 = vld [vmem:[%s320 + $0x460] sm:$0xff]
      %v2059 = vld [vmem:[%s320 + $0x468] sm:$0xff]
      %v2060 = vld [vmem:[%s320 + $0x470] sm:$0xff]
      %v2061 = vld [vmem:[%s320 + $0x478] sm:$0xff]
      %v2062 = vld [vmem:[%s320 + $0x480] sm:$0xff]
      %v2063 = vld [vmem:[%s320 + $0x488] sm:$0xff]
      %v2064 = vld [vmem:[%s320 + $0x490] sm:$0xff]
      %v2065 = vld [vmem:[%s320 + $0x498] sm:$0xff]
      %v2066 = vld [vmem:[%s320 + $0x4a0] sm:$0xff]
      %v2067 = vld [vmem:[%s320 + $0x4a8] sm:$0xff]
      %v2068 = vld [vmem:[%s320 + $0x4b0] sm:$0xff]
      %v2069 = vld [vmem:[%s320 + $0x4b8] sm:$0xff]
      %v2070 = vld [vmem:[%s320 + $0x4c0] sm:$0xff]
      %v2071 = vld [vmem:[%s320 + $0x4c8] sm:$0xff]
      %v2072 = vld [vmem:[%s320 + $0x4d0] sm:$0xff]
      %v2073 = vld [vmem:[%s320 + $0x4d8] sm:$0xff]
      %v2074 = vld [vmem:[%s320 + $0x4e0] sm:$0xff]
      %v2075 = vld [vmem:[%s320 + $0x4e8] sm:$0xff]
      %v2076 = vld [vmem:[%s320 + $0x4f0] sm:$0xff]
      %v2077 = vld [vmem:[%s320 + $0x4f8] sm:$0xff]
      %v2078 = vld [vmem:[%s320 + $0x500] sm:$0xff]
      %v2079 = vld [vmem:[%s320 + $0x508] sm:$0xff]
      %v2080 = vld [vmem:[%s320 + $0x510] sm:$0xff]
      %v2081 = vld [vmem:[%s320 + $0x518] sm:$0xff]
      %v2082 = vld [vmem:[%s320 + $0x520] sm:$0xff]
      %v2083 = vld [vmem:[%s320 + $0x528] sm:$0xff]
      %v2084 = vld [vmem:[%s320 + $0x530] sm:$0xff]
      %v2085 = vld [vmem:[%s320 + $0x538] sm:$0xff]
      %v2086 = vld [vmem:[%s320 + $0x540] sm:$0xff]
      %v2087 = vld [vmem:[%s320 + $0x548] sm:$0xff]
      %v2088 = vld [vmem:[%s320 + $0x550] sm:$0xff]
      %v2089 = vld [vmem:[%s320 + $0x558] sm:$0xff]
      %v2090 = vld [vmem:[%s320 + $0x560] sm:$0xff]
      %v2091 = vld [vmem:[%s320 + $0x568] sm:$0xff]
      %v2092 = vld [vmem:[%s320 + $0x570] sm:$0xff]
      %v2093 = vld [vmem:[%s320 + $0x578] sm:$0xff]
      %v2094 = vld [vmem:[%s320 + $0x580] sm:$0xff]
      %v2095 = vld [vmem:[%s320 + $0x588] sm:$0xff]
      %v2096 = vld [vmem:[%s320 + $0x590] sm:$0xff]
      %v2097 = vld [vmem:[%s320 + $0x598] sm:$0xff]
      %v2098 = vld [vmem:[%s320 + $0x5a0] sm:$0xff]
      %v2099 = vld [vmem:[%s320 + $0x5a8] sm:$0xff]
      %v2100 = vld [vmem:[%s320 + $0x5b0] sm:$0xff]
      %v2101 = vld [vmem:[%s320 + $0x5b8] sm:$0xff]
      %v2102 = vld [vmem:[%s320 + $0x5c0] sm:$0xff]
      %v2103 = vld [vmem:[%s320 + $0x5c8] sm:$0xff]
      %v2104 = vld [vmem:[%s320 + $0x5d0] sm:$0xff]
      %v2105 = vld [vmem:[%s320 + $0x5d8] sm:$0xff]
      %v2106 = vld [vmem:[%s320 + $0x5e0] sm:$0xff]
      %v2107 = vld [vmem:[%s320 + $0x5e8] sm:$0xff]
      %v2108 = vld [vmem:[%s320 + $0x5f0] sm:$0xff]
      %v2109 = vld [vmem:[%s320 + $0x5f8] sm:$0xff]
      %v2110 = vld [vmem:[%s320 + $0x600] sm:$0xff]
      %v2111 = vld [vmem:[%s320 + $0x608] sm:$0xff]
      %v2112 = vld [vmem:[%s320 + $0x610] sm:$0xff]
      %v2113 = vld [vmem:[%s320 + $0x618] sm:$0xff]
      %v2114 = vld [vmem:[%s320 + $0x620] sm:$0xff]
      %v2115 = vld [vmem:[%s320 + $0x628] sm:$0xff]
      %v2116 = vld [vmem:[%s320 + $0x630] sm:$0xff]
      %v2117 = vld [vmem:[%s320 + $0x638] sm:$0xff]
      %v2118 = vld [vmem:[%s320 + $0x640] sm:$0xff]
      %v2119 = vld [vmem:[%s320 + $0x648] sm:$0xff]
      %v2120 = vld [vmem:[%s320 + $0x650] sm:$0xff]
      %v2121 = vld [vmem:[%s320 + $0x658] sm:$0xff]
      %v2122 = vld [vmem:[%s320 + $0x660] sm:$0xff]
      %v2123 = vld [vmem:[%s320 + $0x668] sm:$0xff]
      %v2124 = vld [vmem:[%s320 + $0x670] sm:$0xff]
      %v2125 = vld [vmem:[%s320 + $0x678] sm:$0xff]
      %v2126 = vld [vmem:[%s320 + $0x680] sm:$0xff]
      %v2127 = vld [vmem:[%s320 + $0x688] sm:$0xff]
      %v2128 = vld [vmem:[%s320 + $0x690] sm:$0xff]
      %v2129 = vld [vmem:[%s320 + $0x698] sm:$0xff]
      %v2130 = vld [vmem:[%s320 + $0x6a0] sm:$0xff]
      %v2131 = vld [vmem:[%s320 + $0x6a8] sm:$0xff]
      %v2132 = vld [vmem:[%s320 + $0x6b0] sm:$0xff]
      %v2133 = vld [vmem:[%s320 + $0x6b8] sm:$0xff]
      %v2134 = vld [vmem:[%s320 + $0x6c0] sm:$0xff]
      %v2135 = vld [vmem:[%s320 + $0x6c8] sm:$0xff]
      %v2136 = vld [vmem:[%s320 + $0x6d0] sm:$0xff]
      %v2137 = vld [vmem:[%s320 + $0x6d8] sm:$0xff]
      %v2138 = vld [vmem:[%s320 + $0x6e0] sm:$0xff]
      %v2139 = vld [vmem:[%s320 + $0x6e8] sm:$0xff]
      %v2140 = vld [vmem:[%s320 + $0x6f0] sm:$0xff]
      %v2141 = vld [vmem:[%s320 + $0x6f8] sm:$0xff]
      %v2142 = vld [vmem:[%s320 + $0x700] sm:$0xff]
      %v2143 = vld [vmem:[%s320 + $0x708] sm:$0xff]
      %v2144 = vld [vmem:[%s320 + $0x710] sm:$0xff]
      %v2145 = vld [vmem:[%s320 + $0x718] sm:$0xff]
      %v2146 = vld [vmem:[%s320 + $0x720] sm:$0xff]
      %v2147 = vld [vmem:[%s320 + $0x728] sm:$0xff]
      %v2148 = vld [vmem:[%s320 + $0x730] sm:$0xff]
      %v2149 = vld [vmem:[%s320 + $0x738] sm:$0xff]
      %v2150 = vld [vmem:[%s320 + $0x740] sm:$0xff]
      %v2151 = vld [vmem:[%s320 + $0x748] sm:$0xff]
      %v2152 = vld [vmem:[%s320 + $0x750] sm:$0xff]
      %v2153 = vld [vmem:[%s320 + $0x758] sm:$0xff]
      %v2154 = vld [vmem:[%s320 + $0x760] sm:$0xff]
      %v2155 = vld [vmem:[%s320 + $0x768] sm:$0xff]
      %v2156 = vld [vmem:[%s320 + $0x770] sm:$0xff]
      %v2157 = vld [vmem:[%s320 + $0x778] sm:$0xff]
      %v2158 = vld [vmem:[%s320 + $0x780] sm:$0xff]
      %v2159 = vld [vmem:[%s320 + $0x788] sm:$0xff]
      %v2160 = vld [vmem:[%s320 + $0x790] sm:$0xff]
      %v2161 = vld [vmem:[%s320 + $0x798] sm:$0xff]
      %v2162 = vld [vmem:[%s320 + $0x7a0] sm:$0xff]
      %v2163 = vld [vmem:[%s320 + $0x7a8] sm:$0xff]
      %v2164 = vld [vmem:[%s320 + $0x7b0] sm:$0xff]
      %v2165 = vld [vmem:[%s320 + $0x7b8] sm:$0xff]
      %v2166 = vld [vmem:[%s320 + $0x7c0] sm:$0xff]
      %v2167 = vld [vmem:[%s320 + $0x7c8] sm:$0xff]
      %v2168 = vld [vmem:[%s320 + $0x7d0] sm:$0xff]
      %v2169 = vld [vmem:[%s320 + $0x7d8] sm:$0xff]
      %v2170 = vld [vmem:[%s320 + $0x7e0] sm:$0xff]
      %v2171 = vld [vmem:[%s320 + $0x7e8] sm:$0xff]
      %v2172 = vld [vmem:[%s320 + $0x7f0] sm:$0xff]
      %v2173 = vld [vmem:[%s320 + $0x7f8] sm:$0xff]
      %v2174 = vld [vmem:[%s320 + $0x800] sm:$0xff]
      %v2175 = vld [vmem:[%s320 + $0x808] sm:$0xff]
      %v2176 = vld [vmem:[%s320 + $0x810] sm:$0xff]
      %v2177 = vld [vmem:[%s320 + $0x818] sm:$0xff]
      %v2178 = vld [vmem:[%s320 + $0x820] sm:$0xff]
      %v2179 = vld [vmem:[%s320 + $0x828] sm:$0xff]
      %v2180 = vld [vmem:[%s320 + $0x830] sm:$0xff]
      %v2181 = vld [vmem:[%s320 + $0x838] sm:$0xff]
      %v2182 = vld [vmem:[%s320 + $0x840] sm:$0xff]
      %v2183 = vld [vmem:[%s320 + $0x848] sm:$0xff]
      %v2184 = vld [vmem:[%s320 + $0x850] sm:$0xff]
      %v2185 = vld [vmem:[%s320 + $0x858] sm:$0xff]
      %v2186 = vld [vmem:[%s320 + $0x860] sm:$0xff]
      %v2187 = vld [vmem:[%s320 + $0x868] sm:$0xff]
      %v2188 = vld [vmem:[%s320 + $0x870] sm:$0xff]
      %v2189 = vld [vmem:[%s320 + $0x878] sm:$0xff]
      %v2190 = vld [vmem:[%s320 + $0x880] sm:$0xff]
      %v2191 = vld [vmem:[%s320 + $0x888] sm:$0xff]
      %v2192 = vld [vmem:[%s320 + $0x890] sm:$0xff]
      %v2193 = vld [vmem:[%s320 + $0x898] sm:$0xff]
      %v2194 = vld [vmem:[%s320 + $0x8a0] sm:$0xff]
      %v2195 = vld [vmem:[%s320 + $0x8a8] sm:$0xff]
      %v2196 = vld [vmem:[%s320 + $0x8b0] sm:$0xff]
      %v2197 = vld [vmem:[%s320 + $0x8b8] sm:$0xff]
      %v2198 = vld [vmem:[%s320 + $0x8c0] sm:$0xff]
      %v2199 = vld [vmem:[%s320 + $0x8c8] sm:$0xff]
      %v2200 = vld [vmem:[%s320 + $0x8d0] sm:$0xff]
      %v2201 = vld [vmem:[%s320 + $0x8d8] sm:$0xff]
      %v2202 = vld [vmem:[%s320 + $0x8e0] sm:$0xff]
      %v2203 = vld [vmem:[%s320 + $0x8e8] sm:$0xff]
      %v2204 = vld [vmem:[%s320 + $0x8f0] sm:$0xff]
      %v2205 = vld [vmem:[%s320 + $0x8f8] sm:$0xff]
      %v2206 = vld [vmem:[%s320 + $0x900] sm:$0xff]
      %v2207 = vld [vmem:[%s320 + $0x908] sm:$0xff]
      %v2208 = vld [vmem:[%s320 + $0x910] sm:$0xff]
      %v2209 = vld [vmem:[%s320 + $0x918] sm:$0xff]
      %v2210 = vld [vmem:[%s320 + $0x920] sm:$0xff]
      %v2211 = vld [vmem:[%s320 + $0x928] sm:$0xff]
      %v2212 = vld [vmem:[%s320 + $0x930] sm:$0xff]
      %v2213 = vld [vmem:[%s320 + $0x938] sm:$0xff]
      %v2214 = vld [vmem:[%s320 + $0x940] sm:$0xff]
      %v2215 = vld [vmem:[%s320 + $0x948] sm:$0xff]
      %v2216 = vld [vmem:[%s320 + $0x950] sm:$0xff]
      %v2217 = vld [vmem:[%s320 + $0x958] sm:$0xff]
      %v2218 = vld [vmem:[%s320 + $0x960] sm:$0xff]
      %v2219 = vld [vmem:[%s320 + $0x968] sm:$0xff]
      %v2220 = vld [vmem:[%s320 + $0x970] sm:$0xff]
      %v2221 = vld [vmem:[%s320 + $0x978] sm:$0xff]
      %v2222 = vld [vmem:[%s320 + $0x980] sm:$0xff]
      %v2223 = vld [vmem:[%s320 + $0x988] sm:$0xff]
      %v2224 = vld [vmem:[%s320 + $0x990] sm:$0xff]
      %v2225 = vld [vmem:[%s320 + $0x998] sm:$0xff]
      %v2226 = vld [vmem:[%s320 + $0x9a0] sm:$0xff]
      %v2227 = vld [vmem:[%s320 + $0x9a8] sm:$0xff]
      %v2228 = vld [vmem:[%s320 + $0x9b0] sm:$0xff]
      %v2229 = vld [vmem:[%s320 + $0x9b8] sm:$0xff]
      %v2230 = vld [vmem:[%s320 + $0x9c0] sm:$0xff]
      %v2231 = vld [vmem:[%s320 + $0x9c8] sm:$0xff]
      %v2232 = vld [vmem:[%s320 + $0x9d0] sm:$0xff]
      %v2233 = vld [vmem:[%s320 + $0x9d8] sm:$0xff]
      %v2234 = vld [vmem:[%s320 + $0x9e0] sm:$0xff]
      %v2235 = vld [vmem:[%s320 + $0x9e8] sm:$0xff]
      %v2236 = vld [vmem:[%s320 + $0x9f0] sm:$0xff]
      %v2237 = vld [vmem:[%s320 + $0x9f8] sm:$0xff]
      %v2238 = vld [vmem:[%s320 + $0xa00] sm:$0xff]
      %v2239 = vld [vmem:[%s320 + $0xa08] sm:$0xff]
      %v2240 = vld [vmem:[%s320 + $0xa10] sm:$0xff]
      %v2241 = vld [vmem:[%s320 + $0xa18] sm:$0xff]
      %v2242 = vld [vmem:[%s320 + $0xa20] sm:$0xff]
      %v2243 = vld [vmem:[%s320 + $0xa28] sm:$0xff]
      %v2244 = vld [vmem:[%s320 + $0xa30] sm:$0xff]
      %v2245 = vld [vmem:[%s320 + $0xa38] sm:$0xff]
      %v2246 = vld [vmem:[%s320 + $0xa40] sm:$0xff]
      %v2247 = vld [vmem:[%s320 + $0xa48] sm:$0xff]
      %v2248 = vld [vmem:[%s320 + $0xa50] sm:$0xff]
      %v2249 = vld [vmem:[%s320 + $0xa58] sm:$0xff]
      %v2250 = vld [vmem:[%s320 + $0xa60] sm:$0xff]
      %v2251 = vld [vmem:[%s320 + $0xa68] sm:$0xff]
      %v2252 = vld [vmem:[%s320 + $0xa70] sm:$0xff]
      %v2253 = vld [vmem:[%s320 + $0xa78] sm:$0xff]
      %v2254 = vld [vmem:[%s320 + $0xa80] sm:$0xff]
      %v2255 = vld [vmem:[%s320 + $0xa88] sm:$0xff]
      %v2256 = vld [vmem:[%s320 + $0xa90] sm:$0xff]
      %v2257 = vld [vmem:[%s320 + $0xa98] sm:$0xff]
      %v2258 = vld [vmem:[%s320 + $0xaa0] sm:$0xff]
      %v2259 = vld [vmem:[%s320 + $0xaa8] sm:$0xff]
      %v2260 = vld [vmem:[%s320 + $0xab0] sm:$0xff]
      %v2261 = vld [vmem:[%s320 + $0xab8] sm:$0xff]
      %v2262 = vld [vmem:[%s320 + $0xac0] sm:$0xff]
      %v2263 = vld [vmem:[%s320 + $0xac8] sm:$0xff]
      %v2264 = vld [vmem:[%s320 + $0xad0] sm:$0xff]
      %v2265 = vld [vmem:[%s320 + $0xad8] sm:$0xff]
      %v2266 = vld [vmem:[%s320 + $0xae0] sm:$0xff]
      %v2267 = vld [vmem:[%s320 + $0xae8] sm:$0xff]
      %v2268 = vld [vmem:[%s320 + $0xaf0] sm:$0xff]
      %v2269 = vld [vmem:[%s320 + $0xaf8] sm:$0xff]
      %v2270 = vld [vmem:[%s320 + $0xb00] sm:$0xff]
      %v2271 = vld [vmem:[%s320 + $0xb08] sm:$0xff]
      %v2272 = vld [vmem:[%s320 + $0xb10] sm:$0xff]
      %v2273 = vld [vmem:[%s320 + $0xb18] sm:$0xff]
      %v2274 = vld [vmem:[%s320 + $0xb20] sm:$0xff]
      %v2275 = vld [vmem:[%s320 + $0xb28] sm:$0xff]
      %v2276 = vld [vmem:[%s320 + $0xb30] sm:$0xff]
      %v2277 = vld [vmem:[%s320 + $0xb38] sm:$0xff]
      %v2278 = vld [vmem:[%s320 + $0xb40] sm:$0xff]
      %v2279 = vld [vmem:[%s320 + $0xb48] sm:$0xff]
      %v2280 = vld [vmem:[%s320 + $0xb50] sm:$0xff]
      %v2281 = vld [vmem:[%s320 + $0xb58] sm:$0xff]
      %v2282 = vld [vmem:[%s320 + $0xb60] sm:$0xff]
      %v2283 = vld [vmem:[%s320 + $0xb68] sm:$0xff]
      %v2284 = vld [vmem:[%s320 + $0xb70] sm:$0xff]
      %v2285 = vld [vmem:[%s320 + $0xb78] sm:$0xff]
      %v2286 = vld [vmem:[%s320 + $0xb80] sm:$0xff]
      %v2287 = vld [vmem:[%s320 + $0xb88] sm:$0xff]
      %v2288 = vld [vmem:[%s320 + $0xb90] sm:$0xff]
      %v2289 = vld [vmem:[%s320 + $0xb98] sm:$0xff]
      %v2290 = vld [vmem:[%s320 + $0xba0] sm:$0xff]
      %v2291 = vld [vmem:[%s320 + $0xba8] sm:$0xff]
      %v2292 = vld [vmem:[%s320 + $0xbb0] sm:$0xff]
      %v2293 = vld [vmem:[%s320 + $0xbb8] sm:$0xff]
      %v2294 = vld [vmem:[%s320 + $0xbc0] sm:$0xff]
      %v2295 = vld [vmem:[%s320 + $0xbc8] sm:$0xff]
      %v2296 = vld [vmem:[%s320 + $0xbd0] sm:$0xff]
      %v2297 = vld [vmem:[%s320 + $0xbd8] sm:$0xff]
      %v2298 = vld [vmem:[%s320 + $0xbe0] sm:$0xff]
      %v2299 = vld [vmem:[%s320 + $0xbe8] sm:$0xff]
      %v2300 = vld [vmem:[%s320 + $0xbf0] sm:$0xff]
      %v2301 = vld [vmem:[%s320 + $0xbf8] sm:$0xff]
      %v2302 = vld [vmem:[%s320 + $0xc00] sm:$0xff]
      %v2303 = vld [vmem:[%s320 + $0xc08] sm:$0xff]
      %v2304 = vld [vmem:[%s320 + $0xc10] sm:$0xff]
      %v2305 = vld [vmem:[%s320 + $0xc18] sm:$0xff]
      %v2306 = vld [vmem:[%s320 + $0xc20] sm:$0xff]
      %v2307 = vld [vmem:[%s320 + $0xc28] sm:$0xff]
      %v2308 = vld [vmem:[%s320 + $0xc30] sm:$0xff]
      %v2309 = vld [vmem:[%s320 + $0xc38] sm:$0xff]
      %v2310 = vld [vmem:[%s320 + $0xc40] sm:$0xff]
      %v2311 = vld [vmem:[%s320 + $0xc48] sm:$0xff]
      %v2312 = vld [vmem:[%s320 + $0xc50] sm:$0xff]
      %v2313 = vld [vmem:[%s320 + $0xc58] sm:$0xff]
      %v2314 = vld [vmem:[%s320 + $0xc60] sm:$0xff]
      %v2315 = vld [vmem:[%s320 + $0xc68] sm:$0xff]
      %v2316 = vld [vmem:[%s320 + $0xc70] sm:$0xff]
      %v2317 = vld [vmem:[%s320 + $0xc78] sm:$0xff]
      %v2318 = vld [vmem:[%s320 + $0xc80] sm:$0xff]
      %v2319 = vld [vmem:[%s320 + $0xc88] sm:$0xff]
      %v2320 = vld [vmem:[%s320 + $0xc90] sm:$0xff]
      %v2321 = vld [vmem:[%s320 + $0xc98] sm:$0xff]
      %v2322 = vld [vmem:[%s320 + $0xca0] sm:$0xff]
      %v2323 = vld [vmem:[%s320 + $0xca8] sm:$0xff]
      %v2324 = vld [vmem:[%s320 + $0xcb0] sm:$0xff]
      %v2325 = vld [vmem:[%s320 + $0xcb8] sm:$0xff]
      %v2326 = vld [vmem:[%s320 + $0xcc0] sm:$0xff]
      %v2327 = vld [vmem:[%s320 + $0xcc8] sm:$0xff]
      %v2328 = vld [vmem:[%s320 + $0xcd0] sm:$0xff]
      %v2329 = vld [vmem:[%s320 + $0xcd8] sm:$0xff]
      %v2330 = vld [vmem:[%s320 + $0xce0] sm:$0xff]
      %v2331 = vld [vmem:[%s320 + $0xce8] sm:$0xff]
      %v2332 = vld [vmem:[%s320 + $0xcf0] sm:$0xff]
      %v2333 = vld [vmem:[%s320 + $0xcf8] sm:$0xff]
      %v2334 = vld [vmem:[%s320 + $0xd00] sm:$0xff]
      %v2335 = vld [vmem:[%s320 + $0xd08] sm:$0xff]
      %v2336 = vld [vmem:[%s320 + $0xd10] sm:$0xff]
      %v2337 = vld [vmem:[%s320 + $0xd18] sm:$0xff]
      %v2338 = vld [vmem:[%s320 + $0xd20] sm:$0xff]
      %v2339 = vld [vmem:[%s320 + $0xd28] sm:$0xff]
      %v2340 = vld [vmem:[%s320 + $0xd30] sm:$0xff]
      %v2341 = vld [vmem:[%s320 + $0xd38] sm:$0xff]
      %v2342 = vld [vmem:[%s320 + $0xd40] sm:$0xff]
      %v2343 = vld [vmem:[%s320 + $0xd48] sm:$0xff]
      %v2344 = vld [vmem:[%s320 + $0xd50] sm:$0xff]
      %v2345 = vld [vmem:[%s320 + $0xd58] sm:$0xff]
      %v2346 = vld [vmem:[%s320 + $0xd60] sm:$0xff]
      %v2347 = vld [vmem:[%s320 + $0xd68] sm:$0xff]
      %v2348 = vld [vmem:[%s320 + $0xd70] sm:$0xff]
      %v2349 = vld [vmem:[%s320 + $0xd78] sm:$0xff]
      %v2350 = vld [vmem:[%s320 + $0xd80] sm:$0xff]
      %v2351 = vld [vmem:[%s320 + $0xd88] sm:$0xff]
      %v2352 = vld [vmem:[%s320 + $0xd90] sm:$0xff]
      %v2353 = vld [vmem:[%s320 + $0xd98] sm:$0xff]
      %v2354 = vld [vmem:[%s320 + $0xda0] sm:$0xff]
      %v2355 = vld [vmem:[%s320 + $0xda8] sm:$0xff]
      %v2356 = vld [vmem:[%s320 + $0xdb0] sm:$0xff]
      %v2357 = vld [vmem:[%s320 + $0xdb8] sm:$0xff]
      %v2358 = vld [vmem:[%s320 + $0xdc0] sm:$0xff]
      %v2359 = vld [vmem:[%s320 + $0xdc8] sm:$0xff]
      %v2360 = vld [vmem:[%s320 + $0xdd0] sm:$0xff]
      %v2361 = vld [vmem:[%s320 + $0xdd8] sm:$0xff]
      %v2362 = vld [vmem:[%s320 + $0xde0] sm:$0xff]
      %v2363 = vld [vmem:[%s320 + $0xde8] sm:$0xff]
      %v2364 = vld [vmem:[%s320 + $0xdf0] sm:$0xff]
      %v2365 = vld [vmem:[%s320 + $0xdf8] sm:$0xff]
      %v2366 = vld [vmem:[%s320 + $0xe00] sm:$0xff]
      %v2367 = vld [vmem:[%s320 + $0xe08] sm:$0xff]
      %v2368 = vld [vmem:[%s320 + $0xe10] sm:$0xff]
      %v2369 = vld [vmem:[%s320 + $0xe18] sm:$0xff]
      %v2370 = vld [vmem:[%s320 + $0xe20] sm:$0xff]
      %v2371 = vld [vmem:[%s320 + $0xe28] sm:$0xff]
      %v2372 = vld [vmem:[%s320 + $0xe30] sm:$0xff]
      %v2373 = vld [vmem:[%s320 + $0xe38] sm:$0xff]
      %v2374 = vld [vmem:[%s320 + $0xe40] sm:$0xff]
      %v2375 = vld [vmem:[%s320 + $0xe48] sm:$0xff]
      %v2376 = vld [vmem:[%s320 + $0xe50] sm:$0xff]
      %v2377 = vld [vmem:[%s320 + $0xe58] sm:$0xff]
      %v2378 = vld [vmem:[%s320 + $0xe60] sm:$0xff]
      %v2379 = vld [vmem:[%s320 + $0xe68] sm:$0xff]
      %v2380 = vld [vmem:[%s320 + $0xe70] sm:$0xff]
      %v2381 = vld [vmem:[%s320 + $0xe78] sm:$0xff]
      %v2382 = vld [vmem:[%s320 + $0xe80] sm:$0xff]
      %v2383 = vld [vmem:[%s320 + $0xe88] sm:$0xff]
      %v2384 = vld [vmem:[%s320 + $0xe90] sm:$0xff]
      %v2385 = vld [vmem:[%s320 + $0xe98] sm:$0xff]
      %v2386 = vld [vmem:[%s320 + $0xea0] sm:$0xff]
      %v2387 = vld [vmem:[%s320 + $0xea8] sm:$0xff]
      %v2388 = vld [vmem:[%s320 + $0xeb0] sm:$0xff]
      %v2389 = vld [vmem:[%s320 + $0xeb8] sm:$0xff]
      %v2390 = vld [vmem:[%s320 + $0xec0] sm:$0xff]
      %v2391 = vld [vmem:[%s320 + $0xec8] sm:$0xff]
      %v2392 = vld [vmem:[%s320 + $0xed0] sm:$0xff]
      %v2393 = vld [vmem:[%s320 + $0xed8] sm:$0xff]
      %v2394 = vld [vmem:[%s320 + $0xee0] sm:$0xff]
      %v2395 = vld [vmem:[%s320 + $0xee8] sm:$0xff]
      %v2396 = vld [vmem:[%s320 + $0xef0] sm:$0xff]
      %v2397 = vld [vmem:[%s320 + $0xef8] sm:$0xff]
      %v2398 = vld [vmem:[%s320 + $0xf00] sm:$0xff]
      %v2399 = vld [vmem:[%s320 + $0xf08] sm:$0xff]
      %v2400 = vld [vmem:[%s320 + $0xf10] sm:$0xff]
      %v2401 = vld [vmem:[%s320 + $0xf18] sm:$0xff]
      %v2402 = vld [vmem:[%s320 + $0xf20] sm:$0xff]
      %v2403 = vld [vmem:[%s320 + $0xf28] sm:$0xff]
      %v2404 = vld [vmem:[%s320 + $0xf30] sm:$0xff]
      %v2405 = vld [vmem:[%s320 + $0xf38] sm:$0xff]
      %v2406 = vld [vmem:[%s320 + $0xf40] sm:$0xff]
      %v2407 = vld [vmem:[%s320 + $0xf48] sm:$0xff]
      %v2408 = vld [vmem:[%s320 + $0xf50] sm:$0xff]
      %v2409 = vld [vmem:[%s320 + $0xf58] sm:$0xff]
      %v2410 = vld [vmem:[%s320 + $0xf60] sm:$0xff]
      %v2411 = vld [vmem:[%s320 + $0xf68] sm:$0xff]
      %v2412 = vld [vmem:[%s320 + $0xf70] sm:$0xff]
      %v2413 = vld [vmem:[%s320 + $0xf78] sm:$0xff]
      %v2414 = vld [vmem:[%s320 + $0xf80] sm:$0xff]
      %v2415 = vld [vmem:[%s320 + $0xf88] sm:$0xff]
      %v2416 = vld [vmem:[%s320 + $0xf90] sm:$0xff]
      %v2417 = vld [vmem:[%s320 + $0xf98] sm:$0xff]
      %v2418 = vld [vmem:[%s320 + $0xfa0] sm:$0xff]
      %v2419 = vld [vmem:[%s320 + $0xfa8] sm:$0xff]
      %v2420 = vld [vmem:[%s320 + $0xfb0] sm:$0xff]
      %v2421 = vld [vmem:[%s320 + $0xfb8] sm:$0xff]
      %v2422 = vld [vmem:[%s320 + $0xfc0] sm:$0xff]
      %v2423 = vld [vmem:[%s320 + $0xfc8] sm:$0xff]
      %v2424 = vld [vmem:[%s320 + $0xfd0] sm:$0xff]
      %v2425 = vld [vmem:[%s320 + $0xfd8] sm:$0xff]
      %v2426 = vld [vmem:[%s320 + $0xfe0] sm:$0xff]
      %v2427 = vld [vmem:[%s320 + $0xfe8] sm:$0xff]
      %v2428 = vld [vmem:[%s320 + $0xff0] sm:$0xff]
      %v2429 = vld [vmem:[%s320 + $0xff8] sm:$0xff]
      %v2430 = vld [vmem:[%s324] sm:$0xff]
      %v2432 = vlaneseq
      %v2433 = vshrl.u32 %v2432, 7
      %v2434 = vsub.s32 0, %v2433
      %v2435 = vrot.slane %v2430, %v2434
      %v2436 = vlaneseq
      %v2437 = vshrl.u32 %v2436, 7
      %v2438 = vsub.s32 1, %v2437
      %v2439 = vrot.slane %v2430, %v2438
      %v2440 = vlaneseq
      %v2441 = vshrl.u32 %v2440, 7
      %v2442 = vsub.s32 2, %v2441
      %v2443 = vrot.slane %v2430, %v2442
      %v2444 = vlaneseq
      %v2445 = vshrl.u32 %v2444, 7
      %v2446 = vsub.s32 3, %v2445
      %v2447 = vrot.slane %v2430, %v2446
      %v2448 = vlaneseq
      %v2449 = vshrl.u32 %v2448, 7
      %v2450 = vsub.s32 4, %v2449
      %v2451 = vrot.slane %v2430, %v2450
      %v2452 = vlaneseq
      %v2453 = vshrl.u32 %v2452, 7
      %v2454 = vsub.s32 5, %v2453
      %v2455 = vrot.slane %v2430, %v2454
      %v2456 = vlaneseq
      %v2457 = vshrl.u32 %v2456, 7
      %v2458 = vsub.s32 6, %v2457
      %v2459 = vrot.slane %v2430, %v2458
      %v2460 = vlaneseq
      %v2461 = vshrl.u32 %v2460, 7
      %v2462 = vsub.s32 7, %v2461
      %v2463 = vrot.slane %v2430, %v2462
      %v2536 = vunpack.c.l.b16 %v1854
      %v2537 = vunpack.c.h.b16 %v1854
      %v2538 = vunpack.c.l.b16 %v1855
      %v2539 = vunpack.c.h.b16 %v1855
      %v2540 = vunpack.c.l.b16 %v1856
      %v2541 = vunpack.c.h.b16 %v1856
      %v2542 = vunpack.c.l.b16 %v1857
      %v2543 = vunpack.c.h.b16 %v1857
      %v2544 = vunpack.c.l.b16 %v1858
      %v2545 = vunpack.c.h.b16 %v1858
      %v2546 = vunpack.c.l.b16 %v1859
      %v2547 = vunpack.c.h.b16 %v1859
      %v2548 = vunpack.c.l.b16 %v1860
      %v2549 = vunpack.c.h.b16 %v1860
      %v2550 = vunpack.c.l.b16 %v1861
      %v2551 = vunpack.c.h.b16 %v1861
      %v2552 = vunpack.c.l.b16 %v1862
      %v2553 = vunpack.c.h.b16 %v1862
      %v2554 = vunpack.c.l.b16 %v1863
      %v2555 = vunpack.c.h.b16 %v1863
      %v2556 = vunpack.c.l.b16 %v1864
      %v2557 = vunpack.c.h.b16 %v1864
      %v2558 = vunpack.c.l.b16 %v1865
      %v2559 = vunpack.c.h.b16 %v1865
      %v2560 = vunpack.c.l.b16 %v1866
      %v2561 = vunpack.c.h.b16 %v1866
      %v2562 = vunpack.c.l.b16 %v1867
      %v2563 = vunpack.c.h.b16 %v1867
      %v2564 = vunpack.c.l.b16 %v1868
      %v2565 = vunpack.c.h.b16 %v1868
      %v2566 = vunpack.c.l.b16 %v1869
      %v2567 = vunpack.c.h.b16 %v1869
      %v2568 = vunpack.c.l.b16 %v1870
      %v2569 = vunpack.c.h.b16 %v1870
      %v2570 = vunpack.c.l.b16 %v1871
      %v2571 = vunpack.c.h.b16 %v1871
      %v2572 = vunpack.c.l.b16 %v1872
      %v2573 = vunpack.c.h.b16 %v1872
      %v2574 = vunpack.c.l.b16 %v1873
      %v2575 = vunpack.c.h.b16 %v1873
      %v2576 = vunpack.c.l.b16 %v1874
      %v2577 = vunpack.c.h.b16 %v1874
      %v2578 = vunpack.c.l.b16 %v1875
      %v2579 = vunpack.c.h.b16 %v1875
      %v2580 = vunpack.c.l.b16 %v1876
      %v2581 = vunpack.c.h.b16 %v1876
      %v2582 = vunpack.c.l.b16 %v1877
      %v2583 = vunpack.c.h.b16 %v1877
      %v2584 = vunpack.c.l.b16 %v1878
      %v2585 = vunpack.c.h.b16 %v1878
      %v2586 = vunpack.c.l.b16 %v1879
      %v2587 = vunpack.c.h.b16 %v1879
      %v2588 = vunpack.c.l.b16 %v1880
      %v2589 = vunpack.c.h.b16 %v1880
      %v2590 = vunpack.c.l.b16 %v1881
      %v2591 = vunpack.c.h.b16 %v1881
      %v2592 = vunpack.c.l.b16 %v1882
      %v2593 = vunpack.c.h.b16 %v1882
      %v2594 = vunpack.c.l.b16 %v1883
      %v2595 = vunpack.c.h.b16 %v1883
      %v2596 = vunpack.c.l.b16 %v1884
      %v2597 = vunpack.c.h.b16 %v1884
      %v2598 = vunpack.c.l.b16 %v1885
      %v2599 = vunpack.c.h.b16 %v1885
      %v2600 = vunpack.c.l.b16 %v1886
      %v2601 = vunpack.c.h.b16 %v1886
      %v2602 = vunpack.c.l.b16 %v1887
      %v2603 = vunpack.c.h.b16 %v1887
      %v2604 = vunpack.c.l.b16 %v1888
      %v2605 = vunpack.c.h.b16 %v1888
      %v2606 = vunpack.c.l.b16 %v1889
      %v2607 = vunpack.c.h.b16 %v1889
      %v2608 = vunpack.c.l.b16 %v1890
      %v2609 = vunpack.c.h.b16 %v1890
      %v2610 = vunpack.c.l.b16 %v1891
      %v2611 = vunpack.c.h.b16 %v1891
      %v2612 = vunpack.c.l.b16 %v1892
      %v2613 = vunpack.c.h.b16 %v1892
      %v2614 = vunpack.c.l.b16 %v1893
      %v2615 = vunpack.c.h.b16 %v1893
      %v2616 = vunpack.c.l.b16 %v1894
      %v2617 = vunpack.c.h.b16 %v1894
      %v2618 = vunpack.c.l.b16 %v1895
      %v2619 = vunpack.c.h.b16 %v1895
      %v2620 = vunpack.c.l.b16 %v1896
      %v2621 = vunpack.c.h.b16 %v1896
      %v2622 = vunpack.c.l.b16 %v1897
      %v2623 = vunpack.c.h.b16 %v1897
      %v2624 = vunpack.c.l.b16 %v1898
      %v2625 = vunpack.c.h.b16 %v1898
      %v2626 = vunpack.c.l.b16 %v1899
      %v2627 = vunpack.c.h.b16 %v1899
      %v2628 = vunpack.c.l.b16 %v1900
      %v2629 = vunpack.c.h.b16 %v1900
      %v2630 = vunpack.c.l.b16 %v1901
      %v2631 = vunpack.c.h.b16 %v1901
      %v2632 = vunpack.c.l.b16 %v1902
      %v2633 = vunpack.c.h.b16 %v1902
      %v2634 = vunpack.c.l.b16 %v1903
      %v2635 = vunpack.c.h.b16 %v1903
      %v2636 = vunpack.c.l.b16 %v1904
      %v2637 = vunpack.c.h.b16 %v1904
      %v2638 = vunpack.c.l.b16 %v1905
      %v2639 = vunpack.c.h.b16 %v1905
      %v2640 = vunpack.c.l.b16 %v1906
      %v2641 = vunpack.c.h.b16 %v1906
      %v2642 = vunpack.c.l.b16 %v1907
      %v2643 = vunpack.c.h.b16 %v1907
      %v2644 = vunpack.c.l.b16 %v1908
      %v2645 = vunpack.c.h.b16 %v1908
      %v2646 = vunpack.c.l.b16 %v1909
      %v2647 = vunpack.c.h.b16 %v1909
      %v2648 = vunpack.c.l.b16 %v1910
      %v2649 = vunpack.c.h.b16 %v1910
      %v2650 = vunpack.c.l.b16 %v1911
      %v2651 = vunpack.c.h.b16 %v1911
      %v2652 = vunpack.c.l.b16 %v1912
      %v2653 = vunpack.c.h.b16 %v1912
      %v2654 = vunpack.c.l.b16 %v1913
      %v2655 = vunpack.c.h.b16 %v1913
      %v2656 = vunpack.c.l.b16 %v1914
      %v2657 = vunpack.c.h.b16 %v1914
      %v2658 = vunpack.c.l.b16 %v1915
      %v2659 = vunpack.c.h.b16 %v1915
      %v2660 = vunpack.c.l.b16 %v1916
      %v2661 = vunpack.c.h.b16 %v1916
      %v2662 = vunpack.c.l.b16 %v1917
      %v2663 = vunpack.c.h.b16 %v1917
      %v2664 = vpack.c.b16 %v2544, %v2536
      %v2665 = vpack.c.b16 %v2545, %v2537
      %v2666 = vpack.c.b16 %v2546, %v2538
      %v2667 = vpack.c.b16 %v2547, %v2539
      %v2668 = vpack.c.b16 %v2548, %v2540
      %v2669 = vpack.c.b16 %v2549, %v2541
      %v2670 = vpack.c.b16 %v2550, %v2542
      %v2671 = vpack.c.b16 %v2551, %v2543
      %v2672 = vpack.c.b16 %v2560, %v2552
      %v2673 = vpack.c.b16 %v2561, %v2553
      %v2674 = vpack.c.b16 %v2562, %v2554
      %v2675 = vpack.c.b16 %v2563, %v2555
      %v2676 = vpack.c.b16 %v2564, %v2556
      %v2677 = vpack.c.b16 %v2565, %v2557
      %v2678 = vpack.c.b16 %v2566, %v2558
      %v2679 = vpack.c.b16 %v2567, %v2559
      %v2680 = vpack.c.b16 %v2576, %v2568
      %v2681 = vpack.c.b16 %v2577, %v2569
      %v2682 = vpack.c.b16 %v2578, %v2570
      %v2683 = vpack.c.b16 %v2579, %v2571
      %v2684 = vpack.c.b16 %v2580, %v2572
      %v2685 = vpack.c.b16 %v2581, %v2573
      %v2686 = vpack.c.b16 %v2582, %v2574
      %v2687 = vpack.c.b16 %v2583, %v2575
      %v2688 = vpack.c.b16 %v2592, %v2584
      %v2689 = vpack.c.b16 %v2593, %v2585
      %v2690 = vpack.c.b16 %v2594, %v2586
      %v2691 = vpack.c.b16 %v2595, %v2587
      %v2692 = vpack.c.b16 %v2596, %v2588
      %v2693 = vpack.c.b16 %v2597, %v2589
      %v2694 = vpack.c.b16 %v2598, %v2590
      %v2695 = vpack.c.b16 %v2599, %v2591
      %v2696 = vpack.c.b16 %v2608, %v2600
      %v2697 = vpack.c.b16 %v2609, %v2601
      %v2698 = vpack.c.b16 %v2610, %v2602
      %v2699 = vpack.c.b16 %v2611, %v2603
      %v2700 = vpack.c.b16 %v2612, %v2604
      %v2701 = vpack.c.b16 %v2613, %v2605
      %v2702 = vpack.c.b16 %v2614, %v2606
      %v2703 = vpack.c.b16 %v2615, %v2607
      %v2704 = vpack.c.b16 %v2624, %v2616
      %v2705 = vpack.c.b16 %v2625, %v2617
      %v2706 = vpack.c.b16 %v2626, %v2618
      %v2707 = vpack.c.b16 %v2627, %v2619
      %v2708 = vpack.c.b16 %v2628, %v2620
      %v2709 = vpack.c.b16 %v2629, %v2621
      %v2710 = vpack.c.b16 %v2630, %v2622
      %v2711 = vpack.c.b16 %v2631, %v2623
      %v2712 = vpack.c.b16 %v2640, %v2632
      %v2713 = vpack.c.b16 %v2641, %v2633
      %v2714 = vpack.c.b16 %v2642, %v2634
      %v2715 = vpack.c.b16 %v2643, %v2635
      %v2716 = vpack.c.b16 %v2644, %v2636
      %v2717 = vpack.c.b16 %v2645, %v2637
      %v2718 = vpack.c.b16 %v2646, %v2638
      %v2719 = vpack.c.b16 %v2647, %v2639
      %v2720 = vpack.c.b16 %v2656, %v2648
      %v2721 = vpack.c.b16 %v2657, %v2649
      %v2722 = vpack.c.b16 %v2658, %v2650
      %v2723 = vpack.c.b16 %v2659, %v2651
      %v2724 = vpack.c.b16 %v2660, %v2652
      %v2725 = vpack.c.b16 %v2661, %v2653
      %v2726 = vpack.c.b16 %v2662, %v2654
      %v2727 = vpack.c.b16 %v2663, %v2655
      %v3304 = vunpack.c.l.b16 %v1918
      %v3305 = vunpack.c.h.b16 %v1918
      %v3306 = vunpack.c.l.b16 %v1919
      %v3307 = vunpack.c.h.b16 %v1919
      %v3308 = vunpack.c.l.b16 %v1920
      %v3309 = vunpack.c.h.b16 %v1920
      %v3310 = vunpack.c.l.b16 %v1921
      %v3311 = vunpack.c.h.b16 %v1921
      %v3312 = vunpack.c.l.b16 %v1922
      %v3313 = vunpack.c.h.b16 %v1922
      %v3314 = vunpack.c.l.b16 %v1923
      %v3315 = vunpack.c.h.b16 %v1923
      %v3316 = vunpack.c.l.b16 %v1924
      %v3317 = vunpack.c.h.b16 %v1924
      %v3318 = vunpack.c.l.b16 %v1925
      %v3319 = vunpack.c.h.b16 %v1925
      %v3320 = vunpack.c.l.b16 %v1926
      %v3321 = vunpack.c.h.b16 %v1926
      %v3322 = vunpack.c.l.b16 %v1927
      %v3323 = vunpack.c.h.b16 %v1927
      %v3324 = vunpack.c.l.b16 %v1928
      %v3325 = vunpack.c.h.b16 %v1928
      %v3326 = vunpack.c.l.b16 %v1929
      %v3327 = vunpack.c.h.b16 %v1929
      %v3328 = vunpack.c.l.b16 %v1930
      %v3329 = vunpack.c.h.b16 %v1930
      %v3330 = vunpack.c.l.b16 %v1931
      %v3331 = vunpack.c.h.b16 %v1931
      %v3332 = vunpack.c.l.b16 %v1932
      %v3333 = vunpack.c.h.b16 %v1932
      %v3334 = vunpack.c.l.b16 %v1933
      %v3335 = vunpack.c.h.b16 %v1933
      %v3336 = vunpack.c.l.b16 %v1934
      %v3337 = vunpack.c.h.b16 %v1934
      %v3338 = vunpack.c.l.b16 %v1935
      %v3339 = vunpack.c.h.b16 %v1935
      %v3340 = vunpack.c.l.b16 %v1936
      %v3341 = vunpack.c.h.b16 %v1936
      %v3342 = vunpack.c.l.b16 %v1937
      %v3343 = vunpack.c.h.b16 %v1937
      %v3344 = vunpack.c.l.b16 %v1938
      %v3345 = vunpack.c.h.b16 %v1938
      %v3346 = vunpack.c.l.b16 %v1939
      %v3347 = vunpack.c.h.b16 %v1939
      %v3348 = vunpack.c.l.b16 %v1940
      %v3349 = vunpack.c.h.b16 %v1940
      %v3350 = vunpack.c.l.b16 %v1941
      %v3351 = vunpack.c.h.b16 %v1941
      %v3352 = vunpack.c.l.b16 %v1942
      %v3353 = vunpack.c.h.b16 %v1942
      %v3354 = vunpack.c.l.b16 %v1943
      %v3355 = vunpack.c.h.b16 %v1943
      %v3356 = vunpack.c.l.b16 %v1944
      %v3357 = vunpack.c.h.b16 %v1944
      %v3358 = vunpack.c.l.b16 %v1945
      %v3359 = vunpack.c.h.b16 %v1945
      %v3360 = vunpack.c.l.b16 %v1946
      %v3361 = vunpack.c.h.b16 %v1946
      %v3362 = vunpack.c.l.b16 %v1947
      %v3363 = vunpack.c.h.b16 %v1947
      %v3364 = vunpack.c.l.b16 %v1948
      %v3365 = vunpack.c.h.b16 %v1948
      %v3366 = vunpack.c.l.b16 %v1949
      %v3367 = vunpack.c.h.b16 %v1949
      %v3368 = vunpack.c.l.b16 %v1950
      %v3369 = vunpack.c.h.b16 %v1950
      %v3370 = vunpack.c.l.b16 %v1951
      %v3371 = vunpack.c.h.b16 %v1951
      %v3372 = vunpack.c.l.b16 %v1952
      %v3373 = vunpack.c.h.b16 %v1952
      %v3374 = vunpack.c.l.b16 %v1953
      %v3375 = vunpack.c.h.b16 %v1953
      %v3376 = vunpack.c.l.b16 %v1954
      %v3377 = vunpack.c.h.b16 %v1954
      %v3378 = vunpack.c.l.b16 %v1955
      %v3379 = vunpack.c.h.b16 %v1955
      %v3380 = vunpack.c.l.b16 %v1956
      %v3381 = vunpack.c.h.b16 %v1956
      %v3382 = vunpack.c.l.b16 %v1957
      %v3383 = vunpack.c.h.b16 %v1957
      %v3384 = vunpack.c.l.b16 %v1958
      %v3385 = vunpack.c.h.b16 %v1958
      %v3386 = vunpack.c.l.b16 %v1959
      %v3387 = vunpack.c.h.b16 %v1959
      %v3388 = vunpack.c.l.b16 %v1960
      %v3389 = vunpack.c.h.b16 %v1960
      %v3390 = vunpack.c.l.b16 %v1961
      %v3391 = vunpack.c.h.b16 %v1961
      %v3392 = vunpack.c.l.b16 %v1962
      %v3393 = vunpack.c.h.b16 %v1962
      %v3394 = vunpack.c.l.b16 %v1963
      %v3395 = vunpack.c.h.b16 %v1963
      %v3396 = vunpack.c.l.b16 %v1964
      %v3397 = vunpack.c.h.b16 %v1964
      %v3398 = vunpack.c.l.b16 %v1965
      %v3399 = vunpack.c.h.b16 %v1965
      %v3400 = vunpack.c.l.b16 %v1966
      %v3401 = vunpack.c.h.b16 %v1966
      %v3402 = vunpack.c.l.b16 %v1967
      %v3403 = vunpack.c.h.b16 %v1967
      %v3404 = vunpack.c.l.b16 %v1968
      %v3405 = vunpack.c.h.b16 %v1968
      %v3406 = vunpack.c.l.b16 %v1969
      %v3407 = vunpack.c.h.b16 %v1969
      %v3408 = vunpack.c.l.b16 %v1970
      %v3409 = vunpack.c.h.b16 %v1970
      %v3410 = vunpack.c.l.b16 %v1971
      %v3411 = vunpack.c.h.b16 %v1971
      %v3412 = vunpack.c.l.b16 %v1972
      %v3413 = vunpack.c.h.b16 %v1972
      %v3414 = vunpack.c.l.b16 %v1973
      %v3415 = vunpack.c.h.b16 %v1973
      %v3416 = vunpack.c.l.b16 %v1974
      %v3417 = vunpack.c.h.b16 %v1974
      %v3418 = vunpack.c.l.b16 %v1975
      %v3419 = vunpack.c.h.b16 %v1975
      %v3420 = vunpack.c.l.b16 %v1976
      %v3421 = vunpack.c.h.b16 %v1976
      %v3422 = vunpack.c.l.b16 %v1977
      %v3423 = vunpack.c.h.b16 %v1977
      %v3424 = vunpack.c.l.b16 %v1978
      %v3425 = vunpack.c.h.b16 %v1978
      %v3426 = vunpack.c.l.b16 %v1979
      %v3427 = vunpack.c.h.b16 %v1979
      %v3428 = vunpack.c.l.b16 %v1980
      %v3429 = vunpack.c.h.b16 %v1980
      %v3430 = vunpack.c.l.b16 %v1981
      %v3431 = vunpack.c.h.b16 %v1981
      %v3432 = vunpack.c.l.b16 %v1982
      %v3433 = vunpack.c.h.b16 %v1982
      %v3434 = vunpack.c.l.b16 %v1983
      %v3435 = vunpack.c.h.b16 %v1983
      %v3436 = vunpack.c.l.b16 %v1984
      %v3437 = vunpack.c.h.b16 %v1984
      %v3438 = vunpack.c.l.b16 %v1985
      %v3439 = vunpack.c.h.b16 %v1985
      %v3440 = vunpack.c.l.b16 %v1986
      %v3441 = vunpack.c.h.b16 %v1986
      %v3442 = vunpack.c.l.b16 %v1987
      %v3443 = vunpack.c.h.b16 %v1987
      %v3444 = vunpack.c.l.b16 %v1988
      %v3445 = vunpack.c.h.b16 %v1988
      %v3446 = vunpack.c.l.b16 %v1989
      %v3447 = vunpack.c.h.b16 %v1989
      %v3448 = vunpack.c.l.b16 %v1990
      %v3449 = vunpack.c.h.b16 %v1990
      %v3450 = vunpack.c.l.b16 %v1991
      %v3451 = vunpack.c.h.b16 %v1991
      %v3452 = vunpack.c.l.b16 %v1992
      %v3453 = vunpack.c.h.b16 %v1992
      %v3454 = vunpack.c.l.b16 %v1993
      %v3455 = vunpack.c.h.b16 %v1993
      %v3456 = vunpack.c.l.b16 %v1994
      %v3457 = vunpack.c.h.b16 %v1994
      %v3458 = vunpack.c.l.b16 %v1995
      %v3459 = vunpack.c.h.b16 %v1995
      %v3460 = vunpack.c.l.b16 %v1996
      %v3461 = vunpack.c.h.b16 %v1996
      %v3462 = vunpack.c.l.b16 %v1997
      %v3463 = vunpack.c.h.b16 %v1997
      %v3464 = vunpack.c.l.b16 %v1998
      %v3465 = vunpack.c.h.b16 %v1998
      %v3466 = vunpack.c.l.b16 %v1999
      %v3467 = vunpack.c.h.b16 %v1999
      %v3468 = vunpack.c.l.b16 %v2000
      %v3469 = vunpack.c.h.b16 %v2000
      %v3470 = vunpack.c.l.b16 %v2001
      %v3471 = vunpack.c.h.b16 %v2001
      %v3472 = vunpack.c.l.b16 %v2002
      %v3473 = vunpack.c.h.b16 %v2002
      %v3474 = vunpack.c.l.b16 %v2003
      %v3475 = vunpack.c.h.b16 %v2003
      %v3476 = vunpack.c.l.b16 %v2004
      %v3477 = vunpack.c.h.b16 %v2004
      %v3478 = vunpack.c.l.b16 %v2005
      %v3479 = vunpack.c.h.b16 %v2005
      %v3480 = vunpack.c.l.b16 %v2006
      %v3481 = vunpack.c.h.b16 %v2006
      %v3482 = vunpack.c.l.b16 %v2007
      %v3483 = vunpack.c.h.b16 %v2007
      %v3484 = vunpack.c.l.b16 %v2008
      %v3485 = vunpack.c.h.b16 %v2008
      %v3486 = vunpack.c.l.b16 %v2009
      %v3487 = vunpack.c.h.b16 %v2009
      %v3488 = vunpack.c.l.b16 %v2010
      %v3489 = vunpack.c.h.b16 %v2010
      %v3490 = vunpack.c.l.b16 %v2011
      %v3491 = vunpack.c.h.b16 %v2011
      %v3492 = vunpack.c.l.b16 %v2012
      %v3493 = vunpack.c.h.b16 %v2012
      %v3494 = vunpack.c.l.b16 %v2013
      %v3495 = vunpack.c.h.b16 %v2013
      %v3496 = vunpack.c.l.b16 %v2014
      %v3497 = vunpack.c.h.b16 %v2014
      %v3498 = vunpack.c.l.b16 %v2015
      %v3499 = vunpack.c.h.b16 %v2015
      %v3500 = vunpack.c.l.b16 %v2016
      %v3501 = vunpack.c.h.b16 %v2016
      %v3502 = vunpack.c.l.b16 %v2017
      %v3503 = vunpack.c.h.b16 %v2017
      %v3504 = vunpack.c.l.b16 %v2018
      %v3505 = vunpack.c.h.b16 %v2018
      %v3506 = vunpack.c.l.b16 %v2019
      %v3507 = vunpack.c.h.b16 %v2019
      %v3508 = vunpack.c.l.b16 %v2020
      %v3509 = vunpack.c.h.b16 %v2020
      %v3510 = vunpack.c.l.b16 %v2021
      %v3511 = vunpack.c.h.b16 %v2021
      %v3512 = vunpack.c.l.b16 %v2022
      %v3513 = vunpack.c.h.b16 %v2022
      %v3514 = vunpack.c.l.b16 %v2023
      %v3515 = vunpack.c.h.b16 %v2023
      %v3516 = vunpack.c.l.b16 %v2024
      %v3517 = vunpack.c.h.b16 %v2024
      %v3518 = vunpack.c.l.b16 %v2025
      %v3519 = vunpack.c.h.b16 %v2025
      %v3520 = vunpack.c.l.b16 %v2026
      %v3521 = vunpack.c.h.b16 %v2026
      %v3522 = vunpack.c.l.b16 %v2027
      %v3523 = vunpack.c.h.b16 %v2027
      %v3524 = vunpack.c.l.b16 %v2028
      %v3525 = vunpack.c.h.b16 %v2028
      %v3526 = vunpack.c.l.b16 %v2029
      %v3527 = vunpack.c.h.b16 %v2029
      %v3528 = vunpack.c.l.b16 %v2030
      %v3529 = vunpack.c.h.b16 %v2030
      %v3530 = vunpack.c.l.b16 %v2031
      %v3531 = vunpack.c.h.b16 %v2031
      %v3532 = vunpack.c.l.b16 %v2032
      %v3533 = vunpack.c.h.b16 %v2032
      %v3534 = vunpack.c.l.b16 %v2033
      %v3535 = vunpack.c.h.b16 %v2033
      %v3536 = vunpack.c.l.b16 %v2034
      %v3537 = vunpack.c.h.b16 %v2034
      %v3538 = vunpack.c.l.b16 %v2035
      %v3539 = vunpack.c.h.b16 %v2035
      %v3540 = vunpack.c.l.b16 %v2036
      %v3541 = vunpack.c.h.b16 %v2036
      %v3542 = vunpack.c.l.b16 %v2037
      %v3543 = vunpack.c.h.b16 %v2037
      %v3544 = vunpack.c.l.b16 %v2038
      %v3545 = vunpack.c.h.b16 %v2038
      %v3546 = vunpack.c.l.b16 %v2039
      %v3547 = vunpack.c.h.b16 %v2039
      %v3548 = vunpack.c.l.b16 %v2040
      %v3549 = vunpack.c.h.b16 %v2040
      %v3550 = vunpack.c.l.b16 %v2041
      %v3551 = vunpack.c.h.b16 %v2041
      %v3552 = vunpack.c.l.b16 %v2042
      %v3553 = vunpack.c.h.b16 %v2042
      %v3554 = vunpack.c.l.b16 %v2043
      %v3555 = vunpack.c.h.b16 %v2043
      %v3556 = vunpack.c.l.b16 %v2044
      %v3557 = vunpack.c.h.b16 %v2044
      %v3558 = vunpack.c.l.b16 %v2045
      %v3559 = vunpack.c.h.b16 %v2045
      %v3560 = vunpack.c.l.b16 %v2046
      %v3561 = vunpack.c.h.b16 %v2046
      %v3562 = vunpack.c.l.b16 %v2047
      %v3563 = vunpack.c.h.b16 %v2047
      %v3564 = vunpack.c.l.b16 %v2048
      %v3565 = vunpack.c.h.b16 %v2048
      %v3566 = vunpack.c.l.b16 %v2049
      %v3567 = vunpack.c.h.b16 %v2049
      %v3568 = vunpack.c.l.b16 %v2050
      %v3569 = vunpack.c.h.b16 %v2050
      %v3570 = vunpack.c.l.b16 %v2051
      %v3571 = vunpack.c.h.b16 %v2051
      %v3572 = vunpack.c.l.b16 %v2052
      %v3573 = vunpack.c.h.b16 %v2052
      %v3574 = vunpack.c.l.b16 %v2053
      %v3575 = vunpack.c.h.b16 %v2053
      %v3576 = vunpack.c.l.b16 %v2054
      %v3577 = vunpack.c.h.b16 %v2054
      %v3578 = vunpack.c.l.b16 %v2055
      %v3579 = vunpack.c.h.b16 %v2055
      %v3580 = vunpack.c.l.b16 %v2056
      %v3581 = vunpack.c.h.b16 %v2056
      %v3582 = vunpack.c.l.b16 %v2057
      %v3583 = vunpack.c.h.b16 %v2057
      %v3584 = vunpack.c.l.b16 %v2058
      %v3585 = vunpack.c.h.b16 %v2058
      %v3586 = vunpack.c.l.b16 %v2059
      %v3587 = vunpack.c.h.b16 %v2059
      %v3588 = vunpack.c.l.b16 %v2060
      %v3589 = vunpack.c.h.b16 %v2060
      %v3590 = vunpack.c.l.b16 %v2061
      %v3591 = vunpack.c.h.b16 %v2061
      %v3592 = vunpack.c.l.b16 %v2062
      %v3593 = vunpack.c.h.b16 %v2062
      %v3594 = vunpack.c.l.b16 %v2063
      %v3595 = vunpack.c.h.b16 %v2063
      %v3596 = vunpack.c.l.b16 %v2064
      %v3597 = vunpack.c.h.b16 %v2064
      %v3598 = vunpack.c.l.b16 %v2065
      %v3599 = vunpack.c.h.b16 %v2065
      %v3600 = vunpack.c.l.b16 %v2066
      %v3601 = vunpack.c.h.b16 %v2066
      %v3602 = vunpack.c.l.b16 %v2067
      %v3603 = vunpack.c.h.b16 %v2067
      %v3604 = vunpack.c.l.b16 %v2068
      %v3605 = vunpack.c.h.b16 %v2068
      %v3606 = vunpack.c.l.b16 %v2069
      %v3607 = vunpack.c.h.b16 %v2069
      %v3608 = vunpack.c.l.b16 %v2070
      %v3609 = vunpack.c.h.b16 %v2070
      %v3610 = vunpack.c.l.b16 %v2071
      %v3611 = vunpack.c.h.b16 %v2071
      %v3612 = vunpack.c.l.b16 %v2072
      %v3613 = vunpack.c.h.b16 %v2072
      %v3614 = vunpack.c.l.b16 %v2073
      %v3615 = vunpack.c.h.b16 %v2073
      %v3616 = vunpack.c.l.b16 %v2074
      %v3617 = vunpack.c.h.b16 %v2074
      %v3618 = vunpack.c.l.b16 %v2075
      %v3619 = vunpack.c.h.b16 %v2075
      %v3620 = vunpack.c.l.b16 %v2076
      %v3621 = vunpack.c.h.b16 %v2076
      %v3622 = vunpack.c.l.b16 %v2077
      %v3623 = vunpack.c.h.b16 %v2077
      %v3624 = vunpack.c.l.b16 %v2078
      %v3625 = vunpack.c.h.b16 %v2078
      %v3626 = vunpack.c.l.b16 %v2079
      %v3627 = vunpack.c.h.b16 %v2079
      %v3628 = vunpack.c.l.b16 %v2080
      %v3629 = vunpack.c.h.b16 %v2080
      %v3630 = vunpack.c.l.b16 %v2081
      %v3631 = vunpack.c.h.b16 %v2081
      %v3632 = vunpack.c.l.b16 %v2082
      %v3633 = vunpack.c.h.b16 %v2082
      %v3634 = vunpack.c.l.b16 %v2083
      %v3635 = vunpack.c.h.b16 %v2083
      %v3636 = vunpack.c.l.b16 %v2084
      %v3637 = vunpack.c.h.b16 %v2084
      %v3638 = vunpack.c.l.b16 %v2085
      %v3639 = vunpack.c.h.b16 %v2085
      %v3640 = vunpack.c.l.b16 %v2086
      %v3641 = vunpack.c.h.b16 %v2086
      %v3642 = vunpack.c.l.b16 %v2087
      %v3643 = vunpack.c.h.b16 %v2087
      %v3644 = vunpack.c.l.b16 %v2088
      %v3645 = vunpack.c.h.b16 %v2088
      %v3646 = vunpack.c.l.b16 %v2089
      %v3647 = vunpack.c.h.b16 %v2089
      %v3648 = vunpack.c.l.b16 %v2090
      %v3649 = vunpack.c.h.b16 %v2090
      %v3650 = vunpack.c.l.b16 %v2091
      %v3651 = vunpack.c.h.b16 %v2091
      %v3652 = vunpack.c.l.b16 %v2092
      %v3653 = vunpack.c.h.b16 %v2092
      %v3654 = vunpack.c.l.b16 %v2093
      %v3655 = vunpack.c.h.b16 %v2093
      %v3656 = vunpack.c.l.b16 %v2094
      %v3657 = vunpack.c.h.b16 %v2094
      %v3658 = vunpack.c.l.b16 %v2095
      %v3659 = vunpack.c.h.b16 %v2095
      %v3660 = vunpack.c.l.b16 %v2096
      %v3661 = vunpack.c.h.b16 %v2096
      %v3662 = vunpack.c.l.b16 %v2097
      %v3663 = vunpack.c.h.b16 %v2097
      %v3664 = vunpack.c.l.b16 %v2098
      %v3665 = vunpack.c.h.b16 %v2098
      %v3666 = vunpack.c.l.b16 %v2099
      %v3667 = vunpack.c.h.b16 %v2099
      %v3668 = vunpack.c.l.b16 %v2100
      %v3669 = vunpack.c.h.b16 %v2100
      %v3670 = vunpack.c.l.b16 %v2101
      %v3671 = vunpack.c.h.b16 %v2101
      %v3672 = vunpack.c.l.b16 %v2102
      %v3673 = vunpack.c.h.b16 %v2102
      %v3674 = vunpack.c.l.b16 %v2103
      %v3675 = vunpack.c.h.b16 %v2103
      %v3676 = vunpack.c.l.b16 %v2104
      %v3677 = vunpack.c.h.b16 %v2104
      %v3678 = vunpack.c.l.b16 %v2105
      %v3679 = vunpack.c.h.b16 %v2105
      %v3680 = vunpack.c.l.b16 %v2106
      %v3681 = vunpack.c.h.b16 %v2106
      %v3682 = vunpack.c.l.b16 %v2107
      %v3683 = vunpack.c.h.b16 %v2107
      %v3684 = vunpack.c.l.b16 %v2108
      %v3685 = vunpack.c.h.b16 %v2108
      %v3686 = vunpack.c.l.b16 %v2109
      %v3687 = vunpack.c.h.b16 %v2109
      %v3688 = vunpack.c.l.b16 %v2110
      %v3689 = vunpack.c.h.b16 %v2110
      %v3690 = vunpack.c.l.b16 %v2111
      %v3691 = vunpack.c.h.b16 %v2111
      %v3692 = vunpack.c.l.b16 %v2112
      %v3693 = vunpack.c.h.b16 %v2112
      %v3694 = vunpack.c.l.b16 %v2113
      %v3695 = vunpack.c.h.b16 %v2113
      %v3696 = vunpack.c.l.b16 %v2114
      %v3697 = vunpack.c.h.b16 %v2114
      %v3698 = vunpack.c.l.b16 %v2115
      %v3699 = vunpack.c.h.b16 %v2115
      %v3700 = vunpack.c.l.b16 %v2116
      %v3701 = vunpack.c.h.b16 %v2116
      %v3702 = vunpack.c.l.b16 %v2117
      %v3703 = vunpack.c.h.b16 %v2117
      %v3704 = vunpack.c.l.b16 %v2118
      %v3705 = vunpack.c.h.b16 %v2118
      %v3706 = vunpack.c.l.b16 %v2119
      %v3707 = vunpack.c.h.b16 %v2119
      %v3708 = vunpack.c.l.b16 %v2120
      %v3709 = vunpack.c.h.b16 %v2120
      %v3710 = vunpack.c.l.b16 %v2121
      %v3711 = vunpack.c.h.b16 %v2121
      %v3712 = vunpack.c.l.b16 %v2122
      %v3713 = vunpack.c.h.b16 %v2122
      %v3714 = vunpack.c.l.b16 %v2123
      %v3715 = vunpack.c.h.b16 %v2123
      %v3716 = vunpack.c.l.b16 %v2124
      %v3717 = vunpack.c.h.b16 %v2124
      %v3718 = vunpack.c.l.b16 %v2125
      %v3719 = vunpack.c.h.b16 %v2125
      %v3720 = vunpack.c.l.b16 %v2126
      %v3721 = vunpack.c.h.b16 %v2126
      %v3722 = vunpack.c.l.b16 %v2127
      %v3723 = vunpack.c.h.b16 %v2127
      %v3724 = vunpack.c.l.b16 %v2128
      %v3725 = vunpack.c.h.b16 %v2128
      %v3726 = vunpack.c.l.b16 %v2129
      %v3727 = vunpack.c.h.b16 %v2129
      %v3728 = vunpack.c.l.b16 %v2130
      %v3729 = vunpack.c.h.b16 %v2130
      %v3730 = vunpack.c.l.b16 %v2131
      %v3731 = vunpack.c.h.b16 %v2131
      %v3732 = vunpack.c.l.b16 %v2132
      %v3733 = vunpack.c.h.b16 %v2132
      %v3734 = vunpack.c.l.b16 %v2133
      %v3735 = vunpack.c.h.b16 %v2133
      %v3736 = vunpack.c.l.b16 %v2134
      %v3737 = vunpack.c.h.b16 %v2134
      %v3738 = vunpack.c.l.b16 %v2135
      %v3739 = vunpack.c.h.b16 %v2135
      %v3740 = vunpack.c.l.b16 %v2136
      %v3741 = vunpack.c.h.b16 %v2136
      %v3742 = vunpack.c.l.b16 %v2137
      %v3743 = vunpack.c.h.b16 %v2137
      %v3744 = vunpack.c.l.b16 %v2138
      %v3745 = vunpack.c.h.b16 %v2138
      %v3746 = vunpack.c.l.b16 %v2139
      %v3747 = vunpack.c.h.b16 %v2139
      %v3748 = vunpack.c.l.b16 %v2140
      %v3749 = vunpack.c.h.b16 %v2140
      %v3750 = vunpack.c.l.b16 %v2141
      %v3751 = vunpack.c.h.b16 %v2141
      %v3752 = vunpack.c.l.b16 %v2142
      %v3753 = vunpack.c.h.b16 %v2142
      %v3754 = vunpack.c.l.b16 %v2143
      %v3755 = vunpack.c.h.b16 %v2143
      %v3756 = vunpack.c.l.b16 %v2144
      %v3757 = vunpack.c.h.b16 %v2144
      %v3758 = vunpack.c.l.b16 %v2145
      %v3759 = vunpack.c.h.b16 %v2145
      %v3760 = vunpack.c.l.b16 %v2146
      %v3761 = vunpack.c.h.b16 %v2146
      %v3762 = vunpack.c.l.b16 %v2147
      %v3763 = vunpack.c.h.b16 %v2147
      %v3764 = vunpack.c.l.b16 %v2148
      %v3765 = vunpack.c.h.b16 %v2148
      %v3766 = vunpack.c.l.b16 %v2149
      %v3767 = vunpack.c.h.b16 %v2149
      %v3768 = vunpack.c.l.b16 %v2150
      %v3769 = vunpack.c.h.b16 %v2150
      %v3770 = vunpack.c.l.b16 %v2151
      %v3771 = vunpack.c.h.b16 %v2151
      %v3772 = vunpack.c.l.b16 %v2152
      %v3773 = vunpack.c.h.b16 %v2152
      %v3774 = vunpack.c.l.b16 %v2153
      %v3775 = vunpack.c.h.b16 %v2153
      %v3776 = vunpack.c.l.b16 %v2154
      %v3777 = vunpack.c.h.b16 %v2154
      %v3778 = vunpack.c.l.b16 %v2155
      %v3779 = vunpack.c.h.b16 %v2155
      %v3780 = vunpack.c.l.b16 %v2156
      %v3781 = vunpack.c.h.b16 %v2156
      %v3782 = vunpack.c.l.b16 %v2157
      %v3783 = vunpack.c.h.b16 %v2157
      %v3784 = vunpack.c.l.b16 %v2158
      %v3785 = vunpack.c.h.b16 %v2158
      %v3786 = vunpack.c.l.b16 %v2159
      %v3787 = vunpack.c.h.b16 %v2159
      %v3788 = vunpack.c.l.b16 %v2160
      %v3789 = vunpack.c.h.b16 %v2160
      %v3790 = vunpack.c.l.b16 %v2161
      %v3791 = vunpack.c.h.b16 %v2161
      %v3792 = vunpack.c.l.b16 %v2162
      %v3793 = vunpack.c.h.b16 %v2162
      %v3794 = vunpack.c.l.b16 %v2163
      %v3795 = vunpack.c.h.b16 %v2163
      %v3796 = vunpack.c.l.b16 %v2164
      %v3797 = vunpack.c.h.b16 %v2164
      %v3798 = vunpack.c.l.b16 %v2165
      %v3799 = vunpack.c.h.b16 %v2165
      %v3800 = vunpack.c.l.b16 %v2166
      %v3801 = vunpack.c.h.b16 %v2166
      %v3802 = vunpack.c.l.b16 %v2167
      %v3803 = vunpack.c.h.b16 %v2167
      %v3804 = vunpack.c.l.b16 %v2168
      %v3805 = vunpack.c.h.b16 %v2168
      %v3806 = vunpack.c.l.b16 %v2169
      %v3807 = vunpack.c.h.b16 %v2169
      %v3808 = vunpack.c.l.b16 %v2170
      %v3809 = vunpack.c.h.b16 %v2170
      %v3810 = vunpack.c.l.b16 %v2171
      %v3811 = vunpack.c.h.b16 %v2171
      %v3812 = vunpack.c.l.b16 %v2172
      %v3813 = vunpack.c.h.b16 %v2172
      %v3814 = vunpack.c.l.b16 %v2173
      %v3815 = vunpack.c.h.b16 %v2173
      %v3816 = vunpack.c.l.b16 %v2174
      %v3817 = vunpack.c.h.b16 %v2174
      %v3818 = vunpack.c.l.b16 %v2175
      %v3819 = vunpack.c.h.b16 %v2175
      %v3820 = vunpack.c.l.b16 %v2176
      %v3821 = vunpack.c.h.b16 %v2176
      %v3822 = vunpack.c.l.b16 %v2177
      %v3823 = vunpack.c.h.b16 %v2177
      %v3824 = vunpack.c.l.b16 %v2178
      %v3825 = vunpack.c.h.b16 %v2178
      %v3826 = vunpack.c.l.b16 %v2179
      %v3827 = vunpack.c.h.b16 %v2179
      %v3828 = vunpack.c.l.b16 %v2180
      %v3829 = vunpack.c.h.b16 %v2180
      %v3830 = vunpack.c.l.b16 %v2181
      %v3831 = vunpack.c.h.b16 %v2181
      %v3832 = vunpack.c.l.b16 %v2182
      %v3833 = vunpack.c.h.b16 %v2182
      %v3834 = vunpack.c.l.b16 %v2183
      %v3835 = vunpack.c.h.b16 %v2183
      %v3836 = vunpack.c.l.b16 %v2184
      %v3837 = vunpack.c.h.b16 %v2184
      %v3838 = vunpack.c.l.b16 %v2185
      %v3839 = vunpack.c.h.b16 %v2185
      %v3840 = vunpack.c.l.b16 %v2186
      %v3841 = vunpack.c.h.b16 %v2186
      %v3842 = vunpack.c.l.b16 %v2187
      %v3843 = vunpack.c.h.b16 %v2187
      %v3844 = vunpack.c.l.b16 %v2188
      %v3845 = vunpack.c.h.b16 %v2188
      %v3846 = vunpack.c.l.b16 %v2189
      %v3847 = vunpack.c.h.b16 %v2189
      %v3848 = vunpack.c.l.b16 %v2190
      %v3849 = vunpack.c.h.b16 %v2190
      %v3850 = vunpack.c.l.b16 %v2191
      %v3851 = vunpack.c.h.b16 %v2191
      %v3852 = vunpack.c.l.b16 %v2192
      %v3853 = vunpack.c.h.b16 %v2192
      %v3854 = vunpack.c.l.b16 %v2193
      %v3855 = vunpack.c.h.b16 %v2193
      %v3856 = vunpack.c.l.b16 %v2194
      %v3857 = vunpack.c.h.b16 %v2194
      %v3858 = vunpack.c.l.b16 %v2195
      %v3859 = vunpack.c.h.b16 %v2195
      %v3860 = vunpack.c.l.b16 %v2196
      %v3861 = vunpack.c.h.b16 %v2196
      %v3862 = vunpack.c.l.b16 %v2197
      %v3863 = vunpack.c.h.b16 %v2197
      %v3864 = vunpack.c.l.b16 %v2198
      %v3865 = vunpack.c.h.b16 %v2198
      %v3866 = vunpack.c.l.b16 %v2199
      %v3867 = vunpack.c.h.b16 %v2199
      %v3868 = vunpack.c.l.b16 %v2200
      %v3869 = vunpack.c.h.b16 %v2200
      %v3870 = vunpack.c.l.b16 %v2201
      %v3871 = vunpack.c.h.b16 %v2201
      %v3872 = vunpack.c.l.b16 %v2202
      %v3873 = vunpack.c.h.b16 %v2202
      %v3874 = vunpack.c.l.b16 %v2203
      %v3875 = vunpack.c.h.b16 %v2203
      %v3876 = vunpack.c.l.b16 %v2204
      %v3877 = vunpack.c.h.b16 %v2204
      %v3878 = vunpack.c.l.b16 %v2205
      %v3879 = vunpack.c.h.b16 %v2205
      %v3880 = vunpack.c.l.b16 %v2206
      %v3881 = vunpack.c.h.b16 %v2206
      %v3882 = vunpack.c.l.b16 %v2207
      %v3883 = vunpack.c.h.b16 %v2207
      %v3884 = vunpack.c.l.b16 %v2208
      %v3885 = vunpack.c.h.b16 %v2208
      %v3886 = vunpack.c.l.b16 %v2209
      %v3887 = vunpack.c.h.b16 %v2209
      %v3888 = vunpack.c.l.b16 %v2210
      %v3889 = vunpack.c.h.b16 %v2210
      %v3890 = vunpack.c.l.b16 %v2211
      %v3891 = vunpack.c.h.b16 %v2211
      %v3892 = vunpack.c.l.b16 %v2212
      %v3893 = vunpack.c.h.b16 %v2212
      %v3894 = vunpack.c.l.b16 %v2213
      %v3895 = vunpack.c.h.b16 %v2213
      %v3896 = vunpack.c.l.b16 %v2214
      %v3897 = vunpack.c.h.b16 %v2214
      %v3898 = vunpack.c.l.b16 %v2215
      %v3899 = vunpack.c.h.b16 %v2215
      %v3900 = vunpack.c.l.b16 %v2216
      %v3901 = vunpack.c.h.b16 %v2216
      %v3902 = vunpack.c.l.b16 %v2217
      %v3903 = vunpack.c.h.b16 %v2217
      %v3904 = vunpack.c.l.b16 %v2218
      %v3905 = vunpack.c.h.b16 %v2218
      %v3906 = vunpack.c.l.b16 %v2219
      %v3907 = vunpack.c.h.b16 %v2219
      %v3908 = vunpack.c.l.b16 %v2220
      %v3909 = vunpack.c.h.b16 %v2220
      %v3910 = vunpack.c.l.b16 %v2221
      %v3911 = vunpack.c.h.b16 %v2221
      %v3912 = vunpack.c.l.b16 %v2222
      %v3913 = vunpack.c.h.b16 %v2222
      %v3914 = vunpack.c.l.b16 %v2223
      %v3915 = vunpack.c.h.b16 %v2223
      %v3916 = vunpack.c.l.b16 %v2224
      %v3917 = vunpack.c.h.b16 %v2224
      %v3918 = vunpack.c.l.b16 %v2225
      %v3919 = vunpack.c.h.b16 %v2225
      %v3920 = vunpack.c.l.b16 %v2226
      %v3921 = vunpack.c.h.b16 %v2226
      %v3922 = vunpack.c.l.b16 %v2227
      %v3923 = vunpack.c.h.b16 %v2227
      %v3924 = vunpack.c.l.b16 %v2228
      %v3925 = vunpack.c.h.b16 %v2228
      %v3926 = vunpack.c.l.b16 %v2229
      %v3927 = vunpack.c.h.b16 %v2229
      %v3928 = vunpack.c.l.b16 %v2230
      %v3929 = vunpack.c.h.b16 %v2230
      %v3930 = vunpack.c.l.b16 %v2231
      %v3931 = vunpack.c.h.b16 %v2231
      %v3932 = vunpack.c.l.b16 %v2232
      %v3933 = vunpack.c.h.b16 %v2232
      %v3934 = vunpack.c.l.b16 %v2233
      %v3935 = vunpack.c.h.b16 %v2233
      %v3936 = vunpack.c.l.b16 %v2234
      %v3937 = vunpack.c.h.b16 %v2234
      %v3938 = vunpack.c.l.b16 %v2235
      %v3939 = vunpack.c.h.b16 %v2235
      %v3940 = vunpack.c.l.b16 %v2236
      %v3941 = vunpack.c.h.b16 %v2236
      %v3942 = vunpack.c.l.b16 %v2237
      %v3943 = vunpack.c.h.b16 %v2237
      %v3944 = vunpack.c.l.b16 %v2238
      %v3945 = vunpack.c.h.b16 %v2238
      %v3946 = vunpack.c.l.b16 %v2239
      %v3947 = vunpack.c.h.b16 %v2239
      %v3948 = vunpack.c.l.b16 %v2240
      %v3949 = vunpack.c.h.b16 %v2240
      %v3950 = vunpack.c.l.b16 %v2241
      %v3951 = vunpack.c.h.b16 %v2241
      %v3952 = vunpack.c.l.b16 %v2242
      %v3953 = vunpack.c.h.b16 %v2242
      %v3954 = vunpack.c.l.b16 %v2243
      %v3955 = vunpack.c.h.b16 %v2243
      %v3956 = vunpack.c.l.b16 %v2244
      %v3957 = vunpack.c.h.b16 %v2244
      %v3958 = vunpack.c.l.b16 %v2245
      %v3959 = vunpack.c.h.b16 %v2245
      %v3960 = vunpack.c.l.b16 %v2246
      %v3961 = vunpack.c.h.b16 %v2246
      %v3962 = vunpack.c.l.b16 %v2247
      %v3963 = vunpack.c.h.b16 %v2247
      %v3964 = vunpack.c.l.b16 %v2248
      %v3965 = vunpack.c.h.b16 %v2248
      %v3966 = vunpack.c.l.b16 %v2249
      %v3967 = vunpack.c.h.b16 %v2249
      %v3968 = vunpack.c.l.b16 %v2250
      %v3969 = vunpack.c.h.b16 %v2250
      %v3970 = vunpack.c.l.b16 %v2251
      %v3971 = vunpack.c.h.b16 %v2251
      %v3972 = vunpack.c.l.b16 %v2252
      %v3973 = vunpack.c.h.b16 %v2252
      %v3974 = vunpack.c.l.b16 %v2253
      %v3975 = vunpack.c.h.b16 %v2253
      %v3976 = vunpack.c.l.b16 %v2254
      %v3977 = vunpack.c.h.b16 %v2254
      %v3978 = vunpack.c.l.b16 %v2255
      %v3979 = vunpack.c.h.b16 %v2255
      %v3980 = vunpack.c.l.b16 %v2256
      %v3981 = vunpack.c.h.b16 %v2256
      %v3982 = vunpack.c.l.b16 %v2257
      %v3983 = vunpack.c.h.b16 %v2257
      %v3984 = vunpack.c.l.b16 %v2258
      %v3985 = vunpack.c.h.b16 %v2258
      %v3986 = vunpack.c.l.b16 %v2259
      %v3987 = vunpack.c.h.b16 %v2259
      %v3988 = vunpack.c.l.b16 %v2260
      %v3989 = vunpack.c.h.b16 %v2260
      %v3990 = vunpack.c.l.b16 %v2261
      %v3991 = vunpack.c.h.b16 %v2261
      %v3992 = vunpack.c.l.b16 %v2262
      %v3993 = vunpack.c.h.b16 %v2262
      %v3994 = vunpack.c.l.b16 %v2263
      %v3995 = vunpack.c.h.b16 %v2263
      %v3996 = vunpack.c.l.b16 %v2264
      %v3997 = vunpack.c.h.b16 %v2264
      %v3998 = vunpack.c.l.b16 %v2265
      %v3999 = vunpack.c.h.b16 %v2265
      %v4000 = vunpack.c.l.b16 %v2266
      %v4001 = vunpack.c.h.b16 %v2266
      %v4002 = vunpack.c.l.b16 %v2267
      %v4003 = vunpack.c.h.b16 %v2267
      %v4004 = vunpack.c.l.b16 %v2268
      %v4005 = vunpack.c.h.b16 %v2268
      %v4006 = vunpack.c.l.b16 %v2269
      %v4007 = vunpack.c.h.b16 %v2269
      %v4008 = vunpack.c.l.b16 %v2270
      %v4009 = vunpack.c.h.b16 %v2270
      %v4010 = vunpack.c.l.b16 %v2271
      %v4011 = vunpack.c.h.b16 %v2271
      %v4012 = vunpack.c.l.b16 %v2272
      %v4013 = vunpack.c.h.b16 %v2272
      %v4014 = vunpack.c.l.b16 %v2273
      %v4015 = vunpack.c.h.b16 %v2273
      %v4016 = vunpack.c.l.b16 %v2274
      %v4017 = vunpack.c.h.b16 %v2274
      %v4018 = vunpack.c.l.b16 %v2275
      %v4019 = vunpack.c.h.b16 %v2275
      %v4020 = vunpack.c.l.b16 %v2276
      %v4021 = vunpack.c.h.b16 %v2276
      %v4022 = vunpack.c.l.b16 %v2277
      %v4023 = vunpack.c.h.b16 %v2277
      %v4024 = vunpack.c.l.b16 %v2278
      %v4025 = vunpack.c.h.b16 %v2278
      %v4026 = vunpack.c.l.b16 %v2279
      %v4027 = vunpack.c.h.b16 %v2279
      %v4028 = vunpack.c.l.b16 %v2280
      %v4029 = vunpack.c.h.b16 %v2280
      %v4030 = vunpack.c.l.b16 %v2281
      %v4031 = vunpack.c.h.b16 %v2281
      %v4032 = vunpack.c.l.b16 %v2282
      %v4033 = vunpack.c.h.b16 %v2282
      %v4034 = vunpack.c.l.b16 %v2283
      %v4035 = vunpack.c.h.b16 %v2283
      %v4036 = vunpack.c.l.b16 %v2284
      %v4037 = vunpack.c.h.b16 %v2284
      %v4038 = vunpack.c.l.b16 %v2285
      %v4039 = vunpack.c.h.b16 %v2285
      %v4040 = vunpack.c.l.b16 %v2286
      %v4041 = vunpack.c.h.b16 %v2286
      %v4042 = vunpack.c.l.b16 %v2287
      %v4043 = vunpack.c.h.b16 %v2287
      %v4044 = vunpack.c.l.b16 %v2288
      %v4045 = vunpack.c.h.b16 %v2288
      %v4046 = vunpack.c.l.b16 %v2289
      %v4047 = vunpack.c.h.b16 %v2289
      %v4048 = vunpack.c.l.b16 %v2290
      %v4049 = vunpack.c.h.b16 %v2290
      %v4050 = vunpack.c.l.b16 %v2291
      %v4051 = vunpack.c.h.b16 %v2291
      %v4052 = vunpack.c.l.b16 %v2292
      %v4053 = vunpack.c.h.b16 %v2292
      %v4054 = vunpack.c.l.b16 %v2293
      %v4055 = vunpack.c.h.b16 %v2293
      %v4056 = vunpack.c.l.b16 %v2294
      %v4057 = vunpack.c.h.b16 %v2294
      %v4058 = vunpack.c.l.b16 %v2295
      %v4059 = vunpack.c.h.b16 %v2295
      %v4060 = vunpack.c.l.b16 %v2296
      %v4061 = vunpack.c.h.b16 %v2296
      %v4062 = vunpack.c.l.b16 %v2297
      %v4063 = vunpack.c.h.b16 %v2297
      %v4064 = vunpack.c.l.b16 %v2298
      %v4065 = vunpack.c.h.b16 %v2298
      %v4066 = vunpack.c.l.b16 %v2299
      %v4067 = vunpack.c.h.b16 %v2299
      %v4068 = vunpack.c.l.b16 %v2300
      %v4069 = vunpack.c.h.b16 %v2300
      %v4070 = vunpack.c.l.b16 %v2301
      %v4071 = vunpack.c.h.b16 %v2301
      %v4072 = vunpack.c.l.b16 %v2302
      %v4073 = vunpack.c.h.b16 %v2302
      %v4074 = vunpack.c.l.b16 %v2303
      %v4075 = vunpack.c.h.b16 %v2303
      %v4076 = vunpack.c.l.b16 %v2304
      %v4077 = vunpack.c.h.b16 %v2304
      %v4078 = vunpack.c.l.b16 %v2305
      %v4079 = vunpack.c.h.b16 %v2305
      %v4080 = vunpack.c.l.b16 %v2306
      %v4081 = vunpack.c.h.b16 %v2306
      %v4082 = vunpack.c.l.b16 %v2307
      %v4083 = vunpack.c.h.b16 %v2307
      %v4084 = vunpack.c.l.b16 %v2308
      %v4085 = vunpack.c.h.b16 %v2308
      %v4086 = vunpack.c.l.b16 %v2309
      %v4087 = vunpack.c.h.b16 %v2309
      %v4088 = vunpack.c.l.b16 %v2310
      %v4089 = vunpack.c.h.b16 %v2310
      %v4090 = vunpack.c.l.b16 %v2311
      %v4091 = vunpack.c.h.b16 %v2311
      %v4092 = vunpack.c.l.b16 %v2312
      %v4093 = vunpack.c.h.b16 %v2312
      %v4094 = vunpack.c.l.b16 %v2313
      %v4095 = vunpack.c.h.b16 %v2313
      %v4096 = vunpack.c.l.b16 %v2314
      %v4097 = vunpack.c.h.b16 %v2314
      %v4098 = vunpack.c.l.b16 %v2315
      %v4099 = vunpack.c.h.b16 %v2315
      %v4100 = vunpack.c.l.b16 %v2316
      %v4101 = vunpack.c.h.b16 %v2316
      %v4102 = vunpack.c.l.b16 %v2317
      %v4103 = vunpack.c.h.b16 %v2317
      %v4104 = vunpack.c.l.b16 %v2318
      %v4105 = vunpack.c.h.b16 %v2318
      %v4106 = vunpack.c.l.b16 %v2319
      %v4107 = vunpack.c.h.b16 %v2319
      %v4108 = vunpack.c.l.b16 %v2320
      %v4109 = vunpack.c.h.b16 %v2320
      %v4110 = vunpack.c.l.b16 %v2321
      %v4111 = vunpack.c.h.b16 %v2321
      %v4112 = vunpack.c.l.b16 %v2322
      %v4113 = vunpack.c.h.b16 %v2322
      %v4114 = vunpack.c.l.b16 %v2323
      %v4115 = vunpack.c.h.b16 %v2323
      %v4116 = vunpack.c.l.b16 %v2324
      %v4117 = vunpack.c.h.b16 %v2324
      %v4118 = vunpack.c.l.b16 %v2325
      %v4119 = vunpack.c.h.b16 %v2325
      %v4120 = vunpack.c.l.b16 %v2326
      %v4121 = vunpack.c.h.b16 %v2326
      %v4122 = vunpack.c.l.b16 %v2327
      %v4123 = vunpack.c.h.b16 %v2327
      %v4124 = vunpack.c.l.b16 %v2328
      %v4125 = vunpack.c.h.b16 %v2328
      %v4126 = vunpack.c.l.b16 %v2329
      %v4127 = vunpack.c.h.b16 %v2329
      %v4128 = vunpack.c.l.b16 %v2330
      %v4129 = vunpack.c.h.b16 %v2330
      %v4130 = vunpack.c.l.b16 %v2331
      %v4131 = vunpack.c.h.b16 %v2331
      %v4132 = vunpack.c.l.b16 %v2332
      %v4133 = vunpack.c.h.b16 %v2332
      %v4134 = vunpack.c.l.b16 %v2333
      %v4135 = vunpack.c.h.b16 %v2333
      %v4136 = vunpack.c.l.b16 %v2334
      %v4137 = vunpack.c.h.b16 %v2334
      %v4138 = vunpack.c.l.b16 %v2335
      %v4139 = vunpack.c.h.b16 %v2335
      %v4140 = vunpack.c.l.b16 %v2336
      %v4141 = vunpack.c.h.b16 %v2336
      %v4142 = vunpack.c.l.b16 %v2337
      %v4143 = vunpack.c.h.b16 %v2337
      %v4144 = vunpack.c.l.b16 %v2338
      %v4145 = vunpack.c.h.b16 %v2338
      %v4146 = vunpack.c.l.b16 %v2339
      %v4147 = vunpack.c.h.b16 %v2339
      %v4148 = vunpack.c.l.b16 %v2340
      %v4149 = vunpack.c.h.b16 %v2340
      %v4150 = vunpack.c.l.b16 %v2341
      %v4151 = vunpack.c.h.b16 %v2341
      %v4152 = vunpack.c.l.b16 %v2342
      %v4153 = vunpack.c.h.b16 %v2342
      %v4154 = vunpack.c.l.b16 %v2343
      %v4155 = vunpack.c.h.b16 %v2343
      %v4156 = vunpack.c.l.b16 %v2344
      %v4157 = vunpack.c.h.b16 %v2344
      %v4158 = vunpack.c.l.b16 %v2345
      %v4159 = vunpack.c.h.b16 %v2345
      %v4160 = vunpack.c.l.b16 %v2346
      %v4161 = vunpack.c.h.b16 %v2346
      %v4162 = vunpack.c.l.b16 %v2347
      %v4163 = vunpack.c.h.b16 %v2347
      %v4164 = vunpack.c.l.b16 %v2348
      %v4165 = vunpack.c.h.b16 %v2348
      %v4166 = vunpack.c.l.b16 %v2349
      %v4167 = vunpack.c.h.b16 %v2349
      %v4168 = vunpack.c.l.b16 %v2350
      %v4169 = vunpack.c.h.b16 %v2350
      %v4170 = vunpack.c.l.b16 %v2351
      %v4171 = vunpack.c.h.b16 %v2351
      %v4172 = vunpack.c.l.b16 %v2352
      %v4173 = vunpack.c.h.b16 %v2352
      %v4174 = vunpack.c.l.b16 %v2353
      %v4175 = vunpack.c.h.b16 %v2353
      %v4176 = vunpack.c.l.b16 %v2354
      %v4177 = vunpack.c.h.b16 %v2354
      %v4178 = vunpack.c.l.b16 %v2355
      %v4179 = vunpack.c.h.b16 %v2355
      %v4180 = vunpack.c.l.b16 %v2356
      %v4181 = vunpack.c.h.b16 %v2356
      %v4182 = vunpack.c.l.b16 %v2357
      %v4183 = vunpack.c.h.b16 %v2357
      %v4184 = vunpack.c.l.b16 %v2358
      %v4185 = vunpack.c.h.b16 %v2358
      %v4186 = vunpack.c.l.b16 %v2359
      %v4187 = vunpack.c.h.b16 %v2359
      %v4188 = vunpack.c.l.b16 %v2360
      %v4189 = vunpack.c.h.b16 %v2360
      %v4190 = vunpack.c.l.b16 %v2361
      %v4191 = vunpack.c.h.b16 %v2361
      %v4192 = vunpack.c.l.b16 %v2362
      %v4193 = vunpack.c.h.b16 %v2362
      %v4194 = vunpack.c.l.b16 %v2363
      %v4195 = vunpack.c.h.b16 %v2363
      %v4196 = vunpack.c.l.b16 %v2364
      %v4197 = vunpack.c.h.b16 %v2364
      %v4198 = vunpack.c.l.b16 %v2365
      %v4199 = vunpack.c.h.b16 %v2365
      %v4200 = vunpack.c.l.b16 %v2366
      %v4201 = vunpack.c.h.b16 %v2366
      %v4202 = vunpack.c.l.b16 %v2367
      %v4203 = vunpack.c.h.b16 %v2367
      %v4204 = vunpack.c.l.b16 %v2368
      %v4205 = vunpack.c.h.b16 %v2368
      %v4206 = vunpack.c.l.b16 %v2369
      %v4207 = vunpack.c.h.b16 %v2369
      %v4208 = vunpack.c.l.b16 %v2370
      %v4209 = vunpack.c.h.b16 %v2370
      %v4210 = vunpack.c.l.b16 %v2371
      %v4211 = vunpack.c.h.b16 %v2371
      %v4212 = vunpack.c.l.b16 %v2372
      %v4213 = vunpack.c.h.b16 %v2372
      %v4214 = vunpack.c.l.b16 %v2373
      %v4215 = vunpack.c.h.b16 %v2373
      %v4216 = vunpack.c.l.b16 %v2374
      %v4217 = vunpack.c.h.b16 %v2374
      %v4218 = vunpack.c.l.b16 %v2375
      %v4219 = vunpack.c.h.b16 %v2375
      %v4220 = vunpack.c.l.b16 %v2376
      %v4221 = vunpack.c.h.b16 %v2376
      %v4222 = vunpack.c.l.b16 %v2377
      %v4223 = vunpack.c.h.b16 %v2377
      %v4224 = vunpack.c.l.b16 %v2378
      %v4225 = vunpack.c.h.b16 %v2378
      %v4226 = vunpack.c.l.b16 %v2379
      %v4227 = vunpack.c.h.b16 %v2379
      %v4228 = vunpack.c.l.b16 %v2380
      %v4229 = vunpack.c.h.b16 %v2380
      %v4230 = vunpack.c.l.b16 %v2381
      %v4231 = vunpack.c.h.b16 %v2381
      %v4232 = vunpack.c.l.b16 %v2382
      %v4233 = vunpack.c.h.b16 %v2382
      %v4234 = vunpack.c.l.b16 %v2383
      %v4235 = vunpack.c.h.b16 %v2383
      %v4236 = vunpack.c.l.b16 %v2384
      %v4237 = vunpack.c.h.b16 %v2384
      %v4238 = vunpack.c.l.b16 %v2385
      %v4239 = vunpack.c.h.b16 %v2385
      %v4240 = vunpack.c.l.b16 %v2386
      %v4241 = vunpack.c.h.b16 %v2386
      %v4242 = vunpack.c.l.b16 %v2387
      %v4243 = vunpack.c.h.b16 %v2387
      %v4244 = vunpack.c.l.b16 %v2388
      %v4245 = vunpack.c.h.b16 %v2388
      %v4246 = vunpack.c.l.b16 %v2389
      %v4247 = vunpack.c.h.b16 %v2389
      %v4248 = vunpack.c.l.b16 %v2390
      %v4249 = vunpack.c.h.b16 %v2390
      %v4250 = vunpack.c.l.b16 %v2391
      %v4251 = vunpack.c.h.b16 %v2391
      %v4252 = vunpack.c.l.b16 %v2392
      %v4253 = vunpack.c.h.b16 %v2392
      %v4254 = vunpack.c.l.b16 %v2393
      %v4255 = vunpack.c.h.b16 %v2393
      %v4256 = vunpack.c.l.b16 %v2394
      %v4257 = vunpack.c.h.b16 %v2394
      %v4258 = vunpack.c.l.b16 %v2395
      %v4259 = vunpack.c.h.b16 %v2395
      %v4260 = vunpack.c.l.b16 %v2396
      %v4261 = vunpack.c.h.b16 %v2396
      %v4262 = vunpack.c.l.b16 %v2397
      %v4263 = vunpack.c.h.b16 %v2397
      %v4264 = vunpack.c.l.b16 %v2398
      %v4265 = vunpack.c.h.b16 %v2398
      %v4266 = vunpack.c.l.b16 %v2399
      %v4267 = vunpack.c.h.b16 %v2399
      %v4268 = vunpack.c.l.b16 %v2400
      %v4269 = vunpack.c.h.b16 %v2400
      %v4270 = vunpack.c.l.b16 %v2401
      %v4271 = vunpack.c.h.b16 %v2401
      %v4272 = vunpack.c.l.b16 %v2402
      %v4273 = vunpack.c.h.b16 %v2402
      %v4274 = vunpack.c.l.b16 %v2403
      %v4275 = vunpack.c.h.b16 %v2403
      %v4276 = vunpack.c.l.b16 %v2404
      %v4277 = vunpack.c.h.b16 %v2404
      %v4278 = vunpack.c.l.b16 %v2405
      %v4279 = vunpack.c.h.b16 %v2405
      %v4280 = vunpack.c.l.b16 %v2406
      %v4281 = vunpack.c.h.b16 %v2406
      %v4282 = vunpack.c.l.b16 %v2407
      %v4283 = vunpack.c.h.b16 %v2407
      %v4284 = vunpack.c.l.b16 %v2408
      %v4285 = vunpack.c.h.b16 %v2408
      %v4286 = vunpack.c.l.b16 %v2409
      %v4287 = vunpack.c.h.b16 %v2409
      %v4288 = vunpack.c.l.b16 %v2410
      %v4289 = vunpack.c.h.b16 %v2410
      %v4290 = vunpack.c.l.b16 %v2411
      %v4291 = vunpack.c.h.b16 %v2411
      %v4292 = vunpack.c.l.b16 %v2412
      %v4293 = vunpack.c.h.b16 %v2412
      %v4294 = vunpack.c.l.b16 %v2413
      %v4295 = vunpack.c.h.b16 %v2413
      %v4296 = vunpack.c.l.b16 %v2414
      %v4297 = vunpack.c.h.b16 %v2414
      %v4298 = vunpack.c.l.b16 %v2415
      %v4299 = vunpack.c.h.b16 %v2415
      %v4300 = vunpack.c.l.b16 %v2416
      %v4301 = vunpack.c.h.b16 %v2416
      %v4302 = vunpack.c.l.b16 %v2417
      %v4303 = vunpack.c.h.b16 %v2417
      %v4304 = vunpack.c.l.b16 %v2418
      %v4305 = vunpack.c.h.b16 %v2418
      %v4306 = vunpack.c.l.b16 %v2419
      %v4307 = vunpack.c.h.b16 %v2419
      %v4308 = vunpack.c.l.b16 %v2420
      %v4309 = vunpack.c.h.b16 %v2420
      %v4310 = vunpack.c.l.b16 %v2421
      %v4311 = vunpack.c.h.b16 %v2421
      %v4312 = vunpack.c.l.b16 %v2422
      %v4313 = vunpack.c.h.b16 %v2422
      %v4314 = vunpack.c.l.b16 %v2423
      %v4315 = vunpack.c.h.b16 %v2423
      %v4316 = vunpack.c.l.b16 %v2424
      %v4317 = vunpack.c.h.b16 %v2424
      %v4318 = vunpack.c.l.b16 %v2425
      %v4319 = vunpack.c.h.b16 %v2425
      %v4320 = vunpack.c.l.b16 %v2426
      %v4321 = vunpack.c.h.b16 %v2426
      %v4322 = vunpack.c.l.b16 %v2427
      %v4323 = vunpack.c.h.b16 %v2427
      %v4324 = vunpack.c.l.b16 %v2428
      %v4325 = vunpack.c.h.b16 %v2428
      %v4326 = vunpack.c.l.b16 %v2429
      %v4327 = vunpack.c.h.b16 %v2429
      %v4328 = vpack.c.b16 %v3312, %v3304
      %v4329 = vpack.c.b16 %v3313, %v3305
      %v4330 = vpack.c.b16 %v3314, %v3306
      %v4331 = vpack.c.b16 %v3315, %v3307
      %v4332 = vpack.c.b16 %v3316, %v3308
      %v4333 = vpack.c.b16 %v3317, %v3309
      %v4334 = vpack.c.b16 %v3318, %v3310
      %v4335 = vpack.c.b16 %v3319, %v3311
      %v4336 = vpack.c.b16 %v3328, %v3320
      %v4337 = vpack.c.b16 %v3329, %v3321
      %v4338 = vpack.c.b16 %v3330, %v3322
      %v4339 = vpack.c.b16 %v3331, %v3323
      %v4340 = vpack.c.b16 %v3332, %v3324
      %v4341 = vpack.c.b16 %v3333, %v3325
      %v4342 = vpack.c.b16 %v3334, %v3326
      %v4343 = vpack.c.b16 %v3335, %v3327
      %v4344 = vpack.c.b16 %v3344, %v3336
      %v4345 = vpack.c.b16 %v3345, %v3337
      %v4346 = vpack.c.b16 %v3346, %v3338
      %v4347 = vpack.c.b16 %v3347, %v3339
      %v4348 = vpack.c.b16 %v3348, %v3340
      %v4349 = vpack.c.b16 %v3349, %v3341
      %v4350 = vpack.c.b16 %v3350, %v3342
      %v4351 = vpack.c.b16 %v3351, %v3343
      %v4352 = vpack.c.b16 %v3360, %v3352
      %v4353 = vpack.c.b16 %v3361, %v3353
      %v4354 = vpack.c.b16 %v3362, %v3354
      %v4355 = vpack.c.b16 %v3363, %v3355
      %v4356 = vpack.c.b16 %v3364, %v3356
      %v4357 = vpack.c.b16 %v3365, %v3357
      %v4358 = vpack.c.b16 %v3366, %v3358
      %v4359 = vpack.c.b16 %v3367, %v3359
      %v4360 = vpack.c.b16 %v3376, %v3368
      %v4361 = vpack.c.b16 %v3377, %v3369
      %v4362 = vpack.c.b16 %v3378, %v3370
      %v4363 = vpack.c.b16 %v3379, %v3371
      %v4364 = vpack.c.b16 %v3380, %v3372
      %v4365 = vpack.c.b16 %v3381, %v3373
      %v4366 = vpack.c.b16 %v3382, %v3374
      %v4367 = vpack.c.b16 %v3383, %v3375
      %v4368 = vpack.c.b16 %v3392, %v3384
      %v4369 = vpack.c.b16 %v3393, %v3385
      %v4370 = vpack.c.b16 %v3394, %v3386
      %v4371 = vpack.c.b16 %v3395, %v3387
      %v4372 = vpack.c.b16 %v3396, %v3388
      %v4373 = vpack.c.b16 %v3397, %v3389
      %v4374 = vpack.c.b16 %v3398, %v3390
      %v4375 = vpack.c.b16 %v3399, %v3391
      %v4376 = vpack.c.b16 %v3408, %v3400
      %v4377 = vpack.c.b16 %v3409, %v3401
      %v4378 = vpack.c.b16 %v3410, %v3402
      %v4379 = vpack.c.b16 %v3411, %v3403
      %v4380 = vpack.c.b16 %v3412, %v3404
      %v4381 = vpack.c.b16 %v3413, %v3405
      %v4382 = vpack.c.b16 %v3414, %v3406
      %v4383 = vpack.c.b16 %v3415, %v3407
      %v4384 = vpack.c.b16 %v3424, %v3416
      %v4385 = vpack.c.b16 %v3425, %v3417
      %v4386 = vpack.c.b16 %v3426, %v3418
      %v4387 = vpack.c.b16 %v3427, %v3419
      %v4388 = vpack.c.b16 %v3428, %v3420
      %v4389 = vpack.c.b16 %v3429, %v3421
      %v4390 = vpack.c.b16 %v3430, %v3422
      %v4391 = vpack.c.b16 %v3431, %v3423
      %v4392 = vpack.c.b16 %v3440, %v3432
      %v4393 = vpack.c.b16 %v3441, %v3433
      %v4394 = vpack.c.b16 %v3442, %v3434
      %v4395 = vpack.c.b16 %v3443, %v3435
      %v4396 = vpack.c.b16 %v3444, %v3436
      %v4397 = vpack.c.b16 %v3445, %v3437
      %v4398 = vpack.c.b16 %v3446, %v3438
      %v4399 = vpack.c.b16 %v3447, %v3439
      %v4400 = vpack.c.b16 %v3456, %v3448
      %v4401 = vpack.c.b16 %v3457, %v3449
      %v4402 = vpack.c.b16 %v3458, %v3450
      %v4403 = vpack.c.b16 %v3459, %v3451
      %v4404 = vpack.c.b16 %v3460, %v3452
      %v4405 = vpack.c.b16 %v3461, %v3453
      %v4406 = vpack.c.b16 %v3462, %v3454
      %v4407 = vpack.c.b16 %v3463, %v3455
      %v4408 = vpack.c.b16 %v3472, %v3464
      %v4409 = vpack.c.b16 %v3473, %v3465
      %v4410 = vpack.c.b16 %v3474, %v3466
      %v4411 = vpack.c.b16 %v3475, %v3467
      %v4412 = vpack.c.b16 %v3476, %v3468
      %v4413 = vpack.c.b16 %v3477, %v3469
      %v4414 = vpack.c.b16 %v3478, %v3470
      %v4415 = vpack.c.b16 %v3479, %v3471
      %v4416 = vpack.c.b16 %v3488, %v3480
      %v4417 = vpack.c.b16 %v3489, %v3481
      %v4418 = vpack.c.b16 %v3490, %v3482
      %v4419 = vpack.c.b16 %v3491, %v3483
      %v4420 = vpack.c.b16 %v3492, %v3484
      %v4421 = vpack.c.b16 %v3493, %v3485
      %v4422 = vpack.c.b16 %v3494, %v3486
      %v4423 = vpack.c.b16 %v3495, %v3487
      %v4424 = vpack.c.b16 %v3504, %v3496
      %v4425 = vpack.c.b16 %v3505, %v3497
      %v4426 = vpack.c.b16 %v3506, %v3498
      %v4427 = vpack.c.b16 %v3507, %v3499
      %v4428 = vpack.c.b16 %v3508, %v3500
      %v4429 = vpack.c.b16 %v3509, %v3501
      %v4430 = vpack.c.b16 %v3510, %v3502
      %v4431 = vpack.c.b16 %v3511, %v3503
      %v4432 = vpack.c.b16 %v3520, %v3512
      %v4433 = vpack.c.b16 %v3521, %v3513
      %v4434 = vpack.c.b16 %v3522, %v3514
      %v4435 = vpack.c.b16 %v3523, %v3515
      %v4436 = vpack.c.b16 %v3524, %v3516
      %v4437 = vpack.c.b16 %v3525, %v3517
      %v4438 = vpack.c.b16 %v3526, %v3518
      %v4439 = vpack.c.b16 %v3527, %v3519
      %v4440 = vpack.c.b16 %v3536, %v3528
      %v4441 = vpack.c.b16 %v3537, %v3529
      %v4442 = vpack.c.b16 %v3538, %v3530
      %v4443 = vpack.c.b16 %v3539, %v3531
      %v4444 = vpack.c.b16 %v3540, %v3532
      %v4445 = vpack.c.b16 %v3541, %v3533
      %v4446 = vpack.c.b16 %v3542, %v3534
      %v4447 = vpack.c.b16 %v3543, %v3535
      %v4448 = vpack.c.b16 %v3552, %v3544
      %v4449 = vpack.c.b16 %v3553, %v3545
      %v4450 = vpack.c.b16 %v3554, %v3546
      %v4451 = vpack.c.b16 %v3555, %v3547
      %v4452 = vpack.c.b16 %v3556, %v3548
      %v4453 = vpack.c.b16 %v3557, %v3549
      %v4454 = vpack.c.b16 %v3558, %v3550
      %v4455 = vpack.c.b16 %v3559, %v3551
      %v4456 = vpack.c.b16 %v3568, %v3560
      %v4457 = vpack.c.b16 %v3569, %v3561
      %v4458 = vpack.c.b16 %v3570, %v3562
      %v4459 = vpack.c.b16 %v3571, %v3563
      %v4460 = vpack.c.b16 %v3572, %v3564
      %v4461 = vpack.c.b16 %v3573, %v3565
      %v4462 = vpack.c.b16 %v3574, %v3566
      %v4463 = vpack.c.b16 %v3575, %v3567
      %v4464 = vpack.c.b16 %v3584, %v3576
      %v4465 = vpack.c.b16 %v3585, %v3577
      %v4466 = vpack.c.b16 %v3586, %v3578
      %v4467 = vpack.c.b16 %v3587, %v3579
      %v4468 = vpack.c.b16 %v3588, %v3580
      %v4469 = vpack.c.b16 %v3589, %v3581
      %v4470 = vpack.c.b16 %v3590, %v3582
      %v4471 = vpack.c.b16 %v3591, %v3583
      %v4472 = vpack.c.b16 %v3600, %v3592
      %v4473 = vpack.c.b16 %v3601, %v3593
      %v4474 = vpack.c.b16 %v3602, %v3594
      %v4475 = vpack.c.b16 %v3603, %v3595
      %v4476 = vpack.c.b16 %v3604, %v3596
      %v4477 = vpack.c.b16 %v3605, %v3597
      %v4478 = vpack.c.b16 %v3606, %v3598
      %v4479 = vpack.c.b16 %v3607, %v3599
      %v4480 = vpack.c.b16 %v3616, %v3608
      %v4481 = vpack.c.b16 %v3617, %v3609
      %v4482 = vpack.c.b16 %v3618, %v3610
      %v4483 = vpack.c.b16 %v3619, %v3611
      %v4484 = vpack.c.b16 %v3620, %v3612
      %v4485 = vpack.c.b16 %v3621, %v3613
      %v4486 = vpack.c.b16 %v3622, %v3614
      %v4487 = vpack.c.b16 %v3623, %v3615
      %v4488 = vpack.c.b16 %v3632, %v3624
      %v4489 = vpack.c.b16 %v3633, %v3625
      %v4490 = vpack.c.b16 %v3634, %v3626
      %v4491 = vpack.c.b16 %v3635, %v3627
      %v4492 = vpack.c.b16 %v3636, %v3628
      %v4493 = vpack.c.b16 %v3637, %v3629
      %v4494 = vpack.c.b16 %v3638, %v3630
      %v4495 = vpack.c.b16 %v3639, %v3631
      %v4496 = vpack.c.b16 %v3648, %v3640
      %v4497 = vpack.c.b16 %v3649, %v3641
      %v4498 = vpack.c.b16 %v3650, %v3642
      %v4499 = vpack.c.b16 %v3651, %v3643
      %v4500 = vpack.c.b16 %v3652, %v3644
      %v4501 = vpack.c.b16 %v3653, %v3645
      %v4502 = vpack.c.b16 %v3654, %v3646
      %v4503 = vpack.c.b16 %v3655, %v3647
      %v4504 = vpack.c.b16 %v3664, %v3656
      %v4505 = vpack.c.b16 %v3665, %v3657
      %v4506 = vpack.c.b16 %v3666, %v3658
      %v4507 = vpack.c.b16 %v3667, %v3659
      %v4508 = vpack.c.b16 %v3668, %v3660
      %v4509 = vpack.c.b16 %v3669, %v3661
      %v4510 = vpack.c.b16 %v3670, %v3662
      %v4511 = vpack.c.b16 %v3671, %v3663
      %v4512 = vpack.c.b16 %v3680, %v3672
      %v4513 = vpack.c.b16 %v3681, %v3673
      %v4514 = vpack.c.b16 %v3682, %v3674
      %v4515 = vpack.c.b16 %v3683, %v3675
      %v4516 = vpack.c.b16 %v3684, %v3676
      %v4517 = vpack.c.b16 %v3685, %v3677
      %v4518 = vpack.c.b16 %v3686, %v3678
      %v4519 = vpack.c.b16 %v3687, %v3679
      %v4520 = vpack.c.b16 %v3696, %v3688
      %v4521 = vpack.c.b16 %v3697, %v3689
      %v4522 = vpack.c.b16 %v3698, %v3690
      %v4523 = vpack.c.b16 %v3699, %v3691
      %v4524 = vpack.c.b16 %v3700, %v3692
      %v4525 = vpack.c.b16 %v3701, %v3693
      %v4526 = vpack.c.b16 %v3702, %v3694
      %v4527 = vpack.c.b16 %v3703, %v3695
      %v4528 = vpack.c.b16 %v3712, %v3704
      %v4529 = vpack.c.b16 %v3713, %v3705
      %v4530 = vpack.c.b16 %v3714, %v3706
      %v4531 = vpack.c.b16 %v3715, %v3707
      %v4532 = vpack.c.b16 %v3716, %v3708
      %v4533 = vpack.c.b16 %v3717, %v3709
      %v4534 = vpack.c.b16 %v3718, %v3710
      %v4535 = vpack.c.b16 %v3719, %v3711
      %v4536 = vpack.c.b16 %v3728, %v3720
      %v4537 = vpack.c.b16 %v3729, %v3721
      %v4538 = vpack.c.b16 %v3730, %v3722
      %v4539 = vpack.c.b16 %v3731, %v3723
      %v4540 = vpack.c.b16 %v3732, %v3724
      %v4541 = vpack.c.b16 %v3733, %v3725
      %v4542 = vpack.c.b16 %v3734, %v3726
      %v4543 = vpack.c.b16 %v3735, %v3727
      %v4544 = vpack.c.b16 %v3744, %v3736
      %v4545 = vpack.c.b16 %v3745, %v3737
      %v4546 = vpack.c.b16 %v3746, %v3738
      %v4547 = vpack.c.b16 %v3747, %v3739
      %v4548 = vpack.c.b16 %v3748, %v3740
      %v4549 = vpack.c.b16 %v3749, %v3741
      %v4550 = vpack.c.b16 %v3750, %v3742
      %v4551 = vpack.c.b16 %v3751, %v3743
      %v4552 = vpack.c.b16 %v3760, %v3752
      %v4553 = vpack.c.b16 %v3761, %v3753
      %v4554 = vpack.c.b16 %v3762, %v3754
      %v4555 = vpack.c.b16 %v3763, %v3755
      %v4556 = vpack.c.b16 %v3764, %v3756
      %v4557 = vpack.c.b16 %v3765, %v3757
      %v4558 = vpack.c.b16 %v3766, %v3758
      %v4559 = vpack.c.b16 %v3767, %v3759
      %v4560 = vpack.c.b16 %v3776, %v3768
      %v4561 = vpack.c.b16 %v3777, %v3769
      %v4562 = vpack.c.b16 %v3778, %v3770
      %v4563 = vpack.c.b16 %v3779, %v3771
      %v4564 = vpack.c.b16 %v3780, %v3772
      %v4565 = vpack.c.b16 %v3781, %v3773
      %v4566 = vpack.c.b16 %v3782, %v3774
      %v4567 = vpack.c.b16 %v3783, %v3775
      %v4568 = vpack.c.b16 %v3792, %v3784
      %v4569 = vpack.c.b16 %v3793, %v3785
      %v4570 = vpack.c.b16 %v3794, %v3786
      %v4571 = vpack.c.b16 %v3795, %v3787
      %v4572 = vpack.c.b16 %v3796, %v3788
      %v4573 = vpack.c.b16 %v3797, %v3789
      %v4574 = vpack.c.b16 %v3798, %v3790
      %v4575 = vpack.c.b16 %v3799, %v3791
      %v4576 = vpack.c.b16 %v3808, %v3800
      %v4577 = vpack.c.b16 %v3809, %v3801
      %v4578 = vpack.c.b16 %v3810, %v3802
      %v4579 = vpack.c.b16 %v3811, %v3803
      %v4580 = vpack.c.b16 %v3812, %v3804
      %v4581 = vpack.c.b16 %v3813, %v3805
      %v4582 = vpack.c.b16 %v3814, %v3806
      %v4583 = vpack.c.b16 %v3815, %v3807
      %v4584 = vpack.c.b16 %v3824, %v3816
      %v4585 = vpack.c.b16 %v3825, %v3817
      %v4586 = vpack.c.b16 %v3826, %v3818
      %v4587 = vpack.c.b16 %v3827, %v3819
      %v4588 = vpack.c.b16 %v3828, %v3820
      %v4589 = vpack.c.b16 %v3829, %v3821
      %v4590 = vpack.c.b16 %v3830, %v3822
      %v4591 = vpack.c.b16 %v3831, %v3823
      %v4592 = vpack.c.b16 %v3840, %v3832
      %v4593 = vpack.c.b16 %v3841, %v3833
      %v4594 = vpack.c.b16 %v3842, %v3834
      %v4595 = vpack.c.b16 %v3843, %v3835
      %v4596 = vpack.c.b16 %v3844, %v3836
      %v4597 = vpack.c.b16 %v3845, %v3837
      %v4598 = vpack.c.b16 %v3846, %v3838
      %v4599 = vpack.c.b16 %v3847, %v3839
      %v4600 = vpack.c.b16 %v3856, %v3848
      %v4601 = vpack.c.b16 %v3857, %v3849
      %v4602 = vpack.c.b16 %v3858, %v3850
      %v4603 = vpack.c.b16 %v3859, %v3851
      %v4604 = vpack.c.b16 %v3860, %v3852
      %v4605 = vpack.c.b16 %v3861, %v3853
      %v4606 = vpack.c.b16 %v3862, %v3854
      %v4607 = vpack.c.b16 %v3863, %v3855
      %v4608 = vpack.c.b16 %v3872, %v3864
      %v4609 = vpack.c.b16 %v3873, %v3865
      %v4610 = vpack.c.b16 %v3874, %v3866
      %v4611 = vpack.c.b16 %v3875, %v3867
      %v4612 = vpack.c.b16 %v3876, %v3868
      %v4613 = vpack.c.b16 %v3877, %v3869
      %v4614 = vpack.c.b16 %v3878, %v3870
      %v4615 = vpack.c.b16 %v3879, %v3871
      %v4616 = vpack.c.b16 %v3888, %v3880
      %v4617 = vpack.c.b16 %v3889, %v3881
      %v4618 = vpack.c.b16 %v3890, %v3882
      %v4619 = vpack.c.b16 %v3891, %v3883
      %v4620 = vpack.c.b16 %v3892, %v3884
      %v4621 = vpack.c.b16 %v3893, %v3885
      %v4622 = vpack.c.b16 %v3894, %v3886
      %v4623 = vpack.c.b16 %v3895, %v3887
      %v4624 = vpack.c.b16 %v3904, %v3896
      %v4625 = vpack.c.b16 %v3905, %v3897
      %v4626 = vpack.c.b16 %v3906, %v3898
      %v4627 = vpack.c.b16 %v3907, %v3899
      %v4628 = vpack.c.b16 %v3908, %v3900
      %v4629 = vpack.c.b16 %v3909, %v3901
      %v4630 = vpack.c.b16 %v3910, %v3902
      %v4631 = vpack.c.b16 %v3911, %v3903
      %v4632 = vpack.c.b16 %v3920, %v3912
      %v4633 = vpack.c.b16 %v3921, %v3913
      %v4634 = vpack.c.b16 %v3922, %v3914
      %v4635 = vpack.c.b16 %v3923, %v3915
      %v4636 = vpack.c.b16 %v3924, %v3916
      %v4637 = vpack.c.b16 %v3925, %v3917
      %v4638 = vpack.c.b16 %v3926, %v3918
      %v4639 = vpack.c.b16 %v3927, %v3919
      %v4640 = vpack.c.b16 %v3936, %v3928
      %v4641 = vpack.c.b16 %v3937, %v3929
      %v4642 = vpack.c.b16 %v3938, %v3930
      %v4643 = vpack.c.b16 %v3939, %v3931
      %v4644 = vpack.c.b16 %v3940, %v3932
      %v4645 = vpack.c.b16 %v3941, %v3933
      %v4646 = vpack.c.b16 %v3942, %v3934
      %v4647 = vpack.c.b16 %v3943, %v3935
      %v4648 = vpack.c.b16 %v3952, %v3944
      %v4649 = vpack.c.b16 %v3953, %v3945
      %v4650 = vpack.c.b16 %v3954, %v3946
      %v4651 = vpack.c.b16 %v3955, %v3947
      %v4652 = vpack.c.b16 %v3956, %v3948
      %v4653 = vpack.c.b16 %v3957, %v3949
      %v4654 = vpack.c.b16 %v3958, %v3950
      %v4655 = vpack.c.b16 %v3959, %v3951
      %v4656 = vpack.c.b16 %v3968, %v3960
      %v4657 = vpack.c.b16 %v3969, %v3961
      %v4658 = vpack.c.b16 %v3970, %v3962
      %v4659 = vpack.c.b16 %v3971, %v3963
      %v4660 = vpack.c.b16 %v3972, %v3964
      %v4661 = vpack.c.b16 %v3973, %v3965
      %v4662 = vpack.c.b16 %v3974, %v3966
      %v4663 = vpack.c.b16 %v3975, %v3967
      %v4664 = vpack.c.b16 %v3984, %v3976
      %v4665 = vpack.c.b16 %v3985, %v3977
      %v4666 = vpack.c.b16 %v3986, %v3978
      %v4667 = vpack.c.b16 %v3987, %v3979
      %v4668 = vpack.c.b16 %v3988, %v3980
      %v4669 = vpack.c.b16 %v3989, %v3981
      %v4670 = vpack.c.b16 %v3990, %v3982
      %v4671 = vpack.c.b16 %v3991, %v3983
      %v4672 = vpack.c.b16 %v4000, %v3992
      %v4673 = vpack.c.b16 %v4001, %v3993
      %v4674 = vpack.c.b16 %v4002, %v3994
      %v4675 = vpack.c.b16 %v4003, %v3995
      %v4676 = vpack.c.b16 %v4004, %v3996
      %v4677 = vpack.c.b16 %v4005, %v3997
      %v4678 = vpack.c.b16 %v4006, %v3998
      %v4679 = vpack.c.b16 %v4007, %v3999
      %v4680 = vpack.c.b16 %v4016, %v4008
      %v4681 = vpack.c.b16 %v4017, %v4009
      %v4682 = vpack.c.b16 %v4018, %v4010
      %v4683 = vpack.c.b16 %v4019, %v4011
      %v4684 = vpack.c.b16 %v4020, %v4012
      %v4685 = vpack.c.b16 %v4021, %v4013
      %v4686 = vpack.c.b16 %v4022, %v4014
      %v4687 = vpack.c.b16 %v4023, %v4015
      %v4688 = vpack.c.b16 %v4032, %v4024
      %v4689 = vpack.c.b16 %v4033, %v4025
      %v4690 = vpack.c.b16 %v4034, %v4026
      %v4691 = vpack.c.b16 %v4035, %v4027
      %v4692 = vpack.c.b16 %v4036, %v4028
      %v4693 = vpack.c.b16 %v4037, %v4029
      %v4694 = vpack.c.b16 %v4038, %v4030
      %v4695 = vpack.c.b16 %v4039, %v4031
      %v4696 = vpack.c.b16 %v4048, %v4040
      %v4697 = vpack.c.b16 %v4049, %v4041
      %v4698 = vpack.c.b16 %v4050, %v4042
      %v4699 = vpack.c.b16 %v4051, %v4043
      %v4700 = vpack.c.b16 %v4052, %v4044
      %v4701 = vpack.c.b16 %v4053, %v4045
      %v4702 = vpack.c.b16 %v4054, %v4046
      %v4703 = vpack.c.b16 %v4055, %v4047
      %v4704 = vpack.c.b16 %v4064, %v4056
      %v4705 = vpack.c.b16 %v4065, %v4057
      %v4706 = vpack.c.b16 %v4066, %v4058
      %v4707 = vpack.c.b16 %v4067, %v4059
      %v4708 = vpack.c.b16 %v4068, %v4060
      %v4709 = vpack.c.b16 %v4069, %v4061
      %v4710 = vpack.c.b16 %v4070, %v4062
      %v4711 = vpack.c.b16 %v4071, %v4063
      %v4712 = vpack.c.b16 %v4080, %v4072
      %v4713 = vpack.c.b16 %v4081, %v4073
      %v4714 = vpack.c.b16 %v4082, %v4074
      %v4715 = vpack.c.b16 %v4083, %v4075
      %v4716 = vpack.c.b16 %v4084, %v4076
      %v4717 = vpack.c.b16 %v4085, %v4077
      %v4718 = vpack.c.b16 %v4086, %v4078
      %v4719 = vpack.c.b16 %v4087, %v4079
      %v4720 = vpack.c.b16 %v4096, %v4088
      %v4721 = vpack.c.b16 %v4097, %v4089
      %v4722 = vpack.c.b16 %v4098, %v4090
      %v4723 = vpack.c.b16 %v4099, %v4091
      %v4724 = vpack.c.b16 %v4100, %v4092
      %v4725 = vpack.c.b16 %v4101, %v4093
      %v4726 = vpack.c.b16 %v4102, %v4094
      %v4727 = vpack.c.b16 %v4103, %v4095
      %v4728 = vpack.c.b16 %v4112, %v4104
      %v4729 = vpack.c.b16 %v4113, %v4105
      %v4730 = vpack.c.b16 %v4114, %v4106
      %v4731 = vpack.c.b16 %v4115, %v4107
      %v4732 = vpack.c.b16 %v4116, %v4108
      %v4733 = vpack.c.b16 %v4117, %v4109
      %v4734 = vpack.c.b16 %v4118, %v4110
      %v4735 = vpack.c.b16 %v4119, %v4111
      %v4736 = vpack.c.b16 %v4128, %v4120
      %v4737 = vpack.c.b16 %v4129, %v4121
      %v4738 = vpack.c.b16 %v4130, %v4122
      %v4739 = vpack.c.b16 %v4131, %v4123
      %v4740 = vpack.c.b16 %v4132, %v4124
      %v4741 = vpack.c.b16 %v4133, %v4125
      %v4742 = vpack.c.b16 %v4134, %v4126
      %v4743 = vpack.c.b16 %v4135, %v4127
      %v4744 = vpack.c.b16 %v4144, %v4136
      %v4745 = vpack.c.b16 %v4145, %v4137
      %v4746 = vpack.c.b16 %v4146, %v4138
      %v4747 = vpack.c.b16 %v4147, %v4139
      %v4748 = vpack.c.b16 %v4148, %v4140
      %v4749 = vpack.c.b16 %v4149, %v4141
      %v4750 = vpack.c.b16 %v4150, %v4142
      %v4751 = vpack.c.b16 %v4151, %v4143
      %v4752 = vpack.c.b16 %v4160, %v4152
      %v4753 = vpack.c.b16 %v4161, %v4153
      %v4754 = vpack.c.b16 %v4162, %v4154
      %v4755 = vpack.c.b16 %v4163, %v4155
      %v4756 = vpack.c.b16 %v4164, %v4156
      %v4757 = vpack.c.b16 %v4165, %v4157
      %v4758 = vpack.c.b16 %v4166, %v4158
      %v4759 = vpack.c.b16 %v4167, %v4159
      %v4760 = vpack.c.b16 %v4176, %v4168
      %v4761 = vpack.c.b16 %v4177, %v4169
      %v4762 = vpack.c.b16 %v4178, %v4170
      %v4763 = vpack.c.b16 %v4179, %v4171
      %v4764 = vpack.c.b16 %v4180, %v4172
      %v4765 = vpack.c.b16 %v4181, %v4173
      %v4766 = vpack.c.b16 %v4182, %v4174
      %v4767 = vpack.c.b16 %v4183, %v4175
      %v4768 = vpack.c.b16 %v4192, %v4184
      %v4769 = vpack.c.b16 %v4193, %v4185
      %v4770 = vpack.c.b16 %v4194, %v4186
      %v4771 = vpack.c.b16 %v4195, %v4187
      %v4772 = vpack.c.b16 %v4196, %v4188
      %v4773 = vpack.c.b16 %v4197, %v4189
      %v4774 = vpack.c.b16 %v4198, %v4190
      %v4775 = vpack.c.b16 %v4199, %v4191
      %v4776 = vpack.c.b16 %v4208, %v4200
      %v4777 = vpack.c.b16 %v4209, %v4201
      %v4778 = vpack.c.b16 %v4210, %v4202
      %v4779 = vpack.c.b16 %v4211, %v4203
      %v4780 = vpack.c.b16 %v4212, %v4204
      %v4781 = vpack.c.b16 %v4213, %v4205
      %v4782 = vpack.c.b16 %v4214, %v4206
      %v4783 = vpack.c.b16 %v4215, %v4207
      %v4784 = vpack.c.b16 %v4224, %v4216
      %v4785 = vpack.c.b16 %v4225, %v4217
      %v4786 = vpack.c.b16 %v4226, %v4218
      %v4787 = vpack.c.b16 %v4227, %v4219
      %v4788 = vpack.c.b16 %v4228, %v4220
      %v4789 = vpack.c.b16 %v4229, %v4221
      %v4790 = vpack.c.b16 %v4230, %v4222
      %v4791 = vpack.c.b16 %v4231, %v4223
      %v4792 = vpack.c.b16 %v4240, %v4232
      %v4793 = vpack.c.b16 %v4241, %v4233
      %v4794 = vpack.c.b16 %v4242, %v4234
      %v4795 = vpack.c.b16 %v4243, %v4235
      %v4796 = vpack.c.b16 %v4244, %v4236
      %v4797 = vpack.c.b16 %v4245, %v4237
      %v4798 = vpack.c.b16 %v4246, %v4238
      %v4799 = vpack.c.b16 %v4247, %v4239
      %v4800 = vpack.c.b16 %v4256, %v4248
      %v4801 = vpack.c.b16 %v4257, %v4249
      %v4802 = vpack.c.b16 %v4258, %v4250
      %v4803 = vpack.c.b16 %v4259, %v4251
      %v4804 = vpack.c.b16 %v4260, %v4252
      %v4805 = vpack.c.b16 %v4261, %v4253
      %v4806 = vpack.c.b16 %v4262, %v4254
      %v4807 = vpack.c.b16 %v4263, %v4255
      %v4808 = vpack.c.b16 %v4272, %v4264
      %v4809 = vpack.c.b16 %v4273, %v4265
      %v4810 = vpack.c.b16 %v4274, %v4266
      %v4811 = vpack.c.b16 %v4275, %v4267
      %v4812 = vpack.c.b16 %v4276, %v4268
      %v4813 = vpack.c.b16 %v4277, %v4269
      %v4814 = vpack.c.b16 %v4278, %v4270
      %v4815 = vpack.c.b16 %v4279, %v4271
      %v4816 = vpack.c.b16 %v4288, %v4280
      %v4817 = vpack.c.b16 %v4289, %v4281
      %v4818 = vpack.c.b16 %v4290, %v4282
      %v4819 = vpack.c.b16 %v4291, %v4283
      %v4820 = vpack.c.b16 %v4292, %v4284
      %v4821 = vpack.c.b16 %v4293, %v4285
      %v4822 = vpack.c.b16 %v4294, %v4286
      %v4823 = vpack.c.b16 %v4295, %v4287
      %v4824 = vpack.c.b16 %v4304, %v4296
      %v4825 = vpack.c.b16 %v4305, %v4297
      %v4826 = vpack.c.b16 %v4306, %v4298
      %v4827 = vpack.c.b16 %v4307, %v4299
      %v4828 = vpack.c.b16 %v4308, %v4300
      %v4829 = vpack.c.b16 %v4309, %v4301
      %v4830 = vpack.c.b16 %v4310, %v4302
      %v4831 = vpack.c.b16 %v4311, %v4303
      %v4832 = vpack.c.b16 %v4320, %v4312
      %v4833 = vpack.c.b16 %v4321, %v4313
      %v4834 = vpack.c.b16 %v4322, %v4314
      %v4835 = vpack.c.b16 %v4323, %v4315
      %v4836 = vpack.c.b16 %v4324, %v4316
      %v4837 = vpack.c.b16 %v4325, %v4317
      %v4838 = vpack.c.b16 %v4326, %v4318
      %v4839 = vpack.c.b16 %v4327, %v4319
      %5352 = vmatprep.subr.bf16.mxu0 %v4385
      %5353 = vmatpush1.bf16.msra.mxu0 %v4384
      %5354 = vmatprep.subr.bf16.mxu0 %v4377
      %5355 = vmatpush1.bf16.msra.mxu0 %v4376
      %5356 = vmatprep.subr.bf16.mxu0 %v4369
      %5357 = vmatpush1.bf16.msra.mxu0 %v4368
      %5358 = vmatprep.subr.bf16.mxu0 %v4361
      %5359 = vmatpush1.bf16.msra.mxu0 %v4360
      %5360 = vmatprep.subr.bf16.mxu0 %v4353
      %5361 = vmatpush1.bf16.msra.mxu0 %v4352
      %5362 = vmatprep.subr.bf16.mxu0 %v4345
      %5363 = vmatpush1.bf16.msra.mxu0 %v4344
      %5364 = vmatprep.subr.bf16.mxu0 %v4337
      %5365 = vmatpush1.bf16.msra.mxu0 %v4336
      %5366 = vmatprep.subr.bf16.mxu0 %v4329
      %5367 = vmatpush1.bf16.msra.mxu0 %v4328
      %5368 = vmatprep.subr.bf16.mxu0 %v4449
      %5369 = vmatpush2.bf16.msra.mxu0 %v4448
      %5370 = vmatprep.subr.bf16.mxu0 %v4441
      %5371 = vmatpush2.bf16.msra.mxu0 %v4440
      %5372 = vmatprep.subr.bf16.mxu0 %v4433
      %5373 = vmatpush2.bf16.msra.mxu0 %v4432
      %5374 = vmatprep.subr.bf16.mxu0 %v4425
      %5375 = vmatpush2.bf16.msra.mxu0 %v4424
      %5376 = vmatprep.subr.bf16.mxu0 %v4417
      %5377 = vmatpush2.bf16.msra.mxu0 %v4416
      %5378 = vmatprep.subr.bf16.mxu0 %v4409
      %5379 = vmatpush2.bf16.msra.mxu0 %v4408
      %5380 = vmatprep.subr.bf16.mxu0 %v4401
      %5381 = vmatpush2.bf16.msra.mxu0 %v4400
      %5382 = vmatprep.subr.bf16.mxu0 %v4393
      %5383 = vmatpush2.bf16.msra.mxu0 %v4392
      %5384 = vmatprep.mubr.bf16.mxu0 %v2665
      %5385 = vmatmul.mubr.bf16.gmra.mxu0 %v2664
      %v5386 = vpop.f32.mrf.mxu0
      %v5387 = vadd.f32 %v2435, %v5386
      %v5388 = vpop.f32.mrf.mxu0
      %v5389 = vadd.f32 %v2439, %v5388
      %v5390 = vpop.f32.mrf.mxu0
      %v5391 = vadd.f32 %v2435, %v5390
      %v5392 = vpop.f32.mrf.mxu0
      %v5393 = vadd.f32 %v2439, %v5392
      %5394 = vmatprep.mubr.bf16.mxu0 %v2673
      %5395 = vmatmul.mubr.bf16.gmra.mxu0 %v2672
      %v5396 = vpop.f32.mrf.mxu0
      %v5397 = vadd.f32 %v2435, %v5396
      %v5398 = vpop.f32.mrf.mxu0
      %v5399 = vadd.f32 %v2439, %v5398
      %v5400 = vpop.f32.mrf.mxu0
      %v5401 = vadd.f32 %v2435, %v5400
      %v5402 = vpop.f32.mrf.mxu0
      %v5403 = vadd.f32 %v2439, %v5402
      %5404 = vmatprep.mubr.bf16.mxu0 %v2681
      %5405 = vmatmul.mubr.bf16.gmra.mxu0 %v2680
      %v5406 = vpop.f32.mrf.mxu0
      %v5407 = vadd.f32 %v2435, %v5406
      %v5408 = vpop.f32.mrf.mxu0
      %v5409 = vadd.f32 %v2439, %v5408
      %v5410 = vpop.f32.mrf.mxu0
      %v5411 = vadd.f32 %v2435, %v5410
      %v5412 = vpop.f32.mrf.mxu0
      %v5413 = vadd.f32 %v2439, %v5412
      %5414 = vmatprep.mubr.bf16.mxu0 %v2689
      %5415 = vmatmul.mubr.bf16.gmra.mxu0 %v2688
      %v5416 = vpop.f32.mrf.mxu0
      %v5417 = vadd.f32 %v2435, %v5416
      %v5418 = vpop.f32.mrf.mxu0
      %v5419 = vadd.f32 %v2439, %v5418
      %v5420 = vpop.f32.mrf.mxu0
      %v5421 = vadd.f32 %v2435, %v5420
      %v5422 = vpop.f32.mrf.mxu0
      %v5423 = vadd.f32 %v2439, %v5422
      %5424 = vmatprep.mubr.bf16.mxu0 %v2697
      %5425 = vmatmul.mubr.bf16.gmra.mxu0 %v2696
      %v5426 = vpop.f32.mrf.mxu0
      %v5427 = vadd.f32 %v2435, %v5426
      %v5428 = vpop.f32.mrf.mxu0
      %v5429 = vadd.f32 %v2439, %v5428
      %v5430 = vpop.f32.mrf.mxu0
      %v5431 = vadd.f32 %v2435, %v5430
      %v5432 = vpop.f32.mrf.mxu0
      %v5433 = vadd.f32 %v2439, %v5432
      %5434 = vmatprep.mubr.bf16.mxu0 %v2705
      %5435 = vmatmul.mubr.bf16.gmra.mxu0 %v2704
      %v5436 = vpop.f32.mrf.mxu0
      %v5437 = vadd.f32 %v2435, %v5436
      %v5438 = vpop.f32.mrf.mxu0
      %v5439 = vadd.f32 %v2439, %v5438
      %v5440 = vpop.f32.mrf.mxu0
      %v5441 = vadd.f32 %v2435, %v5440
      %v5442 = vpop.f32.mrf.mxu0
      %v5443 = vadd.f32 %v2439, %v5442
      %5444 = vmatprep.mubr.bf16.mxu0 %v2713
      %5445 = vmatmul.mubr.bf16.gmra.mxu0 %v2712
      %v5446 = vpop.f32.mrf.mxu0
      %v5447 = vadd.f32 %v2435, %v5446
      %v5448 = vpop.f32.mrf.mxu0
      %v5449 = vadd.f32 %v2439, %v5448
      %v5450 = vpop.f32.mrf.mxu0
      %v5451 = vadd.f32 %v2435, %v5450
      %v5452 = vpop.f32.mrf.mxu0
      %v5453 = vadd.f32 %v2439, %v5452
      %5454 = vmatprep.mubr.bf16.mxu0 %v2721
      %5455 = vmatmul.mubr.bf16.gmra.mxu0 %v2720
      %v5456 = vpop.f32.mrf.mxu0
      %v5457 = vadd.f32 %v2435, %v5456
      %v5458 = vpop.f32.mrf.mxu0
      %v5459 = vadd.f32 %v2439, %v5458
      %v5460 = vpop.f32.mrf.mxu0
      %v5461 = vadd.f32 %v2435, %v5460
      %v5462 = vpop.f32.mrf.mxu0
      %v5463 = vadd.f32 %v2439, %v5462
      %5464 = vdwg.mxu0
      %5465 = vmatprep.subr.bf16.mxu0 %v4513
      %5466 = vmatpush1.bf16.msra.mxu0 %v4512
      %5467 = vmatprep.subr.bf16.mxu0 %v4505
      %5468 = vmatpush1.bf16.msra.mxu0 %v4504
      %5469 = vmatprep.subr.bf16.mxu0 %v4497
      %5470 = vmatpush1.bf16.msra.mxu0 %v4496
      %5471 = vmatprep.subr.bf16.mxu0 %v4489
      %5472 = vmatpush1.bf16.msra.mxu0 %v4488
      %5473 = vmatprep.subr.bf16.mxu0 %v4481
      %5474 = vmatpush1.bf16.msra.mxu0 %v4480
      %5475 = vmatprep.subr.bf16.mxu0 %v4473
      %5476 = vmatpush1.bf16.msra.mxu0 %v4472
      %5477 = vmatprep.subr.bf16.mxu0 %v4465
      %5478 = vmatpush1.bf16.msra.mxu0 %v4464
      %5479 = vmatprep.subr.bf16.mxu0 %v4457
      %5480 = vmatpush1.bf16.msra.mxu0 %v4456
      %5481 = vmatprep.subr.bf16.mxu0 %v4577
      %5482 = vmatpush2.bf16.msra.mxu0 %v4576
      %5483 = vmatprep.subr.bf16.mxu0 %v4569
      %5484 = vmatpush2.bf16.msra.mxu0 %v4568
      %5485 = vmatprep.subr.bf16.mxu0 %v4561
      %5486 = vmatpush2.bf16.msra.mxu0 %v4560
      %5487 = vmatprep.subr.bf16.mxu0 %v4553
      %5488 = vmatpush2.bf16.msra.mxu0 %v4552
      %5489 = vmatprep.subr.bf16.mxu0 %v4545
      %5490 = vmatpush2.bf16.msra.mxu0 %v4544
      %5491 = vmatprep.subr.bf16.mxu0 %v4537
      %5492 = vmatpush2.bf16.msra.mxu0 %v4536
      %5493 = vmatprep.subr.bf16.mxu0 %v4529
      %5494 = vmatpush2.bf16.msra.mxu0 %v4528
      %5495 = vmatprep.subr.bf16.mxu0 %v4521
      %5496 = vmatpush2.bf16.msra.mxu0 %v4520
      %5497 = vmatprep.mubr.bf16.mxu0 %v2667
      %5498 = vmatmul.mubr.bf16.gmra.mxu0 %v2666
      %v5499 = vpop.f32.mrf.mxu0
      %v5500 = vadd.f32 %v5387, %v5499
      %v5501 = vpop.f32.mrf.mxu0
      %v5502 = vadd.f32 %v5389, %v5501
      %v5503 = vpop.f32.mrf.mxu0
      %v5504 = vadd.f32 %v5391, %v5503
      %v5505 = vpop.f32.mrf.mxu0
      %v5506 = vadd.f32 %v5393, %v5505
      %5507 = vmatprep.mubr.bf16.mxu0 %v2675
      %5508 = vmatmul.mubr.bf16.gmra.mxu0 %v2674
      %v5509 = vpop.f32.mrf.mxu0
      %v5510 = vadd.f32 %v5397, %v5509
      %v5511 = vpop.f32.mrf.mxu0
      %v5512 = vadd.f32 %v5399, %v5511
      %v5513 = vpop.f32.mrf.mxu0
      %v5514 = vadd.f32 %v5401, %v5513
      %v5515 = vpop.f32.mrf.mxu0
      %v5516 = vadd.f32 %v5403, %v5515
      %5517 = vmatprep.mubr.bf16.mxu0 %v2683
      %5518 = vmatmul.mubr.bf16.gmra.mxu0 %v2682
      %v5519 = vpop.f32.mrf.mxu0
      %v5520 = vadd.f32 %v5407, %v5519
      %v5521 = vpop.f32.mrf.mxu0
      %v5522 = vadd.f32 %v5409, %v5521
      %v5523 = vpop.f32.mrf.mxu0
      %v5524 = vadd.f32 %v5411, %v5523
      %v5525 = vpop.f32.mrf.mxu0
      %v5526 = vadd.f32 %v5413, %v5525
      %5527 = vmatprep.mubr.bf16.mxu0 %v2691
      %5528 = vmatmul.mubr.bf16.gmra.mxu0 %v2690
      %v5529 = vpop.f32.mrf.mxu0
      %v5530 = vadd.f32 %v5417, %v5529
      %v5531 = vpop.f32.mrf.mxu0
      %v5532 = vadd.f32 %v5419, %v5531
      %v5533 = vpop.f32.mrf.mxu0
      %v5534 = vadd.f32 %v5421, %v5533
      %v5535 = vpop.f32.mrf.mxu0
      %v5536 = vadd.f32 %v5423, %v5535
      %5537 = vmatprep.mubr.bf16.mxu0 %v2699
      %5538 = vmatmul.mubr.bf16.gmra.mxu0 %v2698
      %v5539 = vpop.f32.mrf.mxu0
      %v5540 = vadd.f32 %v5427, %v5539
      %v5541 = vpop.f32.mrf.mxu0
      %v5542 = vadd.f32 %v5429, %v5541
      %v5543 = vpop.f32.mrf.mxu0
      %v5544 = vadd.f32 %v5431, %v5543
      %v5545 = vpop.f32.mrf.mxu0
      %v5546 = vadd.f32 %v5433, %v5545
      %5547 = vmatprep.mubr.bf16.mxu0 %v2707
      %5548 = vmatmul.mubr.bf16.gmra.mxu0 %v2706
      %v5549 = vpop.f32.mrf.mxu0
      %v5550 = vadd.f32 %v5437, %v5549
      %v5551 = vpop.f32.mrf.mxu0
      %v5552 = vadd.f32 %v5439, %v5551
      %v5553 = vpop.f32.mrf.mxu0
      %v5554 = vadd.f32 %v5441, %v5553
      %v5555 = vpop.f32.mrf.mxu0
      %v5556 = vadd.f32 %v5443, %v5555
      %5557 = vmatprep.mubr.bf16.mxu0 %v2715
      %5558 = vmatmul.mubr.bf16.gmra.mxu0 %v2714
      %v5559 = vpop.f32.mrf.mxu0
      %v5560 = vadd.f32 %v5447, %v5559
      %v5561 = vpop.f32.mrf.mxu0
      %v5562 = vadd.f32 %v5449, %v5561
      %v5563 = vpop.f32.mrf.mxu0
      %v5564 = vadd.f32 %v5451, %v5563
      %v5565 = vpop.f32.mrf.mxu0
      %v5566 = vadd.f32 %v5453, %v5565
      %5567 = vmatprep.mubr.bf16.mxu0 %v2723
      %5568 = vmatmul.mubr.bf16.gmra.mxu0 %v2722
      %v5569 = vpop.f32.mrf.mxu0
      %v5570 = vadd.f32 %v5457, %v5569
      %v5571 = vpop.f32.mrf.mxu0
      %v5572 = vadd.f32 %v5459, %v5571
      %v5573 = vpop.f32.mrf.mxu0
      %v5574 = vadd.f32 %v5461, %v5573
      %v5575 = vpop.f32.mrf.mxu0
      %v5576 = vadd.f32 %v5463, %v5575
      %5577 = vdwg.mxu0
      %5578 = vmatprep.subr.bf16.mxu0 %v4641
      %5579 = vmatpush1.bf16.msra.mxu0 %v4640
      %5580 = vmatprep.subr.bf16.mxu0 %v4633
      %5581 = vmatpush1.bf16.msra.mxu0 %v4632
      %5582 = vmatprep.subr.bf16.mxu0 %v4625
      %5583 = vmatpush1.bf16.msra.mxu0 %v4624
      %5584 = vmatprep.subr.bf16.mxu0 %v4617
      %5585 = vmatpush1.bf16.msra.mxu0 %v4616
      %5586 = vmatprep.subr.bf16.mxu0 %v4609
      %5587 = vmatpush1.bf16.msra.mxu0 %v4608
      %5588 = vmatprep.subr.bf16.mxu0 %v4601
      %5589 = vmatpush1.bf16.msra.mxu0 %v4600
      %5590 = vmatprep.subr.bf16.mxu0 %v4593
      %5591 = vmatpush1.bf16.msra.mxu0 %v4592
      %5592 = vmatprep.subr.bf16.mxu0 %v4585
      %5593 = vmatpush1.bf16.msra.mxu0 %v4584
      %5594 = vmatprep.subr.bf16.mxu0 %v4705
      %5595 = vmatpush2.bf16.msra.mxu0 %v4704
      %5596 = vmatprep.subr.bf16.mxu0 %v4697
      %5597 = vmatpush2.bf16.msra.mxu0 %v4696
      %5598 = vmatprep.subr.bf16.mxu0 %v4689
      %5599 = vmatpush2.bf16.msra.mxu0 %v4688
      %5600 = vmatprep.subr.bf16.mxu0 %v4681
      %5601 = vmatpush2.bf16.msra.mxu0 %v4680
      %5602 = vmatprep.subr.bf16.mxu0 %v4673
      %5603 = vmatpush2.bf16.msra.mxu0 %v4672
      %5604 = vmatprep.subr.bf16.mxu0 %v4665
      %5605 = vmatpush2.bf16.msra.mxu0 %v4664
      %5606 = vmatprep.subr.bf16.mxu0 %v4657
      %5607 = vmatpush2.bf16.msra.mxu0 %v4656
      %5608 = vmatprep.subr.bf16.mxu0 %v4649
      %5609 = vmatpush2.bf16.msra.mxu0 %v4648
      %5610 = vmatprep.mubr.bf16.mxu0 %v2669
      %5611 = vmatmul.mubr.bf16.gmra.mxu0 %v2668
      %v5612 = vpop.f32.mrf.mxu0
      %v5613 = vadd.f32 %v5500, %v5612
      %v5614 = vpop.f32.mrf.mxu0
      %v5615 = vadd.f32 %v5502, %v5614
      %v5616 = vpop.f32.mrf.mxu0
      %v5617 = vadd.f32 %v5504, %v5616
      %v5618 = vpop.f32.mrf.mxu0
      %v5619 = vadd.f32 %v5506, %v5618
      %5620 = vmatprep.mubr.bf16.mxu0 %v2677
      %5621 = vmatmul.mubr.bf16.gmra.mxu0 %v2676
      %v5622 = vpop.f32.mrf.mxu0
      %v5623 = vadd.f32 %v5510, %v5622
      %v5624 = vpop.f32.mrf.mxu0
      %v5625 = vadd.f32 %v5512, %v5624
      %v5626 = vpop.f32.mrf.mxu0
      %v5627 = vadd.f32 %v5514, %v5626
      %v5628 = vpop.f32.mrf.mxu0
      %v5629 = vadd.f32 %v5516, %v5628
      %5630 = vmatprep.mubr.bf16.mxu0 %v2685
      %5631 = vmatmul.mubr.bf16.gmra.mxu0 %v2684
      %v5632 = vpop.f32.mrf.mxu0
      %v5633 = vadd.f32 %v5520, %v5632
      %v5634 = vpop.f32.mrf.mxu0
      %v5635 = vadd.f32 %v5522, %v5634
      %v5636 = vpop.f32.mrf.mxu0
      %v5637 = vadd.f32 %v5524, %v5636
      %v5638 = vpop.f32.mrf.mxu0
      %v5639 = vadd.f32 %v5526, %v5638
      %5640 = vmatprep.mubr.bf16.mxu0 %v2693
      %5641 = vmatmul.mubr.bf16.gmra.mxu0 %v2692
      %v5642 = vpop.f32.mrf.mxu0
      %v5643 = vadd.f32 %v5530, %v5642
      %v5644 = vpop.f32.mrf.mxu0
      %v5645 = vadd.f32 %v5532, %v5644
      %v5646 = vpop.f32.mrf.mxu0
      %v5647 = vadd.f32 %v5534, %v5646
      %v5648 = vpop.f32.mrf.mxu0
      %v5649 = vadd.f32 %v5536, %v5648
      %5650 = vmatprep.mubr.bf16.mxu0 %v2701
      %5651 = vmatmul.mubr.bf16.gmra.mxu0 %v2700
      %v5652 = vpop.f32.mrf.mxu0
      %v5653 = vadd.f32 %v5540, %v5652
      %v5654 = vpop.f32.mrf.mxu0
      %v5655 = vadd.f32 %v5542, %v5654
      %v5656 = vpop.f32.mrf.mxu0
      %v5657 = vadd.f32 %v5544, %v5656
      %v5658 = vpop.f32.mrf.mxu0
      %v5659 = vadd.f32 %v5546, %v5658
      %5660 = vmatprep.mubr.bf16.mxu0 %v2709
      %5661 = vmatmul.mubr.bf16.gmra.mxu0 %v2708
      %v5662 = vpop.f32.mrf.mxu0
      %v5663 = vadd.f32 %v5550, %v5662
      %v5664 = vpop.f32.mrf.mxu0
      %v5665 = vadd.f32 %v5552, %v5664
      %v5666 = vpop.f32.mrf.mxu0
      %v5667 = vadd.f32 %v5554, %v5666
      %v5668 = vpop.f32.mrf.mxu0
      %v5669 = vadd.f32 %v5556, %v5668
      %5670 = vmatprep.mubr.bf16.mxu0 %v2717
      %5671 = vmatmul.mubr.bf16.gmra.mxu0 %v2716
      %v5672 = vpop.f32.mrf.mxu0
      %v5673 = vadd.f32 %v5560, %v5672
      %v5674 = vpop.f32.mrf.mxu0
      %v5675 = vadd.f32 %v5562, %v5674
      %v5676 = vpop.f32.mrf.mxu0
      %v5677 = vadd.f32 %v5564, %v5676
      %v5678 = vpop.f32.mrf.mxu0
      %v5679 = vadd.f32 %v5566, %v5678
      %5680 = vmatprep.mubr.bf16.mxu0 %v2725
      %5681 = vmatmul.mubr.bf16.gmra.mxu0 %v2724
      %v5682 = vpop.f32.mrf.mxu0
      %v5683 = vadd.f32 %v5570, %v5682
      %v5684 = vpop.f32.mrf.mxu0
      %v5685 = vadd.f32 %v5572, %v5684
      %v5686 = vpop.f32.mrf.mxu0
      %v5687 = vadd.f32 %v5574, %v5686
      %v5688 = vpop.f32.mrf.mxu0
      %v5689 = vadd.f32 %v5576, %v5688
      %5690 = vdwg.mxu0
      %5691 = vmatprep.subr.bf16.mxu0 %v4769
      %5692 = vmatpush1.bf16.msra.mxu0 %v4768
      %5693 = vmatprep.subr.bf16.mxu0 %v4761
      %5694 = vmatpush1.bf16.msra.mxu0 %v4760
      %5695 = vmatprep.subr.bf16.mxu0 %v4753
      %5696 = vmatpush1.bf16.msra.mxu0 %v4752
      %5697 = vmatprep.subr.bf16.mxu0 %v4745
      %5698 = vmatpush1.bf16.msra.mxu0 %v4744
      %5699 = vmatprep.subr.bf16.mxu0 %v4737
      %5700 = vmatpush1.bf16.msra.mxu0 %v4736
      %5701 = vmatprep.subr.bf16.mxu0 %v4729
      %5702 = vmatpush1.bf16.msra.mxu0 %v4728
      %5703 = vmatprep.subr.bf16.mxu0 %v4721
      %5704 = vmatpush1.bf16.msra.mxu0 %v4720
      %5705 = vmatprep.subr.bf16.mxu0 %v4713
      %5706 = vmatpush1.bf16.msra.mxu0 %v4712
      %5707 = vmatprep.subr.bf16.mxu0 %v4833
      %5708 = vmatpush2.bf16.msra.mxu0 %v4832
      %5709 = vmatprep.subr.bf16.mxu0 %v4825
      %5710 = vmatpush2.bf16.msra.mxu0 %v4824
      %5711 = vmatprep.subr.bf16.mxu0 %v4817
      %5712 = vmatpush2.bf16.msra.mxu0 %v4816
      %5713 = vmatprep.subr.bf16.mxu0 %v4809
      %5714 = vmatpush2.bf16.msra.mxu0 %v4808
      %5715 = vmatprep.subr.bf16.mxu0 %v4801
      %5716 = vmatpush2.bf16.msra.mxu0 %v4800
      %5717 = vmatprep.subr.bf16.mxu0 %v4793
      %5718 = vmatpush2.bf16.msra.mxu0 %v4792
      %5719 = vmatprep.subr.bf16.mxu0 %v4785
      %5720 = vmatpush2.bf16.msra.mxu0 %v4784
      %5721 = vmatprep.subr.bf16.mxu0 %v4777
      %5722 = vmatpush2.bf16.msra.mxu0 %v4776
      %5723 = vmatprep.mubr.bf16.mxu0 %v2671
      %5724 = vmatmul.mubr.bf16.gmra.mxu0 %v2670
      %v5725 = vpop.f32.mrf.mxu0
      %v5726 = vadd.f32 %v5613, %v5725
      %v5727 = vpop.f32.mrf.mxu0
      %v5728 = vadd.f32 %v5615, %v5727
      %v5729 = vpop.f32.mrf.mxu0
      %v5730 = vadd.f32 %v5617, %v5729
      %v5731 = vpop.f32.mrf.mxu0
      %v5732 = vadd.f32 %v5619, %v5731
      %5733 = vmatprep.mubr.bf16.mxu0 %v2679
      %5734 = vmatmul.mubr.bf16.gmra.mxu0 %v2678
      %v5735 = vpop.f32.mrf.mxu0
      %v5736 = vadd.f32 %v5623, %v5735
      %v5737 = vpop.f32.mrf.mxu0
      %v5738 = vadd.f32 %v5625, %v5737
      %v5739 = vpop.f32.mrf.mxu0
      %v5740 = vadd.f32 %v5627, %v5739
      %v5741 = vpop.f32.mrf.mxu0
      %v5742 = vadd.f32 %v5629, %v5741
      %5743 = vmatprep.mubr.bf16.mxu0 %v2687
      %5744 = vmatmul.mubr.bf16.gmra.mxu0 %v2686
      %v5745 = vpop.f32.mrf.mxu0
      %v5746 = vadd.f32 %v5633, %v5745
      %v5747 = vpop.f32.mrf.mxu0
      %v5748 = vadd.f32 %v5635, %v5747
      %v5749 = vpop.f32.mrf.mxu0
      %v5750 = vadd.f32 %v5637, %v5749
      %v5751 = vpop.f32.mrf.mxu0
      %v5752 = vadd.f32 %v5639, %v5751
      %5753 = vmatprep.mubr.bf16.mxu0 %v2695
      %5754 = vmatmul.mubr.bf16.gmra.mxu0 %v2694
      %v5755 = vpop.f32.mrf.mxu0
      %v5756 = vadd.f32 %v5643, %v5755
      %v5757 = vpop.f32.mrf.mxu0
      %v5758 = vadd.f32 %v5645, %v5757
      %v5759 = vpop.f32.mrf.mxu0
      %v5760 = vadd.f32 %v5647, %v5759
      %v5761 = vpop.f32.mrf.mxu0
      %v5762 = vadd.f32 %v5649, %v5761
      %5763 = vmatprep.mubr.bf16.mxu0 %v2703
      %5764 = vmatmul.mubr.bf16.gmra.mxu0 %v2702
      %v5765 = vpop.f32.mrf.mxu0
      %v5766 = vadd.f32 %v5653, %v5765
      %v5767 = vpop.f32.mrf.mxu0
      %v5768 = vadd.f32 %v5655, %v5767
      %v5769 = vpop.f32.mrf.mxu0
      %v5770 = vadd.f32 %v5657, %v5769
      %v5771 = vpop.f32.mrf.mxu0
      %v5772 = vadd.f32 %v5659, %v5771
      %5773 = vmatprep.mubr.bf16.mxu0 %v2711
      %5774 = vmatmul.mubr.bf16.gmra.mxu0 %v2710
      %v5775 = vpop.f32.mrf.mxu0
      %v5776 = vadd.f32 %v5663, %v5775
      %v5777 = vpop.f32.mrf.mxu0
      %v5778 = vadd.f32 %v5665, %v5777
      %v5779 = vpop.f32.mrf.mxu0
      %v5780 = vadd.f32 %v5667, %v5779
      %v5781 = vpop.f32.mrf.mxu0
      %v5782 = vadd.f32 %v5669, %v5781
      %5783 = vmatprep.mubr.bf16.mxu0 %v2719
      %5784 = vmatmul.mubr.bf16.gmra.mxu0 %v2718
      %v5785 = vpop.f32.mrf.mxu0
      %v5786 = vadd.f32 %v5673, %v5785
      %v5787 = vpop.f32.mrf.mxu0
      %v5788 = vadd.f32 %v5675, %v5787
      %v5789 = vpop.f32.mrf.mxu0
      %v5790 = vadd.f32 %v5677, %v5789
      %v5791 = vpop.f32.mrf.mxu0
      %v5792 = vadd.f32 %v5679, %v5791
      %5793 = vmatprep.mubr.bf16.mxu0 %v2727
      %5794 = vmatmul.mubr.bf16.gmra.mxu0 %v2726
      %v5795 = vpop.f32.mrf.mxu0
      %v5796 = vadd.f32 %v5683, %v5795
      %v5797 = vpop.f32.mrf.mxu0
      %v5798 = vadd.f32 %v5685, %v5797
      %v5799 = vpop.f32.mrf.mxu0
      %v5800 = vadd.f32 %v5687, %v5799
      %v5801 = vpop.f32.mrf.mxu0
      %v5802 = vadd.f32 %v5689, %v5801
      %5803 = vdwg.mxu0
      %5804 = vmatprep.subr.bf16.mxu0 %v4387
      %5805 = vmatpush1.bf16.msra.mxu0 %v4386
      %5806 = vmatprep.subr.bf16.mxu0 %v4379
      %5807 = vmatpush1.bf16.msra.mxu0 %v4378
      %5808 = vmatprep.subr.bf16.mxu0 %v4371
      %5809 = vmatpush1.bf16.msra.mxu0 %v4370
      %5810 = vmatprep.subr.bf16.mxu0 %v4363
      %5811 = vmatpush1.bf16.msra.mxu0 %v4362
      %5812 = vmatprep.subr.bf16.mxu0 %v4355
      %5813 = vmatpush1.bf16.msra.mxu0 %v4354
      %5814 = vmatprep.subr.bf16.mxu0 %v4347
      %5815 = vmatpush1.bf16.msra.mxu0 %v4346
      %5816 = vmatprep.subr.bf16.mxu0 %v4339
      %5817 = vmatpush1.bf16.msra.mxu0 %v4338
      %5818 = vmatprep.subr.bf16.mxu0 %v4331
      %5819 = vmatpush1.bf16.msra.mxu0 %v4330
      %5820 = vmatprep.subr.bf16.mxu0 %v4451
      %5821 = vmatpush2.bf16.msra.mxu0 %v4450
      %5822 = vmatprep.subr.bf16.mxu0 %v4443
      %5823 = vmatpush2.bf16.msra.mxu0 %v4442
      %5824 = vmatprep.subr.bf16.mxu0 %v4435
      %5825 = vmatpush2.bf16.msra.mxu0 %v4434
      %5826 = vmatprep.subr.bf16.mxu0 %v4427
      %5827 = vmatpush2.bf16.msra.mxu0 %v4426
      %5828 = vmatprep.subr.bf16.mxu0 %v4419
      %5829 = vmatpush2.bf16.msra.mxu0 %v4418
      %5830 = vmatprep.subr.bf16.mxu0 %v4411
      %5831 = vmatpush2.bf16.msra.mxu0 %v4410
      %5832 = vmatprep.subr.bf16.mxu0 %v4403
      %5833 = vmatpush2.bf16.msra.mxu0 %v4402
      %5834 = vmatprep.subr.bf16.mxu0 %v4395
      %5835 = vmatpush2.bf16.msra.mxu0 %v4394
      %5836 = vmatprep.mubr.bf16.mxu0 %v2665
      %5837 = vmatmul.mubr.bf16.gmra.mxu0 %v2664
      %v5838 = vpop.f32.mrf.mxu0
      %v5839 = vadd.f32 %v2443, %v5838
      %v5840 = vpop.f32.mrf.mxu0
      %v5841 = vadd.f32 %v2447, %v5840
      %v5842 = vpop.f32.mrf.mxu0
      %v5843 = vadd.f32 %v2443, %v5842
      %v5844 = vpop.f32.mrf.mxu0
      %v5845 = vadd.f32 %v2447, %v5844
      %5846 = vmatprep.mubr.bf16.mxu0 %v2673
      %5847 = vmatmul.mubr.bf16.gmra.mxu0 %v2672
      %v5848 = vpop.f32.mrf.mxu0
      %v5849 = vadd.f32 %v2443, %v5848
      %v5850 = vpop.f32.mrf.mxu0
      %v5851 = vadd.f32 %v2447, %v5850
      %v5852 = vpop.f32.mrf.mxu0
      %v5853 = vadd.f32 %v2443, %v5852
      %v5854 = vpop.f32.mrf.mxu0
      %v5855 = vadd.f32 %v2447, %v5854
      %5856 = vmatprep.mubr.bf16.mxu0 %v2681
      %5857 = vmatmul.mubr.bf16.gmra.mxu0 %v2680
      %v5858 = vpop.f32.mrf.mxu0
      %v5859 = vadd.f32 %v2443, %v5858
      %v5860 = vpop.f32.mrf.mxu0
      %v5861 = vadd.f32 %v2447, %v5860
      %v5862 = vpop.f32.mrf.mxu0
      %v5863 = vadd.f32 %v2443, %v5862
      %v5864 = vpop.f32.mrf.mxu0
      %v5865 = vadd.f32 %v2447, %v5864
      %5866 = vmatprep.mubr.bf16.mxu0 %v2689
      %5867 = vmatmul.mubr.bf16.gmra.mxu0 %v2688
      %v5868 = vpop.f32.mrf.mxu0
      %v5869 = vadd.f32 %v2443, %v5868
      %v5870 = vpop.f32.mrf.mxu0
      %v5871 = vadd.f32 %v2447, %v5870
      %v5872 = vpop.f32.mrf.mxu0
      %v5873 = vadd.f32 %v2443, %v5872
      %v5874 = vpop.f32.mrf.mxu0
      %v5875 = vadd.f32 %v2447, %v5874
      %5876 = vmatprep.mubr.bf16.mxu0 %v2697
      %5877 = vmatmul.mubr.bf16.gmra.mxu0 %v2696
      %v5878 = vpop.f32.mrf.mxu0
      %v5879 = vadd.f32 %v2443, %v5878
      %v5880 = vpop.f32.mrf.mxu0
      %v5881 = vadd.f32 %v2447, %v5880
      %v5882 = vpop.f32.mrf.mxu0
      %v5883 = vadd.f32 %v2443, %v5882
      %v5884 = vpop.f32.mrf.mxu0
      %v5885 = vadd.f32 %v2447, %v5884
      %5886 = vmatprep.mubr.bf16.mxu0 %v2705
      %5887 = vmatmul.mubr.bf16.gmra.mxu0 %v2704
      %v5888 = vpop.f32.mrf.mxu0
      %v5889 = vadd.f32 %v2443, %v5888
      %v5890 = vpop.f32.mrf.mxu0
      %v5891 = vadd.f32 %v2447, %v5890
      %v5892 = vpop.f32.mrf.mxu0
      %v5893 = vadd.f32 %v2443, %v5892
      %v5894 = vpop.f32.mrf.mxu0
      %v5895 = vadd.f32 %v2447, %v5894
      %5896 = vmatprep.mubr.bf16.mxu0 %v2713
      %5897 = vmatmul.mubr.bf16.gmra.mxu0 %v2712
      %v5898 = vpop.f32.mrf.mxu0
      %v5899 = vadd.f32 %v2443, %v5898
      %v5900 = vpop.f32.mrf.mxu0
      %v5901 = vadd.f32 %v2447, %v5900
      %v5902 = vpop.f32.mrf.mxu0
      %v5903 = vadd.f32 %v2443, %v5902
      %v5904 = vpop.f32.mrf.mxu0
      %v5905 = vadd.f32 %v2447, %v5904
      %5906 = vmatprep.mubr.bf16.mxu0 %v2721
      %5907 = vmatmul.mubr.bf16.gmra.mxu0 %v2720
      %v5908 = vpop.f32.mrf.mxu0
      %v5909 = vadd.f32 %v2443, %v5908
      %v5910 = vpop.f32.mrf.mxu0
      %v5911 = vadd.f32 %v2447, %v5910
      %v5912 = vpop.f32.mrf.mxu0
      %v5913 = vadd.f32 %v2443, %v5912
      %v5914 = vpop.f32.mrf.mxu0
      %v5915 = vadd.f32 %v2447, %v5914
      %5916 = vdwg.mxu0
      %5917 = vmatprep.subr.bf16.mxu0 %v4515
      %5918 = vmatpush1.bf16.msra.mxu0 %v4514
      %5919 = vmatprep.subr.bf16.mxu0 %v4507
      %5920 = vmatpush1.bf16.msra.mxu0 %v4506
      %5921 = vmatprep.subr.bf16.mxu0 %v4499
      %5922 = vmatpush1.bf16.msra.mxu0 %v4498
      %5923 = vmatprep.subr.bf16.mxu0 %v4491
      %5924 = vmatpush1.bf16.msra.mxu0 %v4490
      %5925 = vmatprep.subr.bf16.mxu0 %v4483
      %5926 = vmatpush1.bf16.msra.mxu0 %v4482
      %5927 = vmatprep.subr.bf16.mxu0 %v4475
      %5928 = vmatpush1.bf16.msra.mxu0 %v4474
      %5929 = vmatprep.subr.bf16.mxu0 %v4467
      %5930 = vmatpush1.bf16.msra.mxu0 %v4466
      %5931 = vmatprep.subr.bf16.mxu0 %v4459
      %5932 = vmatpush1.bf16.msra.mxu0 %v4458
      %5933 = vmatprep.subr.bf16.mxu0 %v4579
      %5934 = vmatpush2.bf16.msra.mxu0 %v4578
      %5935 = vmatprep.subr.bf16.mxu0 %v4571
      %5936 = vmatpush2.bf16.msra.mxu0 %v4570
      %5937 = vmatprep.subr.bf16.mxu0 %v4563
      %5938 = vmatpush2.bf16.msra.mxu0 %v4562
      %5939 = vmatprep.subr.bf16.mxu0 %v4555
      %5940 = vmatpush2.bf16.msra.mxu0 %v4554
      %5941 = vmatprep.subr.bf16.mxu0 %v4547
      %5942 = vmatpush2.bf16.msra.mxu0 %v4546
      %5943 = vmatprep.subr.bf16.mxu0 %v4539
      %5944 = vmatpush2.bf16.msra.mxu0 %v4538
      %5945 = vmatprep.subr.bf16.mxu0 %v4531
      %5946 = vmatpush2.bf16.msra.mxu0 %v4530
      %5947 = vmatprep.subr.bf16.mxu0 %v4523
      %5948 = vmatpush2.bf16.msra.mxu0 %v4522
      %5949 = vmatprep.mubr.bf16.mxu0 %v2667
      %5950 = vmatmul.mubr.bf16.gmra.mxu0 %v2666
      %v5951 = vpop.f32.mrf.mxu0
      %v5952 = vadd.f32 %v5839, %v5951
      %v5953 = vpop.f32.mrf.mxu0
      %v5954 = vadd.f32 %v5841, %v5953
      %v5955 = vpop.f32.mrf.mxu0
      %v5956 = vadd.f32 %v5843, %v5955
      %v5957 = vpop.f32.mrf.mxu0
      %v5958 = vadd.f32 %v5845, %v5957
      %5959 = vmatprep.mubr.bf16.mxu0 %v2675
      %5960 = vmatmul.mubr.bf16.gmra.mxu0 %v2674
      %v5961 = vpop.f32.mrf.mxu0
      %v5962 = vadd.f32 %v5849, %v5961
      %v5963 = vpop.f32.mrf.mxu0
      %v5964 = vadd.f32 %v5851, %v5963
      %v5965 = vpop.f32.mrf.mxu0
      %v5966 = vadd.f32 %v5853, %v5965
      %v5967 = vpop.f32.mrf.mxu0
      %v5968 = vadd.f32 %v5855, %v5967
      %5969 = vmatprep.mubr.bf16.mxu0 %v2683
      %5970 = vmatmul.mubr.bf16.gmra.mxu0 %v2682
      %v5971 = vpop.f32.mrf.mxu0
      %v5972 = vadd.f32 %v5859, %v5971
      %v5973 = vpop.f32.mrf.mxu0
      %v5974 = vadd.f32 %v5861, %v5973
      %v5975 = vpop.f32.mrf.mxu0
      %v5976 = vadd.f32 %v5863, %v5975
      %v5977 = vpop.f32.mrf.mxu0
      %v5978 = vadd.f32 %v5865, %v5977
      %5979 = vmatprep.mubr.bf16.mxu0 %v2691
      %5980 = vmatmul.mubr.bf16.gmra.mxu0 %v2690
      %v5981 = vpop.f32.mrf.mxu0
      %v5982 = vadd.f32 %v5869, %v5981
      %v5983 = vpop.f32.mrf.mxu0
      %v5984 = vadd.f32 %v5871, %v5983
      %v5985 = vpop.f32.mrf.mxu0
      %v5986 = vadd.f32 %v5873, %v5985
      %v5987 = vpop.f32.mrf.mxu0
      %v5988 = vadd.f32 %v5875, %v5987
      %5989 = vmatprep.mubr.bf16.mxu0 %v2699
      %5990 = vmatmul.mubr.bf16.gmra.mxu0 %v2698
      %v5991 = vpop.f32.mrf.mxu0
      %v5992 = vadd.f32 %v5879, %v5991
      %v5993 = vpop.f32.mrf.mxu0
      %v5994 = vadd.f32 %v5881, %v5993
      %v5995 = vpop.f32.mrf.mxu0
      %v5996 = vadd.f32 %v5883, %v5995
      %v5997 = vpop.f32.mrf.mxu0
      %v5998 = vadd.f32 %v5885, %v5997
      %5999 = vmatprep.mubr.bf16.mxu0 %v2707
      %6000 = vmatmul.mubr.bf16.gmra.mxu0 %v2706
      %v6001 = vpop.f32.mrf.mxu0
      %v6002 = vadd.f32 %v5889, %v6001
      %v6003 = vpop.f32.mrf.mxu0
      %v6004 = vadd.f32 %v5891, %v6003
      %v6005 = vpop.f32.mrf.mxu0
      %v6006 = vadd.f32 %v5893, %v6005
      %v6007 = vpop.f32.mrf.mxu0
      %v6008 = vadd.f32 %v5895, %v6007
      %6009 = vmatprep.mubr.bf16.mxu0 %v2715
      %6010 = vmatmul.mubr.bf16.gmra.mxu0 %v2714
      %v6011 = vpop.f32.mrf.mxu0
      %v6012 = vadd.f32 %v5899, %v6011
      %v6013 = vpop.f32.mrf.mxu0
      %v6014 = vadd.f32 %v5901, %v6013
      %v6015 = vpop.f32.mrf.mxu0
      %v6016 = vadd.f32 %v5903, %v6015
      %v6017 = vpop.f32.mrf.mxu0
      %v6018 = vadd.f32 %v5905, %v6017
      %6019 = vmatprep.mubr.bf16.mxu0 %v2723
      %6020 = vmatmul.mubr.bf16.gmra.mxu0 %v2722
      %v6021 = vpop.f32.mrf.mxu0
      %v6022 = vadd.f32 %v5909, %v6021
      %v6023 = vpop.f32.mrf.mxu0
      %v6024 = vadd.f32 %v5911, %v6023
      %v6025 = vpop.f32.mrf.mxu0
      %v6026 = vadd.f32 %v5913, %v6025
      %v6027 = vpop.f32.mrf.mxu0
      %v6028 = vadd.f32 %v5915, %v6027
      %6029 = vdwg.mxu0
      %6030 = vmatprep.subr.bf16.mxu0 %v4643
      %6031 = vmatpush1.bf16.msra.mxu0 %v4642
      %6032 = vmatprep.subr.bf16.mxu0 %v4635
      %6033 = vmatpush1.bf16.msra.mxu0 %v4634
      %6034 = vmatprep.subr.bf16.mxu0 %v4627
      %6035 = vmatpush1.bf16.msra.mxu0 %v4626
      %6036 = vmatprep.subr.bf16.mxu0 %v4619
      %6037 = vmatpush1.bf16.msra.mxu0 %v4618
      %6038 = vmatprep.subr.bf16.mxu0 %v4611
      %6039 = vmatpush1.bf16.msra.mxu0 %v4610
      %6040 = vmatprep.subr.bf16.mxu0 %v4603
      %6041 = vmatpush1.bf16.msra.mxu0 %v4602
      %6042 = vmatprep.subr.bf16.mxu0 %v4595
      %6043 = vmatpush1.bf16.msra.mxu0 %v4594
      %6044 = vmatprep.subr.bf16.mxu0 %v4587
      %6045 = vmatpush1.bf16.msra.mxu0 %v4586
      %6046 = vmatprep.subr.bf16.mxu0 %v4707
      %6047 = vmatpush2.bf16.msra.mxu0 %v4706
      %6048 = vmatprep.subr.bf16.mxu0 %v4699
      %6049 = vmatpush2.bf16.msra.mxu0 %v4698
      %6050 = vmatprep.subr.bf16.mxu0 %v4691
      %6051 = vmatpush2.bf16.msra.mxu0 %v4690
      %6052 = vmatprep.subr.bf16.mxu0 %v4683
      %6053 = vmatpush2.bf16.msra.mxu0 %v4682
      %6054 = vmatprep.subr.bf16.mxu0 %v4675
      %6055 = vmatpush2.bf16.msra.mxu0 %v4674
      %6056 = vmatprep.subr.bf16.mxu0 %v4667
      %6057 = vmatpush2.bf16.msra.mxu0 %v4666
      %6058 = vmatprep.subr.bf16.mxu0 %v4659
      %6059 = vmatpush2.bf16.msra.mxu0 %v4658
      %6060 = vmatprep.subr.bf16.mxu0 %v4651
      %6061 = vmatpush2.bf16.msra.mxu0 %v4650
      %6062 = vmatprep.mubr.bf16.mxu0 %v2669
      %6063 = vmatmul.mubr.bf16.gmra.mxu0 %v2668
      %v6064 = vpop.f32.mrf.mxu0
      %v6065 = vadd.f32 %v5952, %v6064
      %v6066 = vpop.f32.mrf.mxu0
      %v6067 = vadd.f32 %v5954, %v6066
      %v6068 = vpop.f32.mrf.mxu0
      %v6069 = vadd.f32 %v5956, %v6068
      %v6070 = vpop.f32.mrf.mxu0
      %v6071 = vadd.f32 %v5958, %v6070
      %6072 = vmatprep.mubr.bf16.mxu0 %v2677
      %6073 = vmatmul.mubr.bf16.gmra.mxu0 %v2676
      %v6074 = vpop.f32.mrf.mxu0
      %v6075 = vadd.f32 %v5962, %v6074
      %v6076 = vpop.f32.mrf.mxu0
      %v6077 = vadd.f32 %v5964, %v6076
      %v6078 = vpop.f32.mrf.mxu0
      %v6079 = vadd.f32 %v5966, %v6078
      %v6080 = vpop.f32.mrf.mxu0
      %v6081 = vadd.f32 %v5968, %v6080
      %6082 = vmatprep.mubr.bf16.mxu0 %v2685
      %6083 = vmatmul.mubr.bf16.gmra.mxu0 %v2684
      %v6084 = vpop.f32.mrf.mxu0
      %v6085 = vadd.f32 %v5972, %v6084
      %v6086 = vpop.f32.mrf.mxu0
      %v6087 = vadd.f32 %v5974, %v6086
      %v6088 = vpop.f32.mrf.mxu0
      %v6089 = vadd.f32 %v5976, %v6088
      %v6090 = vpop.f32.mrf.mxu0
      %v6091 = vadd.f32 %v5978, %v6090
      %6092 = vmatprep.mubr.bf16.mxu0 %v2693
      %6093 = vmatmul.mubr.bf16.gmra.mxu0 %v2692
      %v6094 = vpop.f32.mrf.mxu0
      %v6095 = vadd.f32 %v5982, %v6094
      %v6096 = vpop.f32.mrf.mxu0
      %v6097 = vadd.f32 %v5984, %v6096
      %v6098 = vpop.f32.mrf.mxu0
      %v6099 = vadd.f32 %v5986, %v6098
      %v6100 = vpop.f32.mrf.mxu0
      %v6101 = vadd.f32 %v5988, %v6100
      %6102 = vmatprep.mubr.bf16.mxu0 %v2701
      %6103 = vmatmul.mubr.bf16.gmra.mxu0 %v2700
      %v6104 = vpop.f32.mrf.mxu0
      %v6105 = vadd.f32 %v5992, %v6104
      %v6106 = vpop.f32.mrf.mxu0
      %v6107 = vadd.f32 %v5994, %v6106
      %v6108 = vpop.f32.mrf.mxu0
      %v6109 = vadd.f32 %v5996, %v6108
      %v6110 = vpop.f32.mrf.mxu0
      %v6111 = vadd.f32 %v5998, %v6110
      %6112 = vmatprep.mubr.bf16.mxu0 %v2709
      %6113 = vmatmul.mubr.bf16.gmra.mxu0 %v2708
      %v6114 = vpop.f32.mrf.mxu0
      %v6115 = vadd.f32 %v6002, %v6114
      %v6116 = vpop.f32.mrf.mxu0
      %v6117 = vadd.f32 %v6004, %v6116
      %v6118 = vpop.f32.mrf.mxu0
      %v6119 = vadd.f32 %v6006, %v6118
      %v6120 = vpop.f32.mrf.mxu0
      %v6121 = vadd.f32 %v6008, %v6120
      %6122 = vmatprep.mubr.bf16.mxu0 %v2717
      %6123 = vmatmul.mubr.bf16.gmra.mxu0 %v2716
      %v6124 = vpop.f32.mrf.mxu0
      %v6125 = vadd.f32 %v6012, %v6124
      %v6126 = vpop.f32.mrf.mxu0
      %v6127 = vadd.f32 %v6014, %v6126
      %v6128 = vpop.f32.mrf.mxu0
      %v6129 = vadd.f32 %v6016, %v6128
      %v6130 = vpop.f32.mrf.mxu0
      %v6131 = vadd.f32 %v6018, %v6130
      %6132 = vmatprep.mubr.bf16.mxu0 %v2725
      %6133 = vmatmul.mubr.bf16.gmra.mxu0 %v2724
      %v6134 = vpop.f32.mrf.mxu0
      %v6135 = vadd.f32 %v6022, %v6134
      %v6136 = vpop.f32.mrf.mxu0
      %v6137 = vadd.f32 %v6024, %v6136
      %v6138 = vpop.f32.mrf.mxu0
      %v6139 = vadd.f32 %v6026, %v6138
      %v6140 = vpop.f32.mrf.mxu0
      %v6141 = vadd.f32 %v6028, %v6140
      %6142 = vdwg.mxu0
      %6143 = vmatprep.subr.bf16.mxu0 %v4771
      %6144 = vmatpush1.bf16.msra.mxu0 %v4770
      %6145 = vmatprep.subr.bf16.mxu0 %v4763
      %6146 = vmatpush1.bf16.msra.mxu0 %v4762
      %6147 = vmatprep.subr.bf16.mxu0 %v4755
      %6148 = vmatpush1.bf16.msra.mxu0 %v4754
      %6149 = vmatprep.subr.bf16.mxu0 %v4747
      %6150 = vmatpush1.bf16.msra.mxu0 %v4746
      %6151 = vmatprep.subr.bf16.mxu0 %v4739
      %6152 = vmatpush1.bf16.msra.mxu0 %v4738
      %6153 = vmatprep.subr.bf16.mxu0 %v4731
      %6154 = vmatpush1.bf16.msra.mxu0 %v4730
      %6155 = vmatprep.subr.bf16.mxu0 %v4723
      %6156 = vmatpush1.bf16.msra.mxu0 %v4722
      %6157 = vmatprep.subr.bf16.mxu0 %v4715
      %6158 = vmatpush1.bf16.msra.mxu0 %v4714
      %6159 = vmatprep.subr.bf16.mxu0 %v4835
      %6160 = vmatpush2.bf16.msra.mxu0 %v4834
      %6161 = vmatprep.subr.bf16.mxu0 %v4827
      %6162 = vmatpush2.bf16.msra.mxu0 %v4826
      %6163 = vmatprep.subr.bf16.mxu0 %v4819
      %6164 = vmatpush2.bf16.msra.mxu0 %v4818
      %6165 = vmatprep.subr.bf16.mxu0 %v4811
      %6166 = vmatpush2.bf16.msra.mxu0 %v4810
      %6167 = vmatprep.subr.bf16.mxu0 %v4803
      %6168 = vmatpush2.bf16.msra.mxu0 %v4802
      %6169 = vmatprep.subr.bf16.mxu0 %v4795
      %6170 = vmatpush2.bf16.msra.mxu0 %v4794
      %6171 = vmatprep.subr.bf16.mxu0 %v4787
      %6172 = vmatpush2.bf16.msra.mxu0 %v4786
      %6173 = vmatprep.subr.bf16.mxu0 %v4779
      %6174 = vmatpush2.bf16.msra.mxu0 %v4778
      %6175 = vmatprep.mubr.bf16.mxu0 %v2671
      %6176 = vmatmul.mubr.bf16.gmra.mxu0 %v2670
      %v6177 = vpop.f32.mrf.mxu0
      %v6178 = vadd.f32 %v6065, %v6177
      %v6179 = vpop.f32.mrf.mxu0
      %v6180 = vadd.f32 %v6067, %v6179
      %v6181 = vpop.f32.mrf.mxu0
      %v6182 = vadd.f32 %v6069, %v6181
      %v6183 = vpop.f32.mrf.mxu0
      %v6184 = vadd.f32 %v6071, %v6183
      %6185 = vmatprep.mubr.bf16.mxu0 %v2679
      %6186 = vmatmul.mubr.bf16.gmra.mxu0 %v2678
      %v6187 = vpop.f32.mrf.mxu0
      %v6188 = vadd.f32 %v6075, %v6187
      %v6189 = vpop.f32.mrf.mxu0
      %v6190 = vadd.f32 %v6077, %v6189
      %v6191 = vpop.f32.mrf.mxu0
      %v6192 = vadd.f32 %v6079, %v6191
      %v6193 = vpop.f32.mrf.mxu0
      %v6194 = vadd.f32 %v6081, %v6193
      %6195 = vmatprep.mubr.bf16.mxu0 %v2687
      %6196 = vmatmul.mubr.bf16.gmra.mxu0 %v2686
      %v6197 = vpop.f32.mrf.mxu0
      %v6198 = vadd.f32 %v6085, %v6197
      %v6199 = vpop.f32.mrf.mxu0
      %v6200 = vadd.f32 %v6087, %v6199
      %v6201 = vpop.f32.mrf.mxu0
      %v6202 = vadd.f32 %v6089, %v6201
      %v6203 = vpop.f32.mrf.mxu0
      %v6204 = vadd.f32 %v6091, %v6203
      %6205 = vmatprep.mubr.bf16.mxu0 %v2695
      %6206 = vmatmul.mubr.bf16.gmra.mxu0 %v2694
      %v6207 = vpop.f32.mrf.mxu0
      %v6208 = vadd.f32 %v6095, %v6207
      %v6209 = vpop.f32.mrf.mxu0
      %v6210 = vadd.f32 %v6097, %v6209
      %v6211 = vpop.f32.mrf.mxu0
      %v6212 = vadd.f32 %v6099, %v6211
      %v6213 = vpop.f32.mrf.mxu0
      %v6214 = vadd.f32 %v6101, %v6213
      %6215 = vmatprep.mubr.bf16.mxu0 %v2703
      %6216 = vmatmul.mubr.bf16.gmra.mxu0 %v2702
      %v6217 = vpop.f32.mrf.mxu0
      %v6218 = vadd.f32 %v6105, %v6217
      %v6219 = vpop.f32.mrf.mxu0
      %v6220 = vadd.f32 %v6107, %v6219
      %v6221 = vpop.f32.mrf.mxu0
      %v6222 = vadd.f32 %v6109, %v6221
      %v6223 = vpop.f32.mrf.mxu0
      %v6224 = vadd.f32 %v6111, %v6223
      %6225 = vmatprep.mubr.bf16.mxu0 %v2711
      %6226 = vmatmul.mubr.bf16.gmra.mxu0 %v2710
      %v6227 = vpop.f32.mrf.mxu0
      %v6228 = vadd.f32 %v6115, %v6227
      %v6229 = vpop.f32.mrf.mxu0
      %v6230 = vadd.f32 %v6117, %v6229
      %v6231 = vpop.f32.mrf.mxu0
      %v6232 = vadd.f32 %v6119, %v6231
      %v6233 = vpop.f32.mrf.mxu0
      %v6234 = vadd.f32 %v6121, %v6233
      %6235 = vmatprep.mubr.bf16.mxu0 %v2719
      %6236 = vmatmul.mubr.bf16.gmra.mxu0 %v2718
      %v6237 = vpop.f32.mrf.mxu0
      %v6238 = vadd.f32 %v6125, %v6237
      %v6239 = vpop.f32.mrf.mxu0
      %v6240 = vadd.f32 %v6127, %v6239
      %v6241 = vpop.f32.mrf.mxu0
      %v6242 = vadd.f32 %v6129, %v6241
      %v6243 = vpop.f32.mrf.mxu0
      %v6244 = vadd.f32 %v6131, %v6243
      %6245 = vmatprep.mubr.bf16.mxu0 %v2727
      %6246 = vmatmul.mubr.bf16.gmra.mxu0 %v2726
      %v6247 = vpop.f32.mrf.mxu0
      %v6248 = vadd.f32 %v6135, %v6247
      %v6249 = vpop.f32.mrf.mxu0
      %v6250 = vadd.f32 %v6137, %v6249
      %v6251 = vpop.f32.mrf.mxu0
      %v6252 = vadd.f32 %v6139, %v6251
      %v6253 = vpop.f32.mrf.mxu0
      %v6254 = vadd.f32 %v6141, %v6253
      %6255 = vdwg.mxu0
      %6256 = vmatprep.subr.bf16.mxu0 %v4389
      %6257 = vmatpush1.bf16.msra.mxu0 %v4388
      %6258 = vmatprep.subr.bf16.mxu0 %v4381
      %6259 = vmatpush1.bf16.msra.mxu0 %v4380
      %6260 = vmatprep.subr.bf16.mxu0 %v4373
      %6261 = vmatpush1.bf16.msra.mxu0 %v4372
      %6262 = vmatprep.subr.bf16.mxu0 %v4365
      %6263 = vmatpush1.bf16.msra.mxu0 %v4364
      %6264 = vmatprep.subr.bf16.mxu0 %v4357
      %6265 = vmatpush1.bf16.msra.mxu0 %v4356
      %6266 = vmatprep.subr.bf16.mxu0 %v4349
      %6267 = vmatpush1.bf16.msra.mxu0 %v4348
      %6268 = vmatprep.subr.bf16.mxu0 %v4341
      %6269 = vmatpush1.bf16.msra.mxu0 %v4340
      %6270 = vmatprep.subr.bf16.mxu0 %v4333
      %6271 = vmatpush1.bf16.msra.mxu0 %v4332
      %6272 = vmatprep.subr.bf16.mxu0 %v4453
      %6273 = vmatpush2.bf16.msra.mxu0 %v4452
      %6274 = vmatprep.subr.bf16.mxu0 %v4445
      %6275 = vmatpush2.bf16.msra.mxu0 %v4444
      %6276 = vmatprep.subr.bf16.mxu0 %v4437
      %6277 = vmatpush2.bf16.msra.mxu0 %v4436
      %6278 = vmatprep.subr.bf16.mxu0 %v4429
      %6279 = vmatpush2.bf16.msra.mxu0 %v4428
      %6280 = vmatprep.subr.bf16.mxu0 %v4421
      %6281 = vmatpush2.bf16.msra.mxu0 %v4420
      %6282 = vmatprep.subr.bf16.mxu0 %v4413
      %6283 = vmatpush2.bf16.msra.mxu0 %v4412
      %6284 = vmatprep.subr.bf16.mxu0 %v4405
      %6285 = vmatpush2.bf16.msra.mxu0 %v4404
      %6286 = vmatprep.subr.bf16.mxu0 %v4397
      %6287 = vmatpush2.bf16.msra.mxu0 %v4396
      %6288 = vmatprep.mubr.bf16.mxu0 %v2665
      %6289 = vmatmul.mubr.bf16.gmra.mxu0 %v2664
      %v6290 = vpop.f32.mrf.mxu0
      %v6291 = vadd.f32 %v2451, %v6290
      %v6292 = vpop.f32.mrf.mxu0
      %v6293 = vadd.f32 %v2455, %v6292
      %v6294 = vpop.f32.mrf.mxu0
      %v6295 = vadd.f32 %v2451, %v6294
      %v6296 = vpop.f32.mrf.mxu0
      %v6297 = vadd.f32 %v2455, %v6296
      %6298 = vmatprep.mubr.bf16.mxu0 %v2673
      %6299 = vmatmul.mubr.bf16.gmra.mxu0 %v2672
      %v6300 = vpop.f32.mrf.mxu0
      %v6301 = vadd.f32 %v2451, %v6300
      %v6302 = vpop.f32.mrf.mxu0
      %v6303 = vadd.f32 %v2455, %v6302
      %v6304 = vpop.f32.mrf.mxu0
      %v6305 = vadd.f32 %v2451, %v6304
      %v6306 = vpop.f32.mrf.mxu0
      %v6307 = vadd.f32 %v2455, %v6306
      %6308 = vmatprep.mubr.bf16.mxu0 %v2681
      %6309 = vmatmul.mubr.bf16.gmra.mxu0 %v2680
      %v6310 = vpop.f32.mrf.mxu0
      %v6311 = vadd.f32 %v2451, %v6310
      %v6312 = vpop.f32.mrf.mxu0
      %v6313 = vadd.f32 %v2455, %v6312
      %v6314 = vpop.f32.mrf.mxu0
      %v6315 = vadd.f32 %v2451, %v6314
      %v6316 = vpop.f32.mrf.mxu0
      %v6317 = vadd.f32 %v2455, %v6316
      %6318 = vmatprep.mubr.bf16.mxu0 %v2689
      %6319 = vmatmul.mubr.bf16.gmra.mxu0 %v2688
      %v6320 = vpop.f32.mrf.mxu0
      %v6321 = vadd.f32 %v2451, %v6320
      %v6322 = vpop.f32.mrf.mxu0
      %v6323 = vadd.f32 %v2455, %v6322
      %v6324 = vpop.f32.mrf.mxu0
      %v6325 = vadd.f32 %v2451, %v6324
      %v6326 = vpop.f32.mrf.mxu0
      %v6327 = vadd.f32 %v2455, %v6326
      %6328 = vmatprep.mubr.bf16.mxu0 %v2697
      %6329 = vmatmul.mubr.bf16.gmra.mxu0 %v2696
      %v6330 = vpop.f32.mrf.mxu0
      %v6331 = vadd.f32 %v2451, %v6330
      %v6332 = vpop.f32.mrf.mxu0
      %v6333 = vadd.f32 %v2455, %v6332
      %v6334 = vpop.f32.mrf.mxu0
      %v6335 = vadd.f32 %v2451, %v6334
      %v6336 = vpop.f32.mrf.mxu0
      %v6337 = vadd.f32 %v2455, %v6336
      %6338 = vmatprep.mubr.bf16.mxu0 %v2705
      %6339 = vmatmul.mubr.bf16.gmra.mxu0 %v2704
      %v6340 = vpop.f32.mrf.mxu0
      %v6341 = vadd.f32 %v2451, %v6340
      %v6342 = vpop.f32.mrf.mxu0
      %v6343 = vadd.f32 %v2455, %v6342
      %v6344 = vpop.f32.mrf.mxu0
      %v6345 = vadd.f32 %v2451, %v6344
      %v6346 = vpop.f32.mrf.mxu0
      %v6347 = vadd.f32 %v2455, %v6346
      %6348 = vmatprep.mubr.bf16.mxu0 %v2713
      %6349 = vmatmul.mubr.bf16.gmra.mxu0 %v2712
      %v6350 = vpop.f32.mrf.mxu0
      %v6351 = vadd.f32 %v2451, %v6350
      %v6352 = vpop.f32.mrf.mxu0
      %v6353 = vadd.f32 %v2455, %v6352
      %v6354 = vpop.f32.mrf.mxu0
      %v6355 = vadd.f32 %v2451, %v6354
      %v6356 = vpop.f32.mrf.mxu0
      %v6357 = vadd.f32 %v2455, %v6356
      %6358 = vmatprep.mubr.bf16.mxu0 %v2721
      %6359 = vmatmul.mubr.bf16.gmra.mxu0 %v2720
      %v6360 = vpop.f32.mrf.mxu0
      %v6361 = vadd.f32 %v2451, %v6360
      %v6362 = vpop.f32.mrf.mxu0
      %v6363 = vadd.f32 %v2455, %v6362
      %v6364 = vpop.f32.mrf.mxu0
      %v6365 = vadd.f32 %v2451, %v6364
      %v6366 = vpop.f32.mrf.mxu0
      %v6367 = vadd.f32 %v2455, %v6366
      %6368 = vdwg.mxu0
      %6369 = vmatprep.subr.bf16.mxu0 %v4517
      %6370 = vmatpush1.bf16.msra.mxu0 %v4516
      %6371 = vmatprep.subr.bf16.mxu0 %v4509
      %6372 = vmatpush1.bf16.msra.mxu0 %v4508
      %6373 = vmatprep.subr.bf16.mxu0 %v4501
      %6374 = vmatpush1.bf16.msra.mxu0 %v4500
      %6375 = vmatprep.subr.bf16.mxu0 %v4493
      %6376 = vmatpush1.bf16.msra.mxu0 %v4492
      %6377 = vmatprep.subr.bf16.mxu0 %v4485
      %6378 = vmatpush1.bf16.msra.mxu0 %v4484
      %6379 = vmatprep.subr.bf16.mxu0 %v4477
      %6380 = vmatpush1.bf16.msra.mxu0 %v4476
      %6381 = vmatprep.subr.bf16.mxu0 %v4469
      %6382 = vmatpush1.bf16.msra.mxu0 %v4468
      %6383 = vmatprep.subr.bf16.mxu0 %v4461
      %6384 = vmatpush1.bf16.msra.mxu0 %v4460
      %6385 = vmatprep.subr.bf16.mxu0 %v4581
      %6386 = vmatpush2.bf16.msra.mxu0 %v4580
      %6387 = vmatprep.subr.bf16.mxu0 %v4573
      %6388 = vmatpush2.bf16.msra.mxu0 %v4572
      %6389 = vmatprep.subr.bf16.mxu0 %v4565
      %6390 = vmatpush2.bf16.msra.mxu0 %v4564
      %6391 = vmatprep.subr.bf16.mxu0 %v4557
      %6392 = vmatpush2.bf16.msra.mxu0 %v4556
      %6393 = vmatprep.subr.bf16.mxu0 %v4549
      %6394 = vmatpush2.bf16.msra.mxu0 %v4548
      %6395 = vmatprep.subr.bf16.mxu0 %v4541
      %6396 = vmatpush2.bf16.msra.mxu0 %v4540
      %6397 = vmatprep.subr.bf16.mxu0 %v4533
      %6398 = vmatpush2.bf16.msra.mxu0 %v4532
      %6399 = vmatprep.subr.bf16.mxu0 %v4525
      %6400 = vmatpush2.bf16.msra.mxu0 %v4524
      %6401 = vmatprep.mubr.bf16.mxu0 %v2667
      %6402 = vmatmul.mubr.bf16.gmra.mxu0 %v2666
      %v6403 = vpop.f32.mrf.mxu0
      %v6404 = vadd.f32 %v6291, %v6403
      %v6405 = vpop.f32.mrf.mxu0
      %v6406 = vadd.f32 %v6293, %v6405
      %v6407 = vpop.f32.mrf.mxu0
      %v6408 = vadd.f32 %v6295, %v6407
      %v6409 = vpop.f32.mrf.mxu0
      %v6410 = vadd.f32 %v6297, %v6409
      %6411 = vmatprep.mubr.bf16.mxu0 %v2675
      %6412 = vmatmul.mubr.bf16.gmra.mxu0 %v2674
      %v6413 = vpop.f32.mrf.mxu0
      %v6414 = vadd.f32 %v6301, %v6413
      %v6415 = vpop.f32.mrf.mxu0
      %v6416 = vadd.f32 %v6303, %v6415
      %v6417 = vpop.f32.mrf.mxu0
      %v6418 = vadd.f32 %v6305, %v6417
      %v6419 = vpop.f32.mrf.mxu0
      %v6420 = vadd.f32 %v6307, %v6419
      %6421 = vmatprep.mubr.bf16.mxu0 %v2683
      %6422 = vmatmul.mubr.bf16.gmra.mxu0 %v2682
      %v6423 = vpop.f32.mrf.mxu0
      %v6424 = vadd.f32 %v6311, %v6423
      %v6425 = vpop.f32.mrf.mxu0
      %v6426 = vadd.f32 %v6313, %v6425
      %v6427 = vpop.f32.mrf.mxu0
      %v6428 = vadd.f32 %v6315, %v6427
      %v6429 = vpop.f32.mrf.mxu0
      %v6430 = vadd.f32 %v6317, %v6429
      %6431 = vmatprep.mubr.bf16.mxu0 %v2691
      %6432 = vmatmul.mubr.bf16.gmra.mxu0 %v2690
      %v6433 = vpop.f32.mrf.mxu0
      %v6434 = vadd.f32 %v6321, %v6433
      %v6435 = vpop.f32.mrf.mxu0
      %v6436 = vadd.f32 %v6323, %v6435
      %v6437 = vpop.f32.mrf.mxu0
      %v6438 = vadd.f32 %v6325, %v6437
      %v6439 = vpop.f32.mrf.mxu0
      %v6440 = vadd.f32 %v6327, %v6439
      %6441 = vmatprep.mubr.bf16.mxu0 %v2699
      %6442 = vmatmul.mubr.bf16.gmra.mxu0 %v2698
      %v6443 = vpop.f32.mrf.mxu0
      %v6444 = vadd.f32 %v6331, %v6443
      %v6445 = vpop.f32.mrf.mxu0
      %v6446 = vadd.f32 %v6333, %v6445
      %v6447 = vpop.f32.mrf.mxu0
      %v6448 = vadd.f32 %v6335, %v6447
      %v6449 = vpop.f32.mrf.mxu0
      %v6450 = vadd.f32 %v6337, %v6449
      %6451 = vmatprep.mubr.bf16.mxu0 %v2707
      %6452 = vmatmul.mubr.bf16.gmra.mxu0 %v2706
      %v6453 = vpop.f32.mrf.mxu0
      %v6454 = vadd.f32 %v6341, %v6453
      %v6455 = vpop.f32.mrf.mxu0
      %v6456 = vadd.f32 %v6343, %v6455
      %v6457 = vpop.f32.mrf.mxu0
      %v6458 = vadd.f32 %v6345, %v6457
      %v6459 = vpop.f32.mrf.mxu0
      %v6460 = vadd.f32 %v6347, %v6459
      %6461 = vmatprep.mubr.bf16.mxu0 %v2715
      %6462 = vmatmul.mubr.bf16.gmra.mxu0 %v2714
      %v6463 = vpop.f32.mrf.mxu0
      %v6464 = vadd.f32 %v6351, %v6463
      %v6465 = vpop.f32.mrf.mxu0
      %v6466 = vadd.f32 %v6353, %v6465
      %v6467 = vpop.f32.mrf.mxu0
      %v6468 = vadd.f32 %v6355, %v6467
      %v6469 = vpop.f32.mrf.mxu0
      %v6470 = vadd.f32 %v6357, %v6469
      %6471 = vmatprep.mubr.bf16.mxu0 %v2723
      %6472 = vmatmul.mubr.bf16.gmra.mxu0 %v2722
      %v6473 = vpop.f32.mrf.mxu0
      %v6474 = vadd.f32 %v6361, %v6473
      %v6475 = vpop.f32.mrf.mxu0
      %v6476 = vadd.f32 %v6363, %v6475
      %v6477 = vpop.f32.mrf.mxu0
      %v6478 = vadd.f32 %v6365, %v6477
      %v6479 = vpop.f32.mrf.mxu0
      %v6480 = vadd.f32 %v6367, %v6479
      %6481 = vdwg.mxu0
      %6482 = vmatprep.subr.bf16.mxu0 %v4645
      %6483 = vmatpush1.bf16.msra.mxu0 %v4644
      %6484 = vmatprep.subr.bf16.mxu0 %v4637
      %6485 = vmatpush1.bf16.msra.mxu0 %v4636
      %6486 = vmatprep.subr.bf16.mxu0 %v4629
      %6487 = vmatpush1.bf16.msra.mxu0 %v4628
      %6488 = vmatprep.subr.bf16.mxu0 %v4621
      %6489 = vmatpush1.bf16.msra.mxu0 %v4620
      %6490 = vmatprep.subr.bf16.mxu0 %v4613
      %6491 = vmatpush1.bf16.msra.mxu0 %v4612
      %6492 = vmatprep.subr.bf16.mxu0 %v4605
      %6493 = vmatpush1.bf16.msra.mxu0 %v4604
      %6494 = vmatprep.subr.bf16.mxu0 %v4597
      %6495 = vmatpush1.bf16.msra.mxu0 %v4596
      %6496 = vmatprep.subr.bf16.mxu0 %v4589
      %6497 = vmatpush1.bf16.msra.mxu0 %v4588
      %6498 = vmatprep.subr.bf16.mxu0 %v4709
      %6499 = vmatpush2.bf16.msra.mxu0 %v4708
      %6500 = vmatprep.subr.bf16.mxu0 %v4701
      %6501 = vmatpush2.bf16.msra.mxu0 %v4700
      %6502 = vmatprep.subr.bf16.mxu0 %v4693
      %6503 = vmatpush2.bf16.msra.mxu0 %v4692
      %6504 = vmatprep.subr.bf16.mxu0 %v4685
      %6505 = vmatpush2.bf16.msra.mxu0 %v4684
      %6506 = vmatprep.subr.bf16.mxu0 %v4677
      %6507 = vmatpush2.bf16.msra.mxu0 %v4676
      %6508 = vmatprep.subr.bf16.mxu0 %v4669
      %6509 = vmatpush2.bf16.msra.mxu0 %v4668
      %6510 = vmatprep.subr.bf16.mxu0 %v4661
      %6511 = vmatpush2.bf16.msra.mxu0 %v4660
      %6512 = vmatprep.subr.bf16.mxu0 %v4653
      %6513 = vmatpush2.bf16.msra.mxu0 %v4652
      %6514 = vmatprep.mubr.bf16.mxu0 %v2669
      %6515 = vmatmul.mubr.bf16.gmra.mxu0 %v2668
      %v6516 = vpop.f32.mrf.mxu0
      %v6517 = vadd.f32 %v6404, %v6516
      %v6518 = vpop.f32.mrf.mxu0
      %v6519 = vadd.f32 %v6406, %v6518
      %v6520 = vpop.f32.mrf.mxu0
      %v6521 = vadd.f32 %v6408, %v6520
      %v6522 = vpop.f32.mrf.mxu0
      %v6523 = vadd.f32 %v6410, %v6522
      %6524 = vmatprep.mubr.bf16.mxu0 %v2677
      %6525 = vmatmul.mubr.bf16.gmra.mxu0 %v2676
      %v6526 = vpop.f32.mrf.mxu0
      %v6527 = vadd.f32 %v6414, %v6526
      %v6528 = vpop.f32.mrf.mxu0
      %v6529 = vadd.f32 %v6416, %v6528
      %v6530 = vpop.f32.mrf.mxu0
      %v6531 = vadd.f32 %v6418, %v6530
      %v6532 = vpop.f32.mrf.mxu0
      %v6533 = vadd.f32 %v6420, %v6532
      %6534 = vmatprep.mubr.bf16.mxu0 %v2685
      %6535 = vmatmul.mubr.bf16.gmra.mxu0 %v2684
      %v6536 = vpop.f32.mrf.mxu0
      %v6537 = vadd.f32 %v6424, %v6536
      %v6538 = vpop.f32.mrf.mxu0
      %v6539 = vadd.f32 %v6426, %v6538
      %v6540 = vpop.f32.mrf.mxu0
      %v6541 = vadd.f32 %v6428, %v6540
      %v6542 = vpop.f32.mrf.mxu0
      %v6543 = vadd.f32 %v6430, %v6542
      %6544 = vmatprep.mubr.bf16.mxu0 %v2693
      %6545 = vmatmul.mubr.bf16.gmra.mxu0 %v2692
      %v6546 = vpop.f32.mrf.mxu0
      %v6547 = vadd.f32 %v6434, %v6546
      %v6548 = vpop.f32.mrf.mxu0
      %v6549 = vadd.f32 %v6436, %v6548
      %v6550 = vpop.f32.mrf.mxu0
      %v6551 = vadd.f32 %v6438, %v6550
      %v6552 = vpop.f32.mrf.mxu0
      %v6553 = vadd.f32 %v6440, %v6552
      %6554 = vmatprep.mubr.bf16.mxu0 %v2701
      %6555 = vmatmul.mubr.bf16.gmra.mxu0 %v2700
      %v6556 = vpop.f32.mrf.mxu0
      %v6557 = vadd.f32 %v6444, %v6556
      %v6558 = vpop.f32.mrf.mxu0
      %v6559 = vadd.f32 %v6446, %v6558
      %v6560 = vpop.f32.mrf.mxu0
      %v6561 = vadd.f32 %v6448, %v6560
      %v6562 = vpop.f32.mrf.mxu0
      %v6563 = vadd.f32 %v6450, %v6562
      %6564 = vmatprep.mubr.bf16.mxu0 %v2709
      %6565 = vmatmul.mubr.bf16.gmra.mxu0 %v2708
      %v6566 = vpop.f32.mrf.mxu0
      %v6567 = vadd.f32 %v6454, %v6566
      %v6568 = vpop.f32.mrf.mxu0
      %v6569 = vadd.f32 %v6456, %v6568
      %v6570 = vpop.f32.mrf.mxu0
      %v6571 = vadd.f32 %v6458, %v6570
      %v6572 = vpop.f32.mrf.mxu0
      %v6573 = vadd.f32 %v6460, %v6572
      %6574 = vmatprep.mubr.bf16.mxu0 %v2717
      %6575 = vmatmul.mubr.bf16.gmra.mxu0 %v2716
      %v6576 = vpop.f32.mrf.mxu0
      %v6577 = vadd.f32 %v6464, %v6576
      %v6578 = vpop.f32.mrf.mxu0
      %v6579 = vadd.f32 %v6466, %v6578
      %v6580 = vpop.f32.mrf.mxu0
      %v6581 = vadd.f32 %v6468, %v6580
      %v6582 = vpop.f32.mrf.mxu0
      %v6583 = vadd.f32 %v6470, %v6582
      %6584 = vmatprep.mubr.bf16.mxu0 %v2725
      %6585 = vmatmul.mubr.bf16.gmra.mxu0 %v2724
      %v6586 = vpop.f32.mrf.mxu0
      %v6587 = vadd.f32 %v6474, %v6586
      %v6588 = vpop.f32.mrf.mxu0
      %v6589 = vadd.f32 %v6476, %v6588
      %v6590 = vpop.f32.mrf.mxu0
      %v6591 = vadd.f32 %v6478, %v6590
      %v6592 = vpop.f32.mrf.mxu0
      %v6593 = vadd.f32 %v6480, %v6592
      %6594 = vdwg.mxu0
      %6595 = vmatprep.subr.bf16.mxu0 %v4773
      %6596 = vmatpush1.bf16.msra.mxu0 %v4772
      %6597 = vmatprep.subr.bf16.mxu0 %v4765
      %6598 = vmatpush1.bf16.msra.mxu0 %v4764
      %6599 = vmatprep.subr.bf16.mxu0 %v4757
      %6600 = vmatpush1.bf16.msra.mxu0 %v4756
      %6601 = vmatprep.subr.bf16.mxu0 %v4749
      %6602 = vmatpush1.bf16.msra.mxu0 %v4748
      %6603 = vmatprep.subr.bf16.mxu0 %v4741
      %6604 = vmatpush1.bf16.msra.mxu0 %v4740
      %6605 = vmatprep.subr.bf16.mxu0 %v4733
      %6606 = vmatpush1.bf16.msra.mxu0 %v4732
      %6607 = vmatprep.subr.bf16.mxu0 %v4725
      %6608 = vmatpush1.bf16.msra.mxu0 %v4724
      %6609 = vmatprep.subr.bf16.mxu0 %v4717
      %6610 = vmatpush1.bf16.msra.mxu0 %v4716
      %6611 = vmatprep.subr.bf16.mxu0 %v4837
      %6612 = vmatpush2.bf16.msra.mxu0 %v4836
      %6613 = vmatprep.subr.bf16.mxu0 %v4829
      %6614 = vmatpush2.bf16.msra.mxu0 %v4828
      %6615 = vmatprep.subr.bf16.mxu0 %v4821
      %6616 = vmatpush2.bf16.msra.mxu0 %v4820
      %6617 = vmatprep.subr.bf16.mxu0 %v4813
      %6618 = vmatpush2.bf16.msra.mxu0 %v4812
      %6619 = vmatprep.subr.bf16.mxu0 %v4805
      %6620 = vmatpush2.bf16.msra.mxu0 %v4804
      %6621 = vmatprep.subr.bf16.mxu0 %v4797
      %6622 = vmatpush2.bf16.msra.mxu0 %v4796
      %6623 = vmatprep.subr.bf16.mxu0 %v4789
      %6624 = vmatpush2.bf16.msra.mxu0 %v4788
      %6625 = vmatprep.subr.bf16.mxu0 %v4781
      %6626 = vmatpush2.bf16.msra.mxu0 %v4780
      %6627 = vmatprep.mubr.bf16.mxu0 %v2671
      %6628 = vmatmul.mubr.bf16.gmra.mxu0 %v2670
      %v6629 = vpop.f32.mrf.mxu0
      %v6630 = vadd.f32 %v6517, %v6629
      %v6631 = vpop.f32.mrf.mxu0
      %v6632 = vadd.f32 %v6519, %v6631
      %v6633 = vpop.f32.mrf.mxu0
      %v6634 = vadd.f32 %v6521, %v6633
      %v6635 = vpop.f32.mrf.mxu0
      %v6636 = vadd.f32 %v6523, %v6635
      %6637 = vmatprep.mubr.bf16.mxu0 %v2679
      %6638 = vmatmul.mubr.bf16.gmra.mxu0 %v2678
      %v6639 = vpop.f32.mrf.mxu0
      %v6640 = vadd.f32 %v6527, %v6639
      %v6641 = vpop.f32.mrf.mxu0
      %v6642 = vadd.f32 %v6529, %v6641
      %v6643 = vpop.f32.mrf.mxu0
      %v6644 = vadd.f32 %v6531, %v6643
      %v6645 = vpop.f32.mrf.mxu0
      %v6646 = vadd.f32 %v6533, %v6645
      %6647 = vmatprep.mubr.bf16.mxu0 %v2687
      %6648 = vmatmul.mubr.bf16.gmra.mxu0 %v2686
      %v6649 = vpop.f32.mrf.mxu0
      %v6650 = vadd.f32 %v6537, %v6649
      %v6651 = vpop.f32.mrf.mxu0
      %v6652 = vadd.f32 %v6539, %v6651
      %v6653 = vpop.f32.mrf.mxu0
      %v6654 = vadd.f32 %v6541, %v6653
      %v6655 = vpop.f32.mrf.mxu0
      %v6656 = vadd.f32 %v6543, %v6655
      %6657 = vmatprep.mubr.bf16.mxu0 %v2695
      %6658 = vmatmul.mubr.bf16.gmra.mxu0 %v2694
      %v6659 = vpop.f32.mrf.mxu0
      %v6660 = vadd.f32 %v6547, %v6659
      %v6661 = vpop.f32.mrf.mxu0
      %v6662 = vadd.f32 %v6549, %v6661
      %v6663 = vpop.f32.mrf.mxu0
      %v6664 = vadd.f32 %v6551, %v6663
      %v6665 = vpop.f32.mrf.mxu0
      %v6666 = vadd.f32 %v6553, %v6665
      %6667 = vmatprep.mubr.bf16.mxu0 %v2703
      %6668 = vmatmul.mubr.bf16.gmra.mxu0 %v2702
      %v6669 = vpop.f32.mrf.mxu0
      %v6670 = vadd.f32 %v6557, %v6669
      %v6671 = vpop.f32.mrf.mxu0
      %v6672 = vadd.f32 %v6559, %v6671
      %v6673 = vpop.f32.mrf.mxu0
      %v6674 = vadd.f32 %v6561, %v6673
      %v6675 = vpop.f32.mrf.mxu0
      %v6676 = vadd.f32 %v6563, %v6675
      %6677 = vmatprep.mubr.bf16.mxu0 %v2711
      %6678 = vmatmul.mubr.bf16.gmra.mxu0 %v2710
      %v6679 = vpop.f32.mrf.mxu0
      %v6680 = vadd.f32 %v6567, %v6679
      %v6681 = vpop.f32.mrf.mxu0
      %v6682 = vadd.f32 %v6569, %v6681
      %v6683 = vpop.f32.mrf.mxu0
      %v6684 = vadd.f32 %v6571, %v6683
      %v6685 = vpop.f32.mrf.mxu0
      %v6686 = vadd.f32 %v6573, %v6685
      %6687 = vmatprep.mubr.bf16.mxu0 %v2719
      %6688 = vmatmul.mubr.bf16.gmra.mxu0 %v2718
      %v6689 = vpop.f32.mrf.mxu0
      %v6690 = vadd.f32 %v6577, %v6689
      %v6691 = vpop.f32.mrf.mxu0
      %v6692 = vadd.f32 %v6579, %v6691
      %v6693 = vpop.f32.mrf.mxu0
      %v6694 = vadd.f32 %v6581, %v6693
      %v6695 = vpop.f32.mrf.mxu0
      %v6696 = vadd.f32 %v6583, %v6695
      %6697 = vmatprep.mubr.bf16.mxu0 %v2727
      %6698 = vmatmul.mubr.bf16.gmra.mxu0 %v2726
      %v6699 = vpop.f32.mrf.mxu0
      %v6700 = vadd.f32 %v6587, %v6699
      %v6701 = vpop.f32.mrf.mxu0
      %v6702 = vadd.f32 %v6589, %v6701
      %v6703 = vpop.f32.mrf.mxu0
      %v6704 = vadd.f32 %v6591, %v6703
      %v6705 = vpop.f32.mrf.mxu0
      %v6706 = vadd.f32 %v6593, %v6705
      %6707 = vdwg.mxu0
      %6708 = vmatprep.subr.bf16.mxu0 %v4391
      %6709 = vmatpush1.bf16.msra.mxu0 %v4390
      %6710 = vmatprep.subr.bf16.mxu0 %v4383
      %6711 = vmatpush1.bf16.msra.mxu0 %v4382
      %6712 = vmatprep.subr.bf16.mxu0 %v4375
      %6713 = vmatpush1.bf16.msra.mxu0 %v4374
      %6714 = vmatprep.subr.bf16.mxu0 %v4367
      %6715 = vmatpush1.bf16.msra.mxu0 %v4366
      %6716 = vmatprep.subr.bf16.mxu0 %v4359
      %6717 = vmatpush1.bf16.msra.mxu0 %v4358
      %6718 = vmatprep.subr.bf16.mxu0 %v4351
      %6719 = vmatpush1.bf16.msra.mxu0 %v4350
      %6720 = vmatprep.subr.bf16.mxu0 %v4343
      %6721 = vmatpush1.bf16.msra.mxu0 %v4342
      %6722 = vmatprep.subr.bf16.mxu0 %v4335
      %6723 = vmatpush1.bf16.msra.mxu0 %v4334
      %6724 = vmatprep.subr.bf16.mxu0 %v4455
      %6725 = vmatpush2.bf16.msra.mxu0 %v4454
      %6726 = vmatprep.subr.bf16.mxu0 %v4447
      %6727 = vmatpush2.bf16.msra.mxu0 %v4446
      %6728 = vmatprep.subr.bf16.mxu0 %v4439
      %6729 = vmatpush2.bf16.msra.mxu0 %v4438
      %6730 = vmatprep.subr.bf16.mxu0 %v4431
      %6731 = vmatpush2.bf16.msra.mxu0 %v4430
      %6732 = vmatprep.subr.bf16.mxu0 %v4423
      %6733 = vmatpush2.bf16.msra.mxu0 %v4422
      %6734 = vmatprep.subr.bf16.mxu0 %v4415
      %6735 = vmatpush2.bf16.msra.mxu0 %v4414
      %6736 = vmatprep.subr.bf16.mxu0 %v4407
      %6737 = vmatpush2.bf16.msra.mxu0 %v4406
      %6738 = vmatprep.subr.bf16.mxu0 %v4399
      %6739 = vmatpush2.bf16.msra.mxu0 %v4398
      %6740 = vmatprep.mubr.bf16.mxu0 %v2665
      %6741 = vmatmul.mubr.bf16.gmra.mxu0 %v2664
      %v6742 = vpop.f32.mrf.mxu0
      %v6743 = vadd.f32 %v2459, %v6742
      %v6744 = vpop.f32.mrf.mxu0
      %v6745 = vadd.f32 %v2463, %v6744
      %v6746 = vpop.f32.mrf.mxu0
      %v6747 = vadd.f32 %v2459, %v6746
      %v6748 = vpop.f32.mrf.mxu0
      %v6749 = vadd.f32 %v2463, %v6748
      %6750 = vmatprep.mubr.bf16.mxu0 %v2673
      %6751 = vmatmul.mubr.bf16.gmra.mxu0 %v2672
      %v6752 = vpop.f32.mrf.mxu0
      %v6753 = vadd.f32 %v2459, %v6752
      %v6754 = vpop.f32.mrf.mxu0
      %v6755 = vadd.f32 %v2463, %v6754
      %v6756 = vpop.f32.mrf.mxu0
      %v6757 = vadd.f32 %v2459, %v6756
      %v6758 = vpop.f32.mrf.mxu0
      %v6759 = vadd.f32 %v2463, %v6758
      %6760 = vmatprep.mubr.bf16.mxu0 %v2681
      %6761 = vmatmul.mubr.bf16.gmra.mxu0 %v2680
      %v6762 = vpop.f32.mrf.mxu0
      %v6763 = vadd.f32 %v2459, %v6762
      %v6764 = vpop.f32.mrf.mxu0
      %v6765 = vadd.f32 %v2463, %v6764
      %v6766 = vpop.f32.mrf.mxu0
      %v6767 = vadd.f32 %v2459, %v6766
      %v6768 = vpop.f32.mrf.mxu0
      %v6769 = vadd.f32 %v2463, %v6768
      %6770 = vmatprep.mubr.bf16.mxu0 %v2689
      %6771 = vmatmul.mubr.bf16.gmra.mxu0 %v2688
      %v6772 = vpop.f32.mrf.mxu0
      %v6773 = vadd.f32 %v2459, %v6772
      %v6774 = vpop.f32.mrf.mxu0
      %v6775 = vadd.f32 %v2463, %v6774
      %v6776 = vpop.f32.mrf.mxu0
      %v6777 = vadd.f32 %v2459, %v6776
      %v6778 = vpop.f32.mrf.mxu0
      %v6779 = vadd.f32 %v2463, %v6778
      %6780 = vmatprep.mubr.bf16.mxu0 %v2697
      %6781 = vmatmul.mubr.bf16.gmra.mxu0 %v2696
      %v6782 = vpop.f32.mrf.mxu0
      %v6783 = vadd.f32 %v2459, %v6782
      %v6784 = vpop.f32.mrf.mxu0
      %v6785 = vadd.f32 %v2463, %v6784
      %v6786 = vpop.f32.mrf.mxu0
      %v6787 = vadd.f32 %v2459, %v6786
      %v6788 = vpop.f32.mrf.mxu0
      %v6789 = vadd.f32 %v2463, %v6788
      %6790 = vmatprep.mubr.bf16.mxu0 %v2705
      %6791 = vmatmul.mubr.bf16.gmra.mxu0 %v2704
      %v6792 = vpop.f32.mrf.mxu0
      %v6793 = vadd.f32 %v2459, %v6792
      %v6794 = vpop.f32.mrf.mxu0
      %v6795 = vadd.f32 %v2463, %v6794
      %v6796 = vpop.f32.mrf.mxu0
      %v6797 = vadd.f32 %v2459, %v6796
      %v6798 = vpop.f32.mrf.mxu0
      %v6799 = vadd.f32 %v2463, %v6798
      %6800 = vmatprep.mubr.bf16.mxu0 %v2713
      %6801 = vmatmul.mubr.bf16.gmra.mxu0 %v2712
      %v6802 = vpop.f32.mrf.mxu0
      %v6803 = vadd.f32 %v2459, %v6802
      %v6804 = vpop.f32.mrf.mxu0
      %v6805 = vadd.f32 %v2463, %v6804
      %v6806 = vpop.f32.mrf.mxu0
      %v6807 = vadd.f32 %v2459, %v6806
      %v6808 = vpop.f32.mrf.mxu0
      %v6809 = vadd.f32 %v2463, %v6808
      %6810 = vmatprep.mubr.bf16.mxu0 %v2721
      %6811 = vmatmul.mubr.bf16.gmra.mxu0 %v2720
      %v6812 = vpop.f32.mrf.mxu0
      %v6813 = vadd.f32 %v2459, %v6812
      %v6814 = vpop.f32.mrf.mxu0
      %v6815 = vadd.f32 %v2463, %v6814
      %v6816 = vpop.f32.mrf.mxu0
      %v6817 = vadd.f32 %v2459, %v6816
      %v6818 = vpop.f32.mrf.mxu0
      %v6819 = vadd.f32 %v2463, %v6818
      %6820 = vdwg.mxu0
      %6821 = vmatprep.subr.bf16.mxu0 %v4519
      %6822 = vmatpush1.bf16.msra.mxu0 %v4518
      %6823 = vmatprep.subr.bf16.mxu0 %v4511
      %6824 = vmatpush1.bf16.msra.mxu0 %v4510
      %6825 = vmatprep.subr.bf16.mxu0 %v4503
      %6826 = vmatpush1.bf16.msra.mxu0 %v4502
      %6827 = vmatprep.subr.bf16.mxu0 %v4495
      %6828 = vmatpush1.bf16.msra.mxu0 %v4494
      %6829 = vmatprep.subr.bf16.mxu0 %v4487
      %6830 = vmatpush1.bf16.msra.mxu0 %v4486
      %6831 = vmatprep.subr.bf16.mxu0 %v4479
      %6832 = vmatpush1.bf16.msra.mxu0 %v4478
      %6833 = vmatprep.subr.bf16.mxu0 %v4471
      %6834 = vmatpush1.bf16.msra.mxu0 %v4470
      %6835 = vmatprep.subr.bf16.mxu0 %v4463
      %6836 = vmatpush1.bf16.msra.mxu0 %v4462
      %6837 = vmatprep.subr.bf16.mxu0 %v4583
      %6838 = vmatpush2.bf16.msra.mxu0 %v4582
      %6839 = vmatprep.subr.bf16.mxu0 %v4575
      %6840 = vmatpush2.bf16.msra.mxu0 %v4574
      %6841 = vmatprep.subr.bf16.mxu0 %v4567
      %6842 = vmatpush2.bf16.msra.mxu0 %v4566
      %6843 = vmatprep.subr.bf16.mxu0 %v4559
      %6844 = vmatpush2.bf16.msra.mxu0 %v4558
      %6845 = vmatprep.subr.bf16.mxu0 %v4551
      %6846 = vmatpush2.bf16.msra.mxu0 %v4550
      %6847 = vmatprep.subr.bf16.mxu0 %v4543
      %6848 = vmatpush2.bf16.msra.mxu0 %v4542
      %6849 = vmatprep.subr.bf16.mxu0 %v4535
      %6850 = vmatpush2.bf16.msra.mxu0 %v4534
      %6851 = vmatprep.subr.bf16.mxu0 %v4527
      %6852 = vmatpush2.bf16.msra.mxu0 %v4526
      %6853 = vmatprep.mubr.bf16.mxu0 %v2667
      %6854 = vmatmul.mubr.bf16.gmra.mxu0 %v2666
      %v6855 = vpop.f32.mrf.mxu0
      %v6856 = vadd.f32 %v6743, %v6855
      %v6857 = vpop.f32.mrf.mxu0
      %v6858 = vadd.f32 %v6745, %v6857
      %v6859 = vpop.f32.mrf.mxu0
      %v6860 = vadd.f32 %v6747, %v6859
      %v6861 = vpop.f32.mrf.mxu0
      %v6862 = vadd.f32 %v6749, %v6861
      %6863 = vmatprep.mubr.bf16.mxu0 %v2675
      %6864 = vmatmul.mubr.bf16.gmra.mxu0 %v2674
      %v6865 = vpop.f32.mrf.mxu0
      %v6866 = vadd.f32 %v6753, %v6865
      %v6867 = vpop.f32.mrf.mxu0
      %v6868 = vadd.f32 %v6755, %v6867
      %v6869 = vpop.f32.mrf.mxu0
      %v6870 = vadd.f32 %v6757, %v6869
      %v6871 = vpop.f32.mrf.mxu0
      %v6872 = vadd.f32 %v6759, %v6871
      %6873 = vmatprep.mubr.bf16.mxu0 %v2683
      %6874 = vmatmul.mubr.bf16.gmra.mxu0 %v2682
      %v6875 = vpop.f32.mrf.mxu0
      %v6876 = vadd.f32 %v6763, %v6875
      %v6877 = vpop.f32.mrf.mxu0
      %v6878 = vadd.f32 %v6765, %v6877
      %v6879 = vpop.f32.mrf.mxu0
      %v6880 = vadd.f32 %v6767, %v6879
      %v6881 = vpop.f32.mrf.mxu0
      %v6882 = vadd.f32 %v6769, %v6881
      %6883 = vmatprep.mubr.bf16.mxu0 %v2691
      %6884 = vmatmul.mubr.bf16.gmra.mxu0 %v2690
      %v6885 = vpop.f32.mrf.mxu0
      %v6886 = vadd.f32 %v6773, %v6885
      %v6887 = vpop.f32.mrf.mxu0
      %v6888 = vadd.f32 %v6775, %v6887
      %v6889 = vpop.f32.mrf.mxu0
      %v6890 = vadd.f32 %v6777, %v6889
      %v6891 = vpop.f32.mrf.mxu0
      %v6892 = vadd.f32 %v6779, %v6891
      %6893 = vmatprep.mubr.bf16.mxu0 %v2699
      %6894 = vmatmul.mubr.bf16.gmra.mxu0 %v2698
      %v6895 = vpop.f32.mrf.mxu0
      %v6896 = vadd.f32 %v6783, %v6895
      %v6897 = vpop.f32.mrf.mxu0
      %v6898 = vadd.f32 %v6785, %v6897
      %v6899 = vpop.f32.mrf.mxu0
      %v6900 = vadd.f32 %v6787, %v6899
      %v6901 = vpop.f32.mrf.mxu0
      %v6902 = vadd.f32 %v6789, %v6901
      %6903 = vmatprep.mubr.bf16.mxu0 %v2707
      %6904 = vmatmul.mubr.bf16.gmra.mxu0 %v2706
      %v6905 = vpop.f32.mrf.mxu0
      %v6906 = vadd.f32 %v6793, %v6905
      %v6907 = vpop.f32.mrf.mxu0
      %v6908 = vadd.f32 %v6795, %v6907
      %v6909 = vpop.f32.mrf.mxu0
      %v6910 = vadd.f32 %v6797, %v6909
      %v6911 = vpop.f32.mrf.mxu0
      %v6912 = vadd.f32 %v6799, %v6911
      %6913 = vmatprep.mubr.bf16.mxu0 %v2715
      %6914 = vmatmul.mubr.bf16.gmra.mxu0 %v2714
      %v6915 = vpop.f32.mrf.mxu0
      %v6916 = vadd.f32 %v6803, %v6915
      %v6917 = vpop.f32.mrf.mxu0
      %v6918 = vadd.f32 %v6805, %v6917
      %v6919 = vpop.f32.mrf.mxu0
      %v6920 = vadd.f32 %v6807, %v6919
      %v6921 = vpop.f32.mrf.mxu0
      %v6922 = vadd.f32 %v6809, %v6921
      %6923 = vmatprep.mubr.bf16.mxu0 %v2723
      %6924 = vmatmul.mubr.bf16.gmra.mxu0 %v2722
      %v6925 = vpop.f32.mrf.mxu0
      %v6926 = vadd.f32 %v6813, %v6925
      %v6927 = vpop.f32.mrf.mxu0
      %v6928 = vadd.f32 %v6815, %v6927
      %v6929 = vpop.f32.mrf.mxu0
      %v6930 = vadd.f32 %v6817, %v6929
      %v6931 = vpop.f32.mrf.mxu0
      %v6932 = vadd.f32 %v6819, %v6931
      %6933 = vdwg.mxu0
      %6934 = vmatprep.subr.bf16.mxu0 %v4647
      %6935 = vmatpush1.bf16.msra.mxu0 %v4646
      %6936 = vmatprep.subr.bf16.mxu0 %v4639
      %6937 = vmatpush1.bf16.msra.mxu0 %v4638
      %6938 = vmatprep.subr.bf16.mxu0 %v4631
      %6939 = vmatpush1.bf16.msra.mxu0 %v4630
      %6940 = vmatprep.subr.bf16.mxu0 %v4623
      %6941 = vmatpush1.bf16.msra.mxu0 %v4622
      %6942 = vmatprep.subr.bf16.mxu0 %v4615
      %6943 = vmatpush1.bf16.msra.mxu0 %v4614
      %6944 = vmatprep.subr.bf16.mxu0 %v4607
      %6945 = vmatpush1.bf16.msra.mxu0 %v4606
      %6946 = vmatprep.subr.bf16.mxu0 %v4599
      %6947 = vmatpush1.bf16.msra.mxu0 %v4598
      %6948 = vmatprep.subr.bf16.mxu0 %v4591
      %6949 = vmatpush1.bf16.msra.mxu0 %v4590
      %6950 = vmatprep.subr.bf16.mxu0 %v4711
      %6951 = vmatpush2.bf16.msra.mxu0 %v4710
      %6952 = vmatprep.subr.bf16.mxu0 %v4703
      %6953 = vmatpush2.bf16.msra.mxu0 %v4702
      %6954 = vmatprep.subr.bf16.mxu0 %v4695
      %6955 = vmatpush2.bf16.msra.mxu0 %v4694
      %6956 = vmatprep.subr.bf16.mxu0 %v4687
      %6957 = vmatpush2.bf16.msra.mxu0 %v4686
      %6958 = vmatprep.subr.bf16.mxu0 %v4679
      %6959 = vmatpush2.bf16.msra.mxu0 %v4678
      %6960 = vmatprep.subr.bf16.mxu0 %v4671
      %6961 = vmatpush2.bf16.msra.mxu0 %v4670
      %6962 = vmatprep.subr.bf16.mxu0 %v4663
      %6963 = vmatpush2.bf16.msra.mxu0 %v4662
      %6964 = vmatprep.subr.bf16.mxu0 %v4655
      %6965 = vmatpush2.bf16.msra.mxu0 %v4654
      %6966 = vmatprep.mubr.bf16.mxu0 %v2669
      %6967 = vmatmul.mubr.bf16.gmra.mxu0 %v2668
      %v6968 = vpop.f32.mrf.mxu0
      %v6969 = vadd.f32 %v6856, %v6968
      %v6970 = vpop.f32.mrf.mxu0
      %v6971 = vadd.f32 %v6858, %v6970
      %v6972 = vpop.f32.mrf.mxu0
      %v6973 = vadd.f32 %v6860, %v6972
      %v6974 = vpop.f32.mrf.mxu0
      %v6975 = vadd.f32 %v6862, %v6974
      %6976 = vmatprep.mubr.bf16.mxu0 %v2677
      %6977 = vmatmul.mubr.bf16.gmra.mxu0 %v2676
      %v6978 = vpop.f32.mrf.mxu0
      %v6979 = vadd.f32 %v6866, %v6978
      %v6980 = vpop.f32.mrf.mxu0
      %v6981 = vadd.f32 %v6868, %v6980
      %v6982 = vpop.f32.mrf.mxu0
      %v6983 = vadd.f32 %v6870, %v6982
      %v6984 = vpop.f32.mrf.mxu0
      %v6985 = vadd.f32 %v6872, %v6984
      %6986 = vmatprep.mubr.bf16.mxu0 %v2685
      %6987 = vmatmul.mubr.bf16.gmra.mxu0 %v2684
      %v6988 = vpop.f32.mrf.mxu0
      %v6989 = vadd.f32 %v6876, %v6988
      %v6990 = vpop.f32.mrf.mxu0
      %v6991 = vadd.f32 %v6878, %v6990
      %v6992 = vpop.f32.mrf.mxu0
      %v6993 = vadd.f32 %v6880, %v6992
      %v6994 = vpop.f32.mrf.mxu0
      %v6995 = vadd.f32 %v6882, %v6994
      %6996 = vmatprep.mubr.bf16.mxu0 %v2693
      %6997 = vmatmul.mubr.bf16.gmra.mxu0 %v2692
      %v6998 = vpop.f32.mrf.mxu0
      %v6999 = vadd.f32 %v6886, %v6998
      %v7000 = vpop.f32.mrf.mxu0
      %v7001 = vadd.f32 %v6888, %v7000
      %v7002 = vpop.f32.mrf.mxu0
      %v7003 = vadd.f32 %v6890, %v7002
      %v7004 = vpop.f32.mrf.mxu0
      %v7005 = vadd.f32 %v6892, %v7004
      %7006 = vmatprep.mubr.bf16.mxu0 %v2701
      %7007 = vmatmul.mubr.bf16.gmra.mxu0 %v2700
      %v7008 = vpop.f32.mrf.mxu0
      %v7009 = vadd.f32 %v6896, %v7008
      %v7010 = vpop.f32.mrf.mxu0
      %v7011 = vadd.f32 %v6898, %v7010
      %v7012 = vpop.f32.mrf.mxu0
      %v7013 = vadd.f32 %v6900, %v7012
      %v7014 = vpop.f32.mrf.mxu0
      %v7015 = vadd.f32 %v6902, %v7014
      %7016 = vmatprep.mubr.bf16.mxu0 %v2709
      %7017 = vmatmul.mubr.bf16.gmra.mxu0 %v2708
      %v7018 = vpop.f32.mrf.mxu0
      %v7019 = vadd.f32 %v6906, %v7018
      %v7020 = vpop.f32.mrf.mxu0
      %v7021 = vadd.f32 %v6908, %v7020
      %v7022 = vpop.f32.mrf.mxu0
      %v7023 = vadd.f32 %v6910, %v7022
      %v7024 = vpop.f32.mrf.mxu0
      %v7025 = vadd.f32 %v6912, %v7024
      %7026 = vmatprep.mubr.bf16.mxu0 %v2717
      %7027 = vmatmul.mubr.bf16.gmra.mxu0 %v2716
      %v7028 = vpop.f32.mrf.mxu0
      %v7029 = vadd.f32 %v6916, %v7028
      %v7030 = vpop.f32.mrf.mxu0
      %v7031 = vadd.f32 %v6918, %v7030
      %v7032 = vpop.f32.mrf.mxu0
      %v7033 = vadd.f32 %v6920, %v7032
      %v7034 = vpop.f32.mrf.mxu0
      %v7035 = vadd.f32 %v6922, %v7034
      %7036 = vmatprep.mubr.bf16.mxu0 %v2725
      %7037 = vmatmul.mubr.bf16.gmra.mxu0 %v2724
      %v7038 = vpop.f32.mrf.mxu0
      %v7039 = vadd.f32 %v6926, %v7038
      %v7040 = vpop.f32.mrf.mxu0
      %v7041 = vadd.f32 %v6928, %v7040
      %v7042 = vpop.f32.mrf.mxu0
      %v7043 = vadd.f32 %v6930, %v7042
      %v7044 = vpop.f32.mrf.mxu0
      %v7045 = vadd.f32 %v6932, %v7044
      %7046 = vdwg.mxu0
      %7047 = vmatprep.subr.bf16.mxu0 %v4775
      %7048 = vmatpush1.bf16.msra.mxu0 %v4774
      %7049 = vmatprep.subr.bf16.mxu0 %v4767
      %7050 = vmatpush1.bf16.msra.mxu0 %v4766
      %7051 = vmatprep.subr.bf16.mxu0 %v4759
      %7052 = vmatpush1.bf16.msra.mxu0 %v4758
      %7053 = vmatprep.subr.bf16.mxu0 %v4751
      %7054 = vmatpush1.bf16.msra.mxu0 %v4750
      %7055 = vmatprep.subr.bf16.mxu0 %v4743
      %7056 = vmatpush1.bf16.msra.mxu0 %v4742
      %7057 = vmatprep.subr.bf16.mxu0 %v4735
      %7058 = vmatpush1.bf16.msra.mxu0 %v4734
      %7059 = vmatprep.subr.bf16.mxu0 %v4727
      %7060 = vmatpush1.bf16.msra.mxu0 %v4726
      %7061 = vmatprep.subr.bf16.mxu0 %v4719
      %7062 = vmatpush1.bf16.msra.mxu0 %v4718
      %7063 = vmatprep.subr.bf16.mxu0 %v4839
      %7064 = vmatpush2.bf16.msra.mxu0 %v4838
      %7065 = vmatprep.subr.bf16.mxu0 %v4831
      %7066 = vmatpush2.bf16.msra.mxu0 %v4830
      %7067 = vmatprep.subr.bf16.mxu0 %v4823
      %7068 = vmatpush2.bf16.msra.mxu0 %v4822
      %7069 = vmatprep.subr.bf16.mxu0 %v4815
      %7070 = vmatpush2.bf16.msra.mxu0 %v4814
      %7071 = vmatprep.subr.bf16.mxu0 %v4807
      %7072 = vmatpush2.bf16.msra.mxu0 %v4806
      %7073 = vmatprep.subr.bf16.mxu0 %v4799
      %7074 = vmatpush2.bf16.msra.mxu0 %v4798
      %7075 = vmatprep.subr.bf16.mxu0 %v4791
      %7076 = vmatpush2.bf16.msra.mxu0 %v4790
      %7077 = vmatprep.subr.bf16.mxu0 %v4783
      %7078 = vmatpush2.bf16.msra.mxu0 %v4782
      %7079 = vmatprep.mubr.bf16.mxu0 %v2671
      %7080 = vmatmul.mubr.bf16.gmra.mxu0 %v2670
      %v7081 = vpop.f32.mrf.mxu0
      %v7082 = vadd.f32 %v6969, %v7081
      %v7083 = vpop.f32.mrf.mxu0
      %v7084 = vadd.f32 %v6971, %v7083
      %v7085 = vpop.f32.mrf.mxu0
      %v7086 = vadd.f32 %v6973, %v7085
      %v7087 = vpop.f32.mrf.mxu0
      %v7088 = vadd.f32 %v6975, %v7087
      %7089 = vmatprep.mubr.bf16.mxu0 %v2679
      %7090 = vmatmul.mubr.bf16.gmra.mxu0 %v2678
      %v7091 = vpop.f32.mrf.mxu0
      %v7092 = vadd.f32 %v6979, %v7091
      %v7093 = vpop.f32.mrf.mxu0
      %v7094 = vadd.f32 %v6981, %v7093
      %v7095 = vpop.f32.mrf.mxu0
      %v7096 = vadd.f32 %v6983, %v7095
      %v7097 = vpop.f32.mrf.mxu0
      %v7098 = vadd.f32 %v6985, %v7097
      %7099 = vmatprep.mubr.bf16.mxu0 %v2687
      %7100 = vmatmul.mubr.bf16.gmra.mxu0 %v2686
      %v7101 = vpop.f32.mrf.mxu0
      %v7102 = vadd.f32 %v6989, %v7101
      %v7103 = vpop.f32.mrf.mxu0
      %v7104 = vadd.f32 %v6991, %v7103
      %v7105 = vpop.f32.mrf.mxu0
      %v7106 = vadd.f32 %v6993, %v7105
      %v7107 = vpop.f32.mrf.mxu0
      %v7108 = vadd.f32 %v6995, %v7107
      %7109 = vmatprep.mubr.bf16.mxu0 %v2695
      %7110 = vmatmul.mubr.bf16.gmra.mxu0 %v2694
      %v7111 = vpop.f32.mrf.mxu0
      %v7112 = vadd.f32 %v6999, %v7111
      %v7113 = vpop.f32.mrf.mxu0
      %v7114 = vadd.f32 %v7001, %v7113
      %v7115 = vpop.f32.mrf.mxu0
      %v7116 = vadd.f32 %v7003, %v7115
      %v7117 = vpop.f32.mrf.mxu0
      %v7118 = vadd.f32 %v7005, %v7117
      %7119 = vmatprep.mubr.bf16.mxu0 %v2703
      %7120 = vmatmul.mubr.bf16.gmra.mxu0 %v2702
      %v7121 = vpop.f32.mrf.mxu0
      %v7122 = vadd.f32 %v7009, %v7121
      %v7123 = vpop.f32.mrf.mxu0
      %v7124 = vadd.f32 %v7011, %v7123
      %v7125 = vpop.f32.mrf.mxu0
      %v7126 = vadd.f32 %v7013, %v7125
      %v7127 = vpop.f32.mrf.mxu0
      %v7128 = vadd.f32 %v7015, %v7127
      %7129 = vmatprep.mubr.bf16.mxu0 %v2711
      %7130 = vmatmul.mubr.bf16.gmra.mxu0 %v2710
      %v7131 = vpop.f32.mrf.mxu0
      %v7132 = vadd.f32 %v7019, %v7131
      %v7133 = vpop.f32.mrf.mxu0
      %v7134 = vadd.f32 %v7021, %v7133
      %v7135 = vpop.f32.mrf.mxu0
      %v7136 = vadd.f32 %v7023, %v7135
      %v7137 = vpop.f32.mrf.mxu0
      %v7138 = vadd.f32 %v7025, %v7137
      %7139 = vmatprep.mubr.bf16.mxu0 %v2719
      %7140 = vmatmul.mubr.bf16.gmra.mxu0 %v2718
      %v7141 = vpop.f32.mrf.mxu0
      %v7142 = vadd.f32 %v7029, %v7141
      %v7143 = vpop.f32.mrf.mxu0
      %v7144 = vadd.f32 %v7031, %v7143
      %v7145 = vpop.f32.mrf.mxu0
      %v7146 = vadd.f32 %v7033, %v7145
      %v7147 = vpop.f32.mrf.mxu0
      %v7148 = vadd.f32 %v7035, %v7147
      %7149 = vmatprep.mubr.bf16.mxu0 %v2727
      %7150 = vmatmul.mubr.bf16.gmra.mxu0 %v2726
      %v7151 = vpop.f32.mrf.mxu0
      %v7152 = vadd.f32 %v7039, %v7151
      %v7153 = vpop.f32.mrf.mxu0
      %v7154 = vadd.f32 %v7041, %v7153
      %v7155 = vpop.f32.mrf.mxu0
      %v7156 = vadd.f32 %v7043, %v7155
      %v7157 = vpop.f32.mrf.mxu0
      %v7158 = vadd.f32 %v7045, %v7157
      %7159 = vdwg.mxu0
      %v7160 = vmax.f32 %v5726, 0.0
      %v7161 = vmax.f32 %v5728, 0.0
      %v7162 = vmax.f32 %v6178, 0.0
      %v7163 = vmax.f32 %v6180, 0.0
      %v7164 = vmax.f32 %v6630, 0.0
      %v7165 = vmax.f32 %v6632, 0.0
      %v7166 = vmax.f32 %v7082, 0.0
      %v7167 = vmax.f32 %v7084, 0.0
      %v7168 = vmax.f32 %v5730, 0.0
      %v7169 = vmax.f32 %v5732, 0.0
      %v7170 = vmax.f32 %v6182, 0.0
      %v7171 = vmax.f32 %v6184, 0.0
      %v7172 = vmax.f32 %v6634, 0.0
      %v7173 = vmax.f32 %v6636, 0.0
      %v7174 = vmax.f32 %v7086, 0.0
      %v7175 = vmax.f32 %v7088, 0.0
      %v7176 = vmax.f32 %v5736, 0.0
      %v7177 = vmax.f32 %v5738, 0.0
      %v7178 = vmax.f32 %v6188, 0.0
      %v7179 = vmax.f32 %v6190, 0.0
      %v7180 = vmax.f32 %v6640, 0.0
      %v7181 = vmax.f32 %v6642, 0.0
      %v7182 = vmax.f32 %v7092, 0.0
      %v7183 = vmax.f32 %v7094, 0.0
      %v7184 = vmax.f32 %v5740, 0.0
      %v7185 = vmax.f32 %v5742, 0.0
      %v7186 = vmax.f32 %v6192, 0.0
      %v7187 = vmax.f32 %v6194, 0.0
      %v7188 = vmax.f32 %v6644, 0.0
      %v7189 = vmax.f32 %v6646, 0.0
      %v7190 = vmax.f32 %v7096, 0.0
      %v7191 = vmax.f32 %v7098, 0.0
      %v7192 = vmax.f32 %v5746, 0.0
      %v7193 = vmax.f32 %v5748, 0.0
      %v7194 = vmax.f32 %v6198, 0.0
      %v7195 = vmax.f32 %v6200, 0.0
      %v7196 = vmax.f32 %v6650, 0.0
      %v7197 = vmax.f32 %v6652, 0.0
      %v7198 = vmax.f32 %v7102, 0.0
      %v7199 = vmax.f32 %v7104, 0.0
      %v7200 = vmax.f32 %v5750, 0.0
      %v7201 = vmax.f32 %v5752, 0.0
      %v7202 = vmax.f32 %v6202, 0.0
      %v7203 = vmax.f32 %v6204, 0.0
      %v7204 = vmax.f32 %v6654, 0.0
      %v7205 = vmax.f32 %v6656, 0.0
      %v7206 = vmax.f32 %v7106, 0.0
      %v7207 = vmax.f32 %v7108, 0.0
      %v7208 = vmax.f32 %v5756, 0.0
      %v7209 = vmax.f32 %v5758, 0.0
      %v7210 = vmax.f32 %v6208, 0.0
      %v7211 = vmax.f32 %v6210, 0.0
      %v7212 = vmax.f32 %v6660, 0.0
      %v7213 = vmax.f32 %v6662, 0.0
      %v7214 = vmax.f32 %v7112, 0.0
      %v7215 = vmax.f32 %v7114, 0.0
      %v7216 = vmax.f32 %v5760, 0.0
      %v7217 = vmax.f32 %v5762, 0.0
      %v7218 = vmax.f32 %v6212, 0.0
      %v7219 = vmax.f32 %v6214, 0.0
      %v7220 = vmax.f32 %v6664, 0.0
      %v7221 = vmax.f32 %v6666, 0.0
      %v7222 = vmax.f32 %v7116, 0.0
      %v7223 = vmax.f32 %v7118, 0.0
      %v7224 = vmax.f32 %v5766, 0.0
      %v7225 = vmax.f32 %v5768, 0.0
      %v7226 = vmax.f32 %v6218, 0.0
      %v7227 = vmax.f32 %v6220, 0.0
      %v7228 = vmax.f32 %v6670, 0.0
      %v7229 = vmax.f32 %v6672, 0.0
      %v7230 = vmax.f32 %v7122, 0.0
      %v7231 = vmax.f32 %v7124, 0.0
      %v7232 = vmax.f32 %v5770, 0.0
      %v7233 = vmax.f32 %v5772, 0.0
      %v7234 = vmax.f32 %v6222, 0.0
      %v7235 = vmax.f32 %v6224, 0.0
      %v7236 = vmax.f32 %v6674, 0.0
      %v7237 = vmax.f32 %v6676, 0.0
      %v7238 = vmax.f32 %v7126, 0.0
      %v7239 = vmax.f32 %v7128, 0.0
      %v7240 = vmax.f32 %v5776, 0.0
      %v7241 = vmax.f32 %v5778, 0.0
      %v7242 = vmax.f32 %v6228, 0.0
      %v7243 = vmax.f32 %v6230, 0.0
      %v7244 = vmax.f32 %v6680, 0.0
      %v7245 = vmax.f32 %v6682, 0.0
      %v7246 = vmax.f32 %v7132, 0.0
      %v7247 = vmax.f32 %v7134, 0.0
      %v7248 = vmax.f32 %v5780, 0.0
      %v7249 = vmax.f32 %v5782, 0.0
      %v7250 = vmax.f32 %v6232, 0.0
      %v7251 = vmax.f32 %v6234, 0.0
      %v7252 = vmax.f32 %v6684, 0.0
      %v7253 = vmax.f32 %v6686, 0.0
      %v7254 = vmax.f32 %v7136, 0.0
      %v7255 = vmax.f32 %v7138, 0.0
      %v7256 = vmax.f32 %v5786, 0.0
      %v7257 = vmax.f32 %v5788, 0.0
      %v7258 = vmax.f32 %v6238, 0.0
      %v7259 = vmax.f32 %v6240, 0.0
      %v7260 = vmax.f32 %v6690, 0.0
      %v7261 = vmax.f32 %v6692, 0.0
      %v7262 = vmax.f32 %v7142, 0.0
      %v7263 = vmax.f32 %v7144, 0.0
      %v7264 = vmax.f32 %v5790, 0.0
      %v7265 = vmax.f32 %v5792, 0.0
      %v7266 = vmax.f32 %v6242, 0.0
      %v7267 = vmax.f32 %v6244, 0.0
      %v7268 = vmax.f32 %v6694, 0.0
      %v7269 = vmax.f32 %v6696, 0.0
      %v7270 = vmax.f32 %v7146, 0.0
      %v7271 = vmax.f32 %v7148, 0.0
      %v7272 = vmax.f32 %v5796, 0.0
      %v7273 = vmax.f32 %v5798, 0.0
      %v7274 = vmax.f32 %v6248, 0.0
      %v7275 = vmax.f32 %v6250, 0.0
      %v7276 = vmax.f32 %v6700, 0.0
      %v7277 = vmax.f32 %v6702, 0.0
      %v7278 = vmax.f32 %v7152, 0.0
      %v7279 = vmax.f32 %v7154, 0.0
      %v7280 = vmax.f32 %v5800, 0.0
      %v7281 = vmax.f32 %v5802, 0.0
      %v7282 = vmax.f32 %v6252, 0.0
      %v7283 = vmax.f32 %v6254, 0.0
      %v7284 = vmax.f32 %v6704, 0.0
      %v7285 = vmax.f32 %v6706, 0.0
      %v7286 = vmax.f32 %v7156, 0.0
      %v7287 = vmax.f32 %v7158, 0.0
      %v7288 = vpack.c.bf16 %v7168, %v7160
      %v7289 = vpack.c.bf16 %v7169, %v7161
      %v7290 = vpack.c.bf16 %v7170, %v7162
      %v7291 = vpack.c.bf16 %v7171, %v7163
      %v7292 = vpack.c.bf16 %v7172, %v7164
      %v7293 = vpack.c.bf16 %v7173, %v7165
      %v7294 = vpack.c.bf16 %v7174, %v7166
      %v7295 = vpack.c.bf16 %v7175, %v7167
      %v7296 = vpack.c.bf16 %v7184, %v7176
      %v7297 = vpack.c.bf16 %v7185, %v7177
      %v7298 = vpack.c.bf16 %v7186, %v7178
      %v7299 = vpack.c.bf16 %v7187, %v7179
      %v7300 = vpack.c.bf16 %v7188, %v7180
      %v7301 = vpack.c.bf16 %v7189, %v7181
      %v7302 = vpack.c.bf16 %v7190, %v7182
      %v7303 = vpack.c.bf16 %v7191, %v7183
      %v7304 = vpack.c.bf16 %v7200, %v7192
      %v7305 = vpack.c.bf16 %v7201, %v7193
      %v7306 = vpack.c.bf16 %v7202, %v7194
      %v7307 = vpack.c.bf16 %v7203, %v7195
      %v7308 = vpack.c.bf16 %v7204, %v7196
      %v7309 = vpack.c.bf16 %v7205, %v7197
      %v7310 = vpack.c.bf16 %v7206, %v7198
      %v7311 = vpack.c.bf16 %v7207, %v7199
      %v7312 = vpack.c.bf16 %v7216, %v7208
      %v7313 = vpack.c.bf16 %v7217, %v7209
      %v7314 = vpack.c.bf16 %v7218, %v7210
      %v7315 = vpack.c.bf16 %v7219, %v7211
      %v7316 = vpack.c.bf16 %v7220, %v7212
      %v7317 = vpack.c.bf16 %v7221, %v7213
      %v7318 = vpack.c.bf16 %v7222, %v7214
      %v7319 = vpack.c.bf16 %v7223, %v7215
      %v7320 = vpack.c.bf16 %v7232, %v7224
      %v7321 = vpack.c.bf16 %v7233, %v7225
      %v7322 = vpack.c.bf16 %v7234, %v7226
      %v7323 = vpack.c.bf16 %v7235, %v7227
      %v7324 = vpack.c.bf16 %v7236, %v7228
      %v7325 = vpack.c.bf16 %v7237, %v7229
      %v7326 = vpack.c.bf16 %v7238, %v7230
      %v7327 = vpack.c.bf16 %v7239, %v7231
      %v7328 = vpack.c.bf16 %v7248, %v7240
      %v7329 = vpack.c.bf16 %v7249, %v7241
      %v7330 = vpack.c.bf16 %v7250, %v7242
      %v7331 = vpack.c.bf16 %v7251, %v7243
      %v7332 = vpack.c.bf16 %v7252, %v7244
      %v7333 = vpack.c.bf16 %v7253, %v7245
      %v7334 = vpack.c.bf16 %v7254, %v7246
      %v7335 = vpack.c.bf16 %v7255, %v7247
      %v7336 = vpack.c.bf16 %v7264, %v7256
      %v7337 = vpack.c.bf16 %v7265, %v7257
      %v7338 = vpack.c.bf16 %v7266, %v7258
      %v7339 = vpack.c.bf16 %v7267, %v7259
      %v7340 = vpack.c.bf16 %v7268, %v7260
      %v7341 = vpack.c.bf16 %v7269, %v7261
      %v7342 = vpack.c.bf16 %v7270, %v7262
      %v7343 = vpack.c.bf16 %v7271, %v7263
      %v7344 = vpack.c.bf16 %v7280, %v7272
      %v7345 = vpack.c.bf16 %v7281, %v7273
      %v7346 = vpack.c.bf16 %v7282, %v7274
      %v7347 = vpack.c.bf16 %v7283, %v7275
      %v7348 = vpack.c.bf16 %v7284, %v7276
      %v7349 = vpack.c.bf16 %v7285, %v7277
      %v7350 = vpack.c.bf16 %v7286, %v7278
      %v7351 = vpack.c.bf16 %v7287, %v7279
      %v7416 = vunpack.c.l.b16 %v7288
      %v7417 = vunpack.c.l.b16 %v7289
      %v7418 = vunpack.c.l.b16 %v7290
      %v7419 = vunpack.c.l.b16 %v7291
      %v7420 = vunpack.c.l.b16 %v7292
      %v7421 = vunpack.c.l.b16 %v7293
      %v7422 = vunpack.c.l.b16 %v7294
      %v7423 = vunpack.c.l.b16 %v7295
      %v7424 = vunpack.c.h.b16 %v7288
      %v7425 = vunpack.c.h.b16 %v7289
      %v7426 = vunpack.c.h.b16 %v7290
      %v7427 = vunpack.c.h.b16 %v7291
      %v7428 = vunpack.c.h.b16 %v7292
      %v7429 = vunpack.c.h.b16 %v7293
      %v7430 = vunpack.c.h.b16 %v7294
      %v7431 = vunpack.c.h.b16 %v7295
      %v7432 = vunpack.c.l.b16 %v7296
      %v7433 = vunpack.c.l.b16 %v7297
      %v7434 = vunpack.c.l.b16 %v7298
      %v7435 = vunpack.c.l.b16 %v7299
      %v7436 = vunpack.c.l.b16 %v7300
      %v7437 = vunpack.c.l.b16 %v7301
      %v7438 = vunpack.c.l.b16 %v7302
      %v7439 = vunpack.c.l.b16 %v7303
      %v7440 = vunpack.c.h.b16 %v7296
      %v7441 = vunpack.c.h.b16 %v7297
      %v7442 = vunpack.c.h.b16 %v7298
      %v7443 = vunpack.c.h.b16 %v7299
      %v7444 = vunpack.c.h.b16 %v7300
      %v7445 = vunpack.c.h.b16 %v7301
      %v7446 = vunpack.c.h.b16 %v7302
      %v7447 = vunpack.c.h.b16 %v7303
      %v7448 = vunpack.c.l.b16 %v7304
      %v7449 = vunpack.c.l.b16 %v7305
      %v7450 = vunpack.c.l.b16 %v7306
      %v7451 = vunpack.c.l.b16 %v7307
      %v7452 = vunpack.c.l.b16 %v7308
      %v7453 = vunpack.c.l.b16 %v7309
      %v7454 = vunpack.c.l.b16 %v7310
      %v7455 = vunpack.c.l.b16 %v7311
      %v7456 = vunpack.c.h.b16 %v7304
      %v7457 = vunpack.c.h.b16 %v7305
      %v7458 = vunpack.c.h.b16 %v7306
      %v7459 = vunpack.c.h.b16 %v7307
      %v7460 = vunpack.c.h.b16 %v7308
      %v7461 = vunpack.c.h.b16 %v7309
      %v7462 = vunpack.c.h.b16 %v7310
      %v7463 = vunpack.c.h.b16 %v7311
      %v7464 = vunpack.c.l.b16 %v7312
      %v7465 = vunpack.c.l.b16 %v7313
      %v7466 = vunpack.c.l.b16 %v7314
      %v7467 = vunpack.c.l.b16 %v7315
      %v7468 = vunpack.c.l.b16 %v7316
      %v7469 = vunpack.c.l.b16 %v7317
      %v7470 = vunpack.c.l.b16 %v7318
      %v7471 = vunpack.c.l.b16 %v7319
      %v7472 = vunpack.c.h.b16 %v7312
      %v7473 = vunpack.c.h.b16 %v7313
      %v7474 = vunpack.c.h.b16 %v7314
      %v7475 = vunpack.c.h.b16 %v7315
      %v7476 = vunpack.c.h.b16 %v7316
      %v7477 = vunpack.c.h.b16 %v7317
      %v7478 = vunpack.c.h.b16 %v7318
      %v7479 = vunpack.c.h.b16 %v7319
      %v7480 = vunpack.c.l.b16 %v7320
      %v7481 = vunpack.c.l.b16 %v7321
      %v7482 = vunpack.c.l.b16 %v7322
      %v7483 = vunpack.c.l.b16 %v7323
      %v7484 = vunpack.c.l.b16 %v7324
      %v7485 = vunpack.c.l.b16 %v7325
      %v7486 = vunpack.c.l.b16 %v7326
      %v7487 = vunpack.c.l.b16 %v7327
      %v7488 = vunpack.c.h.b16 %v7320
      %v7489 = vunpack.c.h.b16 %v7321
      %v7490 = vunpack.c.h.b16 %v7322
      %v7491 = vunpack.c.h.b16 %v7323
      %v7492 = vunpack.c.h.b16 %v7324
      %v7493 = vunpack.c.h.b16 %v7325
      %v7494 = vunpack.c.h.b16 %v7326
      %v7495 = vunpack.c.h.b16 %v7327
      %v7496 = vunpack.c.l.b16 %v7328
      %v7497 = vunpack.c.l.b16 %v7329
      %v7498 = vunpack.c.l.b16 %v7330
      %v7499 = vunpack.c.l.b16 %v7331
      %v7500 = vunpack.c.l.b16 %v7332
      %v7501 = vunpack.c.l.b16 %v7333
      %v7502 = vunpack.c.l.b16 %v7334
      %v7503 = vunpack.c.l.b16 %v7335
      %v7504 = vunpack.c.h.b16 %v7328
      %v7505 = vunpack.c.h.b16 %v7329
      %v7506 = vunpack.c.h.b16 %v7330
      %v7507 = vunpack.c.h.b16 %v7331
      %v7508 = vunpack.c.h.b16 %v7332
      %v7509 = vunpack.c.h.b16 %v7333
      %v7510 = vunpack.c.h.b16 %v7334
      %v7511 = vunpack.c.h.b16 %v7335
      %v7512 = vunpack.c.l.b16 %v7336
      %v7513 = vunpack.c.l.b16 %v7337
      %v7514 = vunpack.c.l.b16 %v7338
      %v7515 = vunpack.c.l.b16 %v7339
      %v7516 = vunpack.c.l.b16 %v7340
      %v7517 = vunpack.c.l.b16 %v7341
      %v7518 = vunpack.c.l.b16 %v7342
      %v7519 = vunpack.c.l.b16 %v7343
      %v7520 = vunpack.c.h.b16 %v7336
      %v7521 = vunpack.c.h.b16 %v7337
      %v7522 = vunpack.c.h.b16 %v7338
      %v7523 = vunpack.c.h.b16 %v7339
      %v7524 = vunpack.c.h.b16 %v7340
      %v7525 = vunpack.c.h.b16 %v7341
      %v7526 = vunpack.c.h.b16 %v7342
      %v7527 = vunpack.c.h.b16 %v7343
      %v7528 = vunpack.c.l.b16 %v7344
      %v7529 = vunpack.c.l.b16 %v7345
      %v7530 = vunpack.c.l.b16 %v7346
      %v7531 = vunpack.c.l.b16 %v7347
      %v7532 = vunpack.c.l.b16 %v7348
      %v7533 = vunpack.c.l.b16 %v7349
      %v7534 = vunpack.c.l.b16 %v7350
      %v7535 = vunpack.c.l.b16 %v7351
      %v7536 = vunpack.c.h.b16 %v7344
      %v7537 = vunpack.c.h.b16 %v7345
      %v7538 = vunpack.c.h.b16 %v7346
      %v7539 = vunpack.c.h.b16 %v7347
      %v7540 = vunpack.c.h.b16 %v7348
      %v7541 = vunpack.c.h.b16 %v7349
      %v7542 = vunpack.c.h.b16 %v7350
      %v7543 = vunpack.c.h.b16 %v7351
      %v7544 = vpack.c.b16 %v7417, %v7416
      %v7545 = vpack.c.b16 %v7419, %v7418
      %v7546 = vpack.c.b16 %v7421, %v7420
      %v7547 = vpack.c.b16 %v7423, %v7422
      %v7548 = vpack.c.b16 %v7425, %v7424
      %v7549 = vpack.c.b16 %v7427, %v7426
      %v7550 = vpack.c.b16 %v7429, %v7428
      %v7551 = vpack.c.b16 %v7431, %v7430
      %v7552 = vpack.c.b16 %v7433, %v7432
      %v7553 = vpack.c.b16 %v7435, %v7434
      %v7554 = vpack.c.b16 %v7437, %v7436
      %v7555 = vpack.c.b16 %v7439, %v7438
      %v7556 = vpack.c.b16 %v7441, %v7440
      %v7557 = vpack.c.b16 %v7443, %v7442
      %v7558 = vpack.c.b16 %v7445, %v7444
      %v7559 = vpack.c.b16 %v7447, %v7446
      %v7560 = vpack.c.b16 %v7449, %v7448
      %v7561 = vpack.c.b16 %v7451, %v7450
      %v7562 = vpack.c.b16 %v7453, %v7452
      %v7563 = vpack.c.b16 %v7455, %v7454
      %v7564 = vpack.c.b16 %v7457, %v7456
      %v7565 = vpack.c.b16 %v7459, %v7458
      %v7566 = vpack.c.b16 %v7461, %v7460
      %v7567 = vpack.c.b16 %v7463, %v7462
      %v7568 = vpack.c.b16 %v7465, %v7464
      %v7569 = vpack.c.b16 %v7467, %v7466
      %v7570 = vpack.c.b16 %v7469, %v7468
      %v7571 = vpack.c.b16 %v7471, %v7470
      %v7572 = vpack.c.b16 %v7473, %v7472
      %v7573 = vpack.c.b16 %v7475, %v7474
      %v7574 = vpack.c.b16 %v7477, %v7476
      %v7575 = vpack.c.b16 %v7479, %v7478
      %v7576 = vpack.c.b16 %v7481, %v7480
      %v7577 = vpack.c.b16 %v7483, %v7482
      %v7578 = vpack.c.b16 %v7485, %v7484
      %v7579 = vpack.c.b16 %v7487, %v7486
      %v7580 = vpack.c.b16 %v7489, %v7488
      %v7581 = vpack.c.b16 %v7491, %v7490
      %v7582 = vpack.c.b16 %v7493, %v7492
      %v7583 = vpack.c.b16 %v7495, %v7494
      %v7584 = vpack.c.b16 %v7497, %v7496
      %v7585 = vpack.c.b16 %v7499, %v7498
      %v7586 = vpack.c.b16 %v7501, %v7500
      %v7587 = vpack.c.b16 %v7503, %v7502
      %v7588 = vpack.c.b16 %v7505, %v7504
      %v7589 = vpack.c.b16 %v7507, %v7506
      %v7590 = vpack.c.b16 %v7509, %v7508
      %v7591 = vpack.c.b16 %v7511, %v7510
      %v7592 = vpack.c.b16 %v7513, %v7512
      %v7593 = vpack.c.b16 %v7515, %v7514
      %v7594 = vpack.c.b16 %v7517, %v7516
      %v7595 = vpack.c.b16 %v7519, %v7518
      %v7596 = vpack.c.b16 %v7521, %v7520
      %v7597 = vpack.c.b16 %v7523, %v7522
      %v7598 = vpack.c.b16 %v7525, %v7524
      %v7599 = vpack.c.b16 %v7527, %v7526
      %v7600 = vpack.c.b16 %v7529, %v7528
      %v7601 = vpack.c.b16 %v7531, %v7530
      %v7602 = vpack.c.b16 %v7533, %v7532
      %v7603 = vpack.c.b16 %v7535, %v7534
      %v7604 = vpack.c.b16 %v7537, %v7536
      %v7605 = vpack.c.b16 %v7539, %v7538
      %v7606 = vpack.c.b16 %v7541, %v7540
      %v7607 = vpack.c.b16 %v7543, %v7542
      %7672 = vst [vmem:[#allocation2] sm:$0xff] %v7544
      %7673 = vst [vmem:[#allocation2 + $0x8] sm:$0xff] %v7545
      %7674 = vst [vmem:[#allocation2 + $0x10] sm:$0xff] %v7546
      %7675 = vst [vmem:[#allocation2 + $0x18] sm:$0xff] %v7547
      %7676 = vst [vmem:[#allocation2 + $0x20] sm:$0xff] %v7548
      %7677 = vst [vmem:[#allocation2 + $0x28] sm:$0xff] %v7549
      %7678 = vst [vmem:[#allocation2 + $0x30] sm:$0xff] %v7550
      %7679 = vst [vmem:[#allocation2 + $0x38] sm:$0xff] %v7551
      %7680 = vst [vmem:[#allocation2 + $0x40] sm:$0xff] %v7552
      %7681 = vst [vmem:[#allocation2 + $0x48] sm:$0xff] %v7553
      %7682 = vst [vmem:[#allocation2 + $0x50] sm:$0xff] %v7554
      %7683 = vst [vmem:[#allocation2 + $0x58] sm:$0xff] %v7555
      %7684 = vst [vmem:[#allocation2 + $0x60] sm:$0xff] %v7556
      %7685 = vst [vmem:[#allocation2 + $0x68] sm:$0xff] %v7557
      %7686 = vst [vmem:[#allocation2 + $0x70] sm:$0xff] %v7558
      %7687 = vst [vmem:[#allocation2 + $0x78] sm:$0xff] %v7559
      %7688 = vst [vmem:[#allocation2 + $0x80] sm:$0xff] %v7560
      %7689 = vst [vmem:[#allocation2 + $0x88] sm:$0xff] %v7561
      %7690 = vst [vmem:[#allocation2 + $0x90] sm:$0xff] %v7562
      %7691 = vst [vmem:[#allocation2 + $0x98] sm:$0xff] %v7563
      %7692 = vst [vmem:[#allocation2 + $0xa0] sm:$0xff] %v7564
      %7693 = vst [vmem:[#allocation2 + $0xa8] sm:$0xff] %v7565
      %7694 = vst [vmem:[#allocation2 + $0xb0] sm:$0xff] %v7566
      %7695 = vst [vmem:[#allocation2 + $0xb8] sm:$0xff] %v7567
      %7696 = vst [vmem:[#allocation2 + $0xc0] sm:$0xff] %v7568
      %7697 = vst [vmem:[#allocation2 + $0xc8] sm:$0xff] %v7569
      %7698 = vst [vmem:[#allocation2 + $0xd0] sm:$0xff] %v7570
      %7699 = vst [vmem:[#allocation2 + $0xd8] sm:$0xff] %v7571
      %7700 = vst [vmem:[#allocation2 + $0xe0] sm:$0xff] %v7572
      %7701 = vst [vmem:[#allocation2 + $0xe8] sm:$0xff] %v7573
      %7702 = vst [vmem:[#allocation2 + $0xf0] sm:$0xff] %v7574
      %7703 = vst [vmem:[#allocation2 + $0xf8] sm:$0xff] %v7575
      %7704 = vst [vmem:[#allocation2 + $0x100] sm:$0xff] %v7576
      %7705 = vst [vmem:[#allocation2 + $0x108] sm:$0xff] %v7577
      %7706 = vst [vmem:[#allocation2 + $0x110] sm:$0xff] %v7578
      %7707 = vst [vmem:[#allocation2 + $0x118] sm:$0xff] %v7579
      %7708 = vst [vmem:[#allocation2 + $0x120] sm:$0xff] %v7580
      %7709 = vst [vmem:[#allocation2 + $0x128] sm:$0xff] %v7581
      %7710 = vst [vmem:[#allocation2 + $0x130] sm:$0xff] %v7582
      %7711 = vst [vmem:[#allocation2 + $0x138] sm:$0xff] %v7583
      %7712 = vst [vmem:[#allocation2 + $0x140] sm:$0xff] %v7584
      %7713 = vst [vmem:[#allocation2 + $0x148] sm:$0xff] %v7585
      %7714 = vst [vmem:[#allocation2 + $0x150] sm:$0xff] %v7586
      %7715 = vst [vmem:[#allocation2 + $0x158] sm:$0xff] %v7587
      %7716 = vst [vmem:[#allocation2 + $0x160] sm:$0xff] %v7588
      %7717 = vst [vmem:[#allocation2 + $0x168] sm:$0xff] %v7589
      %7718 = vst [vmem:[#allocation2 + $0x170] sm:$0xff] %v7590
      %7719 = vst [vmem:[#allocation2 + $0x178] sm:$0xff] %v7591
      %7720 = vst [vmem:[#allocation2 + $0x180] sm:$0xff] %v7592
      %7721 = vst [vmem:[#allocation2 + $0x188] sm:$0xff] %v7593
      %7722 = vst [vmem:[#allocation2 + $0x190] sm:$0xff] %v7594
      %7723 = vst [vmem:[#allocation2 + $0x198] sm:$0xff] %v7595
      %7724 = vst [vmem:[#allocation2 + $0x1a0] sm:$0xff] %v7596
      %7725 = vst [vmem:[#allocation2 + $0x1a8] sm:$0xff] %v7597
      %7726 = vst [vmem:[#allocation2 + $0x1b0] sm:$0xff] %v7598
      %7727 = vst [vmem:[#allocation2 + $0x1b8] sm:$0xff] %v7599
      %7728 = vst [vmem:[#allocation2 + $0x1c0] sm:$0xff] %v7600
      %7729 = vst [vmem:[#allocation2 + $0x1c8] sm:$0xff] %v7601
      %7730 = vst [vmem:[#allocation2 + $0x1d0] sm:$0xff] %v7602
      %7731 = vst [vmem:[#allocation2 + $0x1d8] sm:$0xff] %v7603
      %7732 = vst [vmem:[#allocation2 + $0x1e0] sm:$0xff] %v7604
      %7733 = vst [vmem:[#allocation2 + $0x1e8] sm:$0xff] %v7605
      %7734 = vst [vmem:[#allocation2 + $0x1f0] sm:$0xff] %v7606
      %7735 = vst [vmem:[#allocation2 + $0x1f8] sm:$0xff] %v7607
      %p7736 = scmp.eq.s32.totalorder %s23, 2
      // Predicated region
      $region53: #{mlp_forward.1} parent=47 // pred_check
        %p7737 = pneg %p7736
      $region54: #{mlp_forward.1} parent=47 // pred_check_branch
        %7739 = sbr.rel (%p7737) target = $region56
      $region55: #{mlp_forward.1} parent=47 // pred_region
        %v7740 = vld [vmem:[#allocation2] sm:$0xff]
        %v7741 = vld [vmem:[#allocation2 + $0x8] sm:$0xff]
        %v7742 = vld [vmem:[#allocation2 + $0x10] sm:$0xff]
        %v7743 = vld [vmem:[#allocation2 + $0x18] sm:$0xff]
        %v7744 = vld [vmem:[#allocation2 + $0x20] sm:$0xff]
        %v7745 = vld [vmem:[#allocation2 + $0x28] sm:$0xff]
        %v7746 = vld [vmem:[#allocation2 + $0x30] sm:$0xff]
        %v7747 = vld [vmem:[#allocation2 + $0x38] sm:$0xff]
        %v7748 = vld [vmem:[#allocation2 + $0x40] sm:$0xff]
        %v7749 = vld [vmem:[#allocation2 + $0x48] sm:$0xff]
        %v7750 = vld [vmem:[#allocation2 + $0x50] sm:$0xff]
        %v7751 = vld [vmem:[#allocation2 + $0x58] sm:$0xff]
        %v7752 = vld [vmem:[#allocation2 + $0x60] sm:$0xff]
        %v7753 = vld [vmem:[#allocation2 + $0x68] sm:$0xff]
        %v7754 = vld [vmem:[#allocation2 + $0x70] sm:$0xff]
        %v7755 = vld [vmem:[#allocation2 + $0x78] sm:$0xff]
        %v7756 = vld [vmem:[#allocation2 + $0x80] sm:$0xff]
        %v7757 = vld [vmem:[#allocation2 + $0x88] sm:$0xff]
        %v7758 = vld [vmem:[#allocation2 + $0x90] sm:$0xff]
        %v7759 = vld [vmem:[#allocation2 + $0x98] sm:$0xff]
        %v7760 = vld [vmem:[#allocation2 + $0xa0] sm:$0xff]
        %v7761 = vld [vmem:[#allocation2 + $0xa8] sm:$0xff]
        %v7762 = vld [vmem:[#allocation2 + $0xb0] sm:$0xff]
        %v7763 = vld [vmem:[#allocation2 + $0xb8] sm:$0xff]
        %v7764 = vld [vmem:[#allocation2 + $0xc0] sm:$0xff]
        %v7765 = vld [vmem:[#allocation2 + $0xc8] sm:$0xff]
        %v7766 = vld [vmem:[#allocation2 + $0xd0] sm:$0xff]
        %v7767 = vld [vmem:[#allocation2 + $0xd8] sm:$0xff]
        %v7768 = vld [vmem:[#allocation2 + $0xe0] sm:$0xff]
        %v7769 = vld [vmem:[#allocation2 + $0xe8] sm:$0xff]
        %v7770 = vld [vmem:[#allocation2 + $0xf0] sm:$0xff]
        %v7771 = vld [vmem:[#allocation2 + $0xf8] sm:$0xff]
        %v7772 = vld [vmem:[#allocation2 + $0x100] sm:$0xff]
        %v7773 = vld [vmem:[#allocation2 + $0x108] sm:$0xff]
        %v7774 = vld [vmem:[#allocation2 + $0x110] sm:$0xff]
        %v7775 = vld [vmem:[#allocation2 + $0x118] sm:$0xff]
        %v7776 = vld [vmem:[#allocation2 + $0x120] sm:$0xff]
        %v7777 = vld [vmem:[#allocation2 + $0x128] sm:$0xff]
        %v7778 = vld [vmem:[#allocation2 + $0x130] sm:$0xff]
        %v7779 = vld [vmem:[#allocation2 + $0x138] sm:$0xff]
        %v7780 = vld [vmem:[#allocation2 + $0x140] sm:$0xff]
        %v7781 = vld [vmem:[#allocation2 + $0x148] sm:$0xff]
        %v7782 = vld [vmem:[#allocation2 + $0x150] sm:$0xff]
        %v7783 = vld [vmem:[#allocation2 + $0x158] sm:$0xff]
        %v7784 = vld [vmem:[#allocation2 + $0x160] sm:$0xff]
        %v7785 = vld [vmem:[#allocation2 + $0x168] sm:$0xff]
        %v7786 = vld [vmem:[#allocation2 + $0x170] sm:$0xff]
        %v7787 = vld [vmem:[#allocation2 + $0x178] sm:$0xff]
        %v7788 = vld [vmem:[#allocation2 + $0x180] sm:$0xff]
        %v7789 = vld [vmem:[#allocation2 + $0x188] sm:$0xff]
        %v7790 = vld [vmem:[#allocation2 + $0x190] sm:$0xff]
        %v7791 = vld [vmem:[#allocation2 + $0x198] sm:$0xff]
        %v7792 = vld [vmem:[#allocation2 + $0x1a0] sm:$0xff]
        %v7793 = vld [vmem:[#allocation2 + $0x1a8] sm:$0xff]
        %v7794 = vld [vmem:[#allocation2 + $0x1b0] sm:$0xff]
        %v7795 = vld [vmem:[#allocation2 + $0x1b8] sm:$0xff]
        %v7796 = vld [vmem:[#allocation2 + $0x1c0] sm:$0xff]
        %v7797 = vld [vmem:[#allocation2 + $0x1c8] sm:$0xff]
        %v7798 = vld [vmem:[#allocation2 + $0x1d0] sm:$0xff]
        %v7799 = vld [vmem:[#allocation2 + $0x1d8] sm:$0xff]
        %v7800 = vld [vmem:[#allocation2 + $0x1e0] sm:$0xff]
        %v7801 = vld [vmem:[#allocation2 + $0x1e8] sm:$0xff]
        %v7802 = vld [vmem:[#allocation2 + $0x1f0] sm:$0xff]
        %v7803 = vld [vmem:[#allocation2 + $0x1f8] sm:$0xff]
        %v7804 = vld [vmem:[%s5] sm:$0xf]
        %v7805 = vld [vmem:[%s5 + $0x4] sm:$0xf]
        %v7806 = vld [vmem:[%s5 + $0x8] sm:$0xf]
        %v7807 = vld [vmem:[%s5 + $0xc] sm:$0xf]
        %v7808 = vld [vmem:[%s5 + $0x10] sm:$0xf]
        %v7809 = vld [vmem:[%s5 + $0x14] sm:$0xf]
        %v7810 = vld [vmem:[%s5 + $0x18] sm:$0xf]
        %v7811 = vld [vmem:[%s5 + $0x1c] sm:$0xf]
        %v7812 = vld [vmem:[%s5 + $0x20] sm:$0xf]
        %v7813 = vld [vmem:[%s5 + $0x24] sm:$0xf]
        %v7814 = vld [vmem:[%s5 + $0x28] sm:$0xf]
        %v7815 = vld [vmem:[%s5 + $0x2c] sm:$0xf]
        %v7816 = vld [vmem:[%s5 + $0x30] sm:$0xf]
        %v7817 = vld [vmem:[%s5 + $0x34] sm:$0xf]
        %v7818 = vld [vmem:[%s5 + $0x38] sm:$0xf]
        %v7819 = vld [vmem:[%s5 + $0x3c] sm:$0xf]
        %v7820 = vld [vmem:[%s5 + $0x40] sm:$0xf]
        %v7821 = vld [vmem:[%s5 + $0x44] sm:$0xf]
        %v7822 = vld [vmem:[%s5 + $0x48] sm:$0xf]
        %v7823 = vld [vmem:[%s5 + $0x4c] sm:$0xf]
        %v7824 = vld [vmem:[%s5 + $0x50] sm:$0xf]
        %v7825 = vld [vmem:[%s5 + $0x54] sm:$0xf]
        %v7826 = vld [vmem:[%s5 + $0x58] sm:$0xf]
        %v7827 = vld [vmem:[%s5 + $0x5c] sm:$0xf]
        %v7828 = vld [vmem:[%s5 + $0x60] sm:$0xf]
        %v7829 = vld [vmem:[%s5 + $0x64] sm:$0xf]
        %v7830 = vld [vmem:[%s5 + $0x68] sm:$0xf]
        %v7831 = vld [vmem:[%s5 + $0x6c] sm:$0xf]
        %v7832 = vld [vmem:[%s5 + $0x70] sm:$0xf]
        %v7833 = vld [vmem:[%s5 + $0x74] sm:$0xf]
        %v7834 = vld [vmem:[%s5 + $0x78] sm:$0xf]
        %v7835 = vld [vmem:[%s5 + $0x7c] sm:$0xf]
        %v7836 = vld [vmem:[%s5 + $0x80] sm:$0xf]
        %v7837 = vld [vmem:[%s5 + $0x84] sm:$0xf]
        %v7838 = vld [vmem:[%s5 + $0x88] sm:$0xf]
        %v7839 = vld [vmem:[%s5 + $0x8c] sm:$0xf]
        %v7840 = vld [vmem:[%s5 + $0x90] sm:$0xf]
        %v7841 = vld [vmem:[%s5 + $0x94] sm:$0xf]
        %v7842 = vld [vmem:[%s5 + $0x98] sm:$0xf]
        %v7843 = vld [vmem:[%s5 + $0x9c] sm:$0xf]
        %v7844 = vld [vmem:[%s5 + $0xa0] sm:$0xf]
        %v7845 = vld [vmem:[%s5 + $0xa4] sm:$0xf]
        %v7846 = vld [vmem:[%s5 + $0xa8] sm:$0xf]
        %v7847 = vld [vmem:[%s5 + $0xac] sm:$0xf]
        %v7848 = vld [vmem:[%s5 + $0xb0] sm:$0xf]
        %v7849 = vld [vmem:[%s5 + $0xb4] sm:$0xf]
        %v7850 = vld [vmem:[%s5 + $0xb8] sm:$0xf]
        %v7851 = vld [vmem:[%s5 + $0xbc] sm:$0xf]
        %v7852 = vld [vmem:[%s5 + $0xc0] sm:$0xf]
        %v7853 = vld [vmem:[%s5 + $0xc4] sm:$0xf]
        %v7854 = vld [vmem:[%s5 + $0xc8] sm:$0xf]
        %v7855 = vld [vmem:[%s5 + $0xcc] sm:$0xf]
        %v7856 = vld [vmem:[%s5 + $0xd0] sm:$0xf]
        %v7857 = vld [vmem:[%s5 + $0xd4] sm:$0xf]
        %v7858 = vld [vmem:[%s5 + $0xd8] sm:$0xf]
        %v7859 = vld [vmem:[%s5 + $0xdc] sm:$0xf]
        %v7860 = vld [vmem:[%s5 + $0xe0] sm:$0xf]
        %v7861 = vld [vmem:[%s5 + $0xe4] sm:$0xf]
        %v7862 = vld [vmem:[%s5 + $0xe8] sm:$0xf]
        %v7863 = vld [vmem:[%s5 + $0xec] sm:$0xf]
        %v7864 = vld [vmem:[%s5 + $0xf0] sm:$0xf]
        %v7865 = vld [vmem:[%s5 + $0xf4] sm:$0xf]
        %v7866 = vld [vmem:[%s5 + $0xf8] sm:$0xf]
        %v7867 = vld [vmem:[%s5 + $0xfc] sm:$0xf]
        %v7868 = vld [vmem:[%s5 + $0x100] sm:$0xf]
        %v7869 = vld [vmem:[%s5 + $0x104] sm:$0xf]
        %v7870 = vld [vmem:[%s5 + $0x108] sm:$0xf]
        %v7871 = vld [vmem:[%s5 + $0x10c] sm:$0xf]
        %v7872 = vld [vmem:[%s5 + $0x110] sm:$0xf]
        %v7873 = vld [vmem:[%s5 + $0x114] sm:$0xf]
        %v7874 = vld [vmem:[%s5 + $0x118] sm:$0xf]
        %v7875 = vld [vmem:[%s5 + $0x11c] sm:$0xf]
        %v7876 = vld [vmem:[%s5 + $0x120] sm:$0xf]
        %v7877 = vld [vmem:[%s5 + $0x124] sm:$0xf]
        %v7878 = vld [vmem:[%s5 + $0x128] sm:$0xf]
        %v7879 = vld [vmem:[%s5 + $0x12c] sm:$0xf]
        %v7880 = vld [vmem:[%s5 + $0x130] sm:$0xf]
        %v7881 = vld [vmem:[%s5 + $0x134] sm:$0xf]
        %v7882 = vld [vmem:[%s5 + $0x138] sm:$0xf]
        %v7883 = vld [vmem:[%s5 + $0x13c] sm:$0xf]
        %v7884 = vld [vmem:[%s5 + $0x140] sm:$0xf]
        %v7885 = vld [vmem:[%s5 + $0x144] sm:$0xf]
        %v7886 = vld [vmem:[%s5 + $0x148] sm:$0xf]
        %v7887 = vld [vmem:[%s5 + $0x14c] sm:$0xf]
        %v7888 = vld [vmem:[%s5 + $0x150] sm:$0xf]
        %v7889 = vld [vmem:[%s5 + $0x154] sm:$0xf]
        %v7890 = vld [vmem:[%s5 + $0x158] sm:$0xf]
        %v7891 = vld [vmem:[%s5 + $0x15c] sm:$0xf]
        %v7892 = vld [vmem:[%s5 + $0x160] sm:$0xf]
        %v7893 = vld [vmem:[%s5 + $0x164] sm:$0xf]
        %v7894 = vld [vmem:[%s5 + $0x168] sm:$0xf]
        %v7895 = vld [vmem:[%s5 + $0x16c] sm:$0xf]
        %v7896 = vld [vmem:[%s5 + $0x170] sm:$0xf]
        %v7897 = vld [vmem:[%s5 + $0x174] sm:$0xf]
        %v7898 = vld [vmem:[%s5 + $0x178] sm:$0xf]
        %v7899 = vld [vmem:[%s5 + $0x17c] sm:$0xf]
        %v7900 = vld [vmem:[%s5 + $0x180] sm:$0xf]
        %v7901 = vld [vmem:[%s5 + $0x184] sm:$0xf]
        %v7902 = vld [vmem:[%s5 + $0x188] sm:$0xf]
        %v7903 = vld [vmem:[%s5 + $0x18c] sm:$0xf]
        %v7904 = vld [vmem:[%s5 + $0x190] sm:$0xf]
        %v7905 = vld [vmem:[%s5 + $0x194] sm:$0xf]
        %v7906 = vld [vmem:[%s5 + $0x198] sm:$0xf]
        %v7907 = vld [vmem:[%s5 + $0x19c] sm:$0xf]
        %v7908 = vld [vmem:[%s5 + $0x1a0] sm:$0xf]
        %v7909 = vld [vmem:[%s5 + $0x1a4] sm:$0xf]
        %v7910 = vld [vmem:[%s5 + $0x1a8] sm:$0xf]
        %v7911 = vld [vmem:[%s5 + $0x1ac] sm:$0xf]
        %v7912 = vld [vmem:[%s5 + $0x1b0] sm:$0xf]
        %v7913 = vld [vmem:[%s5 + $0x1b4] sm:$0xf]
        %v7914 = vld [vmem:[%s5 + $0x1b8] sm:$0xf]
        %v7915 = vld [vmem:[%s5 + $0x1bc] sm:$0xf]
        %v7916 = vld [vmem:[%s5 + $0x1c0] sm:$0xf]
        %v7917 = vld [vmem:[%s5 + $0x1c4] sm:$0xf]
        %v7918 = vld [vmem:[%s5 + $0x1c8] sm:$0xf]
        %v7919 = vld [vmem:[%s5 + $0x1cc] sm:$0xf]
        %v7920 = vld [vmem:[%s5 + $0x1d0] sm:$0xf]
        %v7921 = vld [vmem:[%s5 + $0x1d4] sm:$0xf]
        %v7922 = vld [vmem:[%s5 + $0x1d8] sm:$0xf]
        %v7923 = vld [vmem:[%s5 + $0x1dc] sm:$0xf]
        %v7924 = vld [vmem:[%s5 + $0x1e0] sm:$0xf]
        %v7925 = vld [vmem:[%s5 + $0x1e4] sm:$0xf]
        %v7926 = vld [vmem:[%s5 + $0x1e8] sm:$0xf]
        %v7927 = vld [vmem:[%s5 + $0x1ec] sm:$0xf]
        %v7928 = vld [vmem:[%s5 + $0x1f0] sm:$0xf]
        %v7929 = vld [vmem:[%s5 + $0x1f4] sm:$0xf]
        %v7930 = vld [vmem:[%s5 + $0x1f8] sm:$0xf]
        %v7931 = vld [vmem:[%s5 + $0x1fc] sm:$0xf]
        %v7932 = vld [vmem:[%s6] sm:$0x1]
        %v7934 = vlaneseq
        %v7935 = vshrl.u32 %v7934, 7
        %v7936 = vsub.s32 0, %v7935
        %v7937 = vrot.slane %v7932, %v7936
        %v8003 = vunpack.c.l.b16 %v7740
        %v8004 = vunpack.c.h.b16 %v7740
        %v8005 = vunpack.c.l.b16 %v7741
        %v8006 = vunpack.c.h.b16 %v7741
        %v8007 = vunpack.c.l.b16 %v7742
        %v8008 = vunpack.c.h.b16 %v7742
        %v8009 = vunpack.c.l.b16 %v7743
        %v8010 = vunpack.c.h.b16 %v7743
        %v8011 = vunpack.c.l.b16 %v7744
        %v8012 = vunpack.c.h.b16 %v7744
        %v8013 = vunpack.c.l.b16 %v7745
        %v8014 = vunpack.c.h.b16 %v7745
        %v8015 = vunpack.c.l.b16 %v7746
        %v8016 = vunpack.c.h.b16 %v7746
        %v8017 = vunpack.c.l.b16 %v7747
        %v8018 = vunpack.c.h.b16 %v7747
        %v8019 = vunpack.c.l.b16 %v7748
        %v8020 = vunpack.c.h.b16 %v7748
        %v8021 = vunpack.c.l.b16 %v7749
        %v8022 = vunpack.c.h.b16 %v7749
        %v8023 = vunpack.c.l.b16 %v7750
        %v8024 = vunpack.c.h.b16 %v7750
        %v8025 = vunpack.c.l.b16 %v7751
        %v8026 = vunpack.c.h.b16 %v7751
        %v8027 = vunpack.c.l.b16 %v7752
        %v8028 = vunpack.c.h.b16 %v7752
        %v8029 = vunpack.c.l.b16 %v7753
        %v8030 = vunpack.c.h.b16 %v7753
        %v8031 = vunpack.c.l.b16 %v7754
        %v8032 = vunpack.c.h.b16 %v7754
        %v8033 = vunpack.c.l.b16 %v7755
        %v8034 = vunpack.c.h.b16 %v7755
        %v8035 = vunpack.c.l.b16 %v7756
        %v8036 = vunpack.c.h.b16 %v7756
        %v8037 = vunpack.c.l.b16 %v7757
        %v8038 = vunpack.c.h.b16 %v7757
        %v8039 = vunpack.c.l.b16 %v7758
        %v8040 = vunpack.c.h.b16 %v7758
        %v8041 = vunpack.c.l.b16 %v7759
        %v8042 = vunpack.c.h.b16 %v7759
        %v8043 = vunpack.c.l.b16 %v7760
        %v8044 = vunpack.c.h.b16 %v7760
        %v8045 = vunpack.c.l.b16 %v7761
        %v8046 = vunpack.c.h.b16 %v7761
        %v8047 = vunpack.c.l.b16 %v7762
        %v8048 = vunpack.c.h.b16 %v7762
        %v8049 = vunpack.c.l.b16 %v7763
        %v8050 = vunpack.c.h.b16 %v7763
        %v8051 = vunpack.c.l.b16 %v7764
        %v8052 = vunpack.c.h.b16 %v7764
        %v8053 = vunpack.c.l.b16 %v7765
        %v8054 = vunpack.c.h.b16 %v7765
        %v8055 = vunpack.c.l.b16 %v7766
        %v8056 = vunpack.c.h.b16 %v7766
        %v8057 = vunpack.c.l.b16 %v7767
        %v8058 = vunpack.c.h.b16 %v7767
        %v8059 = vunpack.c.l.b16 %v7768
        %v8060 = vunpack.c.h.b16 %v7768
        %v8061 = vunpack.c.l.b16 %v7769
        %v8062 = vunpack.c.h.b16 %v7769
        %v8063 = vunpack.c.l.b16 %v7770
        %v8064 = vunpack.c.h.b16 %v7770
        %v8065 = vunpack.c.l.b16 %v7771
        %v8066 = vunpack.c.h.b16 %v7771
        %v8067 = vunpack.c.l.b16 %v7772
        %v8068 = vunpack.c.h.b16 %v7772
        %v8069 = vunpack.c.l.b16 %v7773
        %v8070 = vunpack.c.h.b16 %v7773
        %v8071 = vunpack.c.l.b16 %v7774
        %v8072 = vunpack.c.h.b16 %v7774
        %v8073 = vunpack.c.l.b16 %v7775
        %v8074 = vunpack.c.h.b16 %v7775
        %v8075 = vunpack.c.l.b16 %v7776
        %v8076 = vunpack.c.h.b16 %v7776
        %v8077 = vunpack.c.l.b16 %v7777
        %v8078 = vunpack.c.h.b16 %v7777
        %v8079 = vunpack.c.l.b16 %v7778
        %v8080 = vunpack.c.h.b16 %v7778
        %v8081 = vunpack.c.l.b16 %v7779
        %v8082 = vunpack.c.h.b16 %v7779
        %v8083 = vunpack.c.l.b16 %v7780
        %v8084 = vunpack.c.h.b16 %v7780
        %v8085 = vunpack.c.l.b16 %v7781
        %v8086 = vunpack.c.h.b16 %v7781
        %v8087 = vunpack.c.l.b16 %v7782
        %v8088 = vunpack.c.h.b16 %v7782
        %v8089 = vunpack.c.l.b16 %v7783
        %v8090 = vunpack.c.h.b16 %v7783
        %v8091 = vunpack.c.l.b16 %v7784
        %v8092 = vunpack.c.h.b16 %v7784
        %v8093 = vunpack.c.l.b16 %v7785
        %v8094 = vunpack.c.h.b16 %v7785
        %v8095 = vunpack.c.l.b16 %v7786
        %v8096 = vunpack.c.h.b16 %v7786
        %v8097 = vunpack.c.l.b16 %v7787
        %v8098 = vunpack.c.h.b16 %v7787
        %v8099 = vunpack.c.l.b16 %v7788
        %v8100 = vunpack.c.h.b16 %v7788
        %v8101 = vunpack.c.l.b16 %v7789
        %v8102 = vunpack.c.h.b16 %v7789
        %v8103 = vunpack.c.l.b16 %v7790
        %v8104 = vunpack.c.h.b16 %v7790
        %v8105 = vunpack.c.l.b16 %v7791
        %v8106 = vunpack.c.h.b16 %v7791
        %v8107 = vunpack.c.l.b16 %v7792
        %v8108 = vunpack.c.h.b16 %v7792
        %v8109 = vunpack.c.l.b16 %v7793
        %v8110 = vunpack.c.h.b16 %v7793
        %v8111 = vunpack.c.l.b16 %v7794
        %v8112 = vunpack.c.h.b16 %v7794
        %v8113 = vunpack.c.l.b16 %v7795
        %v8114 = vunpack.c.h.b16 %v7795
        %v8115 = vunpack.c.l.b16 %v7796
        %v8116 = vunpack.c.h.b16 %v7796
        %v8117 = vunpack.c.l.b16 %v7797
        %v8118 = vunpack.c.h.b16 %v7797
        %v8119 = vunpack.c.l.b16 %v7798
        %v8120 = vunpack.c.h.b16 %v7798
        %v8121 = vunpack.c.l.b16 %v7799
        %v8122 = vunpack.c.h.b16 %v7799
        %v8123 = vunpack.c.l.b16 %v7800
        %v8124 = vunpack.c.h.b16 %v7800
        %v8125 = vunpack.c.l.b16 %v7801
        %v8126 = vunpack.c.h.b16 %v7801
        %v8127 = vunpack.c.l.b16 %v7802
        %v8128 = vunpack.c.h.b16 %v7802
        %v8129 = vunpack.c.l.b16 %v7803
        %v8130 = vunpack.c.h.b16 %v7803
        %v8131 = vpack.c.b16 %v8011, %v8003
        %v8132 = vpack.c.b16 %v8012, %v8004
        %v8133 = vpack.c.b16 %v8013, %v8005
        %v8134 = vpack.c.b16 %v8014, %v8006
        %v8135 = vpack.c.b16 %v8015, %v8007
        %v8136 = vpack.c.b16 %v8016, %v8008
        %v8137 = vpack.c.b16 %v8017, %v8009
        %v8138 = vpack.c.b16 %v8018, %v8010
        %v8139 = vpack.c.b16 %v8027, %v8019
        %v8140 = vpack.c.b16 %v8028, %v8020
        %v8141 = vpack.c.b16 %v8029, %v8021
        %v8142 = vpack.c.b16 %v8030, %v8022
        %v8143 = vpack.c.b16 %v8031, %v8023
        %v8144 = vpack.c.b16 %v8032, %v8024
        %v8145 = vpack.c.b16 %v8033, %v8025
        %v8146 = vpack.c.b16 %v8034, %v8026
        %v8147 = vpack.c.b16 %v8043, %v8035
        %v8148 = vpack.c.b16 %v8044, %v8036
        %v8149 = vpack.c.b16 %v8045, %v8037
        %v8150 = vpack.c.b16 %v8046, %v8038
        %v8151 = vpack.c.b16 %v8047, %v8039
        %v8152 = vpack.c.b16 %v8048, %v8040
        %v8153 = vpack.c.b16 %v8049, %v8041
        %v8154 = vpack.c.b16 %v8050, %v8042
        %v8155 = vpack.c.b16 %v8059, %v8051
        %v8156 = vpack.c.b16 %v8060, %v8052
        %v8157 = vpack.c.b16 %v8061, %v8053
        %v8158 = vpack.c.b16 %v8062, %v8054
        %v8159 = vpack.c.b16 %v8063, %v8055
        %v8160 = vpack.c.b16 %v8064, %v8056
        %v8161 = vpack.c.b16 %v8065, %v8057
        %v8162 = vpack.c.b16 %v8066, %v8058
        %v8163 = vpack.c.b16 %v8075, %v8067
        %v8164 = vpack.c.b16 %v8076, %v8068
        %v8165 = vpack.c.b16 %v8077, %v8069
        %v8166 = vpack.c.b16 %v8078, %v8070
        %v8167 = vpack.c.b16 %v8079, %v8071
        %v8168 = vpack.c.b16 %v8080, %v8072
        %v8169 = vpack.c.b16 %v8081, %v8073
        %v8170 = vpack.c.b16 %v8082, %v8074
        %v8171 = vpack.c.b16 %v8091, %v8083
        %v8172 = vpack.c.b16 %v8092, %v8084
        %v8173 = vpack.c.b16 %v8093, %v8085
        %v8174 = vpack.c.b16 %v8094, %v8086
        %v8175 = vpack.c.b16 %v8095, %v8087
        %v8176 = vpack.c.b16 %v8096, %v8088
        %v8177 = vpack.c.b16 %v8097, %v8089
        %v8178 = vpack.c.b16 %v8098, %v8090
        %v8179 = vpack.c.b16 %v8107, %v8099
        %v8180 = vpack.c.b16 %v8108, %v8100
        %v8181 = vpack.c.b16 %v8109, %v8101
        %v8182 = vpack.c.b16 %v8110, %v8102
        %v8183 = vpack.c.b16 %v8111, %v8103
        %v8184 = vpack.c.b16 %v8112, %v8104
        %v8185 = vpack.c.b16 %v8113, %v8105
        %v8186 = vpack.c.b16 %v8114, %v8106
        %v8187 = vpack.c.b16 %v8123, %v8115
        %v8188 = vpack.c.b16 %v8124, %v8116
        %v8189 = vpack.c.b16 %v8125, %v8117
        %v8190 = vpack.c.b16 %v8126, %v8118
        %v8191 = vpack.c.b16 %v8127, %v8119
        %v8192 = vpack.c.b16 %v8128, %v8120
        %v8193 = vpack.c.b16 %v8129, %v8121
        %v8194 = vpack.c.b16 %v8130, %v8122
        %v8387 = vunpack.c.l.b16 %v7804
        %v8388 = vunpack.c.l.b16 %v7805
        %v8389 = vunpack.c.l.b16 %v7806
        %v8390 = vunpack.c.l.b16 %v7807
        %v8391 = vunpack.c.l.b16 %v7808
        %v8392 = vunpack.c.l.b16 %v7809
        %v8393 = vunpack.c.l.b16 %v7810
        %v8394 = vunpack.c.l.b16 %v7811
        %v8395 = vunpack.c.l.b16 %v7812
        %v8396 = vunpack.c.l.b16 %v7813
        %v8397 = vunpack.c.l.b16 %v7814
        %v8398 = vunpack.c.l.b16 %v7815
        %v8399 = vunpack.c.l.b16 %v7816
        %v8400 = vunpack.c.l.b16 %v7817
        %v8401 = vunpack.c.l.b16 %v7818
        %v8402 = vunpack.c.l.b16 %v7819
        %v8403 = vunpack.c.l.b16 %v7820
        %v8404 = vunpack.c.l.b16 %v7821
        %v8405 = vunpack.c.l.b16 %v7822
        %v8406 = vunpack.c.l.b16 %v7823
        %v8407 = vunpack.c.l.b16 %v7824
        %v8408 = vunpack.c.l.b16 %v7825
        %v8409 = vunpack.c.l.b16 %v7826
        %v8410 = vunpack.c.l.b16 %v7827
        %v8411 = vunpack.c.l.b16 %v7828
        %v8412 = vunpack.c.l.b16 %v7829
        %v8413 = vunpack.c.l.b16 %v7830
        %v8414 = vunpack.c.l.b16 %v7831
        %v8415 = vunpack.c.l.b16 %v7832
        %v8416 = vunpack.c.l.b16 %v7833
        %v8417 = vunpack.c.l.b16 %v7834
        %v8418 = vunpack.c.l.b16 %v7835
        %v8419 = vunpack.c.l.b16 %v7836
        %v8420 = vunpack.c.l.b16 %v7837
        %v8421 = vunpack.c.l.b16 %v7838
        %v8422 = vunpack.c.l.b16 %v7839
        %v8423 = vunpack.c.l.b16 %v7840
        %v8424 = vunpack.c.l.b16 %v7841
        %v8425 = vunpack.c.l.b16 %v7842
        %v8426 = vunpack.c.l.b16 %v7843
        %v8427 = vunpack.c.l.b16 %v7844
        %v8428 = vunpack.c.l.b16 %v7845
        %v8429 = vunpack.c.l.b16 %v7846
        %v8430 = vunpack.c.l.b16 %v7847
        %v8431 = vunpack.c.l.b16 %v7848
        %v8432 = vunpack.c.l.b16 %v7849
        %v8433 = vunpack.c.l.b16 %v7850
        %v8434 = vunpack.c.l.b16 %v7851
        %v8435 = vunpack.c.l.b16 %v7852
        %v8436 = vunpack.c.l.b16 %v7853
        %v8437 = vunpack.c.l.b16 %v7854
        %v8438 = vunpack.c.l.b16 %v7855
        %v8439 = vunpack.c.l.b16 %v7856
        %v8440 = vunpack.c.l.b16 %v7857
        %v8441 = vunpack.c.l.b16 %v7858
        %v8442 = vunpack.c.l.b16 %v7859
        %v8443 = vunpack.c.l.b16 %v7860
        %v8444 = vunpack.c.l.b16 %v7861
        %v8445 = vunpack.c.l.b16 %v7862
        %v8446 = vunpack.c.l.b16 %v7863
        %v8447 = vunpack.c.l.b16 %v7864
        %v8448 = vunpack.c.l.b16 %v7865
        %v8449 = vunpack.c.l.b16 %v7866
        %v8450 = vunpack.c.l.b16 %v7867
        %v8451 = vunpack.c.l.b16 %v7868
        %v8452 = vunpack.c.l.b16 %v7869
        %v8453 = vunpack.c.l.b16 %v7870
        %v8454 = vunpack.c.l.b16 %v7871
        %v8455 = vunpack.c.l.b16 %v7872
        %v8456 = vunpack.c.l.b16 %v7873
        %v8457 = vunpack.c.l.b16 %v7874
        %v8458 = vunpack.c.l.b16 %v7875
        %v8459 = vunpack.c.l.b16 %v7876
        %v8460 = vunpack.c.l.b16 %v7877
        %v8461 = vunpack.c.l.b16 %v7878
        %v8462 = vunpack.c.l.b16 %v7879
        %v8463 = vunpack.c.l.b16 %v7880
        %v8464 = vunpack.c.l.b16 %v7881
        %v8465 = vunpack.c.l.b16 %v7882
        %v8466 = vunpack.c.l.b16 %v7883
        %v8467 = vunpack.c.l.b16 %v7884
        %v8468 = vunpack.c.l.b16 %v7885
        %v8469 = vunpack.c.l.b16 %v7886
        %v8470 = vunpack.c.l.b16 %v7887
        %v8471 = vunpack.c.l.b16 %v7888
        %v8472 = vunpack.c.l.b16 %v7889
        %v8473 = vunpack.c.l.b16 %v7890
        %v8474 = vunpack.c.l.b16 %v7891
        %v8475 = vunpack.c.l.b16 %v7892
        %v8476 = vunpack.c.l.b16 %v7893
        %v8477 = vunpack.c.l.b16 %v7894
        %v8478 = vunpack.c.l.b16 %v7895
        %v8479 = vunpack.c.l.b16 %v7896
        %v8480 = vunpack.c.l.b16 %v7897
        %v8481 = vunpack.c.l.b16 %v7898
        %v8482 = vunpack.c.l.b16 %v7899
        %v8483 = vunpack.c.l.b16 %v7900
        %v8484 = vunpack.c.l.b16 %v7901
        %v8485 = vunpack.c.l.b16 %v7902
        %v8486 = vunpack.c.l.b16 %v7903
        %v8487 = vunpack.c.l.b16 %v7904
        %v8488 = vunpack.c.l.b16 %v7905
        %v8489 = vunpack.c.l.b16 %v7906
        %v8490 = vunpack.c.l.b16 %v7907
        %v8491 = vunpack.c.l.b16 %v7908
        %v8492 = vunpack.c.l.b16 %v7909
        %v8493 = vunpack.c.l.b16 %v7910
        %v8494 = vunpack.c.l.b16 %v7911
        %v8495 = vunpack.c.l.b16 %v7912
        %v8496 = vunpack.c.l.b16 %v7913
        %v8497 = vunpack.c.l.b16 %v7914
        %v8498 = vunpack.c.l.b16 %v7915
        %v8499 = vunpack.c.l.b16 %v7916
        %v8500 = vunpack.c.l.b16 %v7917
        %v8501 = vunpack.c.l.b16 %v7918
        %v8502 = vunpack.c.l.b16 %v7919
        %v8503 = vunpack.c.l.b16 %v7920
        %v8504 = vunpack.c.l.b16 %v7921
        %v8505 = vunpack.c.l.b16 %v7922
        %v8506 = vunpack.c.l.b16 %v7923
        %v8507 = vunpack.c.l.b16 %v7924
        %v8508 = vunpack.c.l.b16 %v7925
        %v8509 = vunpack.c.l.b16 %v7926
        %v8510 = vunpack.c.l.b16 %v7927
        %v8511 = vunpack.c.l.b16 %v7928
        %v8512 = vunpack.c.l.b16 %v7929
        %v8513 = vunpack.c.l.b16 %v7930
        %v8514 = vunpack.c.l.b16 %v7931
        %v8515 = vpack.c.b16 %v8388, %v8387
        %v8516 = vpack.c.b16 %v8390, %v8389
        %v8517 = vpack.c.b16 %v8392, %v8391
        %v8518 = vpack.c.b16 %v8394, %v8393
        %v8519 = vpack.c.b16 %v8396, %v8395
        %v8520 = vpack.c.b16 %v8398, %v8397
        %v8521 = vpack.c.b16 %v8400, %v8399
        %v8522 = vpack.c.b16 %v8402, %v8401
        %v8523 = vpack.c.b16 %v8404, %v8403
        %v8524 = vpack.c.b16 %v8406, %v8405
        %v8525 = vpack.c.b16 %v8408, %v8407
        %v8526 = vpack.c.b16 %v8410, %v8409
        %v8527 = vpack.c.b16 %v8412, %v8411
        %v8528 = vpack.c.b16 %v8414, %v8413
        %v8529 = vpack.c.b16 %v8416, %v8415
        %v8530 = vpack.c.b16 %v8418, %v8417
        %v8531 = vpack.c.b16 %v8420, %v8419
        %v8532 = vpack.c.b16 %v8422, %v8421
        %v8533 = vpack.c.b16 %v8424, %v8423
        %v8534 = vpack.c.b16 %v8426, %v8425
        %v8535 = vpack.c.b16 %v8428, %v8427
        %v8536 = vpack.c.b16 %v8430, %v8429
        %v8537 = vpack.c.b16 %v8432, %v8431
        %v8538 = vpack.c.b16 %v8434, %v8433
        %v8539 = vpack.c.b16 %v8436, %v8435
        %v8540 = vpack.c.b16 %v8438, %v8437
        %v8541 = vpack.c.b16 %v8440, %v8439
        %v8542 = vpack.c.b16 %v8442, %v8441
        %v8543 = vpack.c.b16 %v8444, %v8443
        %v8544 = vpack.c.b16 %v8446, %v8445
        %v8545 = vpack.c.b16 %v8448, %v8447
        %v8546 = vpack.c.b16 %v8450, %v8449
        %v8547 = vpack.c.b16 %v8452, %v8451
        %v8548 = vpack.c.b16 %v8454, %v8453
        %v8549 = vpack.c.b16 %v8456, %v8455
        %v8550 = vpack.c.b16 %v8458, %v8457
        %v8551 = vpack.c.b16 %v8460, %v8459
        %v8552 = vpack.c.b16 %v8462, %v8461
        %v8553 = vpack.c.b16 %v8464, %v8463
        %v8554 = vpack.c.b16 %v8466, %v8465
        %v8555 = vpack.c.b16 %v8468, %v8467
        %v8556 = vpack.c.b16 %v8470, %v8469
        %v8557 = vpack.c.b16 %v8472, %v8471
        %v8558 = vpack.c.b16 %v8474, %v8473
        %v8559 = vpack.c.b16 %v8476, %v8475
        %v8560 = vpack.c.b16 %v8478, %v8477
        %v8561 = vpack.c.b16 %v8480, %v8479
        %v8562 = vpack.c.b16 %v8482, %v8481
        %v8563 = vpack.c.b16 %v8484, %v8483
        %v8564 = vpack.c.b16 %v8486, %v8485
        %v8565 = vpack.c.b16 %v8488, %v8487
        %v8566 = vpack.c.b16 %v8490, %v8489
        %v8567 = vpack.c.b16 %v8492, %v8491
        %v8568 = vpack.c.b16 %v8494, %v8493
        %v8569 = vpack.c.b16 %v8496, %v8495
        %v8570 = vpack.c.b16 %v8498, %v8497
        %v8571 = vpack.c.b16 %v8500, %v8499
        %v8572 = vpack.c.b16 %v8502, %v8501
        %v8573 = vpack.c.b16 %v8504, %v8503
        %v8574 = vpack.c.b16 %v8506, %v8505
        %v8575 = vpack.c.b16 %v8508, %v8507
        %v8576 = vpack.c.b16 %v8510, %v8509
        %v8577 = vpack.c.b16 %v8512, %v8511
        %v8578 = vpack.c.b16 %v8514, %v8513
        %8643 = vmatprep.subr.bf16.mxu0 0
        %8644 = vmatpush1.bf16.msra.mxu0 %v8522
        %8645 = vmatprep.subr.bf16.mxu0 0
        %8646 = vmatpush1.bf16.msra.mxu0 %v8521
        %8647 = vmatprep.subr.bf16.mxu0 0
        %8648 = vmatpush1.bf16.msra.mxu0 %v8520
        %8649 = vmatprep.subr.bf16.mxu0 0
        %8650 = vmatpush1.bf16.msra.mxu0 %v8519
        %8651 = vmatprep.subr.bf16.mxu0 0
        %8652 = vmatpush1.bf16.msra.mxu0 %v8518
        %8653 = vmatprep.subr.bf16.mxu0 0
        %8654 = vmatpush1.bf16.msra.mxu0 %v8517
        %8655 = vmatprep.subr.bf16.mxu0 0
        %8656 = vmatpush1.bf16.msra.mxu0 %v8516
        %8657 = vmatprep.subr.bf16.mxu0 0
        %8658 = vmatpush1.bf16.msra.mxu0 %v8515
        %8659 = vmatprep.subr.bf16.mxu0 0
        %8660 = vmatpush2.bf16.msra.mxu0 %v8530
        %8661 = vmatprep.subr.bf16.mxu0 0
        %8662 = vmatpush2.bf16.msra.mxu0 %v8529
        %8663 = vmatprep.subr.bf16.mxu0 0
        %8664 = vmatpush2.bf16.msra.mxu0 %v8528
        %8665 = vmatprep.subr.bf16.mxu0 0
        %8666 = vmatpush2.bf16.msra.mxu0 %v8527
        %8667 = vmatprep.subr.bf16.mxu0 0
        %8668 = vmatpush2.bf16.msra.mxu0 %v8526
        %8669 = vmatprep.subr.bf16.mxu0 0
        %8670 = vmatpush2.bf16.msra.mxu0 %v8525
        %8671 = vmatprep.subr.bf16.mxu0 0
        %8672 = vmatpush2.bf16.msra.mxu0 %v8524
        %8673 = vmatprep.subr.bf16.mxu0 0
        %8674 = vmatpush2.bf16.msra.mxu0 %v8523
        %8675 = vmatprep.mubr.bf16.mxu0 %v8132
        %8676 = vmatmul.mubr.bf16.gmra.mxu0 %v8131
        %v8677 = vpop.f32.mrf.mxu0
        %v8678 = vadd.f32 %v7937, %v8677
        %v8679 = vpop.f32.mrf.mxu0
        %v8680 = vpop.f32.mrf.mxu0
        %v8681 = vadd.f32 %v7937, %v8680
        %v8682 = vpop.f32.mrf.mxu0
        %8683 = vmatprep.mubr.bf16.mxu0 %v8140
        %8684 = vmatmul.mubr.bf16.gmra.mxu0 %v8139
        %v8685 = vpop.f32.mrf.mxu0
        %v8686 = vadd.f32 %v7937, %v8685
        %v8687 = vpop.f32.mrf.mxu0
        %v8688 = vpop.f32.mrf.mxu0
        %v8689 = vadd.f32 %v7937, %v8688
        %v8690 = vpop.f32.mrf.mxu0
        %8691 = vmatprep.mubr.bf16.mxu0 %v8148
        %8692 = vmatmul.mubr.bf16.gmra.mxu0 %v8147
        %v8693 = vpop.f32.mrf.mxu0
        %v8694 = vadd.f32 %v7937, %v8693
        %v8695 = vpop.f32.mrf.mxu0
        %v8696 = vpop.f32.mrf.mxu0
        %v8697 = vadd.f32 %v7937, %v8696
        %v8698 = vpop.f32.mrf.mxu0
        %8699 = vmatprep.mubr.bf16.mxu0 %v8156
        %8700 = vmatmul.mubr.bf16.gmra.mxu0 %v8155
        %v8701 = vpop.f32.mrf.mxu0
        %v8702 = vadd.f32 %v7937, %v8701
        %v8703 = vpop.f32.mrf.mxu0
        %v8704 = vpop.f32.mrf.mxu0
        %v8705 = vadd.f32 %v7937, %v8704
        %v8706 = vpop.f32.mrf.mxu0
        %8707 = vmatprep.mubr.bf16.mxu0 %v8164
        %8708 = vmatmul.mubr.bf16.gmra.mxu0 %v8163
        %v8709 = vpop.f32.mrf.mxu0
        %v8710 = vadd.f32 %v7937, %v8709
        %v8711 = vpop.f32.mrf.mxu0
        %v8712 = vpop.f32.mrf.mxu0
        %v8713 = vadd.f32 %v7937, %v8712
        %v8714 = vpop.f32.mrf.mxu0
        %8715 = vmatprep.mubr.bf16.mxu0 %v8172
        %8716 = vmatmul.mubr.bf16.gmra.mxu0 %v8171
        %v8717 = vpop.f32.mrf.mxu0
        %v8718 = vadd.f32 %v7937, %v8717
        %v8719 = vpop.f32.mrf.mxu0
        %v8720 = vpop.f32.mrf.mxu0
        %v8721 = vadd.f32 %v7937, %v8720
        %v8722 = vpop.f32.mrf.mxu0
        %8723 = vmatprep.mubr.bf16.mxu0 %v8180
        %8724 = vmatmul.mubr.bf16.gmra.mxu0 %v8179
        %v8725 = vpop.f32.mrf.mxu0
        %v8726 = vadd.f32 %v7937, %v8725
        %v8727 = vpop.f32.mrf.mxu0
        %v8728 = vpop.f32.mrf.mxu0
        %v8729 = vadd.f32 %v7937, %v8728
        %v8730 = vpop.f32.mrf.mxu0
        %8731 = vmatprep.mubr.bf16.mxu0 %v8188
        %8732 = vmatmul.mubr.bf16.gmra.mxu0 %v8187
        %v8733 = vpop.f32.mrf.mxu0
        %v8734 = vadd.f32 %v7937, %v8733
        %v8735 = vpop.f32.mrf.mxu0
        %v8736 = vpop.f32.mrf.mxu0
        %v8737 = vadd.f32 %v7937, %v8736
        %v8738 = vpop.f32.mrf.mxu0
        %8739 = vdwg.mxu0
        %8740 = vmatprep.subr.bf16.mxu0 0
        %8741 = vmatpush1.bf16.msra.mxu0 %v8538
        %8742 = vmatprep.subr.bf16.mxu0 0
        %8743 = vmatpush1.bf16.msra.mxu0 %v8537
        %8744 = vmatprep.subr.bf16.mxu0 0
        %8745 = vmatpush1.bf16.msra.mxu0 %v8536
        %8746 = vmatprep.subr.bf16.mxu0 0
        %8747 = vmatpush1.bf16.msra.mxu0 %v8535
        %8748 = vmatprep.subr.bf16.mxu0 0
        %8749 = vmatpush1.bf16.msra.mxu0 %v8534
        %8750 = vmatprep.subr.bf16.mxu0 0
        %8751 = vmatpush1.bf16.msra.mxu0 %v8533
        %8752 = vmatprep.subr.bf16.mxu0 0
        %8753 = vmatpush1.bf16.msra.mxu0 %v8532
        %8754 = vmatprep.subr.bf16.mxu0 0
        %8755 = vmatpush1.bf16.msra.mxu0 %v8531
        %8756 = vmatprep.subr.bf16.mxu0 0
        %8757 = vmatpush2.bf16.msra.mxu0 %v8546
        %8758 = vmatprep.subr.bf16.mxu0 0
        %8759 = vmatpush2.bf16.msra.mxu0 %v8545
        %8760 = vmatprep.subr.bf16.mxu0 0
        %8761 = vmatpush2.bf16.msra.mxu0 %v8544
        %8762 = vmatprep.subr.bf16.mxu0 0
        %8763 = vmatpush2.bf16.msra.mxu0 %v8543
        %8764 = vmatprep.subr.bf16.mxu0 0
        %8765 = vmatpush2.bf16.msra.mxu0 %v8542
        %8766 = vmatprep.subr.bf16.mxu0 0
        %8767 = vmatpush2.bf16.msra.mxu0 %v8541
        %8768 = vmatprep.subr.bf16.mxu0 0
        %8769 = vmatpush2.bf16.msra.mxu0 %v8540
        %8770 = vmatprep.subr.bf16.mxu0 0
        %8771 = vmatpush2.bf16.msra.mxu0 %v8539
        %8772 = vmatprep.mubr.bf16.mxu0 %v8134
        %8773 = vmatmul.mubr.bf16.gmra.mxu0 %v8133
        %v8774 = vpop.f32.mrf.mxu0
        %v8775 = vadd.f32 %v8678, %v8774
        %v8776 = vpop.f32.mrf.mxu0
        %v8777 = vpop.f32.mrf.mxu0
        %v8778 = vadd.f32 %v8681, %v8777
        %v8779 = vpop.f32.mrf.mxu0
        %8780 = vmatprep.mubr.bf16.mxu0 %v8142
        %8781 = vmatmul.mubr.bf16.gmra.mxu0 %v8141
        %v8782 = vpop.f32.mrf.mxu0
        %v8783 = vadd.f32 %v8686, %v8782
        %v8784 = vpop.f32.mrf.mxu0
        %v8785 = vpop.f32.mrf.mxu0
        %v8786 = vadd.f32 %v8689, %v8785
        %v8787 = vpop.f32.mrf.mxu0
        %8788 = vmatprep.mubr.bf16.mxu0 %v8150
        %8789 = vmatmul.mubr.bf16.gmra.mxu0 %v8149
        %v8790 = vpop.f32.mrf.mxu0
        %v8791 = vadd.f32 %v8694, %v8790
        %v8792 = vpop.f32.mrf.mxu0
        %v8793 = vpop.f32.mrf.mxu0
        %v8794 = vadd.f32 %v8697, %v8793
        %v8795 = vpop.f32.mrf.mxu0
        %8796 = vmatprep.mubr.bf16.mxu0 %v8158
        %8797 = vmatmul.mubr.bf16.gmra.mxu0 %v8157
        %v8798 = vpop.f32.mrf.mxu0
        %v8799 = vadd.f32 %v8702, %v8798
        %v8800 = vpop.f32.mrf.mxu0
        %v8801 = vpop.f32.mrf.mxu0
        %v8802 = vadd.f32 %v8705, %v8801
        %v8803 = vpop.f32.mrf.mxu0
        %8804 = vmatprep.mubr.bf16.mxu0 %v8166
        %8805 = vmatmul.mubr.bf16.gmra.mxu0 %v8165
        %v8806 = vpop.f32.mrf.mxu0
        %v8807 = vadd.f32 %v8710, %v8806
        %v8808 = vpop.f32.mrf.mxu0
        %v8809 = vpop.f32.mrf.mxu0
        %v8810 = vadd.f32 %v8713, %v8809
        %v8811 = vpop.f32.mrf.mxu0
        %8812 = vmatprep.mubr.bf16.mxu0 %v8174
        %8813 = vmatmul.mubr.bf16.gmra.mxu0 %v8173
        %v8814 = vpop.f32.mrf.mxu0
        %v8815 = vadd.f32 %v8718, %v8814
        %v8816 = vpop.f32.mrf.mxu0
        %v8817 = vpop.f32.mrf.mxu0
        %v8818 = vadd.f32 %v8721, %v8817
        %v8819 = vpop.f32.mrf.mxu0
        %8820 = vmatprep.mubr.bf16.mxu0 %v8182
        %8821 = vmatmul.mubr.bf16.gmra.mxu0 %v8181
        %v8822 = vpop.f32.mrf.mxu0
        %v8823 = vadd.f32 %v8726, %v8822
        %v8824 = vpop.f32.mrf.mxu0
        %v8825 = vpop.f32.mrf.mxu0
        %v8826 = vadd.f32 %v8729, %v8825
        %v8827 = vpop.f32.mrf.mxu0
        %8828 = vmatprep.mubr.bf16.mxu0 %v8190
        %8829 = vmatmul.mubr.bf16.gmra.mxu0 %v8189
        %v8830 = vpop.f32.mrf.mxu0
        %v8831 = vadd.f32 %v8734, %v8830
        %v8832 = vpop.f32.mrf.mxu0
        %v8833 = vpop.f32.mrf.mxu0
        %v8834 = vadd.f32 %v8737, %v8833
        %v8835 = vpop.f32.mrf.mxu0
        %8836 = vdwg.mxu0
        %8837 = vmatprep.subr.bf16.mxu0 0
        %8838 = vmatpush1.bf16.msra.mxu0 %v8554
        %8839 = vmatprep.subr.bf16.mxu0 0
        %8840 = vmatpush1.bf16.msra.mxu0 %v8553
        %8841 = vmatprep.subr.bf16.mxu0 0
        %8842 = vmatpush1.bf16.msra.mxu0 %v8552
        %8843 = vmatprep.subr.bf16.mxu0 0
        %8844 = vmatpush1.bf16.msra.mxu0 %v8551
        %8845 = vmatprep.subr.bf16.mxu0 0
        %8846 = vmatpush1.bf16.msra.mxu0 %v8550
        %8847 = vmatprep.subr.bf16.mxu0 0
        %8848 = vmatpush1.bf16.msra.mxu0 %v8549
        %8849 = vmatprep.subr.bf16.mxu0 0
        %8850 = vmatpush1.bf16.msra.mxu0 %v8548
        %8851 = vmatprep.subr.bf16.mxu0 0
        %8852 = vmatpush1.bf16.msra.mxu0 %v8547
        %8853 = vmatprep.subr.bf16.mxu0 0
        %8854 = vmatpush2.bf16.msra.mxu0 %v8562
        %8855 = vmatprep.subr.bf16.mxu0 0
        %8856 = vmatpush2.bf16.msra.mxu0 %v8561
        %8857 = vmatprep.subr.bf16.mxu0 0
        %8858 = vmatpush2.bf16.msra.mxu0 %v8560
        %8859 = vmatprep.subr.bf16.mxu0 0
        %8860 = vmatpush2.bf16.msra.mxu0 %v8559
        %8861 = vmatprep.subr.bf16.mxu0 0
        %8862 = vmatpush2.bf16.msra.mxu0 %v8558
        %8863 = vmatprep.subr.bf16.mxu0 0
        %8864 = vmatpush2.bf16.msra.mxu0 %v8557
        %8865 = vmatprep.subr.bf16.mxu0 0
        %8866 = vmatpush2.bf16.msra.mxu0 %v8556
        %8867 = vmatprep.subr.bf16.mxu0 0
        %8868 = vmatpush2.bf16.msra.mxu0 %v8555
        %8869 = vmatprep.mubr.bf16.mxu0 %v8136
        %8870 = vmatmul.mubr.bf16.gmra.mxu0 %v8135
        %v8871 = vpop.f32.mrf.mxu0
        %v8872 = vadd.f32 %v8775, %v8871
        %v8873 = vpop.f32.mrf.mxu0
        %v8874 = vpop.f32.mrf.mxu0
        %v8875 = vadd.f32 %v8778, %v8874
        %v8876 = vpop.f32.mrf.mxu0
        %8877 = vmatprep.mubr.bf16.mxu0 %v8144
        %8878 = vmatmul.mubr.bf16.gmra.mxu0 %v8143
        %v8879 = vpop.f32.mrf.mxu0
        %v8880 = vadd.f32 %v8783, %v8879
        %v8881 = vpop.f32.mrf.mxu0
        %v8882 = vpop.f32.mrf.mxu0
        %v8883 = vadd.f32 %v8786, %v8882
        %v8884 = vpop.f32.mrf.mxu0
        %8885 = vmatprep.mubr.bf16.mxu0 %v8152
        %8886 = vmatmul.mubr.bf16.gmra.mxu0 %v8151
        %v8887 = vpop.f32.mrf.mxu0
        %v8888 = vadd.f32 %v8791, %v8887
        %v8889 = vpop.f32.mrf.mxu0
        %v8890 = vpop.f32.mrf.mxu0
        %v8891 = vadd.f32 %v8794, %v8890
        %v8892 = vpop.f32.mrf.mxu0
        %8893 = vmatprep.mubr.bf16.mxu0 %v8160
        %8894 = vmatmul.mubr.bf16.gmra.mxu0 %v8159
        %v8895 = vpop.f32.mrf.mxu0
        %v8896 = vadd.f32 %v8799, %v8895
        %v8897 = vpop.f32.mrf.mxu0
        %v8898 = vpop.f32.mrf.mxu0
        %v8899 = vadd.f32 %v8802, %v8898
        %v8900 = vpop.f32.mrf.mxu0
        %8901 = vmatprep.mubr.bf16.mxu0 %v8168
        %8902 = vmatmul.mubr.bf16.gmra.mxu0 %v8167
        %v8903 = vpop.f32.mrf.mxu0
        %v8904 = vadd.f32 %v8807, %v8903
        %v8905 = vpop.f32.mrf.mxu0
        %v8906 = vpop.f32.mrf.mxu0
        %v8907 = vadd.f32 %v8810, %v8906
        %v8908 = vpop.f32.mrf.mxu0
        %8909 = vmatprep.mubr.bf16.mxu0 %v8176
        %8910 = vmatmul.mubr.bf16.gmra.mxu0 %v8175
        %v8911 = vpop.f32.mrf.mxu0
        %v8912 = vadd.f32 %v8815, %v8911
        %v8913 = vpop.f32.mrf.mxu0
        %v8914 = vpop.f32.mrf.mxu0
        %v8915 = vadd.f32 %v8818, %v8914
        %v8916 = vpop.f32.mrf.mxu0
        %8917 = vmatprep.mubr.bf16.mxu0 %v8184
        %8918 = vmatmul.mubr.bf16.gmra.mxu0 %v8183
        %v8919 = vpop.f32.mrf.mxu0
        %v8920 = vadd.f32 %v8823, %v8919
        %v8921 = vpop.f32.mrf.mxu0
        %v8922 = vpop.f32.mrf.mxu0
        %v8923 = vadd.f32 %v8826, %v8922
        %v8924 = vpop.f32.mrf.mxu0
        %8925 = vmatprep.mubr.bf16.mxu0 %v8192
        %8926 = vmatmul.mubr.bf16.gmra.mxu0 %v8191
        %v8927 = vpop.f32.mrf.mxu0
        %v8928 = vadd.f32 %v8831, %v8927
        %v8929 = vpop.f32.mrf.mxu0
        %v8930 = vpop.f32.mrf.mxu0
        %v8931 = vadd.f32 %v8834, %v8930
        %v8932 = vpop.f32.mrf.mxu0
        %8933 = vdwg.mxu0
        %8934 = vmatprep.subr.bf16.mxu0 0
        %8935 = vmatpush1.bf16.msra.mxu0 %v8570
        %8936 = vmatprep.subr.bf16.mxu0 0
        %8937 = vmatpush1.bf16.msra.mxu0 %v8569
        %8938 = vmatprep.subr.bf16.mxu0 0
        %8939 = vmatpush1.bf16.msra.mxu0 %v8568
        %8940 = vmatprep.subr.bf16.mxu0 0
        %8941 = vmatpush1.bf16.msra.mxu0 %v8567
        %8942 = vmatprep.subr.bf16.mxu0 0
        %8943 = vmatpush1.bf16.msra.mxu0 %v8566
        %8944 = vmatprep.subr.bf16.mxu0 0
        %8945 = vmatpush1.bf16.msra.mxu0 %v8565
        %8946 = vmatprep.subr.bf16.mxu0 0
        %8947 = vmatpush1.bf16.msra.mxu0 %v8564
        %8948 = vmatprep.subr.bf16.mxu0 0
        %8949 = vmatpush1.bf16.msra.mxu0 %v8563
        %8950 = vmatprep.subr.bf16.mxu0 0
        %8951 = vmatpush2.bf16.msra.mxu0 %v8578
        %8952 = vmatprep.subr.bf16.mxu0 0
        %8953 = vmatpush2.bf16.msra.mxu0 %v8577
        %8954 = vmatprep.subr.bf16.mxu0 0
        %8955 = vmatpush2.bf16.msra.mxu0 %v8576
        %8956 = vmatprep.subr.bf16.mxu0 0
        %8957 = vmatpush2.bf16.msra.mxu0 %v8575
        %8958 = vmatprep.subr.bf16.mxu0 0
        %8959 = vmatpush2.bf16.msra.mxu0 %v8574
        %8960 = vmatprep.subr.bf16.mxu0 0
        %8961 = vmatpush2.bf16.msra.mxu0 %v8573
        %8962 = vmatprep.subr.bf16.mxu0 0
        %8963 = vmatpush2.bf16.msra.mxu0 %v8572
        %8964 = vmatprep.subr.bf16.mxu0 0
        %8965 = vmatpush2.bf16.msra.mxu0 %v8571
        %8966 = vmatprep.mubr.bf16.mxu0 %v8138
        %8967 = vmatmul.mubr.bf16.gmra.mxu0 %v8137
        %v8968 = vpop.f32.mrf.mxu0
        %v8969 = vadd.f32 %v8872, %v8968
        %v8970 = vpop.f32.mrf.mxu0
        %v8971 = vpop.f32.mrf.mxu0
        %v8972 = vadd.f32 %v8875, %v8971
        %v8973 = vpop.f32.mrf.mxu0
        %8974 = vmatprep.mubr.bf16.mxu0 %v8146
        %8975 = vmatmul.mubr.bf16.gmra.mxu0 %v8145
        %v8976 = vpop.f32.mrf.mxu0
        %v8977 = vadd.f32 %v8880, %v8976
        %v8978 = vpop.f32.mrf.mxu0
        %v8979 = vpop.f32.mrf.mxu0
        %v8980 = vadd.f32 %v8883, %v8979
        %v8981 = vpop.f32.mrf.mxu0
        %8982 = vmatprep.mubr.bf16.mxu0 %v8154
        %8983 = vmatmul.mubr.bf16.gmra.mxu0 %v8153
        %v8984 = vpop.f32.mrf.mxu0
        %v8985 = vadd.f32 %v8888, %v8984
        %v8986 = vpop.f32.mrf.mxu0
        %v8987 = vpop.f32.mrf.mxu0
        %v8988 = vadd.f32 %v8891, %v8987
        %v8989 = vpop.f32.mrf.mxu0
        %8990 = vmatprep.mubr.bf16.mxu0 %v8162
        %8991 = vmatmul.mubr.bf16.gmra.mxu0 %v8161
        %v8992 = vpop.f32.mrf.mxu0
        %v8993 = vadd.f32 %v8896, %v8992
        %v8994 = vpop.f32.mrf.mxu0
        %v8995 = vpop.f32.mrf.mxu0
        %v8996 = vadd.f32 %v8899, %v8995
        %v8997 = vpop.f32.mrf.mxu0
        %8998 = vmatprep.mubr.bf16.mxu0 %v8170
        %8999 = vmatmul.mubr.bf16.gmra.mxu0 %v8169
        %v9000 = vpop.f32.mrf.mxu0
        %v9001 = vadd.f32 %v8904, %v9000
        %v9002 = vpop.f32.mrf.mxu0
        %v9003 = vpop.f32.mrf.mxu0
        %v9004 = vadd.f32 %v8907, %v9003
        %v9005 = vpop.f32.mrf.mxu0
        %9006 = vmatprep.mubr.bf16.mxu0 %v8178
        %9007 = vmatmul.mubr.bf16.gmra.mxu0 %v8177
        %v9008 = vpop.f32.mrf.mxu0
        %v9009 = vadd.f32 %v8912, %v9008
        %v9010 = vpop.f32.mrf.mxu0
        %v9011 = vpop.f32.mrf.mxu0
        %v9012 = vadd.f32 %v8915, %v9011
        %v9013 = vpop.f32.mrf.mxu0
        %9014 = vmatprep.mubr.bf16.mxu0 %v8186
        %9015 = vmatmul.mubr.bf16.gmra.mxu0 %v8185
        %v9016 = vpop.f32.mrf.mxu0
        %v9017 = vadd.f32 %v8920, %v9016
        %v9018 = vpop.f32.mrf.mxu0
        %v9019 = vpop.f32.mrf.mxu0
        %v9020 = vadd.f32 %v8923, %v9019
        %v9021 = vpop.f32.mrf.mxu0
        %9022 = vmatprep.mubr.bf16.mxu0 %v8194
        %9023 = vmatmul.mubr.bf16.gmra.mxu0 %v8193
        %v9024 = vpop.f32.mrf.mxu0
        %v9025 = vadd.f32 %v8928, %v9024
        %v9026 = vpop.f32.mrf.mxu0
        %v9027 = vpop.f32.mrf.mxu0
        %v9028 = vadd.f32 %v8931, %v9027
        %v9029 = vpop.f32.mrf.mxu0
        %9030 = vdwg.mxu0
        %v9031 = vmax.f32 %v8969, 0.0
        %v9032 = vmax.f32 %v8972, 0.0
        %v9033 = vmax.f32 %v8977, 0.0
        %v9034 = vmax.f32 %v8980, 0.0
        %v9035 = vmax.f32 %v8985, 0.0
        %v9036 = vmax.f32 %v8988, 0.0
        %v9037 = vmax.f32 %v8993, 0.0
        %v9038 = vmax.f32 %v8996, 0.0
        %v9039 = vmax.f32 %v9001, 0.0
        %v9040 = vmax.f32 %v9004, 0.0
        %v9041 = vmax.f32 %v9009, 0.0
        %v9042 = vmax.f32 %v9012, 0.0
        %v9043 = vmax.f32 %v9017, 0.0
        %v9044 = vmax.f32 %v9020, 0.0
        %v9045 = vmax.f32 %v9025, 0.0
        %v9046 = vmax.f32 %v9028, 0.0
        %v9047 = vpack.c.bf16 %v9032, %v9031
        %v9048 = vpack.c.bf16 %v9034, %v9033
        %v9049 = vpack.c.bf16 %v9036, %v9035
        %v9050 = vpack.c.bf16 %v9038, %v9037
        %v9051 = vpack.c.bf16 %v9040, %v9039
        %v9052 = vpack.c.bf16 %v9042, %v9041
        %v9053 = vpack.c.bf16 %v9044, %v9043
        %v9054 = vpack.c.bf16 %v9046, %v9045
        %v9063 = vunpack.c.l.b16 %v9047
        %v9064 = vunpack.c.h.b16 %v9047
        %v9065 = vunpack.c.l.b16 %v9048
        %v9066 = vunpack.c.h.b16 %v9048
        %v9067 = vunpack.c.l.b16 %v9049
        %v9068 = vunpack.c.h.b16 %v9049
        %v9069 = vunpack.c.l.b16 %v9050
        %v9070 = vunpack.c.h.b16 %v9050
        %v9071 = vunpack.c.l.b16 %v9051
        %v9072 = vunpack.c.h.b16 %v9051
        %v9073 = vunpack.c.l.b16 %v9052
        %v9074 = vunpack.c.h.b16 %v9052
        %v9075 = vunpack.c.l.b16 %v9053
        %v9076 = vunpack.c.h.b16 %v9053
        %v9077 = vunpack.c.l.b16 %v9054
        %v9078 = vunpack.c.h.b16 %v9054
        %v9079 = vpack.c.b16 %v9063, %v9063
        %v9080 = vpack.c.b16 %v9064, %v9064
        %v9081 = vpack.c.b16 %v9065, %v9065
        %v9082 = vpack.c.b16 %v9066, %v9066
        %v9083 = vpack.c.b16 %v9067, %v9067
        %v9084 = vpack.c.b16 %v9068, %v9068
        %v9085 = vpack.c.b16 %v9069, %v9069
        %v9086 = vpack.c.b16 %v9070, %v9070
        %v9087 = vpack.c.b16 %v9071, %v9071
        %v9088 = vpack.c.b16 %v9072, %v9072
        %v9089 = vpack.c.b16 %v9073, %v9073
        %v9090 = vpack.c.b16 %v9074, %v9074
        %v9091 = vpack.c.b16 %v9075, %v9075
        %v9092 = vpack.c.b16 %v9076, %v9076
        %v9093 = vpack.c.b16 %v9077, %v9077
        %v9094 = vpack.c.b16 %v9078, %v9078
        %9111 = vst [vmem:[%s329] sm:$0xf] %v9079
        %9112 = vst [vmem:[%s329 + $0x4] sm:$0xf] %v9080
        %9113 = vst [vmem:[%s329 + $0x8] sm:$0xf] %v9081
        %9114 = vst [vmem:[%s329 + $0xc] sm:$0xf] %v9082
        %9115 = vst [vmem:[%s329 + $0x10] sm:$0xf] %v9083
        %9116 = vst [vmem:[%s329 + $0x14] sm:$0xf] %v9084
        %9117 = vst [vmem:[%s329 + $0x18] sm:$0xf] %v9085
        %9118 = vst [vmem:[%s329 + $0x1c] sm:$0xf] %v9086
        %9119 = vst [vmem:[%s329 + $0x20] sm:$0xf] %v9087
        %9120 = vst [vmem:[%s329 + $0x24] sm:$0xf] %v9088
        %9121 = vst [vmem:[%s329 + $0x28] sm:$0xf] %v9089
        %9122 = vst [vmem:[%s329 + $0x2c] sm:$0xf] %v9090
        %9123 = vst [vmem:[%s329 + $0x30] sm:$0xf] %v9091
        %9124 = vst [vmem:[%s329 + $0x34] sm:$0xf] %v9092
        %9125 = vst [vmem:[%s329 + $0x38] sm:$0xf] %v9093
        %9126 = vst [vmem:[%s329 + $0x3c] sm:$0xf] %v9094
      $region56: #{mlp_forward.1} parent=47 // pred_fallthru
        _
      %s9127 = smul.u32 16, %s22
      %p9128 = scmp.lt.s32.totalorder %s9127, 15
      %s9129 = scalar_select %p9128, %s9127, 15
      %s9130 = smul.addr %s9129, 4
      %s9131 = scalar_lea.vmem %s7, %s9130
      // Predicated region
      $region57: #{mlp_forward.1} parent=47 // pred_check
        %p9132 = pneg %p210
      $region58: #{mlp_forward.1} parent=47 // pred_check_branch
        %9134 = sbr.rel (%p9132) target = $region60
      $region59: #{mlp_forward.1} parent=47 // pred_region
        %s9135 = smul.u32 16, %s22
      $region60: #{mlp_forward.1} parent=47 // pred_fallthru
        _
      // Predicated region
      $region61: #{mlp_forward.1} parent=47 // pred_check
        %p9136 = pneg %p210
      $region62: #{mlp_forward.1} parent=47 // pred_check_branch
        %9138 = sbr.rel (%p9136) target = $region64
      $region63: #{mlp_forward.1} parent=47 // pred_region
        %s9139 = smul.u32 16, %s22
        %p9140 = scmp.lt.s32.totalorder %s9139, 15
        %s9141 = scalar_select %p9140, %s9139, 15
        %s9142 = smul.addr %s9141, 4
        %s9143 = scalar_lea.vmem %s7, %s9142
      $region64: #{mlp_forward.1} parent=47 // pred_fallthru
        _
    $region48: #{mlp_forward.1} parent=5 // pred_fallthru
      _
    %p9144 = scmp.le.s32.totalorder 2, %s13
    // Predicated region
    $region65: #{mlp_forward.1} parent=5 // pred_check
      %p9145 = pneg %p9144
    $region66: #{mlp_forward.1} parent=5 // pred_check_branch
      %9147 = sbr.rel (%p9145) target = $region68
    $region67: #{mlp_forward.1} parent=5 // pred_region
      %s9148 = ssub.s32 %s13, 2
    $region68: #{mlp_forward.1} parent=5 // pred_fallthru
      _
  $region6: #{mlp_forward.1} parent=0 // loop_footer
    %s17 = sadd.s32 1, %s13
  $region7: #{mlp_forward.1} parent=0 // loop_footer_branch
    %12 = sbr.rel target = $region3
  $region8: #{mlp_forward.1} parent=0 // loop_exit
    _

</llo_original>
